<compile_context>
chip_gen: v6e
topology: v6e:2x2x1
jax: 0.10.0
libtpu: 0.0.40
codegen_flags: <defaults>
</compile_context>

<pallas_src>
import jax
import jax.numpy as jnp
import numpy as np
from jax.experimental import pallas as pl
from jax.experimental.pallas import tpu as pltpu

EPS = 1e-5            # nn.BatchNorm2d default eps
NEG_SLOPE = 0.003     # leaky_relu negative_slope in the reference
KK = 16               # 4x4 kernel -> 16 taps

_VMEM_SPEC = pl.BlockSpec(memory_space=pltpu.MemorySpace.VMEM)


# ----------------------------- Pallas kernel ------------------------------- #

def _discriminator_kernel(p1_ref, w1_ref, g1_ref, be1_ref,
                          g2m_ref, w2_ref, g2_ref, be2_ref,
                          g3m_ref, w3_ref, g3_ref, be3_ref,
                          w4_ref, b4_ref, o_ref):
    """Entire discriminator forward on one VMEM-resident block.

    p1:  (N, 16, S1)      bf16  layer-1 im2col patches (Cin=1, taps kh-major)
    w1:  (C1, 16)         bf16
    g2m: (S1, 16*S2)      bf16  0/1 gather matrix: layer-2 in-kernel im2col
    w2:  (16, C2, C1)     bf16  per-tap conv2 weights
    g3m: (S2, 16*S3)      bf16  layer-3 gather matrix
    w3:  (16, C3, C2)     bf16
    w4:  (1, C3, S3)      f32   conv4 kernel flattened over its 4x4 window
    g*/be*: (1, C, 1)     f32   BN affine params ; b4: (1, 1, 1) f32
    o:   (N, 1, 1)        f32
    """
    n = p1_ref.shape[0]

    def bn_lrelu(y, gamma, beta):
        # y: (N, C, S) f32.  Training-mode BN (biased var over N*S), two-pass
        # (mean first, then squared deviations) for numerical robustness.
        cnt = y.shape[0] * y.shape[2]
        mean = jnp.sum(jnp.sum(y, axis=2, keepdims=True), axis=0, keepdims=True)
        mean = mean * (1.0 / cnt)                                 # (1, C, 1)
        d = y - mean
        var = jnp.sum(jnp.sum(d * d, axis=2, keepdims=True), axis=0, keepdims=True)
        var = var * (1.0 / cnt)
        scale = gamma * jax.lax.rsqrt(var + EPS)                  # (1, C, 1)
        a = d * scale + beta
        return jnp.where(a >= 0.0, a, NEG_SLOPE * a)              # f32

    def conv_from_gather(a_prev, gmat, w):
        # a_prev: (N, Cin, Sin) bf16 ; gmat: (Sin, 16*Sout) bf16 (0/1, exact)
        # w:      (16, Cout, Cin) bf16 (per kernel tap)
        cin, sin = a_prev.shape[1], a_prev.shape[2]
        cout = w.shape[1]
        sout = gmat.shape[1] // KK
        # One MXU matmul extracts all 16 shifted/strided patch planes exactly
        # (each output element selects exactly one bf16 input value or 0).
        pm = jnp.dot(a_prev.reshape(n * cin, sin), gmat,
                     preferred_element_type=jnp.float32)
        pm = pm.astype(jnp.bfloat16)                              # exact cast
        y = jnp.zeros((n, cout, sout), jnp.float32)
        for t in range(KK):
            p_t = pm[:, t * sout:(t + 1) * sout].reshape(n, cin, sout)
            w_t = jnp.broadcast_to(w[t][None], (n, cout, cin))
            y = y + jnp.einsum('nck,nks->ncs', w_t, p_t,
                               preferred_element_type=jnp.float32)
        return y

    # ---- layer 1: conv1 + bn1 + lrelu ----
    w1b = jnp.broadcast_to(w1_ref[...][None], (n,) + w1_ref.shape)
    y1 = jnp.einsum('nck,nks->ncs', w1b, p1_ref[...],
                    preferred_element_type=jnp.float32)           # (N, C1, S1)
    a1 = bn_lrelu(y1, g1_ref[...], be1_ref[...]).astype(jnp.bfloat16)

    # ---- layer 2: conv2 + bn2 + lrelu (im2col in-kernel) ----
    y2 = conv_from_gather(a1, g2m_ref[...], w2_ref[...])          # (N, C2, S2)
    a2 = bn_lrelu(y2, g2_ref[...], be2_ref[...]).astype(jnp.bfloat16)

    # ---- layer 3: conv3 + bn3 + lrelu (im2col in-kernel) ----
    y3 = conv_from_gather(a2, g3m_ref[...], w3_ref[...])          # (N, C3, S3)
    a3 = bn_lrelu(y3, g3_ref[...], be3_ref[...])                  # stays f32

    # ---- layer 4: conv4 (full 4x4 window) + sigmoid ----
    m = a3 * w4_ref[...]                                          # (N, C3, S3)
    u = jnp.sum(m, axis=1, keepdims=True)                         # (N, 1, S3)
    v = jnp.sum(u, axis=2, keepdims=True)                         # (N, 1, 1)
    o_ref[...] = jax.nn.sigmoid(v + b4_ref[...])


# ------------------------------- JAX glue ---------------------------------- #

def _im2col_nchw(x, k, stride, pad):
    """x: (N, C, H, W) -> patches (N, C*k*k, Ho*Wo); runs once on the input."""
    nb, c, h, w = x.shape
    xp = jnp.pad(x, ((0, 0), (0, 0), (pad, pad), (pad, pad)))
    ho = (h + 2 * pad - k) // stride + 1
    wo = (w + 2 * pad - k) // stride + 1
    cols = []
    for i in range(k):
        for j in range(k):
            cols.append(xp[:, :, i:i + stride * ho:stride, j:j + stride * wo:stride])
    p = jnp.stack(cols, axis=2)                      # (N, C, k*k, Ho, Wo)
    return p.reshape(nb, c * k * k, ho * wo)


def _gather_matrix(h, w, k, stride, pad):
    """0/1 matrix (H*W, k*k*Ho*Wo): column (t, o) selects padded input pixel."""
    ho = (h + 2 * pad - k) // stride + 1
    wo = (w + 2 * pad - k) // stride + 1
    g = np.zeros((h * w, k * k * ho * wo), np.float32)
    for kh in range(k):
        for kw in range(k):
            t = kh * k + kw
            for oh in range(ho):
                ih = stride * oh + kh - pad
                if ih < 0 or ih >= h:
                    continue
                for ow in range(wo):
                    iw = stride * ow + kw - pad
                    if iw < 0 or iw >= w:
                        continue
                    g[ih * w + iw, t * ho * wo + oh * wo + ow] = 1.0
    return jnp.asarray(g, jnp.bfloat16)              # 0/1 exact in bf16


def prepare_params(params, in_hw=32):
    """One-time weight prep (review item 3): reshapes, casts, gather matrices."""
    assert in_hw == 32, "DCGAN discriminator head assumes 32x32 inputs"
    c1 = params["w1"].shape[0]
    c2 = params["w2"].shape[0]
    c3 = params["w3"].shape[0]

    def per_tap(w):  # (Cout, Cin, 4, 4) -> (16, Cout, Cin) bf16 (kh-major taps)
        return (jnp.transpose(w, (2, 3, 0, 1))
                .reshape(KK, w.shape[0], w.shape[1]).astype(jnp.bfloat16))

    return {
        "w1": params["w1"].reshape(c1, KK).astype(jnp.bfloat16),
        "g1": params["g1"].reshape(1, c1, 1).astype(jnp.float32),
        "be1": params["be1"].reshape(1, c1, 1).astype(jnp.float32),
        "w2": per_tap(params["w2"]),
        "g2": params["g2"].reshape(1, c2, 1).astype(jnp.float32),
        "be2": params["be2"].reshape(1, c2, 1).astype(jnp.float32),
        "w3": per_tap(params["w3"]),
        "g3": params["g3"].reshape(1, c3, 1).astype(jnp.float32),
        "be3": params["be3"].reshape(1, c3, 1).astype(jnp.float32),
        "w4": params["w4"].reshape(1, c3, KK).astype(jnp.float32),
        "b4": params["b4"].reshape(1, 1, 1).astype(jnp.float32),
        "g2m": _gather_matrix(16, 16, 4, 2, 1),      # layer-2 input 16x16 -> 8x8
        "g3m": _gather_matrix(8, 8, 4, 2, 1),        # layer-3 input  8x8 -> 4x4
    }


# ---------------------------- Discriminator -------------------------------- #

def init_params(key, d=16):
    """Conv weights (Cout, Cin, 4, 4) DCGAN-style N(0, 0.02); BN gamma=1, beta=0."""
    ks = jax.random.split(key, 4)

    def conv_w(k, cout, cin):
        return 0.02 * jax.random.normal(k, (cout, cin, 4, 4), jnp.float32)

    # b1/b2/b3 kept for parameter fidelity but unused: a per-channel bias
    # followed by training-mode BatchNorm is a mathematical no-op.
    return {
        "w1": conv_w(ks[0], d, 1),         "b1": jnp.zeros((d,), jnp.float32),
        "g1": jnp.ones((d,), jnp.float32), "be1": jnp.zeros((d,), jnp.float32),
        "w2": conv_w(ks[1], 2 * d, d),     "b2": jnp.zeros((2 * d,), jnp.float32),
        "g2": jnp.ones((2 * d,), jnp.float32), "be2": jnp.zeros((2 * d,), jnp.float32),
        "w3": conv_w(ks[2], 4 * d, 2 * d), "b3": jnp.zeros((4 * d,), jnp.float32),
        "g3": jnp.ones((4 * d,), jnp.float32), "be3": jnp.zeros((4 * d,), jnp.float32),
        "w4": conv_w(ks[3], 1, 4 * d),     "b4": jnp.zeros((1,), jnp.float32),
    }


@jax.jit
def discriminator_forward(x, prep):
    # x: (N, 1, 32, 32) NCHW.  Only the layer-1 im2col runs in XLA (it reads
    # the input from HBM once); everything else is inside one Pallas kernel.
    n = x.shape[0]
    p1 = _im2col_nchw(x.astype(jnp.bfloat16), 4, 2, 1)        # (N, 16, 256)
    out = pl.pallas_call(
        _discriminator_kernel,
        out_shape=jax.ShapeDtypeStruct((n, 1, 1), jnp.float32),
        in_specs=[_VMEM_SPEC] * 14,
        out_specs=_VMEM_SPEC,
    )(p1,
      prep["w1"], prep["g1"], prep["be1"],
      prep["g2m"], prep["w2"], prep["g2"], prep["be2"],
      prep["g3m"], prep["w3"], prep["g3"], prep["be3"],
      prep["w4"], prep["b4"])
    return out.reshape(n, 1, 1, 1)


# ------------------------------ reference ---------------------------------- #

def _reference_forward(x, params):
    """Pure-JAX f32 reference (lax.conv) for a correctness sanity check."""
    def conv(y, w, stride, pad):
        return jax.lax.conv_general_dilated(
            y, w, window_strides=(stride, stride),
            padding=[(pad, pad), (pad, pad)],
            dimension_numbers=("NCHW", "OIHW", "NCHW"))

    def bn(y, g, b):
        mean = jnp.mean(y, axis=(0, 2, 3), keepdims=True)
        var = jnp.mean((y - mean) ** 2, axis=(0, 2, 3), keepdims=True)
        return (g.reshape(1, -1, 1, 1) * (y - mean) * jax.lax.rsqrt(var + EPS)
                + b.reshape(1, -1, 1, 1))

    def lrelu(y):
        return jnp.where(y >= 0, y, NEG_SLOPE * y)

    y = lrelu(bn(conv(x, params["w1"], 2, 1), params["g1"], params["be1"]))
    y = lrelu(bn(conv(y, params["w2"], 2, 1), params["g2"], params["be2"]))
    y = lrelu(bn(conv(y, params["w3"], 2, 1), params["g3"], params["be3"]))
    y = conv(y, params["w4"], 1, 0) + params["b4"].reshape(1, 1, 1, 1)
    return jax.nn.sigmoid(y)


if __name__ == "__main__":
    key = jax.random.PRNGKey(0)
    k_param, k_x = jax.random.split(key)
    d = 16                                   # small "d" (reference default 128)
    params = init_params(k_param, d=d)
    prep = prepare_params(params)            # one-time weight / gather prep
    # DCGAN discriminator expects 1x32x32 inputs: 32 -> 16 -> 8 -> 4 -> 1
    x = jax.random.normal(k_x, (2, 1, 32, 32), jnp.float32)

    out = discriminator_forward(x, prep)
    out = jax.block_until_ready(out)

    assert out.shape == (2, 1, 1, 1), out.shape
    assert bool(jnp.all(jnp.isfinite(out))) and bool(jnp.all((out >= 0) & (out <= 1)))

    ref = _reference_forward(x, params)
    max_err = float(jnp.max(jnp.abs(out - ref)))
    assert max_err < 5e-2, f"max abs error vs reference: {max_err}"

    print("KERNEL_OK")
</pallas_src>

<mosaic_0001>
module attributes {stable_mosaic.version = 11 : i64} {
  func.func @_discriminator_kernel(%arg0: memref<2x16x256xbf16, #tpu.memory_space<vmem>>, %arg1: memref<16x16xbf16, #tpu.memory_space<vmem>>, %arg2: memref<1x16x1xf32, #tpu.memory_space<vmem>>, %arg3: memref<1x16x1xf32, #tpu.memory_space<vmem>>, %arg4: memref<256x1024xbf16, #tpu.memory_space<vmem>>, %arg5: memref<16x32x16xbf16, #tpu.memory_space<vmem>>, %arg6: memref<1x32x1xf32, #tpu.memory_space<vmem>>, %arg7: memref<1x32x1xf32, #tpu.memory_space<vmem>>, %arg8: memref<64x256xbf16, #tpu.memory_space<vmem>>, %arg9: memref<16x64x32xbf16, #tpu.memory_space<vmem>>, %arg10: memref<1x64x1xf32, #tpu.memory_space<vmem>>, %arg11: memref<1x64x1xf32, #tpu.memory_space<vmem>>, %arg12: memref<1x64x16xf32, #tpu.memory_space<vmem>>, %arg13: memref<1x1x1xf32, #tpu.memory_space<vmem>>, %arg14: memref<2x1x1xf32, #tpu.memory_space<vmem>>) attributes {dimension_semantics = [], scalar_prefetch = 0 : i64, scratch_operands = 0 : i64, tpu.core_type = #tpu.core_type<tc>} {
    %c0 = arith.constant 0 : index
    %c0_0 = arith.constant 0 : index
    %0 = vector.load %arg1[%c0, %c0_0] : memref<16x16xbf16, #tpu.memory_space<vmem>>, vector<16x16xbf16>
    %1 = vector.shape_cast %0 : vector<16x16xbf16> to vector<1x16x16xbf16>
    %2 = vector.shape_cast %1 : vector<1x16x16xbf16> to vector<1x16x16xbf16>
    %3 = vector.broadcast %2 : vector<1x16x16xbf16> to vector<2x16x16xbf16>
    %c0_1 = arith.constant 0 : index
    %c0_2 = arith.constant 0 : index
    %c0_3 = arith.constant 0 : index
    %4 = vector.load %arg0[%c0_1, %c0_2, %c0_3] : memref<2x16x256xbf16, #tpu.memory_space<vmem>>, vector<2x16x256xbf16>
    "tpu.trace_start"() <{level = 10 : i32, message = "nck,nks->ncs"}> : () -> ()
    %cst = arith.constant dense<0.000000e+00> : vector<2x16x256xf32>
    %5 = tpu.matmul %3, %4, %cst {dimension_numbers = #tpu.dot_dimension_numbers<[2], [1], [1], [2], [0, 0, 0, 1, 1, 2], [0], [0]>} : vector<2x16x16xbf16>, vector<2x16x256xbf16>, vector<2x16x256xf32> -> vector<2x16x256xf32>
    "tpu.trace_stop"() : () -> ()
    %c0_4 = arith.constant 0 : index
    %c0_5 = arith.constant 0 : index
    %c0_6 = arith.constant 0 : index
    %6 = vector.load %arg2[%c0_4, %c0_5, %c0_6] : memref<1x16x1xf32, #tpu.memory_space<vmem>>, vector<1x16x1xf32>
    %c0_7 = arith.constant 0 : index
    %c0_8 = arith.constant 0 : index
    %c0_9 = arith.constant 0 : index
    %7 = vector.load %arg3[%c0_7, %c0_8, %c0_9] : memref<1x16x1xf32, #tpu.memory_space<vmem>>, vector<1x16x1xf32>
    %cst_10 = arith.constant dense<0.000000e+00> : vector<2x16xf32>
    %8 = vector.multi_reduction <add>, %5, %cst_10 [2] : vector<2x16x256xf32> to vector<2x16xf32>
    %9 = vector.shape_cast %8 : vector<2x16xf32> to vector<2x16x1xf32>
    %cst_11 = arith.constant dense<0.000000e+00> : vector<16x1xf32>
    %10 = vector.multi_reduction <add>, %9, %cst_11 [0] : vector<2x16x1xf32> to vector<16x1xf32>
    %11 = vector.shape_cast %10 : vector<16x1xf32> to vector<1x16x1xf32>
    %cst_12 = arith.constant 0.001953125 : f32
    %12 = vector.broadcast %cst_12 : f32 to vector<1x16x1xf32>
    %13 = arith.mulf %11, %12 : vector<1x16x1xf32>
    %14 = vector.broadcast %13 : vector<1x16x1xf32> to vector<2x16x256xf32>
    %15 = arith.subf %5, %14 : vector<2x16x256xf32>
    %16 = arith.mulf %15, %15 : vector<2x16x256xf32>
    %cst_13 = arith.constant dense<0.000000e+00> : vector<2x16xf32>
    %17 = vector.multi_reduction <add>, %16, %cst_13 [2] : vector<2x16x256xf32> to vector<2x16xf32>
    %18 = vector.shape_cast %17 : vector<2x16xf32> to vector<2x16x1xf32>
    %cst_14 = arith.constant dense<0.000000e+00> : vector<16x1xf32>
    %19 = vector.multi_reduction <add>, %18, %cst_14 [0] : vector<2x16x1xf32> to vector<16x1xf32>
    %20 = vector.shape_cast %19 : vector<16x1xf32> to vector<1x16x1xf32>
    %cst_15 = arith.constant 0.001953125 : f32
    %21 = vector.broadcast %cst_15 : f32 to vector<1x16x1xf32>
    %22 = arith.mulf %20, %21 : vector<1x16x1xf32>
    %cst_16 = arith.constant 9.99999974E-6 : f32
    %23 = vector.broadcast %cst_16 : f32 to vector<1x16x1xf32>
    %24 = arith.addf %22, %23 : vector<1x16x1xf32>
    %25 = math.rsqrt %24 : vector<1x16x1xf32>
    %26 = arith.mulf %6, %25 : vector<1x16x1xf32>
    %27 = vector.broadcast %26 : vector<1x16x1xf32> to vector<2x16x256xf32>
    %28 = arith.mulf %15, %27 : vector<2x16x256xf32>
    %29 = vector.broadcast %7 : vector<1x16x1xf32> to vector<2x16x256xf32>
    %30 = arith.addf %28, %29 : vector<2x16x256xf32>
    %cst_17 = arith.constant 0.000000e+00 : f32
    %31 = vector.broadcast %cst_17 : f32 to vector<2x16x256xf32>
    %32 = arith.cmpf oge, %30, %31 : vector<2x16x256xf32>
    %cst_18 = arith.constant 3.000000e-03 : f32
    %33 = vector.broadcast %cst_18 : f32 to vector<2x16x256xf32>
    %34 = arith.mulf %33, %30 : vector<2x16x256xf32>
    %35 = arith.select %32, %30, %34 : vector<2x16x256xi1>, vector<2x16x256xf32>
    %36 = arith.truncf %35 : vector<2x16x256xf32> to vector<2x16x256xbf16>
    %c0_19 = arith.constant 0 : index
    %c0_20 = arith.constant 0 : index
    %37 = vector.load %arg4[%c0_19, %c0_20] : memref<256x1024xbf16, #tpu.memory_space<vmem>>, vector<256x1024xbf16>
    %c0_21 = arith.constant 0 : index
    %c0_22 = arith.constant 0 : index
    %c0_23 = arith.constant 0 : index
    %38 = vector.load %arg5[%c0_21, %c0_22, %c0_23] : memref<16x32x16xbf16, #tpu.memory_space<vmem>>, vector<16x32x16xbf16>
    %39 = vector.shape_cast %36 : vector<2x16x256xbf16> to vector<32x256xbf16>
    %cst_24 = arith.constant dense<0.000000e+00> : vector<32x1024xf32>
    %40 = tpu.matmul %39, %37, %cst_24 {dimension_numbers = #tpu.dot_dimension_numbers<[1], [0], [0], [1], [0, 0, 1, 1], [], []>} : vector<32x256xbf16>, vector<256x1024xbf16>, vector<32x1024xf32> -> vector<32x1024xf32>
    %41 = arith.truncf %40 : vector<32x1024xf32> to vector<32x1024xbf16>
    %cst_25 = arith.constant 0.000000e+00 : f32
    %42 = vector.broadcast %cst_25 : f32 to vector<2x32x64xf32>
    %43 = vector.extract_strided_slice %41 {offsets = [0, 0], sizes = [32, 64], strides = [1, 1]} : vector<32x1024xbf16> to vector<32x64xbf16>
    %44 = vector.shape_cast %43 : vector<32x64xbf16> to vector<2x16x64xbf16>
    %45 = vector.extract_strided_slice %38 {offsets = [0, 0, 0], sizes = [1, 32, 16], strides = [1, 1, 1]} : vector<16x32x16xbf16> to vector<1x32x16xbf16>
    %46 = vector.shape_cast %45 : vector<1x32x16xbf16> to vector<32x16xbf16>
    %47 = vector.shape_cast %46 : vector<32x16xbf16> to vector<1x32x16xbf16>
    %48 = vector.shape_cast %47 : vector<1x32x16xbf16> to vector<1x32x16xbf16>
    %49 = vector.broadcast %48 : vector<1x32x16xbf16> to vector<2x32x16xbf16>
    "tpu.trace_start"() <{level = 10 : i32, message = "nck,nks->ncs"}> : () -> ()
    %cst_26 = arith.constant dense<0.000000e+00> : vector<2x32x64xf32>
    %50 = tpu.matmul %49, %44, %cst_26 {dimension_numbers = #tpu.dot_dimension_numbers<[2], [1], [1], [2], [0, 0, 0, 1, 1, 2], [0], [0]>} : vector<2x32x16xbf16>, vector<2x16x64xbf16>, vector<2x32x64xf32> -> vector<2x32x64xf32>
    "tpu.trace_stop"() : () -> ()
    %51 = arith.addf %42, %50 : vector<2x32x64xf32>
    %52 = vector.extract_strided_slice %41 {offsets = [0, 64], sizes = [32, 64], strides = [1, 1]} : vector<32x1024xbf16> to vector<32x64xbf16>
    %53 = vector.shape_cast %52 : vector<32x64xbf16> to vector<2x16x64xbf16>
    %54 = vector.extract_strided_slice %38 {offsets = [1, 0, 0], sizes = [1, 32, 16], strides = [1, 1, 1]} : vector<16x32x16xbf16> to vector<1x32x16xbf16>
    %55 = vector.shape_cast %54 : vector<1x32x16xbf16> to vector<32x16xbf16>
    %56 = vector.shape_cast %55 : vector<32x16xbf16> to vector<1x32x16xbf16>
    %57 = vector.shape_cast %56 : vector<1x32x16xbf16> to vector<1x32x16xbf16>
    %58 = vector.broadcast %57 : vector<1x32x16xbf16> to vector<2x32x16xbf16>
    "tpu.trace_start"() <{level = 10 : i32, message = "nck,nks->ncs"}> : () -> ()
    %cst_27 = arith.constant dense<0.000000e+00> : vector<2x32x64xf32>
    %59 = tpu.matmul %58, %53, %cst_27 {dimension_numbers = #tpu.dot_dimension_numbers<[2], [1], [1], [2], [0, 0, 0, 1, 1, 2], [0], [0]>} : vector<2x32x16xbf16>, vector<2x16x64xbf16>, vector<2x32x64xf32> -> vector<2x32x64xf32>
    "tpu.trace_stop"() : () -> ()
    %60 = arith.addf %51, %59 : vector<2x32x64xf32>
    %61 = vector.extract_strided_slice %41 {offsets = [0, 128], sizes = [32, 64], strides = [1, 1]} : vector<32x1024xbf16> to vector<32x64xbf16>
    %62 = vector.shape_cast %61 : vector<32x64xbf16> to vector<2x16x64xbf16>
    %63 = vector.extract_strided_slice %38 {offsets = [2, 0, 0], sizes = [1, 32, 16], strides = [1, 1, 1]} : vector<16x32x16xbf16> to vector<1x32x16xbf16>
    %64 = vector.shape_cast %63 : vector<1x32x16xbf16> to vector<32x16xbf16>
    %65 = vector.shape_cast %64 : vector<32x16xbf16> to vector<1x32x16xbf16>
    %66 = vector.shape_cast %65 : vector<1x32x16xbf16> to vector<1x32x16xbf16>
    %67 = vector.broadcast %66 : vector<1x32x16xbf16> to vector<2x32x16xbf16>
    "tpu.trace_start"() <{level = 10 : i32, message = "nck,nks->ncs"}> : () -> ()
    %cst_28 = arith.constant dense<0.000000e+00> : vector<2x32x64xf32>
    %68 = tpu.matmul %67, %62, %cst_28 {dimension_numbers = #tpu.dot_dimension_numbers<[2], [1], [1], [2], [0, 0, 0, 1, 1, 2], [0], [0]>} : vector<2x32x16xbf16>, vector<2x16x64xbf16>, vector<2x32x64xf32> -> vector<2x32x64xf32>
    "tpu.trace_stop"() : () -> ()
    %69 = arith.addf %60, %68 : vector<2x32x64xf32>
    %70 = vector.extract_strided_slice %41 {offsets = [0, 192], sizes = [32, 64], strides = [1, 1]} : vector<32x1024xbf16> to vector<32x64xbf16>
    %71 = vector.shape_cast %70 : vector<32x64xbf16> to vector<2x16x64xbf16>
    %72 = vector.extract_strided_slice %38 {offsets = [3, 0, 0], sizes = [1, 32, 16], strides = [1, 1, 1]} : vector<16x32x16xbf16> to vector<1x32x16xbf16>
    %73 = vector.shape_cast %72 : vector<1x32x16xbf16> to vector<32x16xbf16>
    %74 = vector.shape_cast %73 : vector<32x16xbf16> to vector<1x32x16xbf16>
    %75 = vector.shape_cast %74 : vector<1x32x16xbf16> to vector<1x32x16xbf16>
    %76 = vector.broadcast %75 : vector<1x32x16xbf16> to vector<2x32x16xbf16>
    "tpu.trace_start"() <{level = 10 : i32, message = "nck,nks->ncs"}> : () -> ()
    %cst_29 = arith.constant dense<0.000000e+00> : vector<2x32x64xf32>
    %77 = tpu.matmul %76, %71, %cst_29 {dimension_numbers = #tpu.dot_dimension_numbers<[2], [1], [1], [2], [0, 0, 0, 1, 1, 2], [0], [0]>} : vector<2x32x16xbf16>, vector<2x16x64xbf16>, vector<2x32x64xf32> -> vector<2x32x64xf32>
    "tpu.trace_stop"() : () -> ()
    %78 = arith.addf %69, %77 : vector<2x32x64xf32>
    %79 = vector.extract_strided_slice %41 {offsets = [0, 256], sizes = [32, 64], strides = [1, 1]} : vector<32x1024xbf16> to vector<32x64xbf16>
    %80 = vector.shape_cast %79 : vector<32x64xbf16> to vector<2x16x64xbf16>
    %81 = vector.extract_strided_slice %38 {offsets = [4, 0, 0], sizes = [1, 32, 16], strides = [1, 1, 1]} : vector<16x32x16xbf16> to vector<1x32x16xbf16>
    %82 = vector.shape_cast %81 : vector<1x32x16xbf16> to vector<32x16xbf16>
    %83 = vector.shape_cast %82 : vector<32x16xbf16> to vector<1x32x16xbf16>
    %84 = vector.shape_cast %83 : vector<1x32x16xbf16> to vector<1x32x16xbf16>
    %85 = vector.broadcast %84 : vector<1x32x16xbf16> to vector<2x32x16xbf16>
    "tpu.trace_start"() <{level = 10 : i32, message = "nck,nks->ncs"}> : () -> ()
    %cst_30 = arith.constant dense<0.000000e+00> : vector<2x32x64xf32>
    %86 = tpu.matmul %85, %80, %cst_30 {dimension_numbers = #tpu.dot_dimension_numbers<[2], [1], [1], [2], [0, 0, 0, 1, 1, 2], [0], [0]>} : vector<2x32x16xbf16>, vector<2x16x64xbf16>, vector<2x32x64xf32> -> vector<2x32x64xf32>
    "tpu.trace_stop"() : () -> ()
    %87 = arith.addf %78, %86 : vector<2x32x64xf32>
    %88 = vector.extract_strided_slice %41 {offsets = [0, 320], sizes = [32, 64], strides = [1, 1]} : vector<32x1024xbf16> to vector<32x64xbf16>
    %89 = vector.shape_cast %88 : vector<32x64xbf16> to vector<2x16x64xbf16>
    %90 = vector.extract_strided_slice %38 {offsets = [5, 0, 0], sizes = [1, 32, 16], strides = [1, 1, 1]} : vector<16x32x16xbf16> to vector<1x32x16xbf16>
    %91 = vector.shape_cast %90 : vector<1x32x16xbf16> to vector<32x16xbf16>
    %92 = vector.shape_cast %91 : vector<32x16xbf16> to vector<1x32x16xbf16>
    %93 = vector.shape_cast %92 : vector<1x32x16xbf16> to vector<1x32x16xbf16>
    %94 = vector.broadcast %93 : vector<1x32x16xbf16> to vector<2x32x16xbf16>
    "tpu.trace_start"() <{level = 10 : i32, message = "nck,nks->ncs"}> : () -> ()
    %cst_31 = arith.constant dense<0.000000e+00> : vector<2x32x64xf32>
    %95 = tpu.matmul %94, %89, %cst_31 {dimension_numbers = #tpu.dot_dimension_numbers<[2], [1], [1], [2], [0, 0, 0, 1, 1, 2], [0], [0]>} : vector<2x32x16xbf16>, vector<2x16x64xbf16>, vector<2x32x64xf32> -> vector<2x32x64xf32>
    "tpu.trace_stop"() : () -> ()
    %96 = arith.addf %87, %95 : vector<2x32x64xf32>
    %97 = vector.extract_strided_slice %41 {offsets = [0, 384], sizes = [32, 64], strides = [1, 1]} : vector<32x1024xbf16> to vector<32x64xbf16>
    %98 = vector.shape_cast %97 : vector<32x64xbf16> to vector<2x16x64xbf16>
    %99 = vector.extract_strided_slice %38 {offsets = [6, 0, 0], sizes = [1, 32, 16], strides = [1, 1, 1]} : vector<16x32x16xbf16> to vector<1x32x16xbf16>
    %100 = vector.shape_cast %99 : vector<1x32x16xbf16> to vector<32x16xbf16>
    %101 = vector.shape_cast %100 : vector<32x16xbf16> to vector<1x32x16xbf16>
    %102 = vector.shape_cast %101 : vector<1x32x16xbf16> to vector<1x32x16xbf16>
    %103 = vector.broadcast %102 : vector<1x32x16xbf16> to vector<2x32x16xbf16>
    "tpu.trace_start"() <{level = 10 : i32, message = "nck,nks->ncs"}> : () -> ()
    %cst_32 = arith.constant dense<0.000000e+00> : vector<2x32x64xf32>
    %104 = tpu.matmul %103, %98, %cst_32 {dimension_numbers = #tpu.dot_dimension_numbers<[2], [1], [1], [2], [0, 0, 0, 1, 1, 2], [0], [0]>} : vector<2x32x16xbf16>, vector<2x16x64xbf16>, vector<2x32x64xf32> -> vector<2x32x64xf32>
    "tpu.trace_stop"() : () -> ()
    %105 = arith.addf %96, %104 : vector<2x32x64xf32>
    %106 = vector.extract_strided_slice %41 {offsets = [0, 448], sizes = [32, 64], strides = [1, 1]} : vector<32x1024xbf16> to vector<32x64xbf16>
    %107 = vector.shape_cast %106 : vector<32x64xbf16> to vector<2x16x64xbf16>
    %108 = vector.extract_strided_slice %38 {offsets = [7, 0, 0], sizes = [1, 32, 16], strides = [1, 1, 1]} : vector<16x32x16xbf16> to vector<1x32x16xbf16>
    %109 = vector.shape_cast %108 : vector<1x32x16xbf16> to vector<32x16xbf16>
    %110 = vector.shape_cast %109 : vector<32x16xbf16> to vector<1x32x16xbf16>
    %111 = vector.shape_cast %110 : vector<1x32x16xbf16> to vector<1x32x16xbf16>
    %112 = vector.broadcast %111 : vector<1x32x16xbf16> to vector<2x32x16xbf16>
    "tpu.trace_start"() <{level = 10 : i32, message = "nck,nks->ncs"}> : () -> ()
    %cst_33 = arith.constant dense<0.000000e+00> : vector<2x32x64xf32>
    %113 = tpu.matmul %112, %107, %cst_33 {dimension_numbers = #tpu.dot_dimension_numbers<[2], [1], [1], [2], [0, 0, 0, 1, 1, 2], [0], [0]>} : vector<2x32x16xbf16>, vector<2x16x64xbf16>, vector<2x32x64xf32> -> vector<2x32x64xf32>
    "tpu.trace_stop"() : () -> ()
    %114 = arith.addf %105, %113 : vector<2x32x64xf32>
    %115 = vector.extract_strided_slice %41 {offsets = [0, 512], sizes = [32, 64], strides = [1, 1]} : vector<32x1024xbf16> to vector<32x64xbf16>
    %116 = vector.shape_cast %115 : vector<32x64xbf16> to vector<2x16x64xbf16>
    %117 = vector.extract_strided_slice %38 {offsets = [8, 0, 0], sizes = [1, 32, 16], strides = [1, 1, 1]} : vector<16x32x16xbf16> to vector<1x32x16xbf16>
    %118 = vector.shape_cast %117 : vector<1x32x16xbf16> to vector<32x16xbf16>
    %119 = vector.shape_cast %118 : vector<32x16xbf16> to vector<1x32x16xbf16>
    %120 = vector.shape_cast %119 : vector<1x32x16xbf16> to vector<1x32x16xbf16>
    %121 = vector.broadcast %120 : vector<1x32x16xbf16> to vector<2x32x16xbf16>
    "tpu.trace_start"() <{level = 10 : i32, message = "nck,nks->ncs"}> : () -> ()
    %cst_34 = arith.constant dense<0.000000e+00> : vector<2x32x64xf32>
    %122 = tpu.matmul %121, %116, %cst_34 {dimension_numbers = #tpu.dot_dimension_numbers<[2], [1], [1], [2], [0, 0, 0, 1, 1, 2], [0], [0]>} : vector<2x32x16xbf16>, vector<2x16x64xbf16>, vector<2x32x64xf32> -> vector<2x32x64xf32>
    "tpu.trace_stop"() : () -> ()
    %123 = arith.addf %114, %122 : vector<2x32x64xf32>
    %124 = vector.extract_strided_slice %41 {offsets = [0, 576], sizes = [32, 64], strides = [1, 1]} : vector<32x1024xbf16> to vector<32x64xbf16>
    %125 = vector.shape_cast %124 : vector<32x64xbf16> to vector<2x16x64xbf16>
    %126 = vector.extract_strided_slice %38 {offsets = [9, 0, 0], sizes = [1, 32, 16], strides = [1, 1, 1]} : vector<16x32x16xbf16> to vector<1x32x16xbf16>
    %127 = vector.shape_cast %126 : vector<1x32x16xbf16> to vector<32x16xbf16>
    %128 = vector.shape_cast %127 : vector<32x16xbf16> to vector<1x32x16xbf16>
    %129 = vector.shape_cast %128 : vector<1x32x16xbf16> to vector<1x32x16xbf16>
    %130 = vector.broadcast %129 : vector<1x32x16xbf16> to vector<2x32x16xbf16>
    "tpu.trace_start"() <{level = 10 : i32, message = "nck,nks->ncs"}> : () -> ()
    %cst_35 = arith.constant dense<0.000000e+00> : vector<2x32x64xf32>
    %131 = tpu.matmul %130, %125, %cst_35 {dimension_numbers = #tpu.dot_dimension_numbers<[2], [1], [1], [2], [0, 0, 0, 1, 1, 2], [0], [0]>} : vector<2x32x16xbf16>, vector<2x16x64xbf16>, vector<2x32x64xf32> -> vector<2x32x64xf32>
    "tpu.trace_stop"() : () -> ()
    %132 = arith.addf %123, %131 : vector<2x32x64xf32>
    %133 = vector.extract_strided_slice %41 {offsets = [0, 640], sizes = [32, 64], strides = [1, 1]} : vector<32x1024xbf16> to vector<32x64xbf16>
    %134 = vector.shape_cast %133 : vector<32x64xbf16> to vector<2x16x64xbf16>
    %135 = vector.extract_strided_slice %38 {offsets = [10, 0, 0], sizes = [1, 32, 16], strides = [1, 1, 1]} : vector<16x32x16xbf16> to vector<1x32x16xbf16>
    %136 = vector.shape_cast %135 : vector<1x32x16xbf16> to vector<32x16xbf16>
    %137 = vector.shape_cast %136 : vector<32x16xbf16> to vector<1x32x16xbf16>
    %138 = vector.shape_cast %137 : vector<1x32x16xbf16> to vector<1x32x16xbf16>
    %139 = vector.broadcast %138 : vector<1x32x16xbf16> to vector<2x32x16xbf16>
    "tpu.trace_start"() <{level = 10 : i32, message = "nck,nks->ncs"}> : () -> ()
    %cst_36 = arith.constant dense<0.000000e+00> : vector<2x32x64xf32>
    %140 = tpu.matmul %139, %134, %cst_36 {dimension_numbers = #tpu.dot_dimension_numbers<[2], [1], [1], [2], [0, 0, 0, 1, 1, 2], [0], [0]>} : vector<2x32x16xbf16>, vector<2x16x64xbf16>, vector<2x32x64xf32> -> vector<2x32x64xf32>
    "tpu.trace_stop"() : () -> ()
    %141 = arith.addf %132, %140 : vector<2x32x64xf32>
    %142 = vector.extract_strided_slice %41 {offsets = [0, 704], sizes = [32, 64], strides = [1, 1]} : vector<32x1024xbf16> to vector<32x64xbf16>
    %143 = vector.shape_cast %142 : vector<32x64xbf16> to vector<2x16x64xbf16>
    %144 = vector.extract_strided_slice %38 {offsets = [11, 0, 0], sizes = [1, 32, 16], strides = [1, 1, 1]} : vector<16x32x16xbf16> to vector<1x32x16xbf16>
    %145 = vector.shape_cast %144 : vector<1x32x16xbf16> to vector<32x16xbf16>
    %146 = vector.shape_cast %145 : vector<32x16xbf16> to vector<1x32x16xbf16>
    %147 = vector.shape_cast %146 : vector<1x32x16xbf16> to vector<1x32x16xbf16>
    %148 = vector.broadcast %147 : vector<1x32x16xbf16> to vector<2x32x16xbf16>
    "tpu.trace_start"() <{level = 10 : i32, message = "nck,nks->ncs"}> : () -> ()
    %cst_37 = arith.constant dense<0.000000e+00> : vector<2x32x64xf32>
    %149 = tpu.matmul %148, %143, %cst_37 {dimension_numbers = #tpu.dot_dimension_numbers<[2], [1], [1], [2], [0, 0, 0, 1, 1, 2], [0], [0]>} : vector<2x32x16xbf16>, vector<2x16x64xbf16>, vector<2x32x64xf32> -> vector<2x32x64xf32>
    "tpu.trace_stop"() : () -> ()
    %150 = arith.addf %141, %149 : vector<2x32x64xf32>
    %151 = vector.extract_strided_slice %41 {offsets = [0, 768], sizes = [32, 64], strides = [1, 1]} : vector<32x1024xbf16> to vector<32x64xbf16>
    %152 = vector.shape_cast %151 : vector<32x64xbf16> to vector<2x16x64xbf16>
    %153 = vector.extract_strided_slice %38 {offsets = [12, 0, 0], sizes = [1, 32, 16], strides = [1, 1, 1]} : vector<16x32x16xbf16> to vector<1x32x16xbf16>
    %154 = vector.shape_cast %153 : vector<1x32x16xbf16> to vector<32x16xbf16>
    %155 = vector.shape_cast %154 : vector<32x16xbf16> to vector<1x32x16xbf16>
    %156 = vector.shape_cast %155 : vector<1x32x16xbf16> to vector<1x32x16xbf16>
    %157 = vector.broadcast %156 : vector<1x32x16xbf16> to vector<2x32x16xbf16>
    "tpu.trace_start"() <{level = 10 : i32, message = "nck,nks->ncs"}> : () -> ()
    %cst_38 = arith.constant dense<0.000000e+00> : vector<2x32x64xf32>
    %158 = tpu.matmul %157, %152, %cst_38 {dimension_numbers = #tpu.dot_dimension_numbers<[2], [1], [1], [2], [0, 0, 0, 1, 1, 2], [0], [0]>} : vector<2x32x16xbf16>, vector<2x16x64xbf16>, vector<2x32x64xf32> -> vector<2x32x64xf32>
    "tpu.trace_stop"() : () -> ()
    %159 = arith.addf %150, %158 : vector<2x32x64xf32>
    %160 = vector.extract_strided_slice %41 {offsets = [0, 832], sizes = [32, 64], strides = [1, 1]} : vector<32x1024xbf16> to vector<32x64xbf16>
    %161 = vector.shape_cast %160 : vector<32x64xbf16> to vector<2x16x64xbf16>
    %162 = vector.extract_strided_slice %38 {offsets = [13, 0, 0], sizes = [1, 32, 16], strides = [1, 1, 1]} : vector<16x32x16xbf16> to vector<1x32x16xbf16>
    %163 = vector.shape_cast %162 : vector<1x32x16xbf16> to vector<32x16xbf16>
    %164 = vector.shape_cast %163 : vector<32x16xbf16> to vector<1x32x16xbf16>
    %165 = vector.shape_cast %164 : vector<1x32x16xbf16> to vector<1x32x16xbf16>
    %166 = vector.broadcast %165 : vector<1x32x16xbf16> to vector<2x32x16xbf16>
    "tpu.trace_start"() <{level = 10 : i32, message = "nck,nks->ncs"}> : () -> ()
    %cst_39 = arith.constant dense<0.000000e+00> : vector<2x32x64xf32>
    %167 = tpu.matmul %166, %161, %cst_39 {dimension_numbers = #tpu.dot_dimension_numbers<[2], [1], [1], [2], [0, 0, 0, 1, 1, 2], [0], [0]>} : vector<2x32x16xbf16>, vector<2x16x64xbf16>, vector<2x32x64xf32> -> vector<2x32x64xf32>
    "tpu.trace_stop"() : () -> ()
    %168 = arith.addf %159, %167 : vector<2x32x64xf32>
    %169 = vector.extract_strided_slice %41 {offsets = [0, 896], sizes = [32, 64], strides = [1, 1]} : vector<32x1024xbf16> to vector<32x64xbf16>
    %170 = vector.shape_cast %169 : vector<32x64xbf16> to vector<2x16x64xbf16>
    %171 = vector.extract_strided_slice %38 {offsets = [14, 0, 0], sizes = [1, 32, 16], strides = [1, 1, 1]} : vector<16x32x16xbf16> to vector<1x32x16xbf16>
    %172 = vector.shape_cast %171 : vector<1x32x16xbf16> to vector<32x16xbf16>
    %173 = vector.shape_cast %172 : vector<32x16xbf16> to vector<1x32x16xbf16>
    %174 = vector.shape_cast %173 : vector<1x32x16xbf16> to vector<1x32x16xbf16>
    %175 = vector.broadcast %174 : vector<1x32x16xbf16> to vector<2x32x16xbf16>
    "tpu.trace_start"() <{level = 10 : i32, message = "nck,nks->ncs"}> : () -> ()
    %cst_40 = arith.constant dense<0.000000e+00> : vector<2x32x64xf32>
    %176 = tpu.matmul %175, %170, %cst_40 {dimension_numbers = #tpu.dot_dimension_numbers<[2], [1], [1], [2], [0, 0, 0, 1, 1, 2], [0], [0]>} : vector<2x32x16xbf16>, vector<2x16x64xbf16>, vector<2x32x64xf32> -> vector<2x32x64xf32>
    "tpu.trace_stop"() : () -> ()
    %177 = arith.addf %168, %176 : vector<2x32x64xf32>
    %178 = vector.extract_strided_slice %41 {offsets = [0, 960], sizes = [32, 64], strides = [1, 1]} : vector<32x1024xbf16> to vector<32x64xbf16>
    %179 = vector.shape_cast %178 : vector<32x64xbf16> to vector<2x16x64xbf16>
    %180 = vector.extract_strided_slice %38 {offsets = [15, 0, 0], sizes = [1, 32, 16], strides = [1, 1, 1]} : vector<16x32x16xbf16> to vector<1x32x16xbf16>
    %181 = vector.shape_cast %180 : vector<1x32x16xbf16> to vector<32x16xbf16>
    %182 = vector.shape_cast %181 : vector<32x16xbf16> to vector<1x32x16xbf16>
    %183 = vector.shape_cast %182 : vector<1x32x16xbf16> to vector<1x32x16xbf16>
    %184 = vector.broadcast %183 : vector<1x32x16xbf16> to vector<2x32x16xbf16>
    "tpu.trace_start"() <{level = 10 : i32, message = "nck,nks->ncs"}> : () -> ()
    %cst_41 = arith.constant dense<0.000000e+00> : vector<2x32x64xf32>
    %185 = tpu.matmul %184, %179, %cst_41 {dimension_numbers = #tpu.dot_dimension_numbers<[2], [1], [1], [2], [0, 0, 0, 1, 1, 2], [0], [0]>} : vector<2x32x16xbf16>, vector<2x16x64xbf16>, vector<2x32x64xf32> -> vector<2x32x64xf32>
    "tpu.trace_stop"() : () -> ()
    %186 = arith.addf %177, %185 : vector<2x32x64xf32>
    %c0_42 = arith.constant 0 : index
    %c0_43 = arith.constant 0 : index
    %c0_44 = arith.constant 0 : index
    %187 = vector.load %arg6[%c0_42, %c0_43, %c0_44] : memref<1x32x1xf32, #tpu.memory_space<vmem>>, vector<1x32x1xf32>
    %c0_45 = arith.constant 0 : index
    %c0_46 = arith.constant 0 : index
    %c0_47 = arith.constant 0 : index
    %188 = vector.load %arg7[%c0_45, %c0_46, %c0_47] : memref<1x32x1xf32, #tpu.memory_space<vmem>>, vector<1x32x1xf32>
    %cst_48 = arith.constant dense<0.000000e+00> : vector<2x32xf32>
    %189 = vector.multi_reduction <add>, %186, %cst_48 [2] : vector<2x32x64xf32> to vector<2x32xf32>
    %190 = vector.shape_cast %189 : vector<2x32xf32> to vector<2x32x1xf32>
    %cst_49 = arith.constant dense<0.000000e+00> : vector<32x1xf32>
    %191 = vector.multi_reduction <add>, %190, %cst_49 [0] : vector<2x32x1xf32> to vector<32x1xf32>
    %192 = vector.shape_cast %191 : vector<32x1xf32> to vector<1x32x1xf32>
    %cst_50 = arith.constant 7.812500e-03 : f32
    %193 = vector.broadcast %cst_50 : f32 to vector<1x32x1xf32>
    %194 = arith.mulf %192, %193 : vector<1x32x1xf32>
    %195 = vector.broadcast %194 : vector<1x32x1xf32> to vector<2x32x64xf32>
    %196 = arith.subf %186, %195 : vector<2x32x64xf32>
    %197 = arith.mulf %196, %196 : vector<2x32x64xf32>
    %cst_51 = arith.constant dense<0.000000e+00> : vector<2x32xf32>
    %198 = vector.multi_reduction <add>, %197, %cst_51 [2] : vector<2x32x64xf32> to vector<2x32xf32>
    %199 = vector.shape_cast %198 : vector<2x32xf32> to vector<2x32x1xf32>
    %cst_52 = arith.constant dense<0.000000e+00> : vector<32x1xf32>
    %200 = vector.multi_reduction <add>, %199, %cst_52 [0] : vector<2x32x1xf32> to vector<32x1xf32>
    %201 = vector.shape_cast %200 : vector<32x1xf32> to vector<1x32x1xf32>
    %cst_53 = arith.constant 7.812500e-03 : f32
    %202 = vector.broadcast %cst_53 : f32 to vector<1x32x1xf32>
    %203 = arith.mulf %201, %202 : vector<1x32x1xf32>
    %cst_54 = arith.constant 9.99999974E-6 : f32
    %204 = vector.broadcast %cst_54 : f32 to vector<1x32x1xf32>
    %205 = arith.addf %203, %204 : vector<1x32x1xf32>
    %206 = math.rsqrt %205 : vector<1x32x1xf32>
    %207 = arith.mulf %187, %206 : vector<1x32x1xf32>
    %208 = vector.broadcast %207 : vector<1x32x1xf32> to vector<2x32x64xf32>
    %209 = arith.mulf %196, %208 : vector<2x32x64xf32>
    %210 = vector.broadcast %188 : vector<1x32x1xf32> to vector<2x32x64xf32>
    %211 = arith.addf %209, %210 : vector<2x32x64xf32>
    %cst_55 = arith.constant 0.000000e+00 : f32
    %212 = vector.broadcast %cst_55 : f32 to vector<2x32x64xf32>
    %213 = arith.cmpf oge, %211, %212 : vector<2x32x64xf32>
    %cst_56 = arith.constant 3.000000e-03 : f32
    %214 = vector.broadcast %cst_56 : f32 to vector<2x32x64xf32>
    %215 = arith.mulf %214, %211 : vector<2x32x64xf32>
    %216 = arith.select %213, %211, %215 : vector<2x32x64xi1>, vector<2x32x64xf32>
    %217 = arith.truncf %216 : vector<2x32x64xf32> to vector<2x32x64xbf16>
    %c0_57 = arith.constant 0 : index
    %c0_58 = arith.constant 0 : index
    %218 = vector.load %arg8[%c0_57, %c0_58] : memref<64x256xbf16, #tpu.memory_space<vmem>>, vector<64x256xbf16>
    %c0_59 = arith.constant 0 : index
    %c0_60 = arith.constant 0 : index
    %c0_61 = arith.constant 0 : index
    %219 = vector.load %arg9[%c0_59, %c0_60, %c0_61] : memref<16x64x32xbf16, #tpu.memory_space<vmem>>, vector<16x64x32xbf16>
    %220 = vector.shape_cast %217 : vector<2x32x64xbf16> to vector<64x64xbf16>
    %cst_62 = arith.constant dense<0.000000e+00> : vector<64x256xf32>
    %221 = tpu.matmul %220, %218, %cst_62 {dimension_numbers = #tpu.dot_dimension_numbers<[1], [0], [0], [1], [0, 0, 1, 1], [], []>} : vector<64x64xbf16>, vector<64x256xbf16>, vector<64x256xf32> -> vector<64x256xf32>
    %222 = arith.truncf %221 : vector<64x256xf32> to vector<64x256xbf16>
    %cst_63 = arith.constant 0.000000e+00 : f32
    %223 = vector.broadcast %cst_63 : f32 to vector<2x64x16xf32>
    %224 = vector.extract_strided_slice %222 {offsets = [0, 0], sizes = [64, 16], strides = [1, 1]} : vector<64x256xbf16> to vector<64x16xbf16>
    %225 = vector.shape_cast %224 : vector<64x16xbf16> to vector<2x32x16xbf16>
    %226 = vector.extract_strided_slice %219 {offsets = [0, 0, 0], sizes = [1, 64, 32], strides = [1, 1, 1]} : vector<16x64x32xbf16> to vector<1x64x32xbf16>
    %227 = vector.shape_cast %226 : vector<1x64x32xbf16> to vector<64x32xbf16>
    %228 = vector.shape_cast %227 : vector<64x32xbf16> to vector<1x64x32xbf16>
    %229 = vector.shape_cast %228 : vector<1x64x32xbf16> to vector<1x64x32xbf16>
    %230 = vector.broadcast %229 : vector<1x64x32xbf16> to vector<2x64x32xbf16>
    "tpu.trace_start"() <{level = 10 : i32, message = "nck,nks->ncs"}> : () -> ()
    %cst_64 = arith.constant dense<0.000000e+00> : vector<2x64x16xf32>
    %231 = tpu.matmul %230, %225, %cst_64 {dimension_numbers = #tpu.dot_dimension_numbers<[2], [1], [1], [2], [0, 0, 0, 1, 1, 2], [0], [0]>} : vector<2x64x32xbf16>, vector<2x32x16xbf16>, vector<2x64x16xf32> -> vector<2x64x16xf32>
    "tpu.trace_stop"() : () -> ()
    %232 = arith.addf %223, %231 : vector<2x64x16xf32>
    %233 = vector.extract_strided_slice %222 {offsets = [0, 16], sizes = [64, 16], strides = [1, 1]} : vector<64x256xbf16> to vector<64x16xbf16>
    %234 = vector.shape_cast %233 : vector<64x16xbf16> to vector<2x32x16xbf16>
    %235 = vector.extract_strided_slice %219 {offsets = [1, 0, 0], sizes = [1, 64, 32], strides = [1, 1, 1]} : vector<16x64x32xbf16> to vector<1x64x32xbf16>
    %236 = vector.shape_cast %235 : vector<1x64x32xbf16> to vector<64x32xbf16>
    %237 = vector.shape_cast %236 : vector<64x32xbf16> to vector<1x64x32xbf16>
    %238 = vector.shape_cast %237 : vector<1x64x32xbf16> to vector<1x64x32xbf16>
    %239 = vector.broadcast %238 : vector<1x64x32xbf16> to vector<2x64x32xbf16>
    "tpu.trace_start"() <{level = 10 : i32, message = "nck,nks->ncs"}> : () -> ()
    %cst_65 = arith.constant dense<0.000000e+00> : vector<2x64x16xf32>
    %240 = tpu.matmul %239, %234, %cst_65 {dimension_numbers = #tpu.dot_dimension_numbers<[2], [1], [1], [2], [0, 0, 0, 1, 1, 2], [0], [0]>} : vector<2x64x32xbf16>, vector<2x32x16xbf16>, vector<2x64x16xf32> -> vector<2x64x16xf32>
    "tpu.trace_stop"() : () -> ()
    %241 = arith.addf %232, %240 : vector<2x64x16xf32>
    %242 = vector.extract_strided_slice %222 {offsets = [0, 32], sizes = [64, 16], strides = [1, 1]} : vector<64x256xbf16> to vector<64x16xbf16>
    %243 = vector.shape_cast %242 : vector<64x16xbf16> to vector<2x32x16xbf16>
    %244 = vector.extract_strided_slice %219 {offsets = [2, 0, 0], sizes = [1, 64, 32], strides = [1, 1, 1]} : vector<16x64x32xbf16> to vector<1x64x32xbf16>
    %245 = vector.shape_cast %244 : vector<1x64x32xbf16> to vector<64x32xbf16>
    %246 = vector.shape_cast %245 : vector<64x32xbf16> to vector<1x64x32xbf16>
    %247 = vector.shape_cast %246 : vector<1x64x32xbf16> to vector<1x64x32xbf16>
    %248 = vector.broadcast %247 : vector<1x64x32xbf16> to vector<2x64x32xbf16>
    "tpu.trace_start"() <{level = 10 : i32, message = "nck,nks->ncs"}> : () -> ()
    %cst_66 = arith.constant dense<0.000000e+00> : vector<2x64x16xf32>
    %249 = tpu.matmul %248, %243, %cst_66 {dimension_numbers = #tpu.dot_dimension_numbers<[2], [1], [1], [2], [0, 0, 0, 1, 1, 2], [0], [0]>} : vector<2x64x32xbf16>, vector<2x32x16xbf16>, vector<2x64x16xf32> -> vector<2x64x16xf32>
    "tpu.trace_stop"() : () -> ()
    %250 = arith.addf %241, %249 : vector<2x64x16xf32>
    %251 = vector.extract_strided_slice %222 {offsets = [0, 48], sizes = [64, 16], strides = [1, 1]} : vector<64x256xbf16> to vector<64x16xbf16>
    %252 = vector.shape_cast %251 : vector<64x16xbf16> to vector<2x32x16xbf16>
    %253 = vector.extract_strided_slice %219 {offsets = [3, 0, 0], sizes = [1, 64, 32], strides = [1, 1, 1]} : vector<16x64x32xbf16> to vector<1x64x32xbf16>
    %254 = vector.shape_cast %253 : vector<1x64x32xbf16> to vector<64x32xbf16>
    %255 = vector.shape_cast %254 : vector<64x32xbf16> to vector<1x64x32xbf16>
    %256 = vector.shape_cast %255 : vector<1x64x32xbf16> to vector<1x64x32xbf16>
    %257 = vector.broadcast %256 : vector<1x64x32xbf16> to vector<2x64x32xbf16>
    "tpu.trace_start"() <{level = 10 : i32, message = "nck,nks->ncs"}> : () -> ()
    %cst_67 = arith.constant dense<0.000000e+00> : vector<2x64x16xf32>
    %258 = tpu.matmul %257, %252, %cst_67 {dimension_numbers = #tpu.dot_dimension_numbers<[2], [1], [1], [2], [0, 0, 0, 1, 1, 2], [0], [0]>} : vector<2x64x32xbf16>, vector<2x32x16xbf16>, vector<2x64x16xf32> -> vector<2x64x16xf32>
    "tpu.trace_stop"() : () -> ()
    %259 = arith.addf %250, %258 : vector<2x64x16xf32>
    %260 = vector.extract_strided_slice %222 {offsets = [0, 64], sizes = [64, 16], strides = [1, 1]} : vector<64x256xbf16> to vector<64x16xbf16>
    %261 = vector.shape_cast %260 : vector<64x16xbf16> to vector<2x32x16xbf16>
    %262 = vector.extract_strided_slice %219 {offsets = [4, 0, 0], sizes = [1, 64, 32], strides = [1, 1, 1]} : vector<16x64x32xbf16> to vector<1x64x32xbf16>
    %263 = vector.shape_cast %262 : vector<1x64x32xbf16> to vector<64x32xbf16>
    %264 = vector.shape_cast %263 : vector<64x32xbf16> to vector<1x64x32xbf16>
    %265 = vector.shape_cast %264 : vector<1x64x32xbf16> to vector<1x64x32xbf16>
    %266 = vector.broadcast %265 : vector<1x64x32xbf16> to vector<2x64x32xbf16>
    "tpu.trace_start"() <{level = 10 : i32, message = "nck,nks->ncs"}> : () -> ()
    %cst_68 = arith.constant dense<0.000000e+00> : vector<2x64x16xf32>
    %267 = tpu.matmul %266, %261, %cst_68 {dimension_numbers = #tpu.dot_dimension_numbers<[2], [1], [1], [2], [0, 0, 0, 1, 1, 2], [0], [0]>} : vector<2x64x32xbf16>, vector<2x32x16xbf16>, vector<2x64x16xf32> -> vector<2x64x16xf32>
    "tpu.trace_stop"() : () -> ()
    %268 = arith.addf %259, %267 : vector<2x64x16xf32>
    %269 = vector.extract_strided_slice %222 {offsets = [0, 80], sizes = [64, 16], strides = [1, 1]} : vector<64x256xbf16> to vector<64x16xbf16>
    %270 = vector.shape_cast %269 : vector<64x16xbf16> to vector<2x32x16xbf16>
    %271 = vector.extract_strided_slice %219 {offsets = [5, 0, 0], sizes = [1, 64, 32], strides = [1, 1, 1]} : vector<16x64x32xbf16> to vector<1x64x32xbf16>
    %272 = vector.shape_cast %271 : vector<1x64x32xbf16> to vector<64x32xbf16>
    %273 = vector.shape_cast %272 : vector<64x32xbf16> to vector<1x64x32xbf16>
    %274 = vector.shape_cast %273 : vector<1x64x32xbf16> to vector<1x64x32xbf16>
    %275 = vector.broadcast %274 : vector<1x64x32xbf16> to vector<2x64x32xbf16>
    "tpu.trace_start"() <{level = 10 : i32, message = "nck,nks->ncs"}> : () -> ()
    %cst_69 = arith.constant dense<0.000000e+00> : vector<2x64x16xf32>
    %276 = tpu.matmul %275, %270, %cst_69 {dimension_numbers = #tpu.dot_dimension_numbers<[2], [1], [1], [2], [0, 0, 0, 1, 1, 2], [0], [0]>} : vector<2x64x32xbf16>, vector<2x32x16xbf16>, vector<2x64x16xf32> -> vector<2x64x16xf32>
    "tpu.trace_stop"() : () -> ()
    %277 = arith.addf %268, %276 : vector<2x64x16xf32>
    %278 = vector.extract_strided_slice %222 {offsets = [0, 96], sizes = [64, 16], strides = [1, 1]} : vector<64x256xbf16> to vector<64x16xbf16>
    %279 = vector.shape_cast %278 : vector<64x16xbf16> to vector<2x32x16xbf16>
    %280 = vector.extract_strided_slice %219 {offsets = [6, 0, 0], sizes = [1, 64, 32], strides = [1, 1, 1]} : vector<16x64x32xbf16> to vector<1x64x32xbf16>
    %281 = vector.shape_cast %280 : vector<1x64x32xbf16> to vector<64x32xbf16>
    %282 = vector.shape_cast %281 : vector<64x32xbf16> to vector<1x64x32xbf16>
    %283 = vector.shape_cast %282 : vector<1x64x32xbf16> to vector<1x64x32xbf16>
    %284 = vector.broadcast %283 : vector<1x64x32xbf16> to vector<2x64x32xbf16>
    "tpu.trace_start"() <{level = 10 : i32, message = "nck,nks->ncs"}> : () -> ()
    %cst_70 = arith.constant dense<0.000000e+00> : vector<2x64x16xf32>
    %285 = tpu.matmul %284, %279, %cst_70 {dimension_numbers = #tpu.dot_dimension_numbers<[2], [1], [1], [2], [0, 0, 0, 1, 1, 2], [0], [0]>} : vector<2x64x32xbf16>, vector<2x32x16xbf16>, vector<2x64x16xf32> -> vector<2x64x16xf32>
    "tpu.trace_stop"() : () -> ()
    %286 = arith.addf %277, %285 : vector<2x64x16xf32>
    %287 = vector.extract_strided_slice %222 {offsets = [0, 112], sizes = [64, 16], strides = [1, 1]} : vector<64x256xbf16> to vector<64x16xbf16>
    %288 = vector.shape_cast %287 : vector<64x16xbf16> to vector<2x32x16xbf16>
    %289 = vector.extract_strided_slice %219 {offsets = [7, 0, 0], sizes = [1, 64, 32], strides = [1, 1, 1]} : vector<16x64x32xbf16> to vector<1x64x32xbf16>
    %290 = vector.shape_cast %289 : vector<1x64x32xbf16> to vector<64x32xbf16>
    %291 = vector.shape_cast %290 : vector<64x32xbf16> to vector<1x64x32xbf16>
    %292 = vector.shape_cast %291 : vector<1x64x32xbf16> to vector<1x64x32xbf16>
    %293 = vector.broadcast %292 : vector<1x64x32xbf16> to vector<2x64x32xbf16>
    "tpu.trace_start"() <{level = 10 : i32, message = "nck,nks->ncs"}> : () -> ()
    %cst_71 = arith.constant dense<0.000000e+00> : vector<2x64x16xf32>
    %294 = tpu.matmul %293, %288, %cst_71 {dimension_numbers = #tpu.dot_dimension_numbers<[2], [1], [1], [2], [0, 0, 0, 1, 1, 2], [0], [0]>} : vector<2x64x32xbf16>, vector<2x32x16xbf16>, vector<2x64x16xf32> -> vector<2x64x16xf32>
    "tpu.trace_stop"() : () -> ()
    %295 = arith.addf %286, %294 : vector<2x64x16xf32>
    %296 = vector.extract_strided_slice %222 {offsets = [0, 128], sizes = [64, 16], strides = [1, 1]} : vector<64x256xbf16> to vector<64x16xbf16>
    %297 = vector.shape_cast %296 : vector<64x16xbf16> to vector<2x32x16xbf16>
    %298 = vector.extract_strided_slice %219 {offsets = [8, 0, 0], sizes = [1, 64, 32], strides = [1, 1, 1]} : vector<16x64x32xbf16> to vector<1x64x32xbf16>
    %299 = vector.shape_cast %298 : vector<1x64x32xbf16> to vector<64x32xbf16>
    %300 = vector.shape_cast %299 : vector<64x32xbf16> to vector<1x64x32xbf16>
    %301 = vector.shape_cast %300 : vector<1x64x32xbf16> to vector<1x64x32xbf16>
    %302 = vector.broadcast %301 : vector<1x64x32xbf16> to vector<2x64x32xbf16>
    "tpu.trace_start"() <{level = 10 : i32, message = "nck,nks->ncs"}> : () -> ()
    %cst_72 = arith.constant dense<0.000000e+00> : vector<2x64x16xf32>
    %303 = tpu.matmul %302, %297, %cst_72 {dimension_numbers = #tpu.dot_dimension_numbers<[2], [1], [1], [2], [0, 0, 0, 1, 1, 2], [0], [0]>} : vector<2x64x32xbf16>, vector<2x32x16xbf16>, vector<2x64x16xf32> -> vector<2x64x16xf32>
    "tpu.trace_stop"() : () -> ()
    %304 = arith.addf %295, %303 : vector<2x64x16xf32>
    %305 = vector.extract_strided_slice %222 {offsets = [0, 144], sizes = [64, 16], strides = [1, 1]} : vector<64x256xbf16> to vector<64x16xbf16>
    %306 = vector.shape_cast %305 : vector<64x16xbf16> to vector<2x32x16xbf16>
    %307 = vector.extract_strided_slice %219 {offsets = [9, 0, 0], sizes = [1, 64, 32], strides = [1, 1, 1]} : vector<16x64x32xbf16> to vector<1x64x32xbf16>
    %308 = vector.shape_cast %307 : vector<1x64x32xbf16> to vector<64x32xbf16>
    %309 = vector.shape_cast %308 : vector<64x32xbf16> to vector<1x64x32xbf16>
    %310 = vector.shape_cast %309 : vector<1x64x32xbf16> to vector<1x64x32xbf16>
    %311 = vector.broadcast %310 : vector<1x64x32xbf16> to vector<2x64x32xbf16>
    "tpu.trace_start"() <{level = 10 : i32, message = "nck,nks->ncs"}> : () -> ()
    %cst_73 = arith.constant dense<0.000000e+00> : vector<2x64x16xf32>
    %312 = tpu.matmul %311, %306, %cst_73 {dimension_numbers = #tpu.dot_dimension_numbers<[2], [1], [1], [2], [0, 0, 0, 1, 1, 2], [0], [0]>} : vector<2x64x32xbf16>, vector<2x32x16xbf16>, vector<2x64x16xf32> -> vector<2x64x16xf32>
    "tpu.trace_stop"() : () -> ()
    %313 = arith.addf %304, %312 : vector<2x64x16xf32>
    %314 = vector.extract_strided_slice %222 {offsets = [0, 160], sizes = [64, 16], strides = [1, 1]} : vector<64x256xbf16> to vector<64x16xbf16>
    %315 = vector.shape_cast %314 : vector<64x16xbf16> to vector<2x32x16xbf16>
    %316 = vector.extract_strided_slice %219 {offsets = [10, 0, 0], sizes = [1, 64, 32], strides = [1, 1, 1]} : vector<16x64x32xbf16> to vector<1x64x32xbf16>
    %317 = vector.shape_cast %316 : vector<1x64x32xbf16> to vector<64x32xbf16>
    %318 = vector.shape_cast %317 : vector<64x32xbf16> to vector<1x64x32xbf16>
    %319 = vector.shape_cast %318 : vector<1x64x32xbf16> to vector<1x64x32xbf16>
    %320 = vector.broadcast %319 : vector<1x64x32xbf16> to vector<2x64x32xbf16>
    "tpu.trace_start"() <{level = 10 : i32, message = "nck,nks->ncs"}> : () -> ()
    %cst_74 = arith.constant dense<0.000000e+00> : vector<2x64x16xf32>
    %321 = tpu.matmul %320, %315, %cst_74 {dimension_numbers = #tpu.dot_dimension_numbers<[2], [1], [1], [2], [0, 0, 0, 1, 1, 2], [0], [0]>} : vector<2x64x32xbf16>, vector<2x32x16xbf16>, vector<2x64x16xf32> -> vector<2x64x16xf32>
    "tpu.trace_stop"() : () -> ()
    %322 = arith.addf %313, %321 : vector<2x64x16xf32>
    %323 = vector.extract_strided_slice %222 {offsets = [0, 176], sizes = [64, 16], strides = [1, 1]} : vector<64x256xbf16> to vector<64x16xbf16>
    %324 = vector.shape_cast %323 : vector<64x16xbf16> to vector<2x32x16xbf16>
    %325 = vector.extract_strided_slice %219 {offsets = [11, 0, 0], sizes = [1, 64, 32], strides = [1, 1, 1]} : vector<16x64x32xbf16> to vector<1x64x32xbf16>
    %326 = vector.shape_cast %325 : vector<1x64x32xbf16> to vector<64x32xbf16>
    %327 = vector.shape_cast %326 : vector<64x32xbf16> to vector<1x64x32xbf16>
    %328 = vector.shape_cast %327 : vector<1x64x32xbf16> to vector<1x64x32xbf16>
    %329 = vector.broadcast %328 : vector<1x64x32xbf16> to vector<2x64x32xbf16>
    "tpu.trace_start"() <{level = 10 : i32, message = "nck,nks->ncs"}> : () -> ()
    %cst_75 = arith.constant dense<0.000000e+00> : vector<2x64x16xf32>
    %330 = tpu.matmul %329, %324, %cst_75 {dimension_numbers = #tpu.dot_dimension_numbers<[2], [1], [1], [2], [0, 0, 0, 1, 1, 2], [0], [0]>} : vector<2x64x32xbf16>, vector<2x32x16xbf16>, vector<2x64x16xf32> -> vector<2x64x16xf32>
    "tpu.trace_stop"() : () -> ()
    %331 = arith.addf %322, %330 : vector<2x64x16xf32>
    %332 = vector.extract_strided_slice %222 {offsets = [0, 192], sizes = [64, 16], strides = [1, 1]} : vector<64x256xbf16> to vector<64x16xbf16>
    %333 = vector.shape_cast %332 : vector<64x16xbf16> to vector<2x32x16xbf16>
    %334 = vector.extract_strided_slice %219 {offsets = [12, 0, 0], sizes = [1, 64, 32], strides = [1, 1, 1]} : vector<16x64x32xbf16> to vector<1x64x32xbf16>
    %335 = vector.shape_cast %334 : vector<1x64x32xbf16> to vector<64x32xbf16>
    %336 = vector.shape_cast %335 : vector<64x32xbf16> to vector<1x64x32xbf16>
    %337 = vector.shape_cast %336 : vector<1x64x32xbf16> to vector<1x64x32xbf16>
    %338 = vector.broadcast %337 : vector<1x64x32xbf16> to vector<2x64x32xbf16>
    "tpu.trace_start"() <{level = 10 : i32, message = "nck,nks->ncs"}> : () -> ()
    %cst_76 = arith.constant dense<0.000000e+00> : vector<2x64x16xf32>
    %339 = tpu.matmul %338, %333, %cst_76 {dimension_numbers = #tpu.dot_dimension_numbers<[2], [1], [1], [2], [0, 0, 0, 1, 1, 2], [0], [0]>} : vector<2x64x32xbf16>, vector<2x32x16xbf16>, vector<2x64x16xf32> -> vector<2x64x16xf32>
    "tpu.trace_stop"() : () -> ()
    %340 = arith.addf %331, %339 : vector<2x64x16xf32>
    %341 = vector.extract_strided_slice %222 {offsets = [0, 208], sizes = [64, 16], strides = [1, 1]} : vector<64x256xbf16> to vector<64x16xbf16>
    %342 = vector.shape_cast %341 : vector<64x16xbf16> to vector<2x32x16xbf16>
    %343 = vector.extract_strided_slice %219 {offsets = [13, 0, 0], sizes = [1, 64, 32], strides = [1, 1, 1]} : vector<16x64x32xbf16> to vector<1x64x32xbf16>
    %344 = vector.shape_cast %343 : vector<1x64x32xbf16> to vector<64x32xbf16>
    %345 = vector.shape_cast %344 : vector<64x32xbf16> to vector<1x64x32xbf16>
    %346 = vector.shape_cast %345 : vector<1x64x32xbf16> to vector<1x64x32xbf16>
    %347 = vector.broadcast %346 : vector<1x64x32xbf16> to vector<2x64x32xbf16>
    "tpu.trace_start"() <{level = 10 : i32, message = "nck,nks->ncs"}> : () -> ()
    %cst_77 = arith.constant dense<0.000000e+00> : vector<2x64x16xf32>
    %348 = tpu.matmul %347, %342, %cst_77 {dimension_numbers = #tpu.dot_dimension_numbers<[2], [1], [1], [2], [0, 0, 0, 1, 1, 2], [0], [0]>} : vector<2x64x32xbf16>, vector<2x32x16xbf16>, vector<2x64x16xf32> -> vector<2x64x16xf32>
    "tpu.trace_stop"() : () -> ()
    %349 = arith.addf %340, %348 : vector<2x64x16xf32>
    %350 = vector.extract_strided_slice %222 {offsets = [0, 224], sizes = [64, 16], strides = [1, 1]} : vector<64x256xbf16> to vector<64x16xbf16>
    %351 = vector.shape_cast %350 : vector<64x16xbf16> to vector<2x32x16xbf16>
    %352 = vector.extract_strided_slice %219 {offsets = [14, 0, 0], sizes = [1, 64, 32], strides = [1, 1, 1]} : vector<16x64x32xbf16> to vector<1x64x32xbf16>
    %353 = vector.shape_cast %352 : vector<1x64x32xbf16> to vector<64x32xbf16>
    %354 = vector.shape_cast %353 : vector<64x32xbf16> to vector<1x64x32xbf16>
    %355 = vector.shape_cast %354 : vector<1x64x32xbf16> to vector<1x64x32xbf16>
    %356 = vector.broadcast %355 : vector<1x64x32xbf16> to vector<2x64x32xbf16>
    "tpu.trace_start"() <{level = 10 : i32, message = "nck,nks->ncs"}> : () -> ()
    %cst_78 = arith.constant dense<0.000000e+00> : vector<2x64x16xf32>
    %357 = tpu.matmul %356, %351, %cst_78 {dimension_numbers = #tpu.dot_dimension_numbers<[2], [1], [1], [2], [0, 0, 0, 1, 1, 2], [0], [0]>} : vector<2x64x32xbf16>, vector<2x32x16xbf16>, vector<2x64x16xf32> -> vector<2x64x16xf32>
    "tpu.trace_stop"() : () -> ()
    %358 = arith.addf %349, %357 : vector<2x64x16xf32>
    %359 = vector.extract_strided_slice %222 {offsets = [0, 240], sizes = [64, 16], strides = [1, 1]} : vector<64x256xbf16> to vector<64x16xbf16>
    %360 = vector.shape_cast %359 : vector<64x16xbf16> to vector<2x32x16xbf16>
    %361 = vector.extract_strided_slice %219 {offsets = [15, 0, 0], sizes = [1, 64, 32], strides = [1, 1, 1]} : vector<16x64x32xbf16> to vector<1x64x32xbf16>
    %362 = vector.shape_cast %361 : vector<1x64x32xbf16> to vector<64x32xbf16>
    %363 = vector.shape_cast %362 : vector<64x32xbf16> to vector<1x64x32xbf16>
    %364 = vector.shape_cast %363 : vector<1x64x32xbf16> to vector<1x64x32xbf16>
    %365 = vector.broadcast %364 : vector<1x64x32xbf16> to vector<2x64x32xbf16>
    "tpu.trace_start"() <{level = 10 : i32, message = "nck,nks->ncs"}> : () -> ()
    %cst_79 = arith.constant dense<0.000000e+00> : vector<2x64x16xf32>
    %366 = tpu.matmul %365, %360, %cst_79 {dimension_numbers = #tpu.dot_dimension_numbers<[2], [1], [1], [2], [0, 0, 0, 1, 1, 2], [0], [0]>} : vector<2x64x32xbf16>, vector<2x32x16xbf16>, vector<2x64x16xf32> -> vector<2x64x16xf32>
    "tpu.trace_stop"() : () -> ()
    %367 = arith.addf %358, %366 : vector<2x64x16xf32>
    %c0_80 = arith.constant 0 : index
    %c0_81 = arith.constant 0 : index
    %c0_82 = arith.constant 0 : index
    %368 = vector.load %arg10[%c0_80, %c0_81, %c0_82] : memref<1x64x1xf32, #tpu.memory_space<vmem>>, vector<1x64x1xf32>
    %c0_83 = arith.constant 0 : index
    %c0_84 = arith.constant 0 : index
    %c0_85 = arith.constant 0 : index
    %369 = vector.load %arg11[%c0_83, %c0_84, %c0_85] : memref<1x64x1xf32, #tpu.memory_space<vmem>>, vector<1x64x1xf32>
    %cst_86 = arith.constant dense<0.000000e+00> : vector<2x64xf32>
    %370 = vector.multi_reduction <add>, %367, %cst_86 [2] : vector<2x64x16xf32> to vector<2x64xf32>
    %371 = vector.shape_cast %370 : vector<2x64xf32> to vector<2x64x1xf32>
    %cst_87 = arith.constant dense<0.000000e+00> : vector<64x1xf32>
    %372 = vector.multi_reduction <add>, %371, %cst_87 [0] : vector<2x64x1xf32> to vector<64x1xf32>
    %373 = vector.shape_cast %372 : vector<64x1xf32> to vector<1x64x1xf32>
    %cst_88 = arith.constant 3.125000e-02 : f32
    %374 = vector.broadcast %cst_88 : f32 to vector<1x64x1xf32>
    %375 = arith.mulf %373, %374 : vector<1x64x1xf32>
    %376 = vector.broadcast %375 : vector<1x64x1xf32> to vector<2x64x16xf32>
    %377 = arith.subf %367, %376 : vector<2x64x16xf32>
    %378 = arith.mulf %377, %377 : vector<2x64x16xf32>
    %cst_89 = arith.constant dense<0.000000e+00> : vector<2x64xf32>
    %379 = vector.multi_reduction <add>, %378, %cst_89 [2] : vector<2x64x16xf32> to vector<2x64xf32>
    %380 = vector.shape_cast %379 : vector<2x64xf32> to vector<2x64x1xf32>
    %cst_90 = arith.constant dense<0.000000e+00> : vector<64x1xf32>
    %381 = vector.multi_reduction <add>, %380, %cst_90 [0] : vector<2x64x1xf32> to vector<64x1xf32>
    %382 = vector.shape_cast %381 : vector<64x1xf32> to vector<1x64x1xf32>
    %cst_91 = arith.constant 3.125000e-02 : f32
    %383 = vector.broadcast %cst_91 : f32 to vector<1x64x1xf32>
    %384 = arith.mulf %382, %383 : vector<1x64x1xf32>
    %cst_92 = arith.constant 9.99999974E-6 : f32
    %385 = vector.broadcast %cst_92 : f32 to vector<1x64x1xf32>
    %386 = arith.addf %384, %385 : vector<1x64x1xf32>
    %387 = math.rsqrt %386 : vector<1x64x1xf32>
    %388 = arith.mulf %368, %387 : vector<1x64x1xf32>
    %389 = vector.broadcast %388 : vector<1x64x1xf32> to vector<2x64x16xf32>
    %390 = arith.mulf %377, %389 : vector<2x64x16xf32>
    %391 = vector.broadcast %369 : vector<1x64x1xf32> to vector<2x64x16xf32>
    %392 = arith.addf %390, %391 : vector<2x64x16xf32>
    %cst_93 = arith.constant 0.000000e+00 : f32
    %393 = vector.broadcast %cst_93 : f32 to vector<2x64x16xf32>
    %394 = arith.cmpf oge, %392, %393 : vector<2x64x16xf32>
    %cst_94 = arith.constant 3.000000e-03 : f32
    %395 = vector.broadcast %cst_94 : f32 to vector<2x64x16xf32>
    %396 = arith.mulf %395, %392 : vector<2x64x16xf32>
    %397 = arith.select %394, %392, %396 : vector<2x64x16xi1>, vector<2x64x16xf32>
    %c0_95 = arith.constant 0 : index
    %c0_96 = arith.constant 0 : index
    %c0_97 = arith.constant 0 : index
    %398 = vector.load %arg12[%c0_95, %c0_96, %c0_97] : memref<1x64x16xf32, #tpu.memory_space<vmem>>, vector<1x64x16xf32>
    %399 = vector.broadcast %398 : vector<1x64x16xf32> to vector<2x64x16xf32>
    %400 = arith.mulf %397, %399 : vector<2x64x16xf32>
    %cst_98 = arith.constant dense<0.000000e+00> : vector<2x16xf32>
    %401 = vector.multi_reduction <add>, %400, %cst_98 [1] : vector<2x64x16xf32> to vector<2x16xf32>
    %402 = vector.shape_cast %401 : vector<2x16xf32> to vector<2x1x16xf32>
    %cst_99 = arith.constant dense<0.000000e+00> : vector<2x1xf32>
    %403 = vector.multi_reduction <add>, %402, %cst_99 [2] : vector<2x1x16xf32> to vector<2x1xf32>
    %404 = vector.shape_cast %403 : vector<2x1xf32> to vector<2x1x1xf32>
    %c0_100 = arith.constant 0 : index
    %c0_101 = arith.constant 0 : index
    %c0_102 = arith.constant 0 : index
    %405 = vector.load %arg13[%c0_100, %c0_101, %c0_102] : memref<1x1x1xf32, #tpu.memory_space<vmem>>, vector<1x1x1xf32>
    %406 = vector.broadcast %405 : vector<1x1x1xf32> to vector<2x1x1xf32>
    %407 = arith.addf %404, %406 : vector<2x1x1xf32>
    %408 = arith.negf %407 : vector<2x1x1xf32>
    %409 = math.exp %408 : vector<2x1x1xf32>
    %cst_103 = arith.constant 1.000000e+00 : f32
    %410 = vector.broadcast %cst_103 : f32 to vector<2x1x1xf32>
    %411 = arith.addf %410, %409 : vector<2x1x1xf32>
    %412 = arith.divf %410, %411 : vector<2x1x1xf32>
    %c0_104 = arith.constant 0 : index
    %c0_105 = arith.constant 0 : index
    %c0_106 = arith.constant 0 : index
    %413 = vector.load %arg14[%c0_104, %c0_105, %c0_106] : memref<2x1x1xf32, #tpu.memory_space<vmem>>, vector<2x1x1xf32>
    tpu.vector_store %arg14[%c0_104, %c0_105, %c0_106], %412 {strides = array<i32>} : memref<2x1x1xf32, #tpu.memory_space<vmem>>, vector<2x1x1xf32>,
    return
  }
}

</mosaic_0001>

<llo_original>
// kernel: discriminator_forward.1
$region0: #{discriminator_forward.1}
  #allocation0 [shape = 'u32[]', space=smem, size = 0x4, offset = 0x4, fixed_abs, tag = 'smem constant byte address 0x4 - core index']
  #allocation1 [shape = 'u32[144,128]{1,0:T(1,128)}', space=vmem, size = 0x12000, scoped, tag = 'internal scratch']
  #allocation2 [shape = 'f32[1,1,1]{2,1,0:T(1,128)S(1)}', space=vmem, size = 0x200, scoped, tag = 'scoped memory for discriminator_forward.1']
  %s0 = inlined_call_operand.vmem [shape: bf16[2,16,256], index: 0, kind: input, shape index: {}]
  %s1 = inlined_call_operand.vmem [shape: bf16[16,16], index: 1, kind: input, shape index: {}]
  %s2 = inlined_call_operand.vmem [shape: f32[1,16,1], index: 2, kind: input, shape index: {}]
  %s3 = inlined_call_operand.vmem [shape: f32[1,16,1], index: 3, kind: input, shape index: {}]
  %s4 = inlined_call_operand.vmem [shape: bf16[256,1024], index: 4, kind: input, shape index: {}]
  %s5 = inlined_call_operand.vmem [shape: bf16[16,32,16], index: 5, kind: input, shape index: {}]
  %s6 = inlined_call_operand.vmem [shape: f32[1,32,1], index: 6, kind: input, shape index: {}]
  %s7 = inlined_call_operand.vmem [shape: f32[1,32,1], index: 7, kind: input, shape index: {}]
  %s8 = inlined_call_operand.vmem [shape: bf16[64,256], index: 8, kind: input, shape index: {}]
  %s9 = inlined_call_operand.vmem [shape: bf16[16,64,32], index: 9, kind: input, shape index: {}]
  %s10 = inlined_call_operand.vmem [shape: f32[1,64,1], index: 10, kind: input, shape index: {}]
  %s11 = inlined_call_operand.vmem [shape: f32[1,64,1], index: 11, kind: input, shape index: {}]
  %s12 = inlined_call_operand.vmem [shape: f32[1,64,16], index: 12, kind: input, shape index: {}]
  %s13 = inlined_call_operand.<no memory space> [shape: f32[1,1,1], index: 13, kind: input, shape index: {}]
  %s14 = inlined_call_operand.vmem [shape: f32[2,1,1], index: 14, kind: output, shape index: {}]
  %s15 = sld [smem:[#allocation0]]
  $region66: #{discriminator_forward.1} parent=0
    _
  %s17 = ssub.s32 1, %s15
  %s18 = scalar_select 0, %s17, %s15
  %v19 = vstv %s13
  %20 = vst [vmem:[#allocation2] sm:$0x1] %v19
  // Predicated region
  $region2: #{discriminator_forward.1} parent=0 // pred_check
    _
  $region3: #{discriminator_forward.1} parent=0 // pred_check_branch
    %22 = sbr.rel (0) target = $region5
  $region4: #{discriminator_forward.1} parent=0 // pred_region
    _
  $region5: #{discriminator_forward.1} parent=0 // pred_fallthru
    _
  // Predicated region
  $region6: #{discriminator_forward.1} parent=0 // pred_check
    _
  $region7: #{discriminator_forward.1} parent=0 // pred_check_branch
    %24 = sbr.rel (0) target = $region9
  $region8: #{discriminator_forward.1} parent=0 // pred_region
    _
  $region9: #{discriminator_forward.1} parent=0 // pred_fallthru
    _
  // Predicated region
  $region10: #{discriminator_forward.1} parent=0 // pred_check
    _
  $region11: #{discriminator_forward.1} parent=0 // pred_check_branch
    %26 = sbr.rel (0) target = $region13
  $region12: #{discriminator_forward.1} parent=0 // pred_region
    _
  $region13: #{discriminator_forward.1} parent=0 // pred_fallthru
    _
  // Predicated region
  $region14: #{discriminator_forward.1} parent=0 // pred_check
    _
  $region15: #{discriminator_forward.1} parent=0 // pred_check_branch
    %28 = sbr.rel (0) target = $region17
  $region16: #{discriminator_forward.1} parent=0 // pred_region
    _
  $region17: #{discriminator_forward.1} parent=0 // pred_fallthru
    _
  // Predicated region
  $region18: #{discriminator_forward.1} parent=0 // pred_check
    _
  $region19: #{discriminator_forward.1} parent=0 // pred_check_branch
    %30 = sbr.rel (0) target = $region21
  $region20: #{discriminator_forward.1} parent=0 // pred_region
    _
  $region21: #{discriminator_forward.1} parent=0 // pred_fallthru
    _
  // Predicated region
  $region22: #{discriminator_forward.1} parent=0 // pred_check
    _
  $region23: #{discriminator_forward.1} parent=0 // pred_check_branch
    %32 = sbr.rel (0) target = $region25
  $region24: #{discriminator_forward.1} parent=0 // pred_region
    _
  $region25: #{discriminator_forward.1} parent=0 // pred_fallthru
    _
  // Predicated region
  $region26: #{discriminator_forward.1} parent=0 // pred_check
    _
  $region27: #{discriminator_forward.1} parent=0 // pred_check_branch
    %34 = sbr.rel (0) target = $region29
  $region28: #{discriminator_forward.1} parent=0 // pred_region
    _
  $region29: #{discriminator_forward.1} parent=0 // pred_fallthru
    _
  // Predicated region
  $region30: #{discriminator_forward.1} parent=0 // pred_check
    _
  $region31: #{discriminator_forward.1} parent=0 // pred_check_branch
    %36 = sbr.rel (0) target = $region33
  $region32: #{discriminator_forward.1} parent=0 // pred_region
    _
  $region33: #{discriminator_forward.1} parent=0 // pred_fallthru
    _
  // Predicated region
  $region34: #{discriminator_forward.1} parent=0 // pred_check
    _
  $region35: #{discriminator_forward.1} parent=0 // pred_check_branch
    %38 = sbr.rel (0) target = $region37
  $region36: #{discriminator_forward.1} parent=0 // pred_region
    _
  $region37: #{discriminator_forward.1} parent=0 // pred_fallthru
    _
  // Predicated region
  $region38: #{discriminator_forward.1} parent=0 // pred_check
    _
  $region39: #{discriminator_forward.1} parent=0 // pred_check_branch
    %40 = sbr.rel (0) target = $region41
  $region40: #{discriminator_forward.1} parent=0 // pred_region
    _
  $region41: #{discriminator_forward.1} parent=0 // pred_fallthru
    _
  // Predicated region
  $region42: #{discriminator_forward.1} parent=0 // pred_check
    _
  $region43: #{discriminator_forward.1} parent=0 // pred_check_branch
    %42 = sbr.rel (0) target = $region45
  $region44: #{discriminator_forward.1} parent=0 // pred_region
    _
  $region45: #{discriminator_forward.1} parent=0 // pred_fallthru
    _
  // Predicated region
  $region46: #{discriminator_forward.1} parent=0 // pred_check
    _
  $region47: #{discriminator_forward.1} parent=0 // pred_check_branch
    %44 = sbr.rel (0) target = $region49
  $region48: #{discriminator_forward.1} parent=0 // pred_region
    _
  $region49: #{discriminator_forward.1} parent=0 // pred_fallthru
    _
  // Predicated region
  $region50: #{discriminator_forward.1} parent=0 // pred_check
    _
  $region51: #{discriminator_forward.1} parent=0 // pred_check_branch
    %46 = sbr.rel (0) target = $region53
  $region52: #{discriminator_forward.1} parent=0 // pred_region
    _
  $region53: #{discriminator_forward.1} parent=0 // pred_fallthru
    _
  // Predicated region
  $region54: #{discriminator_forward.1} parent=0 // pred_check
    _
  $region55: #{discriminator_forward.1} parent=0 // pred_check_branch
    %48 = sbr.rel (0) target = $region57
  $region56: #{discriminator_forward.1} parent=0 // pred_region
    _
  $region57: #{discriminator_forward.1} parent=0 // pred_fallthru
    _
  %v50 = vld [vmem:[%s1] sm:$0xf]
  %v51 = vld [vmem:[%s1 + $0x4] sm:$0xf]
  %v52 = vld [vmem:[%s0] sm:$0xff]
  %v53 = vld [vmem:[%s0 + $0x8] sm:$0xff]
  %v54 = vld [vmem:[%s0 + $0x10] sm:$0xff]
  %v55 = vld [vmem:[%s0 + $0x18] sm:$0xff]
  %v58 = vunpack.c.l.b16 %v50
  %v59 = vunpack.c.l.b16 %v51
  %v60 = vpack.c.b16 %v59, %v58
  %v63 = vunpack.c.l.b16 %v52
  %v64 = vunpack.c.h.b16 %v52
  %v65 = vunpack.c.l.b16 %v53
  %v66 = vunpack.c.h.b16 %v53
  %v67 = vpack.c.b16 %v65, %v63
  %v68 = vpack.c.b16 %v66, %v64
  %vm71 = vcmask 130048
  %v73 = vsel %vm71, %v60, 0
  %75 = vmatprep.subr.bf16.mxu0 0
  %76 = vmatpush1.bf16.msra.mxu0 0
  %77 = vmatprep.subr.bf16.mxu0 0
  %78 = vmatpush1.bf16.msra.mxu0 0
  %79 = vmatprep.subr.bf16.mxu0 0
  %80 = vmatpush1.bf16.msra.mxu0 0
  %81 = vmatprep.subr.bf16.mxu0 0
  %82 = vmatpush1.bf16.msra.mxu0 0
  %83 = vmatprep.subr.bf16.mxu0 0
  %84 = vmatpush1.bf16.msra.mxu0 0
  %85 = vmatprep.subr.bf16.mxu0 0
  %86 = vmatpush1.bf16.msra.mxu0 0
  %87 = vmatprep.subr.bf16.mxu0 0
  %88 = vmatpush1.bf16.msra.mxu0 0
  %89 = vmatprep.subr.bf16.mxu0 %v68
  %90 = vmatpush1.bf16.msra.mxu0 %v67
  %91 = vmatprep.subr.bf16.mxu0 0
  %92 = vmatpush2.bf16.msra.mxu0 0
  %93 = vmatprep.subr.bf16.mxu0 0
  %94 = vmatpush2.bf16.msra.mxu0 0
  %95 = vmatprep.subr.bf16.mxu0 0
  %96 = vmatpush2.bf16.msra.mxu0 0
  %97 = vmatprep.subr.bf16.mxu0 0
  %98 = vmatpush2.bf16.msra.mxu0 0
  %99 = vmatprep.subr.bf16.mxu0 0
  %100 = vmatpush2.bf16.msra.mxu0 0
  %101 = vmatprep.subr.bf16.mxu0 0
  %102 = vmatpush2.bf16.msra.mxu0 0
  %103 = vmatprep.subr.bf16.mxu0 0
  %104 = vmatpush2.bf16.msra.mxu0 0
  %105 = vmatprep.subr.bf16.mxu0 0
  %106 = vmatpush2.bf16.msra.mxu0 0
  %107 = vmatprep.mubr.bf16.mxu0 0
  %108 = vmatmul.mubr.bf16.gmra.mxu0 %v73
  %v109 = vpop.f32.mrf.mxu0
  %v110 = vadd.f32 0.0, %v109
  %v111 = vpop.f32.mrf.mxu0
  %v112 = vadd.f32 0.0, %v111
  %v113 = vpop.f32.mrf.mxu0
  %v114 = vadd.f32 0.0, %v113
  %v115 = vpop.f32.mrf.mxu0
  %v116 = vadd.f32 0.0, %v115
  %117 = vdwg.mxu0
  %v120 = vunpack.c.l.b16 %v54
  %v121 = vunpack.c.h.b16 %v54
  %v122 = vunpack.c.l.b16 %v55
  %v123 = vunpack.c.h.b16 %v55
  %v124 = vpack.c.b16 %v122, %v120
  %v125 = vpack.c.b16 %v123, %v121
  %128 = vmatprep.subr.bf16.mxu0 0
  %129 = vmatpush1.bf16.msra.mxu0 0
  %130 = vmatprep.subr.bf16.mxu0 0
  %131 = vmatpush1.bf16.msra.mxu0 0
  %132 = vmatprep.subr.bf16.mxu0 0
  %133 = vmatpush1.bf16.msra.mxu0 0
  %134 = vmatprep.subr.bf16.mxu0 0
  %135 = vmatpush1.bf16.msra.mxu0 0
  %136 = vmatprep.subr.bf16.mxu0 0
  %137 = vmatpush1.bf16.msra.mxu0 0
  %138 = vmatprep.subr.bf16.mxu0 0
  %139 = vmatpush1.bf16.msra.mxu0 0
  %140 = vmatprep.subr.bf16.mxu0 0
  %141 = vmatpush1.bf16.msra.mxu0 0
  %142 = vmatprep.subr.bf16.mxu0 %v125
  %143 = vmatpush1.bf16.msra.mxu0 %v124
  %144 = vmatprep.subr.bf16.mxu0 0
  %145 = vmatpush2.bf16.msra.mxu0 0
  %146 = vmatprep.subr.bf16.mxu0 0
  %147 = vmatpush2.bf16.msra.mxu0 0
  %148 = vmatprep.subr.bf16.mxu0 0
  %149 = vmatpush2.bf16.msra.mxu0 0
  %150 = vmatprep.subr.bf16.mxu0 0
  %151 = vmatpush2.bf16.msra.mxu0 0
  %152 = vmatprep.subr.bf16.mxu0 0
  %153 = vmatpush2.bf16.msra.mxu0 0
  %154 = vmatprep.subr.bf16.mxu0 0
  %155 = vmatpush2.bf16.msra.mxu0 0
  %156 = vmatprep.subr.bf16.mxu0 0
  %157 = vmatpush2.bf16.msra.mxu0 0
  %158 = vmatprep.subr.bf16.mxu0 0
  %159 = vmatpush2.bf16.msra.mxu0 0
  %160 = vmatprep.mubr.bf16.mxu0 0
  %161 = vmatmul.mubr.bf16.gmra.mxu0 %v73
  %v162 = vpop.f32.mrf.mxu0
  %v163 = vadd.f32 0.0, %v162
  %v164 = vpop.f32.mrf.mxu0
  %v165 = vadd.f32 0.0, %v164
  %v166 = vpop.f32.mrf.mxu0
  %v167 = vadd.f32 0.0, %v166
  %v168 = vpop.f32.mrf.mxu0
  %v169 = vadd.f32 0.0, %v168
  %170 = vdwg.mxu0
  %v171 = vld [vmem:[%s2] sm:$0xff]
  %v172 = vld [vmem:[%s2 + $0x8] sm:$0xff]
  %v173 = vld [vmem:[%s3] sm:$0xff]
  %v174 = vld [vmem:[%s3 + $0x8] sm:$0xff]
  %v175 = vadd.f32 %v110, %v112
  %176 = vadd.xlane.f32.xlu0 %v175
  %v177 = vpop.xlane.xlu0 %176
  %v178 = vadd.f32 %v114, %v116
  %179 = vadd.xlane.f32.xlu0 %v178
  %v180 = vpop.xlane.xlu0 %179
  %v181 = vadd.f32 %v163, %v165
  %182 = vadd.xlane.f32.xlu0 %v181
  %v183 = vpop.xlane.xlu0 %182
  %v184 = vadd.f32 %v167, %v169
  %185 = vadd.xlane.f32.xlu0 %v184
  %v186 = vpop.xlane.xlu0 %185
  %v187 = vadd.f32 %v177, %v183
  %v188 = vadd.f32 %v180, %v186
  %v189 = vmul.f32 %v187, 0.001953125
  %v190 = vmul.f32 %v188, 0.001953125
  %v191 = vsub.f32 %v110, %v189
  %v192 = vsub.f32 %v112, %v189
  %v193 = vsub.f32 %v114, %v190
  %v194 = vsub.f32 %v116, %v190
  %v195 = vsub.f32 %v163, %v189
  %v196 = vsub.f32 %v165, %v189
  %v197 = vsub.f32 %v167, %v190
  %v198 = vsub.f32 %v169, %v190
  %v199 = vmul.f32 %v191, %v191
  %v200 = vmul.f32 %v192, %v192
  %v201 = vmul.f32 %v193, %v193
  %v202 = vmul.f32 %v194, %v194
  %v203 = vmul.f32 %v195, %v195
  %v204 = vmul.f32 %v196, %v196
  %v205 = vmul.f32 %v197, %v197
  %v206 = vmul.f32 %v198, %v198
  %v207 = vadd.f32 %v199, %v200
  %208 = vadd.xlane.f32.xlu0 %v207
  %v209 = vpop.xlane.xlu0 %208
  %v210 = vadd.f32 %v201, %v202
  %211 = vadd.xlane.f32.xlu0 %v210
  %v212 = vpop.xlane.xlu0 %211
  %v213 = vadd.f32 %v203, %v204
  %214 = vadd.xlane.f32.xlu0 %v213
  %v215 = vpop.xlane.xlu0 %214
  %v216 = vadd.f32 %v205, %v206
  %217 = vadd.xlane.f32.xlu0 %v216
  %v218 = vpop.xlane.xlu0 %217
  %v219 = vadd.f32 %v209, %v215
  %v220 = vadd.f32 %v212, %v218
  %v221 = vmul.f32 %v219, 0.001953125
  %v222 = vmul.f32 %v220, 0.001953125
  %v223 = vadd.f32 %v221, 1e-05
  %v224 = vadd.f32 %v222, 1e-05
  %v225 = vrsqrt.pop %v223
  %v226 = vrsqrt.pop %v224
  %v227 = vmul.f32 %v171, %v225
  %v228 = vmul.f32 %v172, %v226
  %230 = vset.pattern.permute.xlu0 0
  %231 = vperm.xlu0 %230, %v227
  %v232 = vpop.permute.xlu0 %231
  %235 = vset.pattern.permute.xlu0 0
  %236 = vperm.xlu0 %235, %v228
  %v237 = vpop.permute.xlu0 %236
  %v239 = vmul.f32 %v191, %v232
  %v240 = vmul.f32 %v192, %v232
  %v241 = vmul.f32 %v193, %v237
  %v242 = vmul.f32 %v194, %v237
  %v243 = vmul.f32 %v195, %v232
  %v244 = vmul.f32 %v196, %v232
  %v245 = vmul.f32 %v197, %v237
  %v246 = vmul.f32 %v198, %v237
  %248 = vset.pattern.permute.xlu0 0
  %249 = vperm.xlu0 %248, %v173
  %v250 = vpop.permute.xlu0 %249
  %253 = vset.pattern.permute.xlu0 0
  %254 = vperm.xlu0 %253, %v174
  %v255 = vpop.permute.xlu0 %254
  %v257 = vadd.f32 %v239, %v250
  %v258 = vadd.f32 %v240, %v250
  %v259 = vadd.f32 %v241, %v255
  %v260 = vadd.f32 %v242, %v255
  %v261 = vadd.f32 %v243, %v250
  %v262 = vadd.f32 %v244, %v250
  %v263 = vadd.f32 %v245, %v255
  %v264 = vadd.f32 %v246, %v255
  %vm265 = vcmp.ge.f32.partialorder %v257, 0.0
  %vm266 = vcmp.ge.f32.partialorder %v258, 0.0
  %vm267 = vcmp.ge.f32.partialorder %v259, 0.0
  %vm268 = vcmp.ge.f32.partialorder %v260, 0.0
  %vm269 = vcmp.ge.f32.partialorder %v261, 0.0
  %vm270 = vcmp.ge.f32.partialorder %v262, 0.0
  %vm271 = vcmp.ge.f32.partialorder %v263, 0.0
  %vm272 = vcmp.ge.f32.partialorder %v264, 0.0
  %v273 = vmul.f32 %v257, 0.003
  %v274 = vmul.f32 %v258, 0.003
  %v275 = vmul.f32 %v259, 0.003
  %v276 = vmul.f32 %v260, 0.003
  %v277 = vmul.f32 %v261, 0.003
  %v278 = vmul.f32 %v262, 0.003
  %v279 = vmul.f32 %v263, 0.003
  %v280 = vmul.f32 %v264, 0.003
  %v281 = vsel %vm265, %v257, %v273
  %v282 = vsel %vm266, %v258, %v274
  %v283 = vsel %vm267, %v259, %v275
  %v284 = vsel %vm268, %v260, %v276
  %v285 = vsel %vm269, %v261, %v277
  %v286 = vsel %vm270, %v262, %v278
  %v287 = vsel %vm271, %v263, %v279
  %v288 = vsel %vm272, %v264, %v280
  %v289 = vpack.c.bf16 %v283, %v281
  %v290 = vpack.c.bf16 %v284, %v282
  %v291 = vpack.c.bf16 %v287, %v285
  %v292 = vpack.c.bf16 %v288, %v286
  %v293 = vld [vmem:[%s4] sm:$0xff]
  %v294 = vld [vmem:[%s4 + $0x8] sm:$0xff]
  %v295 = vld [vmem:[%s4 + $0x10] sm:$0xff]
  %v296 = vld [vmem:[%s4 + $0x18] sm:$0xff]
  %v297 = vld [vmem:[%s4 + $0x20] sm:$0xff]
  %v298 = vld [vmem:[%s4 + $0x28] sm:$0xff]
  %v299 = vld [vmem:[%s4 + $0x30] sm:$0xff]
  %v300 = vld [vmem:[%s4 + $0x38] sm:$0xff]
  %v301 = vld [vmem:[%s4 + $0x40] sm:$0xff]
  %v302 = vld [vmem:[%s4 + $0x48] sm:$0xff]
  %v303 = vld [vmem:[%s4 + $0x50] sm:$0xff]
  %v304 = vld [vmem:[%s4 + $0x58] sm:$0xff]
  %v305 = vld [vmem:[%s4 + $0x60] sm:$0xff]
  %v306 = vld [vmem:[%s4 + $0x68] sm:$0xff]
  %v307 = vld [vmem:[%s4 + $0x70] sm:$0xff]
  %v308 = vld [vmem:[%s4 + $0x78] sm:$0xff]
  %v309 = vld [vmem:[%s4 + $0x80] sm:$0xff]
  %v310 = vld [vmem:[%s4 + $0x88] sm:$0xff]
  %v311 = vld [vmem:[%s4 + $0x90] sm:$0xff]
  %v312 = vld [vmem:[%s4 + $0x98] sm:$0xff]
  %v313 = vld [vmem:[%s4 + $0xa0] sm:$0xff]
  %v314 = vld [vmem:[%s4 + $0xa8] sm:$0xff]
  %v315 = vld [vmem:[%s4 + $0xb0] sm:$0xff]
  %v316 = vld [vmem:[%s4 + $0xb8] sm:$0xff]
  %v317 = vld [vmem:[%s4 + $0xc0] sm:$0xff]
  %v318 = vld [vmem:[%s4 + $0xc8] sm:$0xff]
  %v319 = vld [vmem:[%s4 + $0xd0] sm:$0xff]
  %v320 = vld [vmem:[%s4 + $0xd8] sm:$0xff]
  %v321 = vld [vmem:[%s4 + $0xe0] sm:$0xff]
  %v322 = vld [vmem:[%s4 + $0xe8] sm:$0xff]
  %v323 = vld [vmem:[%s4 + $0xf0] sm:$0xff]
  %v324 = vld [vmem:[%s4 + $0xf8] sm:$0xff]
  %v325 = vld [vmem:[%s4 + $0x100] sm:$0xff]
  %v326 = vld [vmem:[%s4 + $0x108] sm:$0xff]
  %v327 = vld [vmem:[%s4 + $0x110] sm:$0xff]
  %v328 = vld [vmem:[%s4 + $0x118] sm:$0xff]
  %v329 = vld [vmem:[%s4 + $0x120] sm:$0xff]
  %v330 = vld [vmem:[%s4 + $0x128] sm:$0xff]
  %v331 = vld [vmem:[%s4 + $0x130] sm:$0xff]
  %v332 = vld [vmem:[%s4 + $0x138] sm:$0xff]
  %v333 = vld [vmem:[%s4 + $0x140] sm:$0xff]
  %v334 = vld [vmem:[%s4 + $0x148] sm:$0xff]
  %v335 = vld [vmem:[%s4 + $0x150] sm:$0xff]
  %v336 = vld [vmem:[%s4 + $0x158] sm:$0xff]
  %v337 = vld [vmem:[%s4 + $0x160] sm:$0xff]
  %v338 = vld [vmem:[%s4 + $0x168] sm:$0xff]
  %v339 = vld [vmem:[%s4 + $0x170] sm:$0xff]
  %v340 = vld [vmem:[%s4 + $0x178] sm:$0xff]
  %v341 = vld [vmem:[%s4 + $0x180] sm:$0xff]
  %v342 = vld [vmem:[%s4 + $0x188] sm:$0xff]
  %v343 = vld [vmem:[%s4 + $0x190] sm:$0xff]
  %v344 = vld [vmem:[%s4 + $0x198] sm:$0xff]
  %v345 = vld [vmem:[%s4 + $0x1a0] sm:$0xff]
  %v346 = vld [vmem:[%s4 + $0x1a8] sm:$0xff]
  %v347 = vld [vmem:[%s4 + $0x1b0] sm:$0xff]
  %v348 = vld [vmem:[%s4 + $0x1b8] sm:$0xff]
  %v349 = vld [vmem:[%s4 + $0x1c0] sm:$0xff]
  %v350 = vld [vmem:[%s4 + $0x1c8] sm:$0xff]
  %v351 = vld [vmem:[%s4 + $0x1d0] sm:$0xff]
  %v352 = vld [vmem:[%s4 + $0x1d8] sm:$0xff]
  %v353 = vld [vmem:[%s4 + $0x1e0] sm:$0xff]
  %v354 = vld [vmem:[%s4 + $0x1e8] sm:$0xff]
  %v355 = vld [vmem:[%s4 + $0x1f0] sm:$0xff]
  %v356 = vld [vmem:[%s4 + $0x1f8] sm:$0xff]
  %v357 = vld [vmem:[%s4 + $0x200] sm:$0xff]
  %v358 = vld [vmem:[%s4 + $0x208] sm:$0xff]
  %v359 = vld [vmem:[%s4 + $0x210] sm:$0xff]
  %v360 = vld [vmem:[%s4 + $0x218] sm:$0xff]
  %v361 = vld [vmem:[%s4 + $0x220] sm:$0xff]
  %v362 = vld [vmem:[%s4 + $0x228] sm:$0xff]
  %v363 = vld [vmem:[%s4 + $0x230] sm:$0xff]
  %v364 = vld [vmem:[%s4 + $0x238] sm:$0xff]
  %v365 = vld [vmem:[%s4 + $0x240] sm:$0xff]
  %v366 = vld [vmem:[%s4 + $0x248] sm:$0xff]
  %v367 = vld [vmem:[%s4 + $0x250] sm:$0xff]
  %v368 = vld [vmem:[%s4 + $0x258] sm:$0xff]
  %v369 = vld [vmem:[%s4 + $0x260] sm:$0xff]
  %v370 = vld [vmem:[%s4 + $0x268] sm:$0xff]
  %v371 = vld [vmem:[%s4 + $0x270] sm:$0xff]
  %v372 = vld [vmem:[%s4 + $0x278] sm:$0xff]
  %v373 = vld [vmem:[%s4 + $0x280] sm:$0xff]
  %v374 = vld [vmem:[%s4 + $0x288] sm:$0xff]
  %v375 = vld [vmem:[%s4 + $0x290] sm:$0xff]
  %v376 = vld [vmem:[%s4 + $0x298] sm:$0xff]
  %v377 = vld [vmem:[%s4 + $0x2a0] sm:$0xff]
  %v378 = vld [vmem:[%s4 + $0x2a8] sm:$0xff]
  %v379 = vld [vmem:[%s4 + $0x2b0] sm:$0xff]
  %v380 = vld [vmem:[%s4 + $0x2b8] sm:$0xff]
  %v381 = vld [vmem:[%s4 + $0x2c0] sm:$0xff]
  %v382 = vld [vmem:[%s4 + $0x2c8] sm:$0xff]
  %v383 = vld [vmem:[%s4 + $0x2d0] sm:$0xff]
  %v384 = vld [vmem:[%s4 + $0x2d8] sm:$0xff]
  %v385 = vld [vmem:[%s4 + $0x2e0] sm:$0xff]
  %v386 = vld [vmem:[%s4 + $0x2e8] sm:$0xff]
  %v387 = vld [vmem:[%s4 + $0x2f0] sm:$0xff]
  %v388 = vld [vmem:[%s4 + $0x2f8] sm:$0xff]
  %v389 = vld [vmem:[%s4 + $0x300] sm:$0xff]
  %v390 = vld [vmem:[%s4 + $0x308] sm:$0xff]
  %v391 = vld [vmem:[%s4 + $0x310] sm:$0xff]
  %v392 = vld [vmem:[%s4 + $0x318] sm:$0xff]
  %v393 = vld [vmem:[%s4 + $0x320] sm:$0xff]
  %v394 = vld [vmem:[%s4 + $0x328] sm:$0xff]
  %v395 = vld [vmem:[%s4 + $0x330] sm:$0xff]
  %v396 = vld [vmem:[%s4 + $0x338] sm:$0xff]
  %v397 = vld [vmem:[%s4 + $0x340] sm:$0xff]
  %v398 = vld [vmem:[%s4 + $0x348] sm:$0xff]
  %v399 = vld [vmem:[%s4 + $0x350] sm:$0xff]
  %v400 = vld [vmem:[%s4 + $0x358] sm:$0xff]
  %v401 = vld [vmem:[%s4 + $0x360] sm:$0xff]
  %v402 = vld [vmem:[%s4 + $0x368] sm:$0xff]
  %v403 = vld [vmem:[%s4 + $0x370] sm:$0xff]
  %v404 = vld [vmem:[%s4 + $0x378] sm:$0xff]
  %v405 = vld [vmem:[%s4 + $0x380] sm:$0xff]
  %v406 = vld [vmem:[%s4 + $0x388] sm:$0xff]
  %v407 = vld [vmem:[%s4 + $0x390] sm:$0xff]
  %v408 = vld [vmem:[%s4 + $0x398] sm:$0xff]
  %v409 = vld [vmem:[%s4 + $0x3a0] sm:$0xff]
  %v410 = vld [vmem:[%s4 + $0x3a8] sm:$0xff]
  %v411 = vld [vmem:[%s4 + $0x3b0] sm:$0xff]
  %v412 = vld [vmem:[%s4 + $0x3b8] sm:$0xff]
  %v413 = vld [vmem:[%s4 + $0x3c0] sm:$0xff]
  %v414 = vld [vmem:[%s4 + $0x3c8] sm:$0xff]
  %v415 = vld [vmem:[%s4 + $0x3d0] sm:$0xff]
  %v416 = vld [vmem:[%s4 + $0x3d8] sm:$0xff]
  %v417 = vld [vmem:[%s4 + $0x3e0] sm:$0xff]
  %v418 = vld [vmem:[%s4 + $0x3e8] sm:$0xff]
  %v419 = vld [vmem:[%s4 + $0x3f0] sm:$0xff]
  %v420 = vld [vmem:[%s4 + $0x3f8] sm:$0xff]
  %v421 = vld [vmem:[%s5] sm:$0xf]
  %v422 = vld [vmem:[%s5 + $0x4] sm:$0xf]
  %v423 = vld [vmem:[%s5 + $0x8] sm:$0xf]
  %v424 = vld [vmem:[%s5 + $0xc] sm:$0xf]
  %v425 = vld [vmem:[%s5 + $0x10] sm:$0xf]
  %v426 = vld [vmem:[%s5 + $0x14] sm:$0xf]
  %v427 = vld [vmem:[%s5 + $0x18] sm:$0xf]
  %v428 = vld [vmem:[%s5 + $0x1c] sm:$0xf]
  %v429 = vld [vmem:[%s5 + $0x20] sm:$0xf]
  %v430 = vld [vmem:[%s5 + $0x24] sm:$0xf]
  %v431 = vld [vmem:[%s5 + $0x28] sm:$0xf]
  %v432 = vld [vmem:[%s5 + $0x2c] sm:$0xf]
  %v433 = vld [vmem:[%s5 + $0x30] sm:$0xf]
  %v434 = vld [vmem:[%s5 + $0x34] sm:$0xf]
  %v435 = vld [vmem:[%s5 + $0x38] sm:$0xf]
  %v436 = vld [vmem:[%s5 + $0x3c] sm:$0xf]
  %v437 = vld [vmem:[%s5 + $0x40] sm:$0xf]
  %v438 = vld [vmem:[%s5 + $0x44] sm:$0xf]
  %v439 = vld [vmem:[%s5 + $0x48] sm:$0xf]
  %v440 = vld [vmem:[%s5 + $0x4c] sm:$0xf]
  %v441 = vld [vmem:[%s5 + $0x50] sm:$0xf]
  %v442 = vld [vmem:[%s5 + $0x54] sm:$0xf]
  %v443 = vld [vmem:[%s5 + $0x58] sm:$0xf]
  %v444 = vld [vmem:[%s5 + $0x5c] sm:$0xf]
  %v445 = vld [vmem:[%s5 + $0x60] sm:$0xf]
  %v446 = vld [vmem:[%s5 + $0x64] sm:$0xf]
  %v447 = vld [vmem:[%s5 + $0x68] sm:$0xf]
  %v448 = vld [vmem:[%s5 + $0x6c] sm:$0xf]
  %v449 = vld [vmem:[%s5 + $0x70] sm:$0xf]
  %v450 = vld [vmem:[%s5 + $0x74] sm:$0xf]
  %v451 = vld [vmem:[%s5 + $0x78] sm:$0xf]
  %v452 = vld [vmem:[%s5 + $0x7c] sm:$0xf]
  %v453 = vld [vmem:[%s5 + $0x80] sm:$0xf]
  %v454 = vld [vmem:[%s5 + $0x84] sm:$0xf]
  %v455 = vld [vmem:[%s5 + $0x88] sm:$0xf]
  %v456 = vld [vmem:[%s5 + $0x8c] sm:$0xf]
  %v457 = vld [vmem:[%s5 + $0x90] sm:$0xf]
  %v458 = vld [vmem:[%s5 + $0x94] sm:$0xf]
  %v459 = vld [vmem:[%s5 + $0x98] sm:$0xf]
  %v460 = vld [vmem:[%s5 + $0x9c] sm:$0xf]
  %v461 = vld [vmem:[%s5 + $0xa0] sm:$0xf]
  %v462 = vld [vmem:[%s5 + $0xa4] sm:$0xf]
  %v463 = vld [vmem:[%s5 + $0xa8] sm:$0xf]
  %v464 = vld [vmem:[%s5 + $0xac] sm:$0xf]
  %v465 = vld [vmem:[%s5 + $0xb0] sm:$0xf]
  %v466 = vld [vmem:[%s5 + $0xb4] sm:$0xf]
  %v467 = vld [vmem:[%s5 + $0xb8] sm:$0xf]
  %v468 = vld [vmem:[%s5 + $0xbc] sm:$0xf]
  %v469 = vld [vmem:[%s5 + $0xc0] sm:$0xf]
  %v470 = vld [vmem:[%s5 + $0xc4] sm:$0xf]
  %v471 = vld [vmem:[%s5 + $0xc8] sm:$0xf]
  %v472 = vld [vmem:[%s5 + $0xcc] sm:$0xf]
  %v473 = vld [vmem:[%s5 + $0xd0] sm:$0xf]
  %v474 = vld [vmem:[%s5 + $0xd4] sm:$0xf]
  %v475 = vld [vmem:[%s5 + $0xd8] sm:$0xf]
  %v476 = vld [vmem:[%s5 + $0xdc] sm:$0xf]
  %v477 = vld [vmem:[%s5 + $0xe0] sm:$0xf]
  %v478 = vld [vmem:[%s5 + $0xe4] sm:$0xf]
  %v479 = vld [vmem:[%s5 + $0xe8] sm:$0xf]
  %v480 = vld [vmem:[%s5 + $0xec] sm:$0xf]
  %v481 = vld [vmem:[%s5 + $0xf0] sm:$0xf]
  %v482 = vld [vmem:[%s5 + $0xf4] sm:$0xf]
  %v483 = vld [vmem:[%s5 + $0xf8] sm:$0xf]
  %v484 = vld [vmem:[%s5 + $0xfc] sm:$0xf]
  %v613 = vunpack.c.l.b16 %v293
  %v614 = vunpack.c.h.b16 %v293
  %v615 = vunpack.c.l.b16 %v294
  %v616 = vunpack.c.h.b16 %v294
  %v617 = vunpack.c.l.b16 %v295
  %v618 = vunpack.c.h.b16 %v295
  %v619 = vunpack.c.l.b16 %v296
  %v620 = vunpack.c.h.b16 %v296
  %v621 = vunpack.c.l.b16 %v297
  %v622 = vunpack.c.h.b16 %v297
  %v623 = vunpack.c.l.b16 %v298
  %v624 = vunpack.c.h.b16 %v298
  %v625 = vunpack.c.l.b16 %v299
  %v626 = vunpack.c.h.b16 %v299
  %v627 = vunpack.c.l.b16 %v300
  %v628 = vunpack.c.h.b16 %v300
  %v629 = vunpack.c.l.b16 %v301
  %v630 = vunpack.c.h.b16 %v301
  %v631 = vunpack.c.l.b16 %v302
  %v632 = vunpack.c.h.b16 %v302
  %v633 = vunpack.c.l.b16 %v303
  %v634 = vunpack.c.h.b16 %v303
  %v635 = vunpack.c.l.b16 %v304
  %v636 = vunpack.c.h.b16 %v304
  %v637 = vunpack.c.l.b16 %v305
  %v638 = vunpack.c.h.b16 %v305
  %v639 = vunpack.c.l.b16 %v306
  %v640 = vunpack.c.h.b16 %v306
  %v641 = vunpack.c.l.b16 %v307
  %v642 = vunpack.c.h.b16 %v307
  %v643 = vunpack.c.l.b16 %v308
  %v644 = vunpack.c.h.b16 %v308
  %v645 = vunpack.c.l.b16 %v309
  %v646 = vunpack.c.h.b16 %v309
  %v647 = vunpack.c.l.b16 %v310
  %v648 = vunpack.c.h.b16 %v310
  %v649 = vunpack.c.l.b16 %v311
  %v650 = vunpack.c.h.b16 %v311
  %v651 = vunpack.c.l.b16 %v312
  %v652 = vunpack.c.h.b16 %v312
  %v653 = vunpack.c.l.b16 %v313
  %v654 = vunpack.c.h.b16 %v313
  %v655 = vunpack.c.l.b16 %v314
  %v656 = vunpack.c.h.b16 %v314
  %v657 = vunpack.c.l.b16 %v315
  %v658 = vunpack.c.h.b16 %v315
  %v659 = vunpack.c.l.b16 %v316
  %v660 = vunpack.c.h.b16 %v316
  %v661 = vunpack.c.l.b16 %v317
  %v662 = vunpack.c.h.b16 %v317
  %v663 = vunpack.c.l.b16 %v318
  %v664 = vunpack.c.h.b16 %v318
  %v665 = vunpack.c.l.b16 %v319
  %v666 = vunpack.c.h.b16 %v319
  %v667 = vunpack.c.l.b16 %v320
  %v668 = vunpack.c.h.b16 %v320
  %v669 = vunpack.c.l.b16 %v321
  %v670 = vunpack.c.h.b16 %v321
  %v671 = vunpack.c.l.b16 %v322
  %v672 = vunpack.c.h.b16 %v322
  %v673 = vunpack.c.l.b16 %v323
  %v674 = vunpack.c.h.b16 %v323
  %v675 = vunpack.c.l.b16 %v324
  %v676 = vunpack.c.h.b16 %v324
  %v677 = vunpack.c.l.b16 %v325
  %v678 = vunpack.c.h.b16 %v325
  %v679 = vunpack.c.l.b16 %v326
  %v680 = vunpack.c.h.b16 %v326
  %v681 = vunpack.c.l.b16 %v327
  %v682 = vunpack.c.h.b16 %v327
  %v683 = vunpack.c.l.b16 %v328
  %v684 = vunpack.c.h.b16 %v328
  %v685 = vunpack.c.l.b16 %v329
  %v686 = vunpack.c.h.b16 %v329
  %v687 = vunpack.c.l.b16 %v330
  %v688 = vunpack.c.h.b16 %v330
  %v689 = vunpack.c.l.b16 %v331
  %v690 = vunpack.c.h.b16 %v331
  %v691 = vunpack.c.l.b16 %v332
  %v692 = vunpack.c.h.b16 %v332
  %v693 = vunpack.c.l.b16 %v333
  %v694 = vunpack.c.h.b16 %v333
  %v695 = vunpack.c.l.b16 %v334
  %v696 = vunpack.c.h.b16 %v334
  %v697 = vunpack.c.l.b16 %v335
  %v698 = vunpack.c.h.b16 %v335
  %v699 = vunpack.c.l.b16 %v336
  %v700 = vunpack.c.h.b16 %v336
  %v701 = vunpack.c.l.b16 %v337
  %v702 = vunpack.c.h.b16 %v337
  %v703 = vunpack.c.l.b16 %v338
  %v704 = vunpack.c.h.b16 %v338
  %v705 = vunpack.c.l.b16 %v339
  %v706 = vunpack.c.h.b16 %v339
  %v707 = vunpack.c.l.b16 %v340
  %v708 = vunpack.c.h.b16 %v340
  %v709 = vunpack.c.l.b16 %v341
  %v710 = vunpack.c.h.b16 %v341
  %v711 = vunpack.c.l.b16 %v342
  %v712 = vunpack.c.h.b16 %v342
  %v713 = vunpack.c.l.b16 %v343
  %v714 = vunpack.c.h.b16 %v343
  %v715 = vunpack.c.l.b16 %v344
  %v716 = vunpack.c.h.b16 %v344
  %v717 = vunpack.c.l.b16 %v345
  %v718 = vunpack.c.h.b16 %v345
  %v719 = vunpack.c.l.b16 %v346
  %v720 = vunpack.c.h.b16 %v346
  %v721 = vunpack.c.l.b16 %v347
  %v722 = vunpack.c.h.b16 %v347
  %v723 = vunpack.c.l.b16 %v348
  %v724 = vunpack.c.h.b16 %v348
  %v725 = vunpack.c.l.b16 %v349
  %v726 = vunpack.c.h.b16 %v349
  %v727 = vunpack.c.l.b16 %v350
  %v728 = vunpack.c.h.b16 %v350
  %v729 = vunpack.c.l.b16 %v351
  %v730 = vunpack.c.h.b16 %v351
  %v731 = vunpack.c.l.b16 %v352
  %v732 = vunpack.c.h.b16 %v352
  %v733 = vunpack.c.l.b16 %v353
  %v734 = vunpack.c.h.b16 %v353
  %v735 = vunpack.c.l.b16 %v354
  %v736 = vunpack.c.h.b16 %v354
  %v737 = vunpack.c.l.b16 %v355
  %v738 = vunpack.c.h.b16 %v355
  %v739 = vunpack.c.l.b16 %v356
  %v740 = vunpack.c.h.b16 %v356
  %v741 = vunpack.c.l.b16 %v357
  %v742 = vunpack.c.h.b16 %v357
  %v743 = vunpack.c.l.b16 %v358
  %v744 = vunpack.c.h.b16 %v358
  %v745 = vunpack.c.l.b16 %v359
  %v746 = vunpack.c.h.b16 %v359
  %v747 = vunpack.c.l.b16 %v360
  %v748 = vunpack.c.h.b16 %v360
  %v749 = vunpack.c.l.b16 %v361
  %v750 = vunpack.c.h.b16 %v361
  %v751 = vunpack.c.l.b16 %v362
  %v752 = vunpack.c.h.b16 %v362
  %v753 = vunpack.c.l.b16 %v363
  %v754 = vunpack.c.h.b16 %v363
  %v755 = vunpack.c.l.b16 %v364
  %v756 = vunpack.c.h.b16 %v364
  %v757 = vunpack.c.l.b16 %v365
  %v758 = vunpack.c.h.b16 %v365
  %v759 = vunpack.c.l.b16 %v366
  %v760 = vunpack.c.h.b16 %v366
  %v761 = vunpack.c.l.b16 %v367
  %v762 = vunpack.c.h.b16 %v367
  %v763 = vunpack.c.l.b16 %v368
  %v764 = vunpack.c.h.b16 %v368
  %v765 = vunpack.c.l.b16 %v369
  %v766 = vunpack.c.h.b16 %v369
  %v767 = vunpack.c.l.b16 %v370
  %v768 = vunpack.c.h.b16 %v370
  %v769 = vunpack.c.l.b16 %v371
  %v770 = vunpack.c.h.b16 %v371
  %v771 = vunpack.c.l.b16 %v372
  %v772 = vunpack.c.h.b16 %v372
  %v773 = vunpack.c.l.b16 %v373
  %v774 = vunpack.c.h.b16 %v373
  %v775 = vunpack.c.l.b16 %v374
  %v776 = vunpack.c.h.b16 %v374
  %v777 = vunpack.c.l.b16 %v375
  %v778 = vunpack.c.h.b16 %v375
  %v779 = vunpack.c.l.b16 %v376
  %v780 = vunpack.c.h.b16 %v376
  %v781 = vunpack.c.l.b16 %v377
  %v782 = vunpack.c.h.b16 %v377
  %v783 = vunpack.c.l.b16 %v378
  %v784 = vunpack.c.h.b16 %v378
  %v785 = vunpack.c.l.b16 %v379
  %v786 = vunpack.c.h.b16 %v379
  %v787 = vunpack.c.l.b16 %v380
  %v788 = vunpack.c.h.b16 %v380
  %v789 = vunpack.c.l.b16 %v381
  %v790 = vunpack.c.h.b16 %v381
  %v791 = vunpack.c.l.b16 %v382
  %v792 = vunpack.c.h.b16 %v382
  %v793 = vunpack.c.l.b16 %v383
  %v794 = vunpack.c.h.b16 %v383
  %v795 = vunpack.c.l.b16 %v384
  %v796 = vunpack.c.h.b16 %v384
  %v797 = vunpack.c.l.b16 %v385
  %v798 = vunpack.c.h.b16 %v385
  %v799 = vunpack.c.l.b16 %v386
  %v800 = vunpack.c.h.b16 %v386
  %v801 = vunpack.c.l.b16 %v387
  %v802 = vunpack.c.h.b16 %v387
  %v803 = vunpack.c.l.b16 %v388
  %v804 = vunpack.c.h.b16 %v388
  %v805 = vunpack.c.l.b16 %v389
  %v806 = vunpack.c.h.b16 %v389
  %v807 = vunpack.c.l.b16 %v390
  %v808 = vunpack.c.h.b16 %v390
  %v809 = vunpack.c.l.b16 %v391
  %v810 = vunpack.c.h.b16 %v391
  %v811 = vunpack.c.l.b16 %v392
  %v812 = vunpack.c.h.b16 %v392
  %v813 = vunpack.c.l.b16 %v393
  %v814 = vunpack.c.h.b16 %v393
  %v815 = vunpack.c.l.b16 %v394
  %v816 = vunpack.c.h.b16 %v394
  %v817 = vunpack.c.l.b16 %v395
  %v818 = vunpack.c.h.b16 %v395
  %v819 = vunpack.c.l.b16 %v396
  %v820 = vunpack.c.h.b16 %v396
  %v821 = vunpack.c.l.b16 %v397
  %v822 = vunpack.c.h.b16 %v397
  %v823 = vunpack.c.l.b16 %v398
  %v824 = vunpack.c.h.b16 %v398
  %v825 = vunpack.c.l.b16 %v399
  %v826 = vunpack.c.h.b16 %v399
  %v827 = vunpack.c.l.b16 %v400
  %v828 = vunpack.c.h.b16 %v400
  %v829 = vunpack.c.l.b16 %v401
  %v830 = vunpack.c.h.b16 %v401
  %v831 = vunpack.c.l.b16 %v402
  %v832 = vunpack.c.h.b16 %v402
  %v833 = vunpack.c.l.b16 %v403
  %v834 = vunpack.c.h.b16 %v403
  %v835 = vunpack.c.l.b16 %v404
  %v836 = vunpack.c.h.b16 %v404
  %v837 = vunpack.c.l.b16 %v405
  %v838 = vunpack.c.h.b16 %v405
  %v839 = vunpack.c.l.b16 %v406
  %v840 = vunpack.c.h.b16 %v406
  %v841 = vunpack.c.l.b16 %v407
  %v842 = vunpack.c.h.b16 %v407
  %v843 = vunpack.c.l.b16 %v408
  %v844 = vunpack.c.h.b16 %v408
  %v845 = vunpack.c.l.b16 %v409
  %v846 = vunpack.c.h.b16 %v409
  %v847 = vunpack.c.l.b16 %v410
  %v848 = vunpack.c.h.b16 %v410
  %v849 = vunpack.c.l.b16 %v411
  %v850 = vunpack.c.h.b16 %v411
  %v851 = vunpack.c.l.b16 %v412
  %v852 = vunpack.c.h.b16 %v412
  %v853 = vunpack.c.l.b16 %v413
  %v854 = vunpack.c.h.b16 %v413
  %v855 = vunpack.c.l.b16 %v414
  %v856 = vunpack.c.h.b16 %v414
  %v857 = vunpack.c.l.b16 %v415
  %v858 = vunpack.c.h.b16 %v415
  %v859 = vunpack.c.l.b16 %v416
  %v860 = vunpack.c.h.b16 %v416
  %v861 = vunpack.c.l.b16 %v417
  %v862 = vunpack.c.h.b16 %v417
  %v863 = vunpack.c.l.b16 %v418
  %v864 = vunpack.c.h.b16 %v418
  %v865 = vunpack.c.l.b16 %v419
  %v866 = vunpack.c.h.b16 %v419
  %v867 = vunpack.c.l.b16 %v420
  %v868 = vunpack.c.h.b16 %v420
  %v869 = vpack.c.b16 %v621, %v613
  %v870 = vpack.c.b16 %v622, %v614
  %v871 = vpack.c.b16 %v623, %v615
  %v872 = vpack.c.b16 %v624, %v616
  %v873 = vpack.c.b16 %v625, %v617
  %v874 = vpack.c.b16 %v626, %v618
  %v875 = vpack.c.b16 %v627, %v619
  %v876 = vpack.c.b16 %v628, %v620
  %v877 = vpack.c.b16 %v637, %v629
  %v878 = vpack.c.b16 %v638, %v630
  %v879 = vpack.c.b16 %v639, %v631
  %v880 = vpack.c.b16 %v640, %v632
  %v881 = vpack.c.b16 %v641, %v633
  %v882 = vpack.c.b16 %v642, %v634
  %v883 = vpack.c.b16 %v643, %v635
  %v884 = vpack.c.b16 %v644, %v636
  %v885 = vpack.c.b16 %v653, %v645
  %v886 = vpack.c.b16 %v654, %v646
  %v887 = vpack.c.b16 %v655, %v647
  %v888 = vpack.c.b16 %v656, %v648
  %v889 = vpack.c.b16 %v657, %v649
  %v890 = vpack.c.b16 %v658, %v650
  %v891 = vpack.c.b16 %v659, %v651
  %v892 = vpack.c.b16 %v660, %v652
  %v893 = vpack.c.b16 %v669, %v661
  %v894 = vpack.c.b16 %v670, %v662
  %v895 = vpack.c.b16 %v671, %v663
  %v896 = vpack.c.b16 %v672, %v664
  %v897 = vpack.c.b16 %v673, %v665
  %v898 = vpack.c.b16 %v674, %v666
  %v899 = vpack.c.b16 %v675, %v667
  %v900 = vpack.c.b16 %v676, %v668
  %v901 = vpack.c.b16 %v685, %v677
  %v902 = vpack.c.b16 %v686, %v678
  %v903 = vpack.c.b16 %v687, %v679
  %v904 = vpack.c.b16 %v688, %v680
  %v905 = vpack.c.b16 %v689, %v681
  %v906 = vpack.c.b16 %v690, %v682
  %v907 = vpack.c.b16 %v691, %v683
  %v908 = vpack.c.b16 %v692, %v684
  %v909 = vpack.c.b16 %v701, %v693
  %v910 = vpack.c.b16 %v702, %v694
  %v911 = vpack.c.b16 %v703, %v695
  %v912 = vpack.c.b16 %v704, %v696
  %v913 = vpack.c.b16 %v705, %v697
  %v914 = vpack.c.b16 %v706, %v698
  %v915 = vpack.c.b16 %v707, %v699
  %v916 = vpack.c.b16 %v708, %v700
  %v917 = vpack.c.b16 %v717, %v709
  %v918 = vpack.c.b16 %v718, %v710
  %v919 = vpack.c.b16 %v719, %v711
  %v920 = vpack.c.b16 %v720, %v712
  %v921 = vpack.c.b16 %v721, %v713
  %v922 = vpack.c.b16 %v722, %v714
  %v923 = vpack.c.b16 %v723, %v715
  %v924 = vpack.c.b16 %v724, %v716
  %v925 = vpack.c.b16 %v733, %v725
  %v926 = vpack.c.b16 %v734, %v726
  %v927 = vpack.c.b16 %v735, %v727
  %v928 = vpack.c.b16 %v736, %v728
  %v929 = vpack.c.b16 %v737, %v729
  %v930 = vpack.c.b16 %v738, %v730
  %v931 = vpack.c.b16 %v739, %v731
  %v932 = vpack.c.b16 %v740, %v732
  %v933 = vpack.c.b16 %v749, %v741
  %v934 = vpack.c.b16 %v750, %v742
  %v935 = vpack.c.b16 %v751, %v743
  %v936 = vpack.c.b16 %v752, %v744
  %v937 = vpack.c.b16 %v753, %v745
  %v938 = vpack.c.b16 %v754, %v746
  %v939 = vpack.c.b16 %v755, %v747
  %v940 = vpack.c.b16 %v756, %v748
  %v941 = vpack.c.b16 %v765, %v757
  %v942 = vpack.c.b16 %v766, %v758
  %v943 = vpack.c.b16 %v767, %v759
  %v944 = vpack.c.b16 %v768, %v760
  %v945 = vpack.c.b16 %v769, %v761
  %v946 = vpack.c.b16 %v770, %v762
  %v947 = vpack.c.b16 %v771, %v763
  %v948 = vpack.c.b16 %v772, %v764
  %v949 = vpack.c.b16 %v781, %v773
  %v950 = vpack.c.b16 %v782, %v774
  %v951 = vpack.c.b16 %v783, %v775
  %v952 = vpack.c.b16 %v784, %v776
  %v953 = vpack.c.b16 %v785, %v777
  %v954 = vpack.c.b16 %v786, %v778
  %v955 = vpack.c.b16 %v787, %v779
  %v956 = vpack.c.b16 %v788, %v780
  %v957 = vpack.c.b16 %v797, %v789
  %v958 = vpack.c.b16 %v798, %v790
  %v959 = vpack.c.b16 %v799, %v791
  %v960 = vpack.c.b16 %v800, %v792
  %v961 = vpack.c.b16 %v801, %v793
  %v962 = vpack.c.b16 %v802, %v794
  %v963 = vpack.c.b16 %v803, %v795
  %v964 = vpack.c.b16 %v804, %v796
  %v965 = vpack.c.b16 %v813, %v805
  %v966 = vpack.c.b16 %v814, %v806
  %v967 = vpack.c.b16 %v815, %v807
  %v968 = vpack.c.b16 %v816, %v808
  %v969 = vpack.c.b16 %v817, %v809
  %v970 = vpack.c.b16 %v818, %v810
  %v971 = vpack.c.b16 %v819, %v811
  %v972 = vpack.c.b16 %v820, %v812
  %v973 = vpack.c.b16 %v829, %v821
  %v974 = vpack.c.b16 %v830, %v822
  %v975 = vpack.c.b16 %v831, %v823
  %v976 = vpack.c.b16 %v832, %v824
  %v977 = vpack.c.b16 %v833, %v825
  %v978 = vpack.c.b16 %v834, %v826
  %v979 = vpack.c.b16 %v835, %v827
  %v980 = vpack.c.b16 %v836, %v828
  %v981 = vpack.c.b16 %v845, %v837
  %v982 = vpack.c.b16 %v846, %v838
  %v983 = vpack.c.b16 %v847, %v839
  %v984 = vpack.c.b16 %v848, %v840
  %v985 = vpack.c.b16 %v849, %v841
  %v986 = vpack.c.b16 %v850, %v842
  %v987 = vpack.c.b16 %v851, %v843
  %v988 = vpack.c.b16 %v852, %v844
  %v989 = vpack.c.b16 %v861, %v853
  %v990 = vpack.c.b16 %v862, %v854
  %v991 = vpack.c.b16 %v863, %v855
  %v992 = vpack.c.b16 %v864, %v856
  %v993 = vpack.c.b16 %v865, %v857
  %v994 = vpack.c.b16 %v866, %v858
  %v995 = vpack.c.b16 %v867, %v859
  %v996 = vpack.c.b16 %v868, %v860
  %1125 = vmatprep.subr.bf16.mxu0 %v926
  %1126 = vmatpush1.bf16.msra.mxu0 %v925
  %1127 = vmatprep.subr.bf16.mxu0 %v918
  %1128 = vmatpush1.bf16.msra.mxu0 %v917
  %1129 = vmatprep.subr.bf16.mxu0 %v910
  %1130 = vmatpush1.bf16.msra.mxu0 %v909
  %1131 = vmatprep.subr.bf16.mxu0 %v902
  %1132 = vmatpush1.bf16.msra.mxu0 %v901
  %1133 = vmatprep.subr.bf16.mxu0 %v894
  %1134 = vmatpush1.bf16.msra.mxu0 %v893
  %1135 = vmatprep.subr.bf16.mxu0 %v886
  %1136 = vmatpush1.bf16.msra.mxu0 %v885
  %1137 = vmatprep.subr.bf16.mxu0 %v878
  %1138 = vmatpush1.bf16.msra.mxu0 %v877
  %1139 = vmatprep.subr.bf16.mxu0 %v870
  %1140 = vmatpush1.bf16.msra.mxu0 %v869
  %1141 = vmatprep.subr.bf16.mxu0 %v990
  %1142 = vmatpush2.bf16.msra.mxu0 %v989
  %1143 = vmatprep.subr.bf16.mxu0 %v982
  %1144 = vmatpush2.bf16.msra.mxu0 %v981
  %1145 = vmatprep.subr.bf16.mxu0 %v974
  %1146 = vmatpush2.bf16.msra.mxu0 %v973
  %1147 = vmatprep.subr.bf16.mxu0 %v966
  %1148 = vmatpush2.bf16.msra.mxu0 %v965
  %1149 = vmatprep.subr.bf16.mxu0 %v958
  %1150 = vmatpush2.bf16.msra.mxu0 %v957
  %1151 = vmatprep.subr.bf16.mxu0 %v950
  %1152 = vmatpush2.bf16.msra.mxu0 %v949
  %1153 = vmatprep.subr.bf16.mxu0 %v942
  %1154 = vmatpush2.bf16.msra.mxu0 %v941
  %1155 = vmatprep.subr.bf16.mxu0 %v934
  %1156 = vmatpush2.bf16.msra.mxu0 %v933
  %1157 = vmatprep.mubr.bf16.mxu0 %v290
  %1158 = vmatmul.mubr.bf16.gmra.mxu0 %v289
  %v1159 = vpop.f32.mrf.mxu0
  %v1160 = vadd.f32 0.0, %v1159
  %v1161 = vpop.f32.mrf.mxu0
  %v1162 = vadd.f32 0.0, %v1161
  %v1163 = vpop.f32.mrf.mxu0
  %v1164 = vadd.f32 0.0, %v1163
  %v1165 = vpop.f32.mrf.mxu0
  %v1166 = vadd.f32 0.0, %v1165
  %1167 = vmatprep.mubr.bf16.mxu0 %v292
  %1168 = vmatmul.mubr.bf16.gmra.mxu0 %v291
  %v1169 = vpop.f32.mrf.mxu0
  %v1170 = vadd.f32 0.0, %v1169
  %v1171 = vpop.f32.mrf.mxu0
  %v1172 = vadd.f32 0.0, %v1171
  %v1173 = vpop.f32.mrf.mxu0
  %v1174 = vadd.f32 0.0, %v1173
  %v1175 = vpop.f32.mrf.mxu0
  %v1176 = vadd.f32 0.0, %v1175
  %1177 = vdwg.mxu0
  %1178 = vmatprep.subr.bf16.mxu0 %v928
  %1179 = vmatpush1.bf16.msra.mxu0 %v927
  %1180 = vmatprep.subr.bf16.mxu0 %v920
  %1181 = vmatpush1.bf16.msra.mxu0 %v919
  %1182 = vmatprep.subr.bf16.mxu0 %v912
  %1183 = vmatpush1.bf16.msra.mxu0 %v911
  %1184 = vmatprep.subr.bf16.mxu0 %v904
  %1185 = vmatpush1.bf16.msra.mxu0 %v903
  %1186 = vmatprep.subr.bf16.mxu0 %v896
  %1187 = vmatpush1.bf16.msra.mxu0 %v895
  %1188 = vmatprep.subr.bf16.mxu0 %v888
  %1189 = vmatpush1.bf16.msra.mxu0 %v887
  %1190 = vmatprep.subr.bf16.mxu0 %v880
  %1191 = vmatpush1.bf16.msra.mxu0 %v879
  %1192 = vmatprep.subr.bf16.mxu0 %v872
  %1193 = vmatpush1.bf16.msra.mxu0 %v871
  %1194 = vmatprep.subr.bf16.mxu0 %v992
  %1195 = vmatpush2.bf16.msra.mxu0 %v991
  %1196 = vmatprep.subr.bf16.mxu0 %v984
  %1197 = vmatpush2.bf16.msra.mxu0 %v983
  %1198 = vmatprep.subr.bf16.mxu0 %v976
  %1199 = vmatpush2.bf16.msra.mxu0 %v975
  %1200 = vmatprep.subr.bf16.mxu0 %v968
  %1201 = vmatpush2.bf16.msra.mxu0 %v967
  %1202 = vmatprep.subr.bf16.mxu0 %v960
  %1203 = vmatpush2.bf16.msra.mxu0 %v959
  %1204 = vmatprep.subr.bf16.mxu0 %v952
  %1205 = vmatpush2.bf16.msra.mxu0 %v951
  %1206 = vmatprep.subr.bf16.mxu0 %v944
  %1207 = vmatpush2.bf16.msra.mxu0 %v943
  %1208 = vmatprep.subr.bf16.mxu0 %v936
  %1209 = vmatpush2.bf16.msra.mxu0 %v935
  %1210 = vmatprep.mubr.bf16.mxu0 %v290
  %1211 = vmatmul.mubr.bf16.gmra.mxu0 %v289
  %v1212 = vpop.f32.mrf.mxu0
  %v1213 = vadd.f32 0.0, %v1212
  %v1214 = vpop.f32.mrf.mxu0
  %v1215 = vadd.f32 0.0, %v1214
  %v1216 = vpop.f32.mrf.mxu0
  %v1217 = vadd.f32 0.0, %v1216
  %v1218 = vpop.f32.mrf.mxu0
  %v1219 = vadd.f32 0.0, %v1218
  %1220 = vmatprep.mubr.bf16.mxu0 %v292
  %1221 = vmatmul.mubr.bf16.gmra.mxu0 %v291
  %v1222 = vpop.f32.mrf.mxu0
  %v1223 = vadd.f32 0.0, %v1222
  %v1224 = vpop.f32.mrf.mxu0
  %v1225 = vadd.f32 0.0, %v1224
  %v1226 = vpop.f32.mrf.mxu0
  %v1227 = vadd.f32 0.0, %v1226
  %v1228 = vpop.f32.mrf.mxu0
  %v1229 = vadd.f32 0.0, %v1228
  %1230 = vdwg.mxu0
  %1231 = vmatprep.subr.bf16.mxu0 %v930
  %1232 = vmatpush1.bf16.msra.mxu0 %v929
  %1233 = vmatprep.subr.bf16.mxu0 %v922
  %1234 = vmatpush1.bf16.msra.mxu0 %v921
  %1235 = vmatprep.subr.bf16.mxu0 %v914
  %1236 = vmatpush1.bf16.msra.mxu0 %v913
  %1237 = vmatprep.subr.bf16.mxu0 %v906
  %1238 = vmatpush1.bf16.msra.mxu0 %v905
  %1239 = vmatprep.subr.bf16.mxu0 %v898
  %1240 = vmatpush1.bf16.msra.mxu0 %v897
  %1241 = vmatprep.subr.bf16.mxu0 %v890
  %1242 = vmatpush1.bf16.msra.mxu0 %v889
  %1243 = vmatprep.subr.bf16.mxu0 %v882
  %1244 = vmatpush1.bf16.msra.mxu0 %v881
  %1245 = vmatprep.subr.bf16.mxu0 %v874
  %1246 = vmatpush1.bf16.msra.mxu0 %v873
  %1247 = vmatprep.subr.bf16.mxu0 %v994
  %1248 = vmatpush2.bf16.msra.mxu0 %v993
  %1249 = vmatprep.subr.bf16.mxu0 %v986
  %1250 = vmatpush2.bf16.msra.mxu0 %v985
  %1251 = vmatprep.subr.bf16.mxu0 %v978
  %1252 = vmatpush2.bf16.msra.mxu0 %v977
  %1253 = vmatprep.subr.bf16.mxu0 %v970
  %1254 = vmatpush2.bf16.msra.mxu0 %v969
  %1255 = vmatprep.subr.bf16.mxu0 %v962
  %1256 = vmatpush2.bf16.msra.mxu0 %v961
  %1257 = vmatprep.subr.bf16.mxu0 %v954
  %1258 = vmatpush2.bf16.msra.mxu0 %v953
  %1259 = vmatprep.subr.bf16.mxu0 %v946
  %1260 = vmatpush2.bf16.msra.mxu0 %v945
  %1261 = vmatprep.subr.bf16.mxu0 %v938
  %1262 = vmatpush2.bf16.msra.mxu0 %v937
  %1263 = vmatprep.mubr.bf16.mxu0 %v290
  %1264 = vmatmul.mubr.bf16.gmra.mxu0 %v289
  %v1265 = vpop.f32.mrf.mxu0
  %v1266 = vadd.f32 0.0, %v1265
  %v1267 = vpop.f32.mrf.mxu0
  %v1268 = vadd.f32 0.0, %v1267
  %v1269 = vpop.f32.mrf.mxu0
  %v1270 = vadd.f32 0.0, %v1269
  %v1271 = vpop.f32.mrf.mxu0
  %v1272 = vadd.f32 0.0, %v1271
  %1273 = vmatprep.mubr.bf16.mxu0 %v292
  %1274 = vmatmul.mubr.bf16.gmra.mxu0 %v291
  %v1275 = vpop.f32.mrf.mxu0
  %v1276 = vadd.f32 0.0, %v1275
  %v1277 = vpop.f32.mrf.mxu0
  %v1278 = vadd.f32 0.0, %v1277
  %v1279 = vpop.f32.mrf.mxu0
  %v1280 = vadd.f32 0.0, %v1279
  %v1281 = vpop.f32.mrf.mxu0
  %v1282 = vadd.f32 0.0, %v1281
  %1283 = vdwg.mxu0
  %1284 = vmatprep.subr.bf16.mxu0 %v932
  %1285 = vmatpush1.bf16.msra.mxu0 %v931
  %1286 = vmatprep.subr.bf16.mxu0 %v924
  %1287 = vmatpush1.bf16.msra.mxu0 %v923
  %1288 = vmatprep.subr.bf16.mxu0 %v916
  %1289 = vmatpush1.bf16.msra.mxu0 %v915
  %1290 = vmatprep.subr.bf16.mxu0 %v908
  %1291 = vmatpush1.bf16.msra.mxu0 %v907
  %1292 = vmatprep.subr.bf16.mxu0 %v900
  %1293 = vmatpush1.bf16.msra.mxu0 %v899
  %1294 = vmatprep.subr.bf16.mxu0 %v892
  %1295 = vmatpush1.bf16.msra.mxu0 %v891
  %1296 = vmatprep.subr.bf16.mxu0 %v884
  %1297 = vmatpush1.bf16.msra.mxu0 %v883
  %1298 = vmatprep.subr.bf16.mxu0 %v876
  %1299 = vmatpush1.bf16.msra.mxu0 %v875
  %1300 = vmatprep.subr.bf16.mxu0 %v996
  %1301 = vmatpush2.bf16.msra.mxu0 %v995
  %1302 = vmatprep.subr.bf16.mxu0 %v988
  %1303 = vmatpush2.bf16.msra.mxu0 %v987
  %1304 = vmatprep.subr.bf16.mxu0 %v980
  %1305 = vmatpush2.bf16.msra.mxu0 %v979
  %1306 = vmatprep.subr.bf16.mxu0 %v972
  %1307 = vmatpush2.bf16.msra.mxu0 %v971
  %1308 = vmatprep.subr.bf16.mxu0 %v964
  %1309 = vmatpush2.bf16.msra.mxu0 %v963
  %1310 = vmatprep.subr.bf16.mxu0 %v956
  %1311 = vmatpush2.bf16.msra.mxu0 %v955
  %1312 = vmatprep.subr.bf16.mxu0 %v948
  %1313 = vmatpush2.bf16.msra.mxu0 %v947
  %1314 = vmatprep.subr.bf16.mxu0 %v940
  %1315 = vmatpush2.bf16.msra.mxu0 %v939
  %1316 = vmatprep.mubr.bf16.mxu0 %v290
  %1317 = vmatmul.mubr.bf16.gmra.mxu0 %v289
  %v1318 = vpop.f32.mrf.mxu0
  %v1319 = vadd.f32 0.0, %v1318
  %v1320 = vpop.f32.mrf.mxu0
  %v1321 = vadd.f32 0.0, %v1320
  %v1322 = vpop.f32.mrf.mxu0
  %v1323 = vadd.f32 0.0, %v1322
  %v1324 = vpop.f32.mrf.mxu0
  %v1325 = vadd.f32 0.0, %v1324
  %1326 = vmatprep.mubr.bf16.mxu0 %v292
  %1327 = vmatmul.mubr.bf16.gmra.mxu0 %v291
  %v1328 = vpop.f32.mrf.mxu0
  %v1329 = vadd.f32 0.0, %v1328
  %v1330 = vpop.f32.mrf.mxu0
  %v1331 = vadd.f32 0.0, %v1330
  %v1332 = vpop.f32.mrf.mxu0
  %v1333 = vadd.f32 0.0, %v1332
  %v1334 = vpop.f32.mrf.mxu0
  %v1335 = vadd.f32 0.0, %v1334
  %1336 = vdwg.mxu0
  %v1337 = vpack.c.bf16 %v1164, %v1160
  %v1338 = vpack.c.bf16 %v1166, %v1162
  %v1339 = vpack.c.bf16 %v1217, %v1213
  %v1340 = vpack.c.bf16 %v1219, %v1215
  %v1341 = vpack.c.bf16 %v1270, %v1266
  %v1342 = vpack.c.bf16 %v1272, %v1268
  %v1343 = vpack.c.bf16 %v1323, %v1319
  %v1344 = vpack.c.bf16 %v1325, %v1321
  %v1345 = vpack.c.bf16 %v1174, %v1170
  %v1346 = vpack.c.bf16 %v1176, %v1172
  %v1347 = vpack.c.bf16 %v1227, %v1223
  %v1348 = vpack.c.bf16 %v1229, %v1225
  %v1349 = vpack.c.bf16 %v1280, %v1276
  %v1350 = vpack.c.bf16 %v1282, %v1278
  %v1351 = vpack.c.bf16 %v1333, %v1329
  %v1352 = vpack.c.bf16 %v1335, %v1331
  %v1357 = vunpack.c.l.b16 %v425
  %v1358 = vunpack.c.l.b16 %v426
  %v1359 = vunpack.c.l.b16 %v427
  %v1360 = vunpack.c.l.b16 %v428
  %v1361 = vpack.c.b16 %v1358, %v1357
  %v1362 = vpack.c.b16 %v1360, %v1359
  %1364 = vrot.lane.b32.xlu0 %v1337, 64
  %v1365 = vpop.permute.xlu0 %1364
  %v1368 = vsel %vm71, %v1361, 0
  %v1371 = vsel %vm71, %v1362, 0
  %1373 = vmatprep.subr.bf16.mxu0 0
  %1374 = vmatpush1.bf16.msra.mxu0 0
  %1375 = vmatprep.subr.bf16.mxu0 0
  %1376 = vmatpush1.bf16.msra.mxu0 0
  %1377 = vmatprep.subr.bf16.mxu0 0
  %1378 = vmatpush1.bf16.msra.mxu0 0
  %1379 = vmatprep.subr.bf16.mxu0 0
  %1380 = vmatpush1.bf16.msra.mxu0 0
  %1381 = vmatprep.subr.bf16.mxu0 0
  %1382 = vmatpush1.bf16.msra.mxu0 0
  %1383 = vmatprep.subr.bf16.mxu0 0
  %1384 = vmatpush1.bf16.msra.mxu0 0
  %1385 = vmatprep.subr.bf16.mxu0 0
  %1386 = vmatpush1.bf16.msra.mxu0 0
  %1387 = vmatprep.subr.bf16.mxu0 0
  %1388 = vmatpush1.bf16.msra.mxu0 %v1365
  %1389 = vmatprep.subr.bf16.mxu0 0
  %1390 = vmatpush2.bf16.msra.mxu0 0
  %1391 = vmatprep.subr.bf16.mxu0 0
  %1392 = vmatpush2.bf16.msra.mxu0 0
  %1393 = vmatprep.subr.bf16.mxu0 0
  %1394 = vmatpush2.bf16.msra.mxu0 0
  %1395 = vmatprep.subr.bf16.mxu0 0
  %1396 = vmatpush2.bf16.msra.mxu0 0
  %1397 = vmatprep.subr.bf16.mxu0 0
  %1398 = vmatpush2.bf16.msra.mxu0 0
  %1399 = vmatprep.subr.bf16.mxu0 0
  %1400 = vmatpush2.bf16.msra.mxu0 0
  %1401 = vmatprep.subr.bf16.mxu0 0
  %1402 = vmatpush2.bf16.msra.mxu0 0
  %1403 = vmatprep.subr.bf16.mxu0 0
  %1404 = vmatpush2.bf16.msra.mxu0 0
  %1405 = vmatprep.mubr.bf16.mxu0 0
  %1406 = vmatmul.mubr.bf16.gmra.mxu0 %v1368
  %v1407 = vpop.f32.mrf.mxu0
  %v1408 = vadd.f32 0.0, %v1407
  %v1409 = vpop.f32.mrf.mxu0
  %v1410 = vpop.f32.mrf.mxu0
  %v1411 = vadd.f32 0.0, %v1410
  %v1412 = vpop.f32.mrf.mxu0
  %1413 = vmatprep.mubr.bf16.mxu0 0
  %1414 = vmatmul.mubr.bf16.gmra.mxu0 %v1371
  %v1415 = vpop.f32.mrf.mxu0
  %v1416 = vadd.f32 0.0, %v1415
  %v1417 = vpop.f32.mrf.mxu0
  %v1418 = vpop.f32.mrf.mxu0
  %v1419 = vadd.f32 0.0, %v1418
  %v1420 = vpop.f32.mrf.mxu0
  %1421 = vdwg.mxu0
  %1423 = vrot.lane.b32.xlu0 %v1345, 64
  %v1424 = vpop.permute.xlu0 %1423
  %1426 = vmatprep.subr.bf16.mxu0 0
  %1427 = vmatpush1.bf16.msra.mxu0 0
  %1428 = vmatprep.subr.bf16.mxu0 0
  %1429 = vmatpush1.bf16.msra.mxu0 0
  %1430 = vmatprep.subr.bf16.mxu0 0
  %1431 = vmatpush1.bf16.msra.mxu0 0
  %1432 = vmatprep.subr.bf16.mxu0 0
  %1433 = vmatpush1.bf16.msra.mxu0 0
  %1434 = vmatprep.subr.bf16.mxu0 0
  %1435 = vmatpush1.bf16.msra.mxu0 0
  %1436 = vmatprep.subr.bf16.mxu0 0
  %1437 = vmatpush1.bf16.msra.mxu0 0
  %1438 = vmatprep.subr.bf16.mxu0 0
  %1439 = vmatpush1.bf16.msra.mxu0 0
  %1440 = vmatprep.subr.bf16.mxu0 0
  %1441 = vmatpush1.bf16.msra.mxu0 %v1424
  %1442 = vmatprep.subr.bf16.mxu0 0
  %1443 = vmatpush2.bf16.msra.mxu0 0
  %1444 = vmatprep.subr.bf16.mxu0 0
  %1445 = vmatpush2.bf16.msra.mxu0 0
  %1446 = vmatprep.subr.bf16.mxu0 0
  %1447 = vmatpush2.bf16.msra.mxu0 0
  %1448 = vmatprep.subr.bf16.mxu0 0
  %1449 = vmatpush2.bf16.msra.mxu0 0
  %1450 = vmatprep.subr.bf16.mxu0 0
  %1451 = vmatpush2.bf16.msra.mxu0 0
  %1452 = vmatprep.subr.bf16.mxu0 0
  %1453 = vmatpush2.bf16.msra.mxu0 0
  %1454 = vmatprep.subr.bf16.mxu0 0
  %1455 = vmatpush2.bf16.msra.mxu0 0
  %1456 = vmatprep.subr.bf16.mxu0 0
  %1457 = vmatpush2.bf16.msra.mxu0 0
  %1458 = vmatprep.mubr.bf16.mxu0 0
  %1459 = vmatmul.mubr.bf16.gmra.mxu0 %v1368
  %v1460 = vpop.f32.mrf.mxu0
  %v1461 = vadd.f32 0.0, %v1460
  %v1462 = vpop.f32.mrf.mxu0
  %v1463 = vpop.f32.mrf.mxu0
  %v1464 = vadd.f32 0.0, %v1463
  %v1465 = vpop.f32.mrf.mxu0
  %1466 = vmatprep.mubr.bf16.mxu0 0
  %1467 = vmatmul.mubr.bf16.gmra.mxu0 %v1371
  %v1468 = vpop.f32.mrf.mxu0
  %v1469 = vadd.f32 0.0, %v1468
  %v1470 = vpop.f32.mrf.mxu0
  %v1471 = vpop.f32.mrf.mxu0
  %v1472 = vadd.f32 0.0, %v1471
  %v1473 = vpop.f32.mrf.mxu0
  %1474 = vdwg.mxu0
  %v1479 = vunpack.c.l.b16 %v421
  %v1480 = vunpack.c.l.b16 %v422
  %v1481 = vunpack.c.l.b16 %v423
  %v1482 = vunpack.c.l.b16 %v424
  %v1483 = vpack.c.b16 %v1480, %v1479
  %v1484 = vpack.c.b16 %v1482, %v1481
  %v1486 = vsel %vm71, %v1483, 0
  %v1489 = vsel %vm71, %v1484, 0
  %1491 = vmatprep.subr.bf16.mxu0 0
  %1492 = vmatpush1.bf16.msra.mxu0 0
  %1493 = vmatprep.subr.bf16.mxu0 0
  %1494 = vmatpush1.bf16.msra.mxu0 0
  %1495 = vmatprep.subr.bf16.mxu0 0
  %1496 = vmatpush1.bf16.msra.mxu0 0
  %1497 = vmatprep.subr.bf16.mxu0 0
  %1498 = vmatpush1.bf16.msra.mxu0 0
  %1499 = vmatprep.subr.bf16.mxu0 0
  %1500 = vmatpush1.bf16.msra.mxu0 0
  %1501 = vmatprep.subr.bf16.mxu0 0
  %1502 = vmatpush1.bf16.msra.mxu0 0
  %1503 = vmatprep.subr.bf16.mxu0 0
  %1504 = vmatpush1.bf16.msra.mxu0 0
  %1505 = vmatprep.subr.bf16.mxu0 0
  %1506 = vmatpush1.bf16.msra.mxu0 %v1337
  %1507 = vmatprep.subr.bf16.mxu0 0
  %1508 = vmatpush2.bf16.msra.mxu0 0
  %1509 = vmatprep.subr.bf16.mxu0 0
  %1510 = vmatpush2.bf16.msra.mxu0 0
  %1511 = vmatprep.subr.bf16.mxu0 0
  %1512 = vmatpush2.bf16.msra.mxu0 0
  %1513 = vmatprep.subr.bf16.mxu0 0
  %1514 = vmatpush2.bf16.msra.mxu0 0
  %1515 = vmatprep.subr.bf16.mxu0 0
  %1516 = vmatpush2.bf16.msra.mxu0 0
  %1517 = vmatprep.subr.bf16.mxu0 0
  %1518 = vmatpush2.bf16.msra.mxu0 0
  %1519 = vmatprep.subr.bf16.mxu0 0
  %1520 = vmatpush2.bf16.msra.mxu0 0
  %1521 = vmatprep.subr.bf16.mxu0 0
  %1522 = vmatpush2.bf16.msra.mxu0 0
  %1523 = vmatprep.mubr.bf16.mxu0 0
  %1524 = vmatmul.mubr.bf16.gmra.mxu0 %v1486
  %v1525 = vpop.f32.mrf.mxu0
  %v1526 = vadd.f32 %v1408, %v1525
  %v1527 = vpop.f32.mrf.mxu0
  %v1528 = vpop.f32.mrf.mxu0
  %v1529 = vadd.f32 %v1411, %v1528
  %v1530 = vpop.f32.mrf.mxu0
  %1531 = vmatprep.mubr.bf16.mxu0 0
  %1532 = vmatmul.mubr.bf16.gmra.mxu0 %v1489
  %v1533 = vpop.f32.mrf.mxu0
  %v1534 = vadd.f32 %v1416, %v1533
  %v1535 = vpop.f32.mrf.mxu0
  %v1536 = vpop.f32.mrf.mxu0
  %v1537 = vadd.f32 %v1419, %v1536
  %v1538 = vpop.f32.mrf.mxu0
  %1539 = vdwg.mxu0
  %1540 = vmatprep.subr.bf16.mxu0 0
  %1541 = vmatpush1.bf16.msra.mxu0 0
  %1542 = vmatprep.subr.bf16.mxu0 0
  %1543 = vmatpush1.bf16.msra.mxu0 0
  %1544 = vmatprep.subr.bf16.mxu0 0
  %1545 = vmatpush1.bf16.msra.mxu0 0
  %1546 = vmatprep.subr.bf16.mxu0 0
  %1547 = vmatpush1.bf16.msra.mxu0 0
  %1548 = vmatprep.subr.bf16.mxu0 0
  %1549 = vmatpush1.bf16.msra.mxu0 0
  %1550 = vmatprep.subr.bf16.mxu0 0
  %1551 = vmatpush1.bf16.msra.mxu0 0
  %1552 = vmatprep.subr.bf16.mxu0 0
  %1553 = vmatpush1.bf16.msra.mxu0 0
  %1554 = vmatprep.subr.bf16.mxu0 0
  %1555 = vmatpush1.bf16.msra.mxu0 %v1345
  %1556 = vmatprep.subr.bf16.mxu0 0
  %1557 = vmatpush2.bf16.msra.mxu0 0
  %1558 = vmatprep.subr.bf16.mxu0 0
  %1559 = vmatpush2.bf16.msra.mxu0 0
  %1560 = vmatprep.subr.bf16.mxu0 0
  %1561 = vmatpush2.bf16.msra.mxu0 0
  %1562 = vmatprep.subr.bf16.mxu0 0
  %1563 = vmatpush2.bf16.msra.mxu0 0
  %1564 = vmatprep.subr.bf16.mxu0 0
  %1565 = vmatpush2.bf16.msra.mxu0 0
  %1566 = vmatprep.subr.bf16.mxu0 0
  %1567 = vmatpush2.bf16.msra.mxu0 0
  %1568 = vmatprep.subr.bf16.mxu0 0
  %1569 = vmatpush2.bf16.msra.mxu0 0
  %1570 = vmatprep.subr.bf16.mxu0 0
  %1571 = vmatpush2.bf16.msra.mxu0 0
  %1572 = vmatprep.mubr.bf16.mxu0 0
  %1573 = vmatmul.mubr.bf16.gmra.mxu0 %v1486
  %v1574 = vpop.f32.mrf.mxu0
  %v1575 = vadd.f32 %v1461, %v1574
  %v1576 = vpop.f32.mrf.mxu0
  %v1577 = vpop.f32.mrf.mxu0
  %v1578 = vadd.f32 %v1464, %v1577
  %v1579 = vpop.f32.mrf.mxu0
  %1580 = vmatprep.mubr.bf16.mxu0 0
  %1581 = vmatmul.mubr.bf16.gmra.mxu0 %v1489
  %v1582 = vpop.f32.mrf.mxu0
  %v1583 = vadd.f32 %v1469, %v1582
  %v1584 = vpop.f32.mrf.mxu0
  %v1585 = vpop.f32.mrf.mxu0
  %v1586 = vadd.f32 %v1472, %v1585
  %v1587 = vpop.f32.mrf.mxu0
  %1588 = vdwg.mxu0
  %v1593 = vunpack.c.l.b16 %v429
  %v1594 = vunpack.c.l.b16 %v430
  %v1595 = vunpack.c.l.b16 %v431
  %v1596 = vunpack.c.l.b16 %v432
  %v1597 = vpack.c.b16 %v1594, %v1593
  %v1598 = vpack.c.b16 %v1596, %v1595
  %v1600 = vsel %vm71, %v1597, 0
  %v1603 = vsel %vm71, %v1598, 0
  %1605 = vmatprep.subr.bf16.mxu0 0
  %1606 = vmatpush1.bf16.msra.mxu0 0
  %1607 = vmatprep.subr.bf16.mxu0 0
  %1608 = vmatpush1.bf16.msra.mxu0 0
  %1609 = vmatprep.subr.bf16.mxu0 0
  %1610 = vmatpush1.bf16.msra.mxu0 0
  %1611 = vmatprep.subr.bf16.mxu0 0
  %1612 = vmatpush1.bf16.msra.mxu0 0
  %1613 = vmatprep.subr.bf16.mxu0 0
  %1614 = vmatpush1.bf16.msra.mxu0 0
  %1615 = vmatprep.subr.bf16.mxu0 0
  %1616 = vmatpush1.bf16.msra.mxu0 0
  %1617 = vmatprep.subr.bf16.mxu0 0
  %1618 = vmatpush1.bf16.msra.mxu0 0
  %1619 = vmatprep.subr.bf16.mxu0 0
  %1620 = vmatpush1.bf16.msra.mxu0 %v1338
  %1621 = vmatprep.subr.bf16.mxu0 0
  %1622 = vmatpush2.bf16.msra.mxu0 0
  %1623 = vmatprep.subr.bf16.mxu0 0
  %1624 = vmatpush2.bf16.msra.mxu0 0
  %1625 = vmatprep.subr.bf16.mxu0 0
  %1626 = vmatpush2.bf16.msra.mxu0 0
  %1627 = vmatprep.subr.bf16.mxu0 0
  %1628 = vmatpush2.bf16.msra.mxu0 0
  %1629 = vmatprep.subr.bf16.mxu0 0
  %1630 = vmatpush2.bf16.msra.mxu0 0
  %1631 = vmatprep.subr.bf16.mxu0 0
  %1632 = vmatpush2.bf16.msra.mxu0 0
  %1633 = vmatprep.subr.bf16.mxu0 0
  %1634 = vmatpush2.bf16.msra.mxu0 0
  %1635 = vmatprep.subr.bf16.mxu0 0
  %1636 = vmatpush2.bf16.msra.mxu0 0
  %1637 = vmatprep.mubr.bf16.mxu0 0
  %1638 = vmatmul.mubr.bf16.gmra.mxu0 %v1600
  %v1639 = vpop.f32.mrf.mxu0
  %v1640 = vadd.f32 0.0, %v1639
  %v1641 = vpop.f32.mrf.mxu0
  %v1642 = vpop.f32.mrf.mxu0
  %v1643 = vadd.f32 0.0, %v1642
  %v1644 = vpop.f32.mrf.mxu0
  %1645 = vmatprep.mubr.bf16.mxu0 0
  %1646 = vmatmul.mubr.bf16.gmra.mxu0 %v1603
  %v1647 = vpop.f32.mrf.mxu0
  %v1648 = vadd.f32 0.0, %v1647
  %v1649 = vpop.f32.mrf.mxu0
  %v1650 = vpop.f32.mrf.mxu0
  %v1651 = vadd.f32 0.0, %v1650
  %v1652 = vpop.f32.mrf.mxu0
  %1653 = vdwg.mxu0
  %1654 = vmatprep.subr.bf16.mxu0 0
  %1655 = vmatpush1.bf16.msra.mxu0 0
  %1656 = vmatprep.subr.bf16.mxu0 0
  %1657 = vmatpush1.bf16.msra.mxu0 0
  %1658 = vmatprep.subr.bf16.mxu0 0
  %1659 = vmatpush1.bf16.msra.mxu0 0
  %1660 = vmatprep.subr.bf16.mxu0 0
  %1661 = vmatpush1.bf16.msra.mxu0 0
  %1662 = vmatprep.subr.bf16.mxu0 0
  %1663 = vmatpush1.bf16.msra.mxu0 0
  %1664 = vmatprep.subr.bf16.mxu0 0
  %1665 = vmatpush1.bf16.msra.mxu0 0
  %1666 = vmatprep.subr.bf16.mxu0 0
  %1667 = vmatpush1.bf16.msra.mxu0 0
  %1668 = vmatprep.subr.bf16.mxu0 0
  %1669 = vmatpush1.bf16.msra.mxu0 %v1346
  %1670 = vmatprep.subr.bf16.mxu0 0
  %1671 = vmatpush2.bf16.msra.mxu0 0
  %1672 = vmatprep.subr.bf16.mxu0 0
  %1673 = vmatpush2.bf16.msra.mxu0 0
  %1674 = vmatprep.subr.bf16.mxu0 0
  %1675 = vmatpush2.bf16.msra.mxu0 0
  %1676 = vmatprep.subr.bf16.mxu0 0
  %1677 = vmatpush2.bf16.msra.mxu0 0
  %1678 = vmatprep.subr.bf16.mxu0 0
  %1679 = vmatpush2.bf16.msra.mxu0 0
  %1680 = vmatprep.subr.bf16.mxu0 0
  %1681 = vmatpush2.bf16.msra.mxu0 0
  %1682 = vmatprep.subr.bf16.mxu0 0
  %1683 = vmatpush2.bf16.msra.mxu0 0
  %1684 = vmatprep.subr.bf16.mxu0 0
  %1685 = vmatpush2.bf16.msra.mxu0 0
  %1686 = vmatprep.mubr.bf16.mxu0 0
  %1687 = vmatmul.mubr.bf16.gmra.mxu0 %v1600
  %v1688 = vpop.f32.mrf.mxu0
  %v1689 = vadd.f32 0.0, %v1688
  %v1690 = vpop.f32.mrf.mxu0
  %v1691 = vpop.f32.mrf.mxu0
  %v1692 = vadd.f32 0.0, %v1691
  %v1693 = vpop.f32.mrf.mxu0
  %1694 = vmatprep.mubr.bf16.mxu0 0
  %1695 = vmatmul.mubr.bf16.gmra.mxu0 %v1603
  %v1696 = vpop.f32.mrf.mxu0
  %v1697 = vadd.f32 0.0, %v1696
  %v1698 = vpop.f32.mrf.mxu0
  %v1699 = vpop.f32.mrf.mxu0
  %v1700 = vadd.f32 0.0, %v1699
  %v1701 = vpop.f32.mrf.mxu0
  %1702 = vdwg.mxu0
  %v1703 = vadd.f32 %v1526, %v1640
  %v1704 = vadd.f32 %v1529, %v1643
  %v1705 = vadd.f32 %v1534, %v1648
  %v1706 = vadd.f32 %v1537, %v1651
  %v1707 = vadd.f32 %v1575, %v1689
  %v1708 = vadd.f32 %v1578, %v1692
  %v1709 = vadd.f32 %v1583, %v1697
  %v1710 = vadd.f32 %v1586, %v1700
  %v1715 = vunpack.c.l.b16 %v433
  %v1716 = vunpack.c.l.b16 %v434
  %v1717 = vunpack.c.l.b16 %v435
  %v1718 = vunpack.c.l.b16 %v436
  %v1719 = vpack.c.b16 %v1716, %v1715
  %v1720 = vpack.c.b16 %v1718, %v1717
  %1722 = vrot.lane.b32.xlu0 %v1338, 64
  %v1723 = vpop.permute.xlu0 %1722
  %v1726 = vsel %vm71, %v1719, 0
  %v1729 = vsel %vm71, %v1720, 0
  %1731 = vmatprep.subr.bf16.mxu0 0
  %1732 = vmatpush1.bf16.msra.mxu0 0
  %1733 = vmatprep.subr.bf16.mxu0 0
  %1734 = vmatpush1.bf16.msra.mxu0 0
  %1735 = vmatprep.subr.bf16.mxu0 0
  %1736 = vmatpush1.bf16.msra.mxu0 0
  %1737 = vmatprep.subr.bf16.mxu0 0
  %1738 = vmatpush1.bf16.msra.mxu0 0
  %1739 = vmatprep.subr.bf16.mxu0 0
  %1740 = vmatpush1.bf16.msra.mxu0 0
  %1741 = vmatprep.subr.bf16.mxu0 0
  %1742 = vmatpush1.bf16.msra.mxu0 0
  %1743 = vmatprep.subr.bf16.mxu0 0
  %1744 = vmatpush1.bf16.msra.mxu0 0
  %1745 = vmatprep.subr.bf16.mxu0 0
  %1746 = vmatpush1.bf16.msra.mxu0 %v1723
  %1747 = vmatprep.subr.bf16.mxu0 0
  %1748 = vmatpush2.bf16.msra.mxu0 0
  %1749 = vmatprep.subr.bf16.mxu0 0
  %1750 = vmatpush2.bf16.msra.mxu0 0
  %1751 = vmatprep.subr.bf16.mxu0 0
  %1752 = vmatpush2.bf16.msra.mxu0 0
  %1753 = vmatprep.subr.bf16.mxu0 0
  %1754 = vmatpush2.bf16.msra.mxu0 0
  %1755 = vmatprep.subr.bf16.mxu0 0
  %1756 = vmatpush2.bf16.msra.mxu0 0
  %1757 = vmatprep.subr.bf16.mxu0 0
  %1758 = vmatpush2.bf16.msra.mxu0 0
  %1759 = vmatprep.subr.bf16.mxu0 0
  %1760 = vmatpush2.bf16.msra.mxu0 0
  %1761 = vmatprep.subr.bf16.mxu0 0
  %1762 = vmatpush2.bf16.msra.mxu0 0
  %1763 = vmatprep.mubr.bf16.mxu0 0
  %1764 = vmatmul.mubr.bf16.gmra.mxu0 %v1726
  %v1765 = vpop.f32.mrf.mxu0
  %v1766 = vadd.f32 0.0, %v1765
  %v1767 = vpop.f32.mrf.mxu0
  %v1768 = vpop.f32.mrf.mxu0
  %v1769 = vadd.f32 0.0, %v1768
  %v1770 = vpop.f32.mrf.mxu0
  %1771 = vmatprep.mubr.bf16.mxu0 0
  %1772 = vmatmul.mubr.bf16.gmra.mxu0 %v1729
  %v1773 = vpop.f32.mrf.mxu0
  %v1774 = vadd.f32 0.0, %v1773
  %v1775 = vpop.f32.mrf.mxu0
  %v1776 = vpop.f32.mrf.mxu0
  %v1777 = vadd.f32 0.0, %v1776
  %v1778 = vpop.f32.mrf.mxu0
  %1779 = vdwg.mxu0
  %1781 = vrot.lane.b32.xlu0 %v1346, 64
  %v1782 = vpop.permute.xlu0 %1781
  %1784 = vmatprep.subr.bf16.mxu0 0
  %1785 = vmatpush1.bf16.msra.mxu0 0
  %1786 = vmatprep.subr.bf16.mxu0 0
  %1787 = vmatpush1.bf16.msra.mxu0 0
  %1788 = vmatprep.subr.bf16.mxu0 0
  %1789 = vmatpush1.bf16.msra.mxu0 0
  %1790 = vmatprep.subr.bf16.mxu0 0
  %1791 = vmatpush1.bf16.msra.mxu0 0
  %1792 = vmatprep.subr.bf16.mxu0 0
  %1793 = vmatpush1.bf16.msra.mxu0 0
  %1794 = vmatprep.subr.bf16.mxu0 0
  %1795 = vmatpush1.bf16.msra.mxu0 0
  %1796 = vmatprep.subr.bf16.mxu0 0
  %1797 = vmatpush1.bf16.msra.mxu0 0
  %1798 = vmatprep.subr.bf16.mxu0 0
  %1799 = vmatpush1.bf16.msra.mxu0 %v1782
  %1800 = vmatprep.subr.bf16.mxu0 0
  %1801 = vmatpush2.bf16.msra.mxu0 0
  %1802 = vmatprep.subr.bf16.mxu0 0
  %1803 = vmatpush2.bf16.msra.mxu0 0
  %1804 = vmatprep.subr.bf16.mxu0 0
  %1805 = vmatpush2.bf16.msra.mxu0 0
  %1806 = vmatprep.subr.bf16.mxu0 0
  %1807 = vmatpush2.bf16.msra.mxu0 0
  %1808 = vmatprep.subr.bf16.mxu0 0
  %1809 = vmatpush2.bf16.msra.mxu0 0
  %1810 = vmatprep.subr.bf16.mxu0 0
  %1811 = vmatpush2.bf16.msra.mxu0 0
  %1812 = vmatprep.subr.bf16.mxu0 0
  %1813 = vmatpush2.bf16.msra.mxu0 0
  %1814 = vmatprep.subr.bf16.mxu0 0
  %1815 = vmatpush2.bf16.msra.mxu0 0
  %1816 = vmatprep.mubr.bf16.mxu0 0
  %1817 = vmatmul.mubr.bf16.gmra.mxu0 %v1726
  %v1818 = vpop.f32.mrf.mxu0
  %v1819 = vadd.f32 0.0, %v1818
  %v1820 = vpop.f32.mrf.mxu0
  %v1821 = vpop.f32.mrf.mxu0
  %v1822 = vadd.f32 0.0, %v1821
  %v1823 = vpop.f32.mrf.mxu0
  %1824 = vmatprep.mubr.bf16.mxu0 0
  %1825 = vmatmul.mubr.bf16.gmra.mxu0 %v1729
  %v1826 = vpop.f32.mrf.mxu0
  %v1827 = vadd.f32 0.0, %v1826
  %v1828 = vpop.f32.mrf.mxu0
  %v1829 = vpop.f32.mrf.mxu0
  %v1830 = vadd.f32 0.0, %v1829
  %v1831 = vpop.f32.mrf.mxu0
  %1832 = vdwg.mxu0
  %v1833 = vadd.f32 %v1703, %v1766
  %v1834 = vadd.f32 %v1704, %v1769
  %v1835 = vadd.f32 %v1705, %v1774
  %v1836 = vadd.f32 %v1706, %v1777
  %v1837 = vadd.f32 %v1707, %v1819
  %v1838 = vadd.f32 %v1708, %v1822
  %v1839 = vadd.f32 %v1709, %v1827
  %v1840 = vadd.f32 %v1710, %v1830
  %v1845 = vunpack.c.l.b16 %v437
  %v1846 = vunpack.c.l.b16 %v438
  %v1847 = vunpack.c.l.b16 %v439
  %v1848 = vunpack.c.l.b16 %v440
  %v1849 = vpack.c.b16 %v1846, %v1845
  %v1850 = vpack.c.b16 %v1848, %v1847
  %v1852 = vsel %vm71, %v1849, 0
  %v1855 = vsel %vm71, %v1850, 0
  %1857 = vmatprep.subr.bf16.mxu0 0
  %1858 = vmatpush1.bf16.msra.mxu0 0
  %1859 = vmatprep.subr.bf16.mxu0 0
  %1860 = vmatpush1.bf16.msra.mxu0 0
  %1861 = vmatprep.subr.bf16.mxu0 0
  %1862 = vmatpush1.bf16.msra.mxu0 0
  %1863 = vmatprep.subr.bf16.mxu0 0
  %1864 = vmatpush1.bf16.msra.mxu0 0
  %1865 = vmatprep.subr.bf16.mxu0 0
  %1866 = vmatpush1.bf16.msra.mxu0 0
  %1867 = vmatprep.subr.bf16.mxu0 0
  %1868 = vmatpush1.bf16.msra.mxu0 0
  %1869 = vmatprep.subr.bf16.mxu0 0
  %1870 = vmatpush1.bf16.msra.mxu0 0
  %1871 = vmatprep.subr.bf16.mxu0 0
  %1872 = vmatpush1.bf16.msra.mxu0 %v1339
  %1873 = vmatprep.subr.bf16.mxu0 0
  %1874 = vmatpush2.bf16.msra.mxu0 0
  %1875 = vmatprep.subr.bf16.mxu0 0
  %1876 = vmatpush2.bf16.msra.mxu0 0
  %1877 = vmatprep.subr.bf16.mxu0 0
  %1878 = vmatpush2.bf16.msra.mxu0 0
  %1879 = vmatprep.subr.bf16.mxu0 0
  %1880 = vmatpush2.bf16.msra.mxu0 0
  %1881 = vmatprep.subr.bf16.mxu0 0
  %1882 = vmatpush2.bf16.msra.mxu0 0
  %1883 = vmatprep.subr.bf16.mxu0 0
  %1884 = vmatpush2.bf16.msra.mxu0 0
  %1885 = vmatprep.subr.bf16.mxu0 0
  %1886 = vmatpush2.bf16.msra.mxu0 0
  %1887 = vmatprep.subr.bf16.mxu0 0
  %1888 = vmatpush2.bf16.msra.mxu0 0
  %1889 = vmatprep.mubr.bf16.mxu0 0
  %1890 = vmatmul.mubr.bf16.gmra.mxu0 %v1852
  %v1891 = vpop.f32.mrf.mxu0
  %v1892 = vadd.f32 0.0, %v1891
  %v1893 = vpop.f32.mrf.mxu0
  %v1894 = vpop.f32.mrf.mxu0
  %v1895 = vadd.f32 0.0, %v1894
  %v1896 = vpop.f32.mrf.mxu0
  %1897 = vmatprep.mubr.bf16.mxu0 0
  %1898 = vmatmul.mubr.bf16.gmra.mxu0 %v1855
  %v1899 = vpop.f32.mrf.mxu0
  %v1900 = vadd.f32 0.0, %v1899
  %v1901 = vpop.f32.mrf.mxu0
  %v1902 = vpop.f32.mrf.mxu0
  %v1903 = vadd.f32 0.0, %v1902
  %v1904 = vpop.f32.mrf.mxu0
  %1905 = vdwg.mxu0
  %1906 = vmatprep.subr.bf16.mxu0 0
  %1907 = vmatpush1.bf16.msra.mxu0 0
  %1908 = vmatprep.subr.bf16.mxu0 0
  %1909 = vmatpush1.bf16.msra.mxu0 0
  %1910 = vmatprep.subr.bf16.mxu0 0
  %1911 = vmatpush1.bf16.msra.mxu0 0
  %1912 = vmatprep.subr.bf16.mxu0 0
  %1913 = vmatpush1.bf16.msra.mxu0 0
  %1914 = vmatprep.subr.bf16.mxu0 0
  %1915 = vmatpush1.bf16.msra.mxu0 0
  %1916 = vmatprep.subr.bf16.mxu0 0
  %1917 = vmatpush1.bf16.msra.mxu0 0
  %1918 = vmatprep.subr.bf16.mxu0 0
  %1919 = vmatpush1.bf16.msra.mxu0 0
  %1920 = vmatprep.subr.bf16.mxu0 0
  %1921 = vmatpush1.bf16.msra.mxu0 %v1347
  %1922 = vmatprep.subr.bf16.mxu0 0
  %1923 = vmatpush2.bf16.msra.mxu0 0
  %1924 = vmatprep.subr.bf16.mxu0 0
  %1925 = vmatpush2.bf16.msra.mxu0 0
  %1926 = vmatprep.subr.bf16.mxu0 0
  %1927 = vmatpush2.bf16.msra.mxu0 0
  %1928 = vmatprep.subr.bf16.mxu0 0
  %1929 = vmatpush2.bf16.msra.mxu0 0
  %1930 = vmatprep.subr.bf16.mxu0 0
  %1931 = vmatpush2.bf16.msra.mxu0 0
  %1932 = vmatprep.subr.bf16.mxu0 0
  %1933 = vmatpush2.bf16.msra.mxu0 0
  %1934 = vmatprep.subr.bf16.mxu0 0
  %1935 = vmatpush2.bf16.msra.mxu0 0
  %1936 = vmatprep.subr.bf16.mxu0 0
  %1937 = vmatpush2.bf16.msra.mxu0 0
  %1938 = vmatprep.mubr.bf16.mxu0 0
  %1939 = vmatmul.mubr.bf16.gmra.mxu0 %v1852
  %v1940 = vpop.f32.mrf.mxu0
  %v1941 = vadd.f32 0.0, %v1940
  %v1942 = vpop.f32.mrf.mxu0
  %v1943 = vpop.f32.mrf.mxu0
  %v1944 = vadd.f32 0.0, %v1943
  %v1945 = vpop.f32.mrf.mxu0
  %1946 = vmatprep.mubr.bf16.mxu0 0
  %1947 = vmatmul.mubr.bf16.gmra.mxu0 %v1855
  %v1948 = vpop.f32.mrf.mxu0
  %v1949 = vadd.f32 0.0, %v1948
  %v1950 = vpop.f32.mrf.mxu0
  %v1951 = vpop.f32.mrf.mxu0
  %v1952 = vadd.f32 0.0, %v1951
  %v1953 = vpop.f32.mrf.mxu0
  %1954 = vdwg.mxu0
  %v1955 = vadd.f32 %v1833, %v1892
  %v1956 = vadd.f32 %v1834, %v1895
  %v1957 = vadd.f32 %v1835, %v1900
  %v1958 = vadd.f32 %v1836, %v1903
  %v1959 = vadd.f32 %v1837, %v1941
  %v1960 = vadd.f32 %v1838, %v1944
  %v1961 = vadd.f32 %v1839, %v1949
  %v1962 = vadd.f32 %v1840, %v1952
  %v1967 = vunpack.c.l.b16 %v441
  %v1968 = vunpack.c.l.b16 %v442
  %v1969 = vunpack.c.l.b16 %v443
  %v1970 = vunpack.c.l.b16 %v444
  %v1971 = vpack.c.b16 %v1968, %v1967
  %v1972 = vpack.c.b16 %v1970, %v1969
  %1974 = vrot.lane.b32.xlu0 %v1339, 64
  %v1975 = vpop.permute.xlu0 %1974
  %v1978 = vsel %vm71, %v1971, 0
  %v1981 = vsel %vm71, %v1972, 0
  %1983 = vmatprep.subr.bf16.mxu0 0
  %1984 = vmatpush1.bf16.msra.mxu0 0
  %1985 = vmatprep.subr.bf16.mxu0 0
  %1986 = vmatpush1.bf16.msra.mxu0 0
  %1987 = vmatprep.subr.bf16.mxu0 0
  %1988 = vmatpush1.bf16.msra.mxu0 0
  %1989 = vmatprep.subr.bf16.mxu0 0
  %1990 = vmatpush1.bf16.msra.mxu0 0
  %1991 = vmatprep.subr.bf16.mxu0 0
  %1992 = vmatpush1.bf16.msra.mxu0 0
  %1993 = vmatprep.subr.bf16.mxu0 0
  %1994 = vmatpush1.bf16.msra.mxu0 0
  %1995 = vmatprep.subr.bf16.mxu0 0
  %1996 = vmatpush1.bf16.msra.mxu0 0
  %1997 = vmatprep.subr.bf16.mxu0 0
  %1998 = vmatpush1.bf16.msra.mxu0 %v1975
  %1999 = vmatprep.subr.bf16.mxu0 0
  %2000 = vmatpush2.bf16.msra.mxu0 0
  %2001 = vmatprep.subr.bf16.mxu0 0
  %2002 = vmatpush2.bf16.msra.mxu0 0
  %2003 = vmatprep.subr.bf16.mxu0 0
  %2004 = vmatpush2.bf16.msra.mxu0 0
  %2005 = vmatprep.subr.bf16.mxu0 0
  %2006 = vmatpush2.bf16.msra.mxu0 0
  %2007 = vmatprep.subr.bf16.mxu0 0
  %2008 = vmatpush2.bf16.msra.mxu0 0
  %2009 = vmatprep.subr.bf16.mxu0 0
  %2010 = vmatpush2.bf16.msra.mxu0 0
  %2011 = vmatprep.subr.bf16.mxu0 0
  %2012 = vmatpush2.bf16.msra.mxu0 0
  %2013 = vmatprep.subr.bf16.mxu0 0
  %2014 = vmatpush2.bf16.msra.mxu0 0
  %2015 = vmatprep.mubr.bf16.mxu0 0
  %2016 = vmatmul.mubr.bf16.gmra.mxu0 %v1978
  %v2017 = vpop.f32.mrf.mxu0
  %v2018 = vadd.f32 0.0, %v2017
  %v2019 = vpop.f32.mrf.mxu0
  %v2020 = vpop.f32.mrf.mxu0
  %v2021 = vadd.f32 0.0, %v2020
  %v2022 = vpop.f32.mrf.mxu0
  %2023 = vmatprep.mubr.bf16.mxu0 0
  %2024 = vmatmul.mubr.bf16.gmra.mxu0 %v1981
  %v2025 = vpop.f32.mrf.mxu0
  %v2026 = vadd.f32 0.0, %v2025
  %v2027 = vpop.f32.mrf.mxu0
  %v2028 = vpop.f32.mrf.mxu0
  %v2029 = vadd.f32 0.0, %v2028
  %v2030 = vpop.f32.mrf.mxu0
  %2031 = vdwg.mxu0
  %2033 = vrot.lane.b32.xlu0 %v1347, 64
  %v2034 = vpop.permute.xlu0 %2033
  %2036 = vmatprep.subr.bf16.mxu0 0
  %2037 = vmatpush1.bf16.msra.mxu0 0
  %2038 = vmatprep.subr.bf16.mxu0 0
  %2039 = vmatpush1.bf16.msra.mxu0 0
  %2040 = vmatprep.subr.bf16.mxu0 0
  %2041 = vmatpush1.bf16.msra.mxu0 0
  %2042 = vmatprep.subr.bf16.mxu0 0
  %2043 = vmatpush1.bf16.msra.mxu0 0
  %2044 = vmatprep.subr.bf16.mxu0 0
  %2045 = vmatpush1.bf16.msra.mxu0 0
  %2046 = vmatprep.subr.bf16.mxu0 0
  %2047 = vmatpush1.bf16.msra.mxu0 0
  %2048 = vmatprep.subr.bf16.mxu0 0
  %2049 = vmatpush1.bf16.msra.mxu0 0
  %2050 = vmatprep.subr.bf16.mxu0 0
  %2051 = vmatpush1.bf16.msra.mxu0 %v2034
  %2052 = vmatprep.subr.bf16.mxu0 0
  %2053 = vmatpush2.bf16.msra.mxu0 0
  %2054 = vmatprep.subr.bf16.mxu0 0
  %2055 = vmatpush2.bf16.msra.mxu0 0
  %2056 = vmatprep.subr.bf16.mxu0 0
  %2057 = vmatpush2.bf16.msra.mxu0 0
  %2058 = vmatprep.subr.bf16.mxu0 0
  %2059 = vmatpush2.bf16.msra.mxu0 0
  %2060 = vmatprep.subr.bf16.mxu0 0
  %2061 = vmatpush2.bf16.msra.mxu0 0
  %2062 = vmatprep.subr.bf16.mxu0 0
  %2063 = vmatpush2.bf16.msra.mxu0 0
  %2064 = vmatprep.subr.bf16.mxu0 0
  %2065 = vmatpush2.bf16.msra.mxu0 0
  %2066 = vmatprep.subr.bf16.mxu0 0
  %2067 = vmatpush2.bf16.msra.mxu0 0
  %2068 = vmatprep.mubr.bf16.mxu0 0
  %2069 = vmatmul.mubr.bf16.gmra.mxu0 %v1978
  %v2070 = vpop.f32.mrf.mxu0
  %v2071 = vadd.f32 0.0, %v2070
  %v2072 = vpop.f32.mrf.mxu0
  %v2073 = vpop.f32.mrf.mxu0
  %v2074 = vadd.f32 0.0, %v2073
  %v2075 = vpop.f32.mrf.mxu0
  %2076 = vmatprep.mubr.bf16.mxu0 0
  %2077 = vmatmul.mubr.bf16.gmra.mxu0 %v1981
  %v2078 = vpop.f32.mrf.mxu0
  %v2079 = vadd.f32 0.0, %v2078
  %v2080 = vpop.f32.mrf.mxu0
  %v2081 = vpop.f32.mrf.mxu0
  %v2082 = vadd.f32 0.0, %v2081
  %v2083 = vpop.f32.mrf.mxu0
  %2084 = vdwg.mxu0
  %v2085 = vadd.f32 %v1955, %v2018
  %v2086 = vadd.f32 %v1956, %v2021
  %v2087 = vadd.f32 %v1957, %v2026
  %v2088 = vadd.f32 %v1958, %v2029
  %v2089 = vadd.f32 %v1959, %v2071
  %v2090 = vadd.f32 %v1960, %v2074
  %v2091 = vadd.f32 %v1961, %v2079
  %v2092 = vadd.f32 %v1962, %v2082
  %v2097 = vunpack.c.l.b16 %v445
  %v2098 = vunpack.c.l.b16 %v446
  %v2099 = vunpack.c.l.b16 %v447
  %v2100 = vunpack.c.l.b16 %v448
  %v2101 = vpack.c.b16 %v2098, %v2097
  %v2102 = vpack.c.b16 %v2100, %v2099
  %v2104 = vsel %vm71, %v2101, 0
  %v2107 = vsel %vm71, %v2102, 0
  %2109 = vmatprep.subr.bf16.mxu0 0
  %2110 = vmatpush1.bf16.msra.mxu0 0
  %2111 = vmatprep.subr.bf16.mxu0 0
  %2112 = vmatpush1.bf16.msra.mxu0 0
  %2113 = vmatprep.subr.bf16.mxu0 0
  %2114 = vmatpush1.bf16.msra.mxu0 0
  %2115 = vmatprep.subr.bf16.mxu0 0
  %2116 = vmatpush1.bf16.msra.mxu0 0
  %2117 = vmatprep.subr.bf16.mxu0 0
  %2118 = vmatpush1.bf16.msra.mxu0 0
  %2119 = vmatprep.subr.bf16.mxu0 0
  %2120 = vmatpush1.bf16.msra.mxu0 0
  %2121 = vmatprep.subr.bf16.mxu0 0
  %2122 = vmatpush1.bf16.msra.mxu0 0
  %2123 = vmatprep.subr.bf16.mxu0 0
  %2124 = vmatpush1.bf16.msra.mxu0 %v1340
  %2125 = vmatprep.subr.bf16.mxu0 0
  %2126 = vmatpush2.bf16.msra.mxu0 0
  %2127 = vmatprep.subr.bf16.mxu0 0
  %2128 = vmatpush2.bf16.msra.mxu0 0
  %2129 = vmatprep.subr.bf16.mxu0 0
  %2130 = vmatpush2.bf16.msra.mxu0 0
  %2131 = vmatprep.subr.bf16.mxu0 0
  %2132 = vmatpush2.bf16.msra.mxu0 0
  %2133 = vmatprep.subr.bf16.mxu0 0
  %2134 = vmatpush2.bf16.msra.mxu0 0
  %2135 = vmatprep.subr.bf16.mxu0 0
  %2136 = vmatpush2.bf16.msra.mxu0 0
  %2137 = vmatprep.subr.bf16.mxu0 0
  %2138 = vmatpush2.bf16.msra.mxu0 0
  %2139 = vmatprep.subr.bf16.mxu0 0
  %2140 = vmatpush2.bf16.msra.mxu0 0
  %2141 = vmatprep.mubr.bf16.mxu0 0
  %2142 = vmatmul.mubr.bf16.gmra.mxu0 %v2104
  %v2143 = vpop.f32.mrf.mxu0
  %v2144 = vadd.f32 0.0, %v2143
  %v2145 = vpop.f32.mrf.mxu0
  %v2146 = vpop.f32.mrf.mxu0
  %v2147 = vadd.f32 0.0, %v2146
  %v2148 = vpop.f32.mrf.mxu0
  %2149 = vmatprep.mubr.bf16.mxu0 0
  %2150 = vmatmul.mubr.bf16.gmra.mxu0 %v2107
  %v2151 = vpop.f32.mrf.mxu0
  %v2152 = vadd.f32 0.0, %v2151
  %v2153 = vpop.f32.mrf.mxu0
  %v2154 = vpop.f32.mrf.mxu0
  %v2155 = vadd.f32 0.0, %v2154
  %v2156 = vpop.f32.mrf.mxu0
  %2157 = vdwg.mxu0
  %2158 = vmatprep.subr.bf16.mxu0 0
  %2159 = vmatpush1.bf16.msra.mxu0 0
  %2160 = vmatprep.subr.bf16.mxu0 0
  %2161 = vmatpush1.bf16.msra.mxu0 0
  %2162 = vmatprep.subr.bf16.mxu0 0
  %2163 = vmatpush1.bf16.msra.mxu0 0
  %2164 = vmatprep.subr.bf16.mxu0 0
  %2165 = vmatpush1.bf16.msra.mxu0 0
  %2166 = vmatprep.subr.bf16.mxu0 0
  %2167 = vmatpush1.bf16.msra.mxu0 0
  %2168 = vmatprep.subr.bf16.mxu0 0
  %2169 = vmatpush1.bf16.msra.mxu0 0
  %2170 = vmatprep.subr.bf16.mxu0 0
  %2171 = vmatpush1.bf16.msra.mxu0 0
  %2172 = vmatprep.subr.bf16.mxu0 0
  %2173 = vmatpush1.bf16.msra.mxu0 %v1348
  %2174 = vmatprep.subr.bf16.mxu0 0
  %2175 = vmatpush2.bf16.msra.mxu0 0
  %2176 = vmatprep.subr.bf16.mxu0 0
  %2177 = vmatpush2.bf16.msra.mxu0 0
  %2178 = vmatprep.subr.bf16.mxu0 0
  %2179 = vmatpush2.bf16.msra.mxu0 0
  %2180 = vmatprep.subr.bf16.mxu0 0
  %2181 = vmatpush2.bf16.msra.mxu0 0
  %2182 = vmatprep.subr.bf16.mxu0 0
  %2183 = vmatpush2.bf16.msra.mxu0 0
  %2184 = vmatprep.subr.bf16.mxu0 0
  %2185 = vmatpush2.bf16.msra.mxu0 0
  %2186 = vmatprep.subr.bf16.mxu0 0
  %2187 = vmatpush2.bf16.msra.mxu0 0
  %2188 = vmatprep.subr.bf16.mxu0 0
  %2189 = vmatpush2.bf16.msra.mxu0 0
  %2190 = vmatprep.mubr.bf16.mxu0 0
  %2191 = vmatmul.mubr.bf16.gmra.mxu0 %v2104
  %v2192 = vpop.f32.mrf.mxu0
  %v2193 = vadd.f32 0.0, %v2192
  %v2194 = vpop.f32.mrf.mxu0
  %v2195 = vpop.f32.mrf.mxu0
  %v2196 = vadd.f32 0.0, %v2195
  %v2197 = vpop.f32.mrf.mxu0
  %2198 = vmatprep.mubr.bf16.mxu0 0
  %2199 = vmatmul.mubr.bf16.gmra.mxu0 %v2107
  %v2200 = vpop.f32.mrf.mxu0
  %v2201 = vadd.f32 0.0, %v2200
  %v2202 = vpop.f32.mrf.mxu0
  %v2203 = vpop.f32.mrf.mxu0
  %v2204 = vadd.f32 0.0, %v2203
  %v2205 = vpop.f32.mrf.mxu0
  %2206 = vdwg.mxu0
  %v2207 = vadd.f32 %v2085, %v2144
  %v2208 = vadd.f32 %v2086, %v2147
  %v2209 = vadd.f32 %v2087, %v2152
  %v2210 = vadd.f32 %v2088, %v2155
  %v2211 = vadd.f32 %v2089, %v2193
  %v2212 = vadd.f32 %v2090, %v2196
  %v2213 = vadd.f32 %v2091, %v2201
  %v2214 = vadd.f32 %v2092, %v2204
  %v2219 = vunpack.c.l.b16 %v449
  %v2220 = vunpack.c.l.b16 %v450
  %v2221 = vunpack.c.l.b16 %v451
  %v2222 = vunpack.c.l.b16 %v452
  %v2223 = vpack.c.b16 %v2220, %v2219
  %v2224 = vpack.c.b16 %v2222, %v2221
  %2226 = vrot.lane.b32.xlu0 %v1340, 64
  %v2227 = vpop.permute.xlu0 %2226
  %v2230 = vsel %vm71, %v2223, 0
  %v2233 = vsel %vm71, %v2224, 0
  %2235 = vmatprep.subr.bf16.mxu0 0
  %2236 = vmatpush1.bf16.msra.mxu0 0
  %2237 = vmatprep.subr.bf16.mxu0 0
  %2238 = vmatpush1.bf16.msra.mxu0 0
  %2239 = vmatprep.subr.bf16.mxu0 0
  %2240 = vmatpush1.bf16.msra.mxu0 0
  %2241 = vmatprep.subr.bf16.mxu0 0
  %2242 = vmatpush1.bf16.msra.mxu0 0
  %2243 = vmatprep.subr.bf16.mxu0 0
  %2244 = vmatpush1.bf16.msra.mxu0 0
  %2245 = vmatprep.subr.bf16.mxu0 0
  %2246 = vmatpush1.bf16.msra.mxu0 0
  %2247 = vmatprep.subr.bf16.mxu0 0
  %2248 = vmatpush1.bf16.msra.mxu0 0
  %2249 = vmatprep.subr.bf16.mxu0 0
  %2250 = vmatpush1.bf16.msra.mxu0 %v2227
  %2251 = vmatprep.subr.bf16.mxu0 0
  %2252 = vmatpush2.bf16.msra.mxu0 0
  %2253 = vmatprep.subr.bf16.mxu0 0
  %2254 = vmatpush2.bf16.msra.mxu0 0
  %2255 = vmatprep.subr.bf16.mxu0 0
  %2256 = vmatpush2.bf16.msra.mxu0 0
  %2257 = vmatprep.subr.bf16.mxu0 0
  %2258 = vmatpush2.bf16.msra.mxu0 0
  %2259 = vmatprep.subr.bf16.mxu0 0
  %2260 = vmatpush2.bf16.msra.mxu0 0
  %2261 = vmatprep.subr.bf16.mxu0 0
  %2262 = vmatpush2.bf16.msra.mxu0 0
  %2263 = vmatprep.subr.bf16.mxu0 0
  %2264 = vmatpush2.bf16.msra.mxu0 0
  %2265 = vmatprep.subr.bf16.mxu0 0
  %2266 = vmatpush2.bf16.msra.mxu0 0
  %2267 = vmatprep.mubr.bf16.mxu0 0
  %2268 = vmatmul.mubr.bf16.gmra.mxu0 %v2230
  %v2269 = vpop.f32.mrf.mxu0
  %v2270 = vadd.f32 0.0, %v2269
  %v2271 = vpop.f32.mrf.mxu0
  %v2272 = vpop.f32.mrf.mxu0
  %v2273 = vadd.f32 0.0, %v2272
  %v2274 = vpop.f32.mrf.mxu0
  %2275 = vmatprep.mubr.bf16.mxu0 0
  %2276 = vmatmul.mubr.bf16.gmra.mxu0 %v2233
  %v2277 = vpop.f32.mrf.mxu0
  %v2278 = vadd.f32 0.0, %v2277
  %v2279 = vpop.f32.mrf.mxu0
  %v2280 = vpop.f32.mrf.mxu0
  %v2281 = vadd.f32 0.0, %v2280
  %v2282 = vpop.f32.mrf.mxu0
  %2283 = vdwg.mxu0
  %2285 = vrot.lane.b32.xlu0 %v1348, 64
  %v2286 = vpop.permute.xlu0 %2285
  %2288 = vmatprep.subr.bf16.mxu0 0
  %2289 = vmatpush1.bf16.msra.mxu0 0
  %2290 = vmatprep.subr.bf16.mxu0 0
  %2291 = vmatpush1.bf16.msra.mxu0 0
  %2292 = vmatprep.subr.bf16.mxu0 0
  %2293 = vmatpush1.bf16.msra.mxu0 0
  %2294 = vmatprep.subr.bf16.mxu0 0
  %2295 = vmatpush1.bf16.msra.mxu0 0
  %2296 = vmatprep.subr.bf16.mxu0 0
  %2297 = vmatpush1.bf16.msra.mxu0 0
  %2298 = vmatprep.subr.bf16.mxu0 0
  %2299 = vmatpush1.bf16.msra.mxu0 0
  %2300 = vmatprep.subr.bf16.mxu0 0
  %2301 = vmatpush1.bf16.msra.mxu0 0
  %2302 = vmatprep.subr.bf16.mxu0 0
  %2303 = vmatpush1.bf16.msra.mxu0 %v2286
  %2304 = vmatprep.subr.bf16.mxu0 0
  %2305 = vmatpush2.bf16.msra.mxu0 0
  %2306 = vmatprep.subr.bf16.mxu0 0
  %2307 = vmatpush2.bf16.msra.mxu0 0
  %2308 = vmatprep.subr.bf16.mxu0 0
  %2309 = vmatpush2.bf16.msra.mxu0 0
  %2310 = vmatprep.subr.bf16.mxu0 0
  %2311 = vmatpush2.bf16.msra.mxu0 0
  %2312 = vmatprep.subr.bf16.mxu0 0
  %2313 = vmatpush2.bf16.msra.mxu0 0
  %2314 = vmatprep.subr.bf16.mxu0 0
  %2315 = vmatpush2.bf16.msra.mxu0 0
  %2316 = vmatprep.subr.bf16.mxu0 0
  %2317 = vmatpush2.bf16.msra.mxu0 0
  %2318 = vmatprep.subr.bf16.mxu0 0
  %2319 = vmatpush2.bf16.msra.mxu0 0
  %2320 = vmatprep.mubr.bf16.mxu0 0
  %2321 = vmatmul.mubr.bf16.gmra.mxu0 %v2230
  %v2322 = vpop.f32.mrf.mxu0
  %v2323 = vadd.f32 0.0, %v2322
  %v2324 = vpop.f32.mrf.mxu0
  %v2325 = vpop.f32.mrf.mxu0
  %v2326 = vadd.f32 0.0, %v2325
  %v2327 = vpop.f32.mrf.mxu0
  %2328 = vmatprep.mubr.bf16.mxu0 0
  %2329 = vmatmul.mubr.bf16.gmra.mxu0 %v2233
  %v2330 = vpop.f32.mrf.mxu0
  %v2331 = vadd.f32 0.0, %v2330
  %v2332 = vpop.f32.mrf.mxu0
  %v2333 = vpop.f32.mrf.mxu0
  %v2334 = vadd.f32 0.0, %v2333
  %v2335 = vpop.f32.mrf.mxu0
  %2336 = vdwg.mxu0
  %v2337 = vadd.f32 %v2207, %v2270
  %v2338 = vadd.f32 %v2208, %v2273
  %v2339 = vadd.f32 %v2209, %v2278
  %v2340 = vadd.f32 %v2210, %v2281
  %v2341 = vadd.f32 %v2211, %v2323
  %v2342 = vadd.f32 %v2212, %v2326
  %v2343 = vadd.f32 %v2213, %v2331
  %v2344 = vadd.f32 %v2214, %v2334
  %v2349 = vunpack.c.l.b16 %v453
  %v2350 = vunpack.c.l.b16 %v454
  %v2351 = vunpack.c.l.b16 %v455
  %v2352 = vunpack.c.l.b16 %v456
  %v2353 = vpack.c.b16 %v2350, %v2349
  %v2354 = vpack.c.b16 %v2352, %v2351
  %v2356 = vsel %vm71, %v2353, 0
  %v2359 = vsel %vm71, %v2354, 0
  %2361 = vmatprep.subr.bf16.mxu0 0
  %2362 = vmatpush1.bf16.msra.mxu0 0
  %2363 = vmatprep.subr.bf16.mxu0 0
  %2364 = vmatpush1.bf16.msra.mxu0 0
  %2365 = vmatprep.subr.bf16.mxu0 0
  %2366 = vmatpush1.bf16.msra.mxu0 0
  %2367 = vmatprep.subr.bf16.mxu0 0
  %2368 = vmatpush1.bf16.msra.mxu0 0
  %2369 = vmatprep.subr.bf16.mxu0 0
  %2370 = vmatpush1.bf16.msra.mxu0 0
  %2371 = vmatprep.subr.bf16.mxu0 0
  %2372 = vmatpush1.bf16.msra.mxu0 0
  %2373 = vmatprep.subr.bf16.mxu0 0
  %2374 = vmatpush1.bf16.msra.mxu0 0
  %2375 = vmatprep.subr.bf16.mxu0 0
  %2376 = vmatpush1.bf16.msra.mxu0 %v1341
  %2377 = vmatprep.subr.bf16.mxu0 0
  %2378 = vmatpush2.bf16.msra.mxu0 0
  %2379 = vmatprep.subr.bf16.mxu0 0
  %2380 = vmatpush2.bf16.msra.mxu0 0
  %2381 = vmatprep.subr.bf16.mxu0 0
  %2382 = vmatpush2.bf16.msra.mxu0 0
  %2383 = vmatprep.subr.bf16.mxu0 0
  %2384 = vmatpush2.bf16.msra.mxu0 0
  %2385 = vmatprep.subr.bf16.mxu0 0
  %2386 = vmatpush2.bf16.msra.mxu0 0
  %2387 = vmatprep.subr.bf16.mxu0 0
  %2388 = vmatpush2.bf16.msra.mxu0 0
  %2389 = vmatprep.subr.bf16.mxu0 0
  %2390 = vmatpush2.bf16.msra.mxu0 0
  %2391 = vmatprep.subr.bf16.mxu0 0
  %2392 = vmatpush2.bf16.msra.mxu0 0
  %2393 = vmatprep.mubr.bf16.mxu0 0
  %2394 = vmatmul.mubr.bf16.gmra.mxu0 %v2356
  %v2395 = vpop.f32.mrf.mxu0
  %v2396 = vadd.f32 0.0, %v2395
  %v2397 = vpop.f32.mrf.mxu0
  %v2398 = vpop.f32.mrf.mxu0
  %v2399 = vadd.f32 0.0, %v2398
  %v2400 = vpop.f32.mrf.mxu0
  %2401 = vmatprep.mubr.bf16.mxu0 0
  %2402 = vmatmul.mubr.bf16.gmra.mxu0 %v2359
  %v2403 = vpop.f32.mrf.mxu0
  %v2404 = vadd.f32 0.0, %v2403
  %v2405 = vpop.f32.mrf.mxu0
  %v2406 = vpop.f32.mrf.mxu0
  %v2407 = vadd.f32 0.0, %v2406
  %v2408 = vpop.f32.mrf.mxu0
  %2409 = vdwg.mxu0
  %2410 = vmatprep.subr.bf16.mxu0 0
  %2411 = vmatpush1.bf16.msra.mxu0 0
  %2412 = vmatprep.subr.bf16.mxu0 0
  %2413 = vmatpush1.bf16.msra.mxu0 0
  %2414 = vmatprep.subr.bf16.mxu0 0
  %2415 = vmatpush1.bf16.msra.mxu0 0
  %2416 = vmatprep.subr.bf16.mxu0 0
  %2417 = vmatpush1.bf16.msra.mxu0 0
  %2418 = vmatprep.subr.bf16.mxu0 0
  %2419 = vmatpush1.bf16.msra.mxu0 0
  %2420 = vmatprep.subr.bf16.mxu0 0
  %2421 = vmatpush1.bf16.msra.mxu0 0
  %2422 = vmatprep.subr.bf16.mxu0 0
  %2423 = vmatpush1.bf16.msra.mxu0 0
  %2424 = vmatprep.subr.bf16.mxu0 0
  %2425 = vmatpush1.bf16.msra.mxu0 %v1349
  %2426 = vmatprep.subr.bf16.mxu0 0
  %2427 = vmatpush2.bf16.msra.mxu0 0
  %2428 = vmatprep.subr.bf16.mxu0 0
  %2429 = vmatpush2.bf16.msra.mxu0 0
  %2430 = vmatprep.subr.bf16.mxu0 0
  %2431 = vmatpush2.bf16.msra.mxu0 0
  %2432 = vmatprep.subr.bf16.mxu0 0
  %2433 = vmatpush2.bf16.msra.mxu0 0
  %2434 = vmatprep.subr.bf16.mxu0 0
  %2435 = vmatpush2.bf16.msra.mxu0 0
  %2436 = vmatprep.subr.bf16.mxu0 0
  %2437 = vmatpush2.bf16.msra.mxu0 0
  %2438 = vmatprep.subr.bf16.mxu0 0
  %2439 = vmatpush2.bf16.msra.mxu0 0
  %2440 = vmatprep.subr.bf16.mxu0 0
  %2441 = vmatpush2.bf16.msra.mxu0 0
  %2442 = vmatprep.mubr.bf16.mxu0 0
  %2443 = vmatmul.mubr.bf16.gmra.mxu0 %v2356
  %v2444 = vpop.f32.mrf.mxu0
  %v2445 = vadd.f32 0.0, %v2444
  %v2446 = vpop.f32.mrf.mxu0
  %v2447 = vpop.f32.mrf.mxu0
  %v2448 = vadd.f32 0.0, %v2447
  %v2449 = vpop.f32.mrf.mxu0
  %2450 = vmatprep.mubr.bf16.mxu0 0
  %2451 = vmatmul.mubr.bf16.gmra.mxu0 %v2359
  %v2452 = vpop.f32.mrf.mxu0
  %v2453 = vadd.f32 0.0, %v2452
  %v2454 = vpop.f32.mrf.mxu0
  %v2455 = vpop.f32.mrf.mxu0
  %v2456 = vadd.f32 0.0, %v2455
  %v2457 = vpop.f32.mrf.mxu0
  %2458 = vdwg.mxu0
  %v2459 = vadd.f32 %v2337, %v2396
  %v2460 = vadd.f32 %v2338, %v2399
  %v2461 = vadd.f32 %v2339, %v2404
  %v2462 = vadd.f32 %v2340, %v2407
  %v2463 = vadd.f32 %v2341, %v2445
  %v2464 = vadd.f32 %v2342, %v2448
  %v2465 = vadd.f32 %v2343, %v2453
  %v2466 = vadd.f32 %v2344, %v2456
  %v2471 = vunpack.c.l.b16 %v457
  %v2472 = vunpack.c.l.b16 %v458
  %v2473 = vunpack.c.l.b16 %v459
  %v2474 = vunpack.c.l.b16 %v460
  %v2475 = vpack.c.b16 %v2472, %v2471
  %v2476 = vpack.c.b16 %v2474, %v2473
  %2478 = vrot.lane.b32.xlu0 %v1341, 64
  %v2479 = vpop.permute.xlu0 %2478
  %v2482 = vsel %vm71, %v2475, 0
  %v2485 = vsel %vm71, %v2476, 0
  %2487 = vmatprep.subr.bf16.mxu0 0
  %2488 = vmatpush1.bf16.msra.mxu0 0
  %2489 = vmatprep.subr.bf16.mxu0 0
  %2490 = vmatpush1.bf16.msra.mxu0 0
  %2491 = vmatprep.subr.bf16.mxu0 0
  %2492 = vmatpush1.bf16.msra.mxu0 0
  %2493 = vmatprep.subr.bf16.mxu0 0
  %2494 = vmatpush1.bf16.msra.mxu0 0
  %2495 = vmatprep.subr.bf16.mxu0 0
  %2496 = vmatpush1.bf16.msra.mxu0 0
  %2497 = vmatprep.subr.bf16.mxu0 0
  %2498 = vmatpush1.bf16.msra.mxu0 0
  %2499 = vmatprep.subr.bf16.mxu0 0
  %2500 = vmatpush1.bf16.msra.mxu0 0
  %2501 = vmatprep.subr.bf16.mxu0 0
  %2502 = vmatpush1.bf16.msra.mxu0 %v2479
  %2503 = vmatprep.subr.bf16.mxu0 0
  %2504 = vmatpush2.bf16.msra.mxu0 0
  %2505 = vmatprep.subr.bf16.mxu0 0
  %2506 = vmatpush2.bf16.msra.mxu0 0
  %2507 = vmatprep.subr.bf16.mxu0 0
  %2508 = vmatpush2.bf16.msra.mxu0 0
  %2509 = vmatprep.subr.bf16.mxu0 0
  %2510 = vmatpush2.bf16.msra.mxu0 0
  %2511 = vmatprep.subr.bf16.mxu0 0
  %2512 = vmatpush2.bf16.msra.mxu0 0
  %2513 = vmatprep.subr.bf16.mxu0 0
  %2514 = vmatpush2.bf16.msra.mxu0 0
  %2515 = vmatprep.subr.bf16.mxu0 0
  %2516 = vmatpush2.bf16.msra.mxu0 0
  %2517 = vmatprep.subr.bf16.mxu0 0
  %2518 = vmatpush2.bf16.msra.mxu0 0
  %2519 = vmatprep.mubr.bf16.mxu0 0
  %2520 = vmatmul.mubr.bf16.gmra.mxu0 %v2482
  %v2521 = vpop.f32.mrf.mxu0
  %v2522 = vadd.f32 0.0, %v2521
  %v2523 = vpop.f32.mrf.mxu0
  %v2524 = vpop.f32.mrf.mxu0
  %v2525 = vadd.f32 0.0, %v2524
  %v2526 = vpop.f32.mrf.mxu0
  %2527 = vmatprep.mubr.bf16.mxu0 0
  %2528 = vmatmul.mubr.bf16.gmra.mxu0 %v2485
  %v2529 = vpop.f32.mrf.mxu0
  %v2530 = vadd.f32 0.0, %v2529
  %v2531 = vpop.f32.mrf.mxu0
  %v2532 = vpop.f32.mrf.mxu0
  %v2533 = vadd.f32 0.0, %v2532
  %v2534 = vpop.f32.mrf.mxu0
  %2535 = vdwg.mxu0
  %2537 = vrot.lane.b32.xlu0 %v1349, 64
  %v2538 = vpop.permute.xlu0 %2537
  %2540 = vmatprep.subr.bf16.mxu0 0
  %2541 = vmatpush1.bf16.msra.mxu0 0
  %2542 = vmatprep.subr.bf16.mxu0 0
  %2543 = vmatpush1.bf16.msra.mxu0 0
  %2544 = vmatprep.subr.bf16.mxu0 0
  %2545 = vmatpush1.bf16.msra.mxu0 0
  %2546 = vmatprep.subr.bf16.mxu0 0
  %2547 = vmatpush1.bf16.msra.mxu0 0
  %2548 = vmatprep.subr.bf16.mxu0 0
  %2549 = vmatpush1.bf16.msra.mxu0 0
  %2550 = vmatprep.subr.bf16.mxu0 0
  %2551 = vmatpush1.bf16.msra.mxu0 0
  %2552 = vmatprep.subr.bf16.mxu0 0
  %2553 = vmatpush1.bf16.msra.mxu0 0
  %2554 = vmatprep.subr.bf16.mxu0 0
  %2555 = vmatpush1.bf16.msra.mxu0 %v2538
  %2556 = vmatprep.subr.bf16.mxu0 0
  %2557 = vmatpush2.bf16.msra.mxu0 0
  %2558 = vmatprep.subr.bf16.mxu0 0
  %2559 = vmatpush2.bf16.msra.mxu0 0
  %2560 = vmatprep.subr.bf16.mxu0 0
  %2561 = vmatpush2.bf16.msra.mxu0 0
  %2562 = vmatprep.subr.bf16.mxu0 0
  %2563 = vmatpush2.bf16.msra.mxu0 0
  %2564 = vmatprep.subr.bf16.mxu0 0
  %2565 = vmatpush2.bf16.msra.mxu0 0
  %2566 = vmatprep.subr.bf16.mxu0 0
  %2567 = vmatpush2.bf16.msra.mxu0 0
  %2568 = vmatprep.subr.bf16.mxu0 0
  %2569 = vmatpush2.bf16.msra.mxu0 0
  %2570 = vmatprep.subr.bf16.mxu0 0
  %2571 = vmatpush2.bf16.msra.mxu0 0
  %2572 = vmatprep.mubr.bf16.mxu0 0
  %2573 = vmatmul.mubr.bf16.gmra.mxu0 %v2482
  %v2574 = vpop.f32.mrf.mxu0
  %v2575 = vadd.f32 0.0, %v2574
  %v2576 = vpop.f32.mrf.mxu0
  %v2577 = vpop.f32.mrf.mxu0
  %v2578 = vadd.f32 0.0, %v2577
  %v2579 = vpop.f32.mrf.mxu0
  %2580 = vmatprep.mubr.bf16.mxu0 0
  %2581 = vmatmul.mubr.bf16.gmra.mxu0 %v2485
  %v2582 = vpop.f32.mrf.mxu0
  %v2583 = vadd.f32 0.0, %v2582
  %v2584 = vpop.f32.mrf.mxu0
  %v2585 = vpop.f32.mrf.mxu0
  %v2586 = vadd.f32 0.0, %v2585
  %v2587 = vpop.f32.mrf.mxu0
  %2588 = vdwg.mxu0
  %v2589 = vadd.f32 %v2459, %v2522
  %v2590 = vadd.f32 %v2460, %v2525
  %v2591 = vadd.f32 %v2461, %v2530
  %v2592 = vadd.f32 %v2462, %v2533
  %v2593 = vadd.f32 %v2463, %v2575
  %v2594 = vadd.f32 %v2464, %v2578
  %v2595 = vadd.f32 %v2465, %v2583
  %v2596 = vadd.f32 %v2466, %v2586
  %v2601 = vunpack.c.l.b16 %v461
  %v2602 = vunpack.c.l.b16 %v462
  %v2603 = vunpack.c.l.b16 %v463
  %v2604 = vunpack.c.l.b16 %v464
  %v2605 = vpack.c.b16 %v2602, %v2601
  %v2606 = vpack.c.b16 %v2604, %v2603
  %v2608 = vsel %vm71, %v2605, 0
  %v2611 = vsel %vm71, %v2606, 0
  %2613 = vmatprep.subr.bf16.mxu0 0
  %2614 = vmatpush1.bf16.msra.mxu0 0
  %2615 = vmatprep.subr.bf16.mxu0 0
  %2616 = vmatpush1.bf16.msra.mxu0 0
  %2617 = vmatprep.subr.bf16.mxu0 0
  %2618 = vmatpush1.bf16.msra.mxu0 0
  %2619 = vmatprep.subr.bf16.mxu0 0
  %2620 = vmatpush1.bf16.msra.mxu0 0
  %2621 = vmatprep.subr.bf16.mxu0 0
  %2622 = vmatpush1.bf16.msra.mxu0 0
  %2623 = vmatprep.subr.bf16.mxu0 0
  %2624 = vmatpush1.bf16.msra.mxu0 0
  %2625 = vmatprep.subr.bf16.mxu0 0
  %2626 = vmatpush1.bf16.msra.mxu0 0
  %2627 = vmatprep.subr.bf16.mxu0 0
  %2628 = vmatpush1.bf16.msra.mxu0 %v1342
  %2629 = vmatprep.subr.bf16.mxu0 0
  %2630 = vmatpush2.bf16.msra.mxu0 0
  %2631 = vmatprep.subr.bf16.mxu0 0
  %2632 = vmatpush2.bf16.msra.mxu0 0
  %2633 = vmatprep.subr.bf16.mxu0 0
  %2634 = vmatpush2.bf16.msra.mxu0 0
  %2635 = vmatprep.subr.bf16.mxu0 0
  %2636 = vmatpush2.bf16.msra.mxu0 0
  %2637 = vmatprep.subr.bf16.mxu0 0
  %2638 = vmatpush2.bf16.msra.mxu0 0
  %2639 = vmatprep.subr.bf16.mxu0 0
  %2640 = vmatpush2.bf16.msra.mxu0 0
  %2641 = vmatprep.subr.bf16.mxu0 0
  %2642 = vmatpush2.bf16.msra.mxu0 0
  %2643 = vmatprep.subr.bf16.mxu0 0
  %2644 = vmatpush2.bf16.msra.mxu0 0
  %2645 = vmatprep.mubr.bf16.mxu0 0
  %2646 = vmatmul.mubr.bf16.gmra.mxu0 %v2608
  %v2647 = vpop.f32.mrf.mxu0
  %v2648 = vadd.f32 0.0, %v2647
  %v2649 = vpop.f32.mrf.mxu0
  %v2650 = vpop.f32.mrf.mxu0
  %v2651 = vadd.f32 0.0, %v2650
  %v2652 = vpop.f32.mrf.mxu0
  %2653 = vmatprep.mubr.bf16.mxu0 0
  %2654 = vmatmul.mubr.bf16.gmra.mxu0 %v2611
  %v2655 = vpop.f32.mrf.mxu0
  %v2656 = vadd.f32 0.0, %v2655
  %v2657 = vpop.f32.mrf.mxu0
  %v2658 = vpop.f32.mrf.mxu0
  %v2659 = vadd.f32 0.0, %v2658
  %v2660 = vpop.f32.mrf.mxu0
  %2661 = vdwg.mxu0
  %2662 = vmatprep.subr.bf16.mxu0 0
  %2663 = vmatpush1.bf16.msra.mxu0 0
  %2664 = vmatprep.subr.bf16.mxu0 0
  %2665 = vmatpush1.bf16.msra.mxu0 0
  %2666 = vmatprep.subr.bf16.mxu0 0
  %2667 = vmatpush1.bf16.msra.mxu0 0
  %2668 = vmatprep.subr.bf16.mxu0 0
  %2669 = vmatpush1.bf16.msra.mxu0 0
  %2670 = vmatprep.subr.bf16.mxu0 0
  %2671 = vmatpush1.bf16.msra.mxu0 0
  %2672 = vmatprep.subr.bf16.mxu0 0
  %2673 = vmatpush1.bf16.msra.mxu0 0
  %2674 = vmatprep.subr.bf16.mxu0 0
  %2675 = vmatpush1.bf16.msra.mxu0 0
  %2676 = vmatprep.subr.bf16.mxu0 0
  %2677 = vmatpush1.bf16.msra.mxu0 %v1350
  %2678 = vmatprep.subr.bf16.mxu0 0
  %2679 = vmatpush2.bf16.msra.mxu0 0
  %2680 = vmatprep.subr.bf16.mxu0 0
  %2681 = vmatpush2.bf16.msra.mxu0 0
  %2682 = vmatprep.subr.bf16.mxu0 0
  %2683 = vmatpush2.bf16.msra.mxu0 0
  %2684 = vmatprep.subr.bf16.mxu0 0
  %2685 = vmatpush2.bf16.msra.mxu0 0
  %2686 = vmatprep.subr.bf16.mxu0 0
  %2687 = vmatpush2.bf16.msra.mxu0 0
  %2688 = vmatprep.subr.bf16.mxu0 0
  %2689 = vmatpush2.bf16.msra.mxu0 0
  %2690 = vmatprep.subr.bf16.mxu0 0
  %2691 = vmatpush2.bf16.msra.mxu0 0
  %2692 = vmatprep.subr.bf16.mxu0 0
  %2693 = vmatpush2.bf16.msra.mxu0 0
  %2694 = vmatprep.mubr.bf16.mxu0 0
  %2695 = vmatmul.mubr.bf16.gmra.mxu0 %v2608
  %v2696 = vpop.f32.mrf.mxu0
  %v2697 = vadd.f32 0.0, %v2696
  %v2698 = vpop.f32.mrf.mxu0
  %v2699 = vpop.f32.mrf.mxu0
  %v2700 = vadd.f32 0.0, %v2699
  %v2701 = vpop.f32.mrf.mxu0
  %2702 = vmatprep.mubr.bf16.mxu0 0
  %2703 = vmatmul.mubr.bf16.gmra.mxu0 %v2611
  %v2704 = vpop.f32.mrf.mxu0
  %v2705 = vadd.f32 0.0, %v2704
  %v2706 = vpop.f32.mrf.mxu0
  %v2707 = vpop.f32.mrf.mxu0
  %v2708 = vadd.f32 0.0, %v2707
  %v2709 = vpop.f32.mrf.mxu0
  %2710 = vdwg.mxu0
  %v2711 = vadd.f32 %v2589, %v2648
  %v2712 = vadd.f32 %v2590, %v2651
  %v2713 = vadd.f32 %v2591, %v2656
  %v2714 = vadd.f32 %v2592, %v2659
  %v2715 = vadd.f32 %v2593, %v2697
  %v2716 = vadd.f32 %v2594, %v2700
  %v2717 = vadd.f32 %v2595, %v2705
  %v2718 = vadd.f32 %v2596, %v2708
  %v2723 = vunpack.c.l.b16 %v465
  %v2724 = vunpack.c.l.b16 %v466
  %v2725 = vunpack.c.l.b16 %v467
  %v2726 = vunpack.c.l.b16 %v468
  %v2727 = vpack.c.b16 %v2724, %v2723
  %v2728 = vpack.c.b16 %v2726, %v2725
  %2730 = vrot.lane.b32.xlu0 %v1342, 64
  %v2731 = vpop.permute.xlu0 %2730
  %v2734 = vsel %vm71, %v2727, 0
  %v2737 = vsel %vm71, %v2728, 0
  %2739 = vmatprep.subr.bf16.mxu0 0
  %2740 = vmatpush1.bf16.msra.mxu0 0
  %2741 = vmatprep.subr.bf16.mxu0 0
  %2742 = vmatpush1.bf16.msra.mxu0 0
  %2743 = vmatprep.subr.bf16.mxu0 0
  %2744 = vmatpush1.bf16.msra.mxu0 0
  %2745 = vmatprep.subr.bf16.mxu0 0
  %2746 = vmatpush1.bf16.msra.mxu0 0
  %2747 = vmatprep.subr.bf16.mxu0 0
  %2748 = vmatpush1.bf16.msra.mxu0 0
  %2749 = vmatprep.subr.bf16.mxu0 0
  %2750 = vmatpush1.bf16.msra.mxu0 0
  %2751 = vmatprep.subr.bf16.mxu0 0
  %2752 = vmatpush1.bf16.msra.mxu0 0
  %2753 = vmatprep.subr.bf16.mxu0 0
  %2754 = vmatpush1.bf16.msra.mxu0 %v2731
  %2755 = vmatprep.subr.bf16.mxu0 0
  %2756 = vmatpush2.bf16.msra.mxu0 0
  %2757 = vmatprep.subr.bf16.mxu0 0
  %2758 = vmatpush2.bf16.msra.mxu0 0
  %2759 = vmatprep.subr.bf16.mxu0 0
  %2760 = vmatpush2.bf16.msra.mxu0 0
  %2761 = vmatprep.subr.bf16.mxu0 0
  %2762 = vmatpush2.bf16.msra.mxu0 0
  %2763 = vmatprep.subr.bf16.mxu0 0
  %2764 = vmatpush2.bf16.msra.mxu0 0
  %2765 = vmatprep.subr.bf16.mxu0 0
  %2766 = vmatpush2.bf16.msra.mxu0 0
  %2767 = vmatprep.subr.bf16.mxu0 0
  %2768 = vmatpush2.bf16.msra.mxu0 0
  %2769 = vmatprep.subr.bf16.mxu0 0
  %2770 = vmatpush2.bf16.msra.mxu0 0
  %2771 = vmatprep.mubr.bf16.mxu0 0
  %2772 = vmatmul.mubr.bf16.gmra.mxu0 %v2734
  %v2773 = vpop.f32.mrf.mxu0
  %v2774 = vadd.f32 0.0, %v2773
  %v2775 = vpop.f32.mrf.mxu0
  %v2776 = vpop.f32.mrf.mxu0
  %v2777 = vadd.f32 0.0, %v2776
  %v2778 = vpop.f32.mrf.mxu0
  %2779 = vmatprep.mubr.bf16.mxu0 0
  %2780 = vmatmul.mubr.bf16.gmra.mxu0 %v2737
  %v2781 = vpop.f32.mrf.mxu0
  %v2782 = vadd.f32 0.0, %v2781
  %v2783 = vpop.f32.mrf.mxu0
  %v2784 = vpop.f32.mrf.mxu0
  %v2785 = vadd.f32 0.0, %v2784
  %v2786 = vpop.f32.mrf.mxu0
  %2787 = vdwg.mxu0
  %2789 = vrot.lane.b32.xlu0 %v1350, 64
  %v2790 = vpop.permute.xlu0 %2789
  %2792 = vmatprep.subr.bf16.mxu0 0
  %2793 = vmatpush1.bf16.msra.mxu0 0
  %2794 = vmatprep.subr.bf16.mxu0 0
  %2795 = vmatpush1.bf16.msra.mxu0 0
  %2796 = vmatprep.subr.bf16.mxu0 0
  %2797 = vmatpush1.bf16.msra.mxu0 0
  %2798 = vmatprep.subr.bf16.mxu0 0
  %2799 = vmatpush1.bf16.msra.mxu0 0
  %2800 = vmatprep.subr.bf16.mxu0 0
  %2801 = vmatpush1.bf16.msra.mxu0 0
  %2802 = vmatprep.subr.bf16.mxu0 0
  %2803 = vmatpush1.bf16.msra.mxu0 0
  %2804 = vmatprep.subr.bf16.mxu0 0
  %2805 = vmatpush1.bf16.msra.mxu0 0
  %2806 = vmatprep.subr.bf16.mxu0 0
  %2807 = vmatpush1.bf16.msra.mxu0 %v2790
  %2808 = vmatprep.subr.bf16.mxu0 0
  %2809 = vmatpush2.bf16.msra.mxu0 0
  %2810 = vmatprep.subr.bf16.mxu0 0
  %2811 = vmatpush2.bf16.msra.mxu0 0
  %2812 = vmatprep.subr.bf16.mxu0 0
  %2813 = vmatpush2.bf16.msra.mxu0 0
  %2814 = vmatprep.subr.bf16.mxu0 0
  %2815 = vmatpush2.bf16.msra.mxu0 0
  %2816 = vmatprep.subr.bf16.mxu0 0
  %2817 = vmatpush2.bf16.msra.mxu0 0
  %2818 = vmatprep.subr.bf16.mxu0 0
  %2819 = vmatpush2.bf16.msra.mxu0 0
  %2820 = vmatprep.subr.bf16.mxu0 0
  %2821 = vmatpush2.bf16.msra.mxu0 0
  %2822 = vmatprep.subr.bf16.mxu0 0
  %2823 = vmatpush2.bf16.msra.mxu0 0
  %2824 = vmatprep.mubr.bf16.mxu0 0
  %2825 = vmatmul.mubr.bf16.gmra.mxu0 %v2734
  %v2826 = vpop.f32.mrf.mxu0
  %v2827 = vadd.f32 0.0, %v2826
  %v2828 = vpop.f32.mrf.mxu0
  %v2829 = vpop.f32.mrf.mxu0
  %v2830 = vadd.f32 0.0, %v2829
  %v2831 = vpop.f32.mrf.mxu0
  %2832 = vmatprep.mubr.bf16.mxu0 0
  %2833 = vmatmul.mubr.bf16.gmra.mxu0 %v2737
  %v2834 = vpop.f32.mrf.mxu0
  %v2835 = vadd.f32 0.0, %v2834
  %v2836 = vpop.f32.mrf.mxu0
  %v2837 = vpop.f32.mrf.mxu0
  %v2838 = vadd.f32 0.0, %v2837
  %v2839 = vpop.f32.mrf.mxu0
  %2840 = vdwg.mxu0
  %v2841 = vadd.f32 %v2711, %v2774
  %v2842 = vadd.f32 %v2712, %v2777
  %v2843 = vadd.f32 %v2713, %v2782
  %v2844 = vadd.f32 %v2714, %v2785
  %v2845 = vadd.f32 %v2715, %v2827
  %v2846 = vadd.f32 %v2716, %v2830
  %v2847 = vadd.f32 %v2717, %v2835
  %v2848 = vadd.f32 %v2718, %v2838
  %v2853 = vunpack.c.l.b16 %v469
  %v2854 = vunpack.c.l.b16 %v470
  %v2855 = vunpack.c.l.b16 %v471
  %v2856 = vunpack.c.l.b16 %v472
  %v2857 = vpack.c.b16 %v2854, %v2853
  %v2858 = vpack.c.b16 %v2856, %v2855
  %v2860 = vsel %vm71, %v2857, 0
  %v2863 = vsel %vm71, %v2858, 0
  %2865 = vmatprep.subr.bf16.mxu0 0
  %2866 = vmatpush1.bf16.msra.mxu0 0
  %2867 = vmatprep.subr.bf16.mxu0 0
  %2868 = vmatpush1.bf16.msra.mxu0 0
  %2869 = vmatprep.subr.bf16.mxu0 0
  %2870 = vmatpush1.bf16.msra.mxu0 0
  %2871 = vmatprep.subr.bf16.mxu0 0
  %2872 = vmatpush1.bf16.msra.mxu0 0
  %2873 = vmatprep.subr.bf16.mxu0 0
  %2874 = vmatpush1.bf16.msra.mxu0 0
  %2875 = vmatprep.subr.bf16.mxu0 0
  %2876 = vmatpush1.bf16.msra.mxu0 0
  %2877 = vmatprep.subr.bf16.mxu0 0
  %2878 = vmatpush1.bf16.msra.mxu0 0
  %2879 = vmatprep.subr.bf16.mxu0 0
  %2880 = vmatpush1.bf16.msra.mxu0 %v1343
  %2881 = vmatprep.subr.bf16.mxu0 0
  %2882 = vmatpush2.bf16.msra.mxu0 0
  %2883 = vmatprep.subr.bf16.mxu0 0
  %2884 = vmatpush2.bf16.msra.mxu0 0
  %2885 = vmatprep.subr.bf16.mxu0 0
  %2886 = vmatpush2.bf16.msra.mxu0 0
  %2887 = vmatprep.subr.bf16.mxu0 0
  %2888 = vmatpush2.bf16.msra.mxu0 0
  %2889 = vmatprep.subr.bf16.mxu0 0
  %2890 = vmatpush2.bf16.msra.mxu0 0
  %2891 = vmatprep.subr.bf16.mxu0 0
  %2892 = vmatpush2.bf16.msra.mxu0 0
  %2893 = vmatprep.subr.bf16.mxu0 0
  %2894 = vmatpush2.bf16.msra.mxu0 0
  %2895 = vmatprep.subr.bf16.mxu0 0
  %2896 = vmatpush2.bf16.msra.mxu0 0
  %2897 = vmatprep.mubr.bf16.mxu0 0
  %2898 = vmatmul.mubr.bf16.gmra.mxu0 %v2860
  %v2899 = vpop.f32.mrf.mxu0
  %v2900 = vadd.f32 0.0, %v2899
  %v2901 = vpop.f32.mrf.mxu0
  %v2902 = vpop.f32.mrf.mxu0
  %v2903 = vadd.f32 0.0, %v2902
  %v2904 = vpop.f32.mrf.mxu0
  %2905 = vmatprep.mubr.bf16.mxu0 0
  %2906 = vmatmul.mubr.bf16.gmra.mxu0 %v2863
  %v2907 = vpop.f32.mrf.mxu0
  %v2908 = vadd.f32 0.0, %v2907
  %v2909 = vpop.f32.mrf.mxu0
  %v2910 = vpop.f32.mrf.mxu0
  %v2911 = vadd.f32 0.0, %v2910
  %v2912 = vpop.f32.mrf.mxu0
  %2913 = vdwg.mxu0
  %2914 = vmatprep.subr.bf16.mxu0 0
  %2915 = vmatpush1.bf16.msra.mxu0 0
  %2916 = vmatprep.subr.bf16.mxu0 0
  %2917 = vmatpush1.bf16.msra.mxu0 0
  %2918 = vmatprep.subr.bf16.mxu0 0
  %2919 = vmatpush1.bf16.msra.mxu0 0
  %2920 = vmatprep.subr.bf16.mxu0 0
  %2921 = vmatpush1.bf16.msra.mxu0 0
  %2922 = vmatprep.subr.bf16.mxu0 0
  %2923 = vmatpush1.bf16.msra.mxu0 0
  %2924 = vmatprep.subr.bf16.mxu0 0
  %2925 = vmatpush1.bf16.msra.mxu0 0
  %2926 = vmatprep.subr.bf16.mxu0 0
  %2927 = vmatpush1.bf16.msra.mxu0 0
  %2928 = vmatprep.subr.bf16.mxu0 0
  %2929 = vmatpush1.bf16.msra.mxu0 %v1351
  %2930 = vmatprep.subr.bf16.mxu0 0
  %2931 = vmatpush2.bf16.msra.mxu0 0
  %2932 = vmatprep.subr.bf16.mxu0 0
  %2933 = vmatpush2.bf16.msra.mxu0 0
  %2934 = vmatprep.subr.bf16.mxu0 0
  %2935 = vmatpush2.bf16.msra.mxu0 0
  %2936 = vmatprep.subr.bf16.mxu0 0
  %2937 = vmatpush2.bf16.msra.mxu0 0
  %2938 = vmatprep.subr.bf16.mxu0 0
  %2939 = vmatpush2.bf16.msra.mxu0 0
  %2940 = vmatprep.subr.bf16.mxu0 0
  %2941 = vmatpush2.bf16.msra.mxu0 0
  %2942 = vmatprep.subr.bf16.mxu0 0
  %2943 = vmatpush2.bf16.msra.mxu0 0
  %2944 = vmatprep.subr.bf16.mxu0 0
  %2945 = vmatpush2.bf16.msra.mxu0 0
  %2946 = vmatprep.mubr.bf16.mxu0 0
  %2947 = vmatmul.mubr.bf16.gmra.mxu0 %v2860
  %v2948 = vpop.f32.mrf.mxu0
  %v2949 = vadd.f32 0.0, %v2948
  %v2950 = vpop.f32.mrf.mxu0
  %v2951 = vpop.f32.mrf.mxu0
  %v2952 = vadd.f32 0.0, %v2951
  %v2953 = vpop.f32.mrf.mxu0
  %2954 = vmatprep.mubr.bf16.mxu0 0
  %2955 = vmatmul.mubr.bf16.gmra.mxu0 %v2863
  %v2956 = vpop.f32.mrf.mxu0
  %v2957 = vadd.f32 0.0, %v2956
  %v2958 = vpop.f32.mrf.mxu0
  %v2959 = vpop.f32.mrf.mxu0
  %v2960 = vadd.f32 0.0, %v2959
  %v2961 = vpop.f32.mrf.mxu0
  %2962 = vdwg.mxu0
  %v2963 = vadd.f32 %v2841, %v2900
  %v2964 = vadd.f32 %v2842, %v2903
  %v2965 = vadd.f32 %v2843, %v2908
  %v2966 = vadd.f32 %v2844, %v2911
  %v2967 = vadd.f32 %v2845, %v2949
  %v2968 = vadd.f32 %v2846, %v2952
  %v2969 = vadd.f32 %v2847, %v2957
  %v2970 = vadd.f32 %v2848, %v2960
  %v2975 = vunpack.c.l.b16 %v473
  %v2976 = vunpack.c.l.b16 %v474
  %v2977 = vunpack.c.l.b16 %v475
  %v2978 = vunpack.c.l.b16 %v476
  %v2979 = vpack.c.b16 %v2976, %v2975
  %v2980 = vpack.c.b16 %v2978, %v2977
  %2982 = vrot.lane.b32.xlu0 %v1343, 64
  %v2983 = vpop.permute.xlu0 %2982
  %v2986 = vsel %vm71, %v2979, 0
  %v2989 = vsel %vm71, %v2980, 0
  %2991 = vmatprep.subr.bf16.mxu0 0
  %2992 = vmatpush1.bf16.msra.mxu0 0
  %2993 = vmatprep.subr.bf16.mxu0 0
  %2994 = vmatpush1.bf16.msra.mxu0 0
  %2995 = vmatprep.subr.bf16.mxu0 0
  %2996 = vmatpush1.bf16.msra.mxu0 0
  %2997 = vmatprep.subr.bf16.mxu0 0
  %2998 = vmatpush1.bf16.msra.mxu0 0
  %2999 = vmatprep.subr.bf16.mxu0 0
  %3000 = vmatpush1.bf16.msra.mxu0 0
  %3001 = vmatprep.subr.bf16.mxu0 0
  %3002 = vmatpush1.bf16.msra.mxu0 0
  %3003 = vmatprep.subr.bf16.mxu0 0
  %3004 = vmatpush1.bf16.msra.mxu0 0
  %3005 = vmatprep.subr.bf16.mxu0 0
  %3006 = vmatpush1.bf16.msra.mxu0 %v2983
  %3007 = vmatprep.subr.bf16.mxu0 0
  %3008 = vmatpush2.bf16.msra.mxu0 0
  %3009 = vmatprep.subr.bf16.mxu0 0
  %3010 = vmatpush2.bf16.msra.mxu0 0
  %3011 = vmatprep.subr.bf16.mxu0 0
  %3012 = vmatpush2.bf16.msra.mxu0 0
  %3013 = vmatprep.subr.bf16.mxu0 0
  %3014 = vmatpush2.bf16.msra.mxu0 0
  %3015 = vmatprep.subr.bf16.mxu0 0
  %3016 = vmatpush2.bf16.msra.mxu0 0
  %3017 = vmatprep.subr.bf16.mxu0 0
  %3018 = vmatpush2.bf16.msra.mxu0 0
  %3019 = vmatprep.subr.bf16.mxu0 0
  %3020 = vmatpush2.bf16.msra.mxu0 0
  %3021 = vmatprep.subr.bf16.mxu0 0
  %3022 = vmatpush2.bf16.msra.mxu0 0
  %3023 = vmatprep.mubr.bf16.mxu0 0
  %3024 = vmatmul.mubr.bf16.gmra.mxu0 %v2986
  %v3025 = vpop.f32.mrf.mxu0
  %v3026 = vadd.f32 0.0, %v3025
  %v3027 = vpop.f32.mrf.mxu0
  %v3028 = vpop.f32.mrf.mxu0
  %v3029 = vadd.f32 0.0, %v3028
  %v3030 = vpop.f32.mrf.mxu0
  %3031 = vmatprep.mubr.bf16.mxu0 0
  %3032 = vmatmul.mubr.bf16.gmra.mxu0 %v2989
  %v3033 = vpop.f32.mrf.mxu0
  %v3034 = vadd.f32 0.0, %v3033
  %v3035 = vpop.f32.mrf.mxu0
  %v3036 = vpop.f32.mrf.mxu0
  %v3037 = vadd.f32 0.0, %v3036
  %v3038 = vpop.f32.mrf.mxu0
  %3039 = vdwg.mxu0
  %3041 = vrot.lane.b32.xlu0 %v1351, 64
  %v3042 = vpop.permute.xlu0 %3041
  %3044 = vmatprep.subr.bf16.mxu0 0
  %3045 = vmatpush1.bf16.msra.mxu0 0
  %3046 = vmatprep.subr.bf16.mxu0 0
  %3047 = vmatpush1.bf16.msra.mxu0 0
  %3048 = vmatprep.subr.bf16.mxu0 0
  %3049 = vmatpush1.bf16.msra.mxu0 0
  %3050 = vmatprep.subr.bf16.mxu0 0
  %3051 = vmatpush1.bf16.msra.mxu0 0
  %3052 = vmatprep.subr.bf16.mxu0 0
  %3053 = vmatpush1.bf16.msra.mxu0 0
  %3054 = vmatprep.subr.bf16.mxu0 0
  %3055 = vmatpush1.bf16.msra.mxu0 0
  %3056 = vmatprep.subr.bf16.mxu0 0
  %3057 = vmatpush1.bf16.msra.mxu0 0
  %3058 = vmatprep.subr.bf16.mxu0 0
  %3059 = vmatpush1.bf16.msra.mxu0 %v3042
  %3060 = vmatprep.subr.bf16.mxu0 0
  %3061 = vmatpush2.bf16.msra.mxu0 0
  %3062 = vmatprep.subr.bf16.mxu0 0
  %3063 = vmatpush2.bf16.msra.mxu0 0
  %3064 = vmatprep.subr.bf16.mxu0 0
  %3065 = vmatpush2.bf16.msra.mxu0 0
  %3066 = vmatprep.subr.bf16.mxu0 0
  %3067 = vmatpush2.bf16.msra.mxu0 0
  %3068 = vmatprep.subr.bf16.mxu0 0
  %3069 = vmatpush2.bf16.msra.mxu0 0
  %3070 = vmatprep.subr.bf16.mxu0 0
  %3071 = vmatpush2.bf16.msra.mxu0 0
  %3072 = vmatprep.subr.bf16.mxu0 0
  %3073 = vmatpush2.bf16.msra.mxu0 0
  %3074 = vmatprep.subr.bf16.mxu0 0
  %3075 = vmatpush2.bf16.msra.mxu0 0
  %3076 = vmatprep.mubr.bf16.mxu0 0
  %3077 = vmatmul.mubr.bf16.gmra.mxu0 %v2986
  %v3078 = vpop.f32.mrf.mxu0
  %v3079 = vadd.f32 0.0, %v3078
  %v3080 = vpop.f32.mrf.mxu0
  %v3081 = vpop.f32.mrf.mxu0
  %v3082 = vadd.f32 0.0, %v3081
  %v3083 = vpop.f32.mrf.mxu0
  %3084 = vmatprep.mubr.bf16.mxu0 0
  %3085 = vmatmul.mubr.bf16.gmra.mxu0 %v2989
  %v3086 = vpop.f32.mrf.mxu0
  %v3087 = vadd.f32 0.0, %v3086
  %v3088 = vpop.f32.mrf.mxu0
  %v3089 = vpop.f32.mrf.mxu0
  %v3090 = vadd.f32 0.0, %v3089
  %v3091 = vpop.f32.mrf.mxu0
  %3092 = vdwg.mxu0
  %v3093 = vadd.f32 %v2963, %v3026
  %v3094 = vadd.f32 %v2964, %v3029
  %v3095 = vadd.f32 %v2965, %v3034
  %v3096 = vadd.f32 %v2966, %v3037
  %v3097 = vadd.f32 %v2967, %v3079
  %v3098 = vadd.f32 %v2968, %v3082
  %v3099 = vadd.f32 %v2969, %v3087
  %v3100 = vadd.f32 %v2970, %v3090
  %v3105 = vunpack.c.l.b16 %v477
  %v3106 = vunpack.c.l.b16 %v478
  %v3107 = vunpack.c.l.b16 %v479
  %v3108 = vunpack.c.l.b16 %v480
  %v3109 = vpack.c.b16 %v3106, %v3105
  %v3110 = vpack.c.b16 %v3108, %v3107
  %v3112 = vsel %vm71, %v3109, 0
  %v3115 = vsel %vm71, %v3110, 0
  %3117 = vmatprep.subr.bf16.mxu0 0
  %3118 = vmatpush1.bf16.msra.mxu0 0
  %3119 = vmatprep.subr.bf16.mxu0 0
  %3120 = vmatpush1.bf16.msra.mxu0 0
  %3121 = vmatprep.subr.bf16.mxu0 0
  %3122 = vmatpush1.bf16.msra.mxu0 0
  %3123 = vmatprep.subr.bf16.mxu0 0
  %3124 = vmatpush1.bf16.msra.mxu0 0
  %3125 = vmatprep.subr.bf16.mxu0 0
  %3126 = vmatpush1.bf16.msra.mxu0 0
  %3127 = vmatprep.subr.bf16.mxu0 0
  %3128 = vmatpush1.bf16.msra.mxu0 0
  %3129 = vmatprep.subr.bf16.mxu0 0
  %3130 = vmatpush1.bf16.msra.mxu0 0
  %3131 = vmatprep.subr.bf16.mxu0 0
  %3132 = vmatpush1.bf16.msra.mxu0 %v1344
  %3133 = vmatprep.subr.bf16.mxu0 0
  %3134 = vmatpush2.bf16.msra.mxu0 0
  %3135 = vmatprep.subr.bf16.mxu0 0
  %3136 = vmatpush2.bf16.msra.mxu0 0
  %3137 = vmatprep.subr.bf16.mxu0 0
  %3138 = vmatpush2.bf16.msra.mxu0 0
  %3139 = vmatprep.subr.bf16.mxu0 0
  %3140 = vmatpush2.bf16.msra.mxu0 0
  %3141 = vmatprep.subr.bf16.mxu0 0
  %3142 = vmatpush2.bf16.msra.mxu0 0
  %3143 = vmatprep.subr.bf16.mxu0 0
  %3144 = vmatpush2.bf16.msra.mxu0 0
  %3145 = vmatprep.subr.bf16.mxu0 0
  %3146 = vmatpush2.bf16.msra.mxu0 0
  %3147 = vmatprep.subr.bf16.mxu0 0
  %3148 = vmatpush2.bf16.msra.mxu0 0
  %3149 = vmatprep.mubr.bf16.mxu0 0
  %3150 = vmatmul.mubr.bf16.gmra.mxu0 %v3112
  %v3151 = vpop.f32.mrf.mxu0
  %v3152 = vadd.f32 0.0, %v3151
  %v3153 = vpop.f32.mrf.mxu0
  %v3154 = vpop.f32.mrf.mxu0
  %v3155 = vadd.f32 0.0, %v3154
  %v3156 = vpop.f32.mrf.mxu0
  %3157 = vmatprep.mubr.bf16.mxu0 0
  %3158 = vmatmul.mubr.bf16.gmra.mxu0 %v3115
  %v3159 = vpop.f32.mrf.mxu0
  %v3160 = vadd.f32 0.0, %v3159
  %v3161 = vpop.f32.mrf.mxu0
  %v3162 = vpop.f32.mrf.mxu0
  %v3163 = vadd.f32 0.0, %v3162
  %v3164 = vpop.f32.mrf.mxu0
  %3165 = vdwg.mxu0
  %3166 = vmatprep.subr.bf16.mxu0 0
  %3167 = vmatpush1.bf16.msra.mxu0 0
  %3168 = vmatprep.subr.bf16.mxu0 0
  %3169 = vmatpush1.bf16.msra.mxu0 0
  %3170 = vmatprep.subr.bf16.mxu0 0
  %3171 = vmatpush1.bf16.msra.mxu0 0
  %3172 = vmatprep.subr.bf16.mxu0 0
  %3173 = vmatpush1.bf16.msra.mxu0 0
  %3174 = vmatprep.subr.bf16.mxu0 0
  %3175 = vmatpush1.bf16.msra.mxu0 0
  %3176 = vmatprep.subr.bf16.mxu0 0
  %3177 = vmatpush1.bf16.msra.mxu0 0
  %3178 = vmatprep.subr.bf16.mxu0 0
  %3179 = vmatpush1.bf16.msra.mxu0 0
  %3180 = vmatprep.subr.bf16.mxu0 0
  %3181 = vmatpush1.bf16.msra.mxu0 %v1352
  %3182 = vmatprep.subr.bf16.mxu0 0
  %3183 = vmatpush2.bf16.msra.mxu0 0
  %3184 = vmatprep.subr.bf16.mxu0 0
  %3185 = vmatpush2.bf16.msra.mxu0 0
  %3186 = vmatprep.subr.bf16.mxu0 0
  %3187 = vmatpush2.bf16.msra.mxu0 0
  %3188 = vmatprep.subr.bf16.mxu0 0
  %3189 = vmatpush2.bf16.msra.mxu0 0
  %3190 = vmatprep.subr.bf16.mxu0 0
  %3191 = vmatpush2.bf16.msra.mxu0 0
  %3192 = vmatprep.subr.bf16.mxu0 0
  %3193 = vmatpush2.bf16.msra.mxu0 0
  %3194 = vmatprep.subr.bf16.mxu0 0
  %3195 = vmatpush2.bf16.msra.mxu0 0
  %3196 = vmatprep.subr.bf16.mxu0 0
  %3197 = vmatpush2.bf16.msra.mxu0 0
  %3198 = vmatprep.mubr.bf16.mxu0 0
  %3199 = vmatmul.mubr.bf16.gmra.mxu0 %v3112
  %v3200 = vpop.f32.mrf.mxu0
  %v3201 = vadd.f32 0.0, %v3200
  %v3202 = vpop.f32.mrf.mxu0
  %v3203 = vpop.f32.mrf.mxu0
  %v3204 = vadd.f32 0.0, %v3203
  %v3205 = vpop.f32.mrf.mxu0
  %3206 = vmatprep.mubr.bf16.mxu0 0
  %3207 = vmatmul.mubr.bf16.gmra.mxu0 %v3115
  %v3208 = vpop.f32.mrf.mxu0
  %v3209 = vadd.f32 0.0, %v3208
  %v3210 = vpop.f32.mrf.mxu0
  %v3211 = vpop.f32.mrf.mxu0
  %v3212 = vadd.f32 0.0, %v3211
  %v3213 = vpop.f32.mrf.mxu0
  %3214 = vdwg.mxu0
  %v3215 = vadd.f32 %v3093, %v3152
  %v3216 = vadd.f32 %v3094, %v3155
  %v3217 = vadd.f32 %v3095, %v3160
  %v3218 = vadd.f32 %v3096, %v3163
  %v3219 = vadd.f32 %v3097, %v3201
  %v3220 = vadd.f32 %v3098, %v3204
  %v3221 = vadd.f32 %v3099, %v3209
  %v3222 = vadd.f32 %v3100, %v3212
  %v3227 = vunpack.c.l.b16 %v481
  %v3228 = vunpack.c.l.b16 %v482
  %v3229 = vunpack.c.l.b16 %v483
  %v3230 = vunpack.c.l.b16 %v484
  %v3231 = vpack.c.b16 %v3228, %v3227
  %v3232 = vpack.c.b16 %v3230, %v3229
  %3234 = vrot.lane.b32.xlu0 %v1344, 64
  %v3235 = vpop.permute.xlu0 %3234
  %v3238 = vsel %vm71, %v3231, 0
  %v3241 = vsel %vm71, %v3232, 0
  %3243 = vmatprep.subr.bf16.mxu0 0
  %3244 = vmatpush1.bf16.msra.mxu0 0
  %3245 = vmatprep.subr.bf16.mxu0 0
  %3246 = vmatpush1.bf16.msra.mxu0 0
  %3247 = vmatprep.subr.bf16.mxu0 0
  %3248 = vmatpush1.bf16.msra.mxu0 0
  %3249 = vmatprep.subr.bf16.mxu0 0
  %3250 = vmatpush1.bf16.msra.mxu0 0
  %3251 = vmatprep.subr.bf16.mxu0 0
  %3252 = vmatpush1.bf16.msra.mxu0 0
  %3253 = vmatprep.subr.bf16.mxu0 0
  %3254 = vmatpush1.bf16.msra.mxu0 0
  %3255 = vmatprep.subr.bf16.mxu0 0
  %3256 = vmatpush1.bf16.msra.mxu0 0
  %3257 = vmatprep.subr.bf16.mxu0 0
  %3258 = vmatpush1.bf16.msra.mxu0 %v3235
  %3259 = vmatprep.subr.bf16.mxu0 0
  %3260 = vmatpush2.bf16.msra.mxu0 0
  %3261 = vmatprep.subr.bf16.mxu0 0
  %3262 = vmatpush2.bf16.msra.mxu0 0
  %3263 = vmatprep.subr.bf16.mxu0 0
  %3264 = vmatpush2.bf16.msra.mxu0 0
  %3265 = vmatprep.subr.bf16.mxu0 0
  %3266 = vmatpush2.bf16.msra.mxu0 0
  %3267 = vmatprep.subr.bf16.mxu0 0
  %3268 = vmatpush2.bf16.msra.mxu0 0
  %3269 = vmatprep.subr.bf16.mxu0 0
  %3270 = vmatpush2.bf16.msra.mxu0 0
  %3271 = vmatprep.subr.bf16.mxu0 0
  %3272 = vmatpush2.bf16.msra.mxu0 0
  %3273 = vmatprep.subr.bf16.mxu0 0
  %3274 = vmatpush2.bf16.msra.mxu0 0
  %3275 = vmatprep.mubr.bf16.mxu0 0
  %3276 = vmatmul.mubr.bf16.gmra.mxu0 %v3238
  %v3277 = vpop.f32.mrf.mxu0
  %v3278 = vadd.f32 0.0, %v3277
  %v3279 = vpop.f32.mrf.mxu0
  %v3280 = vpop.f32.mrf.mxu0
  %v3281 = vadd.f32 0.0, %v3280
  %v3282 = vpop.f32.mrf.mxu0
  %3283 = vmatprep.mubr.bf16.mxu0 0
  %3284 = vmatmul.mubr.bf16.gmra.mxu0 %v3241
  %v3285 = vpop.f32.mrf.mxu0
  %v3286 = vadd.f32 0.0, %v3285
  %v3287 = vpop.f32.mrf.mxu0
  %v3288 = vpop.f32.mrf.mxu0
  %v3289 = vadd.f32 0.0, %v3288
  %v3290 = vpop.f32.mrf.mxu0
  %3291 = vdwg.mxu0
  %3293 = vrot.lane.b32.xlu0 %v1352, 64
  %v3294 = vpop.permute.xlu0 %3293
  %3296 = vmatprep.subr.bf16.mxu0 0
  %3297 = vmatpush1.bf16.msra.mxu0 0
  %3298 = vmatprep.subr.bf16.mxu0 0
  %3299 = vmatpush1.bf16.msra.mxu0 0
  %3300 = vmatprep.subr.bf16.mxu0 0
  %3301 = vmatpush1.bf16.msra.mxu0 0
  %3302 = vmatprep.subr.bf16.mxu0 0
  %3303 = vmatpush1.bf16.msra.mxu0 0
  %3304 = vmatprep.subr.bf16.mxu0 0
  %3305 = vmatpush1.bf16.msra.mxu0 0
  %3306 = vmatprep.subr.bf16.mxu0 0
  %3307 = vmatpush1.bf16.msra.mxu0 0
  %3308 = vmatprep.subr.bf16.mxu0 0
  %3309 = vmatpush1.bf16.msra.mxu0 0
  %3310 = vmatprep.subr.bf16.mxu0 0
  %3311 = vmatpush1.bf16.msra.mxu0 %v3294
  %3312 = vmatprep.subr.bf16.mxu0 0
  %3313 = vmatpush2.bf16.msra.mxu0 0
  %3314 = vmatprep.subr.bf16.mxu0 0
  %3315 = vmatpush2.bf16.msra.mxu0 0
  %3316 = vmatprep.subr.bf16.mxu0 0
  %3317 = vmatpush2.bf16.msra.mxu0 0
  %3318 = vmatprep.subr.bf16.mxu0 0
  %3319 = vmatpush2.bf16.msra.mxu0 0
  %3320 = vmatprep.subr.bf16.mxu0 0
  %3321 = vmatpush2.bf16.msra.mxu0 0
  %3322 = vmatprep.subr.bf16.mxu0 0
  %3323 = vmatpush2.bf16.msra.mxu0 0
  %3324 = vmatprep.subr.bf16.mxu0 0
  %3325 = vmatpush2.bf16.msra.mxu0 0
  %3326 = vmatprep.subr.bf16.mxu0 0
  %3327 = vmatpush2.bf16.msra.mxu0 0
  %3328 = vmatprep.mubr.bf16.mxu0 0
  %3329 = vmatmul.mubr.bf16.gmra.mxu0 %v3238
  %v3330 = vpop.f32.mrf.mxu0
  %v3331 = vadd.f32 0.0, %v3330
  %v3332 = vpop.f32.mrf.mxu0
  %v3333 = vpop.f32.mrf.mxu0
  %v3334 = vadd.f32 0.0, %v3333
  %v3335 = vpop.f32.mrf.mxu0
  %3336 = vmatprep.mubr.bf16.mxu0 0
  %3337 = vmatmul.mubr.bf16.gmra.mxu0 %v3241
  %v3338 = vpop.f32.mrf.mxu0
  %v3339 = vadd.f32 0.0, %v3338
  %v3340 = vpop.f32.mrf.mxu0
  %v3341 = vpop.f32.mrf.mxu0
  %v3342 = vadd.f32 0.0, %v3341
  %v3343 = vpop.f32.mrf.mxu0
  %3344 = vdwg.mxu0
  %v3345 = vadd.f32 %v3215, %v3278
  %v3346 = vadd.f32 %v3216, %v3281
  %v3347 = vadd.f32 %v3217, %v3286
  %v3348 = vadd.f32 %v3218, %v3289
  %v3349 = vadd.f32 %v3219, %v3331
  %v3350 = vadd.f32 %v3220, %v3334
  %v3351 = vadd.f32 %v3221, %v3339
  %v3352 = vadd.f32 %v3222, %v3342
  %v3353 = vld [vmem:[%s6] sm:$0xff]
  %v3354 = vld [vmem:[%s6 + $0x8] sm:$0xff]
  %v3355 = vld [vmem:[%s6 + $0x10] sm:$0xff]
  %v3356 = vld [vmem:[%s6 + $0x18] sm:$0xff]
  %v3357 = vld [vmem:[%s7] sm:$0xff]
  %v3358 = vld [vmem:[%s7 + $0x8] sm:$0xff]
  %v3359 = vld [vmem:[%s7 + $0x10] sm:$0xff]
  %v3360 = vld [vmem:[%s7 + $0x18] sm:$0xff]
  %vm3361 = vcmask 523264
  %v3362 = vsel %vm3361, %v3345, 0.0
  %3363 = vadd.xlane.f32.xlu0 %v3362
  %v3364 = vpop.xlane.xlu0 %3363
  %v3365 = vsel %vm3361, %v3346, 0.0
  %3366 = vadd.xlane.f32.xlu0 %v3365
  %v3367 = vpop.xlane.xlu0 %3366
  %v3368 = vsel %vm3361, %v3347, 0.0
  %3369 = vadd.xlane.f32.xlu0 %v3368
  %v3370 = vpop.xlane.xlu0 %3369
  %v3371 = vsel %vm3361, %v3348, 0.0
  %3372 = vadd.xlane.f32.xlu0 %v3371
  %v3373 = vpop.xlane.xlu0 %3372
  %v3374 = vsel %vm3361, %v3349, 0.0
  %3375 = vadd.xlane.f32.xlu0 %v3374
  %v3376 = vpop.xlane.xlu0 %3375
  %v3377 = vsel %vm3361, %v3350, 0.0
  %3378 = vadd.xlane.f32.xlu0 %v3377
  %v3379 = vpop.xlane.xlu0 %3378
  %v3380 = vsel %vm3361, %v3351, 0.0
  %3381 = vadd.xlane.f32.xlu0 %v3380
  %v3382 = vpop.xlane.xlu0 %3381
  %v3383 = vsel %vm3361, %v3352, 0.0
  %3384 = vadd.xlane.f32.xlu0 %v3383
  %v3385 = vpop.xlane.xlu0 %3384
  %v3386 = vadd.f32 %v3364, %v3376
  %v3387 = vadd.f32 %v3367, %v3379
  %v3388 = vadd.f32 %v3370, %v3382
  %v3389 = vadd.f32 %v3373, %v3385
  %v3390 = vmul.f32 %v3386, 0.0078125
  %v3391 = vmul.f32 %v3387, 0.0078125
  %v3392 = vmul.f32 %v3388, 0.0078125
  %v3393 = vmul.f32 %v3389, 0.0078125
  %v3394 = vsub.f32 %v3345, %v3390
  %v3395 = vsub.f32 %v3346, %v3391
  %v3396 = vsub.f32 %v3347, %v3392
  %v3397 = vsub.f32 %v3348, %v3393
  %v3398 = vsub.f32 %v3349, %v3390
  %v3399 = vsub.f32 %v3350, %v3391
  %v3400 = vsub.f32 %v3351, %v3392
  %v3401 = vsub.f32 %v3352, %v3393
  %v3402 = vmul.f32 %v3394, %v3394
  %v3403 = vmul.f32 %v3395, %v3395
  %v3404 = vmul.f32 %v3396, %v3396
  %v3405 = vmul.f32 %v3397, %v3397
  %v3406 = vmul.f32 %v3398, %v3398
  %v3407 = vmul.f32 %v3399, %v3399
  %v3408 = vmul.f32 %v3400, %v3400
  %v3409 = vmul.f32 %v3401, %v3401
  %v3410 = vsel %vm3361, %v3402, 0.0
  %3411 = vadd.xlane.f32.xlu0 %v3410
  %v3412 = vpop.xlane.xlu0 %3411
  %v3413 = vsel %vm3361, %v3403, 0.0
  %3414 = vadd.xlane.f32.xlu0 %v3413
  %v3415 = vpop.xlane.xlu0 %3414
  %v3416 = vsel %vm3361, %v3404, 0.0
  %3417 = vadd.xlane.f32.xlu0 %v3416
  %v3418 = vpop.xlane.xlu0 %3417
  %v3419 = vsel %vm3361, %v3405, 0.0
  %3420 = vadd.xlane.f32.xlu0 %v3419
  %v3421 = vpop.xlane.xlu0 %3420
  %v3422 = vsel %vm3361, %v3406, 0.0
  %3423 = vadd.xlane.f32.xlu0 %v3422
  %v3424 = vpop.xlane.xlu0 %3423
  %v3425 = vsel %vm3361, %v3407, 0.0
  %3426 = vadd.xlane.f32.xlu0 %v3425
  %v3427 = vpop.xlane.xlu0 %3426
  %v3428 = vsel %vm3361, %v3408, 0.0
  %3429 = vadd.xlane.f32.xlu0 %v3428
  %v3430 = vpop.xlane.xlu0 %3429
  %v3431 = vsel %vm3361, %v3409, 0.0
  %3432 = vadd.xlane.f32.xlu0 %v3431
  %v3433 = vpop.xlane.xlu0 %3432
  %v3434 = vadd.f32 %v3412, %v3424
  %v3435 = vadd.f32 %v3415, %v3427
  %v3436 = vadd.f32 %v3418, %v3430
  %v3437 = vadd.f32 %v3421, %v3433
  %v3438 = vmul.f32 %v3434, 0.0078125
  %v3439 = vmul.f32 %v3435, 0.0078125
  %v3440 = vmul.f32 %v3436, 0.0078125
  %v3441 = vmul.f32 %v3437, 0.0078125
  %v3442 = vadd.f32 %v3438, 1e-05
  %v3443 = vadd.f32 %v3439, 1e-05
  %v3444 = vadd.f32 %v3440, 1e-05
  %v3445 = vadd.f32 %v3441, 1e-05
  %v3446 = vrsqrt.pop %v3442
  %v3447 = vrsqrt.pop %v3443
  %v3448 = vrsqrt.pop %v3444
  %v3449 = vrsqrt.pop %v3445
  %v3450 = vmul.f32 %v3353, %v3446
  %v3451 = vmul.f32 %v3354, %v3447
  %v3452 = vmul.f32 %v3355, %v3448
  %v3453 = vmul.f32 %v3356, %v3449
  %3455 = vset.pattern.permute.xlu0 0
  %3456 = vperm.xlu0 %3455, %v3450
  %v3457 = vpop.permute.xlu0 %3456
  %3460 = vset.pattern.permute.xlu0 0
  %3461 = vperm.xlu0 %3460, %v3451
  %v3462 = vpop.permute.xlu0 %3461
  %3465 = vset.pattern.permute.xlu0 0
  %3466 = vperm.xlu0 %3465, %v3452
  %v3467 = vpop.permute.xlu0 %3466
  %3470 = vset.pattern.permute.xlu0 0
  %3471 = vperm.xlu0 %3470, %v3453
  %v3472 = vpop.permute.xlu0 %3471
  %v3474 = vmul.f32 %v3394, %v3457
  %v3475 = vmul.f32 %v3395, %v3462
  %v3476 = vmul.f32 %v3396, %v3467
  %v3477 = vmul.f32 %v3397, %v3472
  %v3478 = vmul.f32 %v3398, %v3457
  %v3479 = vmul.f32 %v3399, %v3462
  %v3480 = vmul.f32 %v3400, %v3467
  %v3481 = vmul.f32 %v3401, %v3472
  %3483 = vset.pattern.permute.xlu0 0
  %3484 = vperm.xlu0 %3483, %v3357
  %v3485 = vpop.permute.xlu0 %3484
  %3488 = vset.pattern.permute.xlu0 0
  %3489 = vperm.xlu0 %3488, %v3358
  %v3490 = vpop.permute.xlu0 %3489
  %3493 = vset.pattern.permute.xlu0 0
  %3494 = vperm.xlu0 %3493, %v3359
  %v3495 = vpop.permute.xlu0 %3494
  %3498 = vset.pattern.permute.xlu0 0
  %3499 = vperm.xlu0 %3498, %v3360
  %v3500 = vpop.permute.xlu0 %3499
  %v3502 = vadd.f32 %v3474, %v3485
  %v3503 = vadd.f32 %v3475, %v3490
  %v3504 = vadd.f32 %v3476, %v3495
  %v3505 = vadd.f32 %v3477, %v3500
  %v3506 = vadd.f32 %v3478, %v3485
  %v3507 = vadd.f32 %v3479, %v3490
  %v3508 = vadd.f32 %v3480, %v3495
  %v3509 = vadd.f32 %v3481, %v3500
  %vm3510 = vcmp.ge.f32.partialorder %v3502, 0.0
  %vm3511 = vcmp.ge.f32.partialorder %v3503, 0.0
  %vm3512 = vcmp.ge.f32.partialorder %v3504, 0.0
  %vm3513 = vcmp.ge.f32.partialorder %v3505, 0.0
  %vm3514 = vcmp.ge.f32.partialorder %v3506, 0.0
  %vm3515 = vcmp.ge.f32.partialorder %v3507, 0.0
  %vm3516 = vcmp.ge.f32.partialorder %v3508, 0.0
  %vm3517 = vcmp.ge.f32.partialorder %v3509, 0.0
  %v3518 = vmul.f32 %v3502, 0.003
  %v3519 = vmul.f32 %v3503, 0.003
  %v3520 = vmul.f32 %v3504, 0.003
  %v3521 = vmul.f32 %v3505, 0.003
  %v3522 = vmul.f32 %v3506, 0.003
  %v3523 = vmul.f32 %v3507, 0.003
  %v3524 = vmul.f32 %v3508, 0.003
  %v3525 = vmul.f32 %v3509, 0.003
  %v3526 = vsel %vm3510, %v3502, %v3518
  %v3527 = vsel %vm3511, %v3503, %v3519
  %v3528 = vsel %vm3512, %v3504, %v3520
  %v3529 = vsel %vm3513, %v3505, %v3521
  %v3530 = vsel %vm3514, %v3506, %v3522
  %v3531 = vsel %vm3515, %v3507, %v3523
  %v3532 = vsel %vm3516, %v3508, %v3524
  %v3533 = vsel %vm3517, %v3509, %v3525
  %v3534 = vpack.c.bf16 %v3527, %v3526
  %v3535 = vpack.c.bf16 %v3529, %v3528
  %v3536 = vpack.c.bf16 %v3531, %v3530
  %v3537 = vpack.c.bf16 %v3533, %v3532
  %v3538 = vld [vmem:[%s8] sm:$0xff]
  %v3539 = vld [vmem:[%s8 + $0x8] sm:$0xff]
  %v3540 = vld [vmem:[%s8 + $0x10] sm:$0xff]
  %v3541 = vld [vmem:[%s8 + $0x18] sm:$0xff]
  %v3542 = vld [vmem:[%s8 + $0x20] sm:$0xff]
  %v3543 = vld [vmem:[%s8 + $0x28] sm:$0xff]
  %v3544 = vld [vmem:[%s8 + $0x30] sm:$0xff]
  %v3545 = vld [vmem:[%s8 + $0x38] sm:$0xff]
  %v3546 = vld [vmem:[%s9] sm:$0xf]
  %v3547 = vld [vmem:[%s9 + $0x4] sm:$0xf]
  %v3548 = vld [vmem:[%s9 + $0x8] sm:$0xf]
  %v3549 = vld [vmem:[%s9 + $0xc] sm:$0xf]
  %v3550 = vld [vmem:[%s9 + $0x10] sm:$0xf]
  %v3551 = vld [vmem:[%s9 + $0x14] sm:$0xf]
  %v3552 = vld [vmem:[%s9 + $0x18] sm:$0xf]
  %v3553 = vld [vmem:[%s9 + $0x1c] sm:$0xf]
  %v3554 = vld [vmem:[%s9 + $0x20] sm:$0xf]
  %v3555 = vld [vmem:[%s9 + $0x24] sm:$0xf]
  %v3556 = vld [vmem:[%s9 + $0x28] sm:$0xf]
  %v3557 = vld [vmem:[%s9 + $0x2c] sm:$0xf]
  %v3558 = vld [vmem:[%s9 + $0x30] sm:$0xf]
  %v3559 = vld [vmem:[%s9 + $0x34] sm:$0xf]
  %v3560 = vld [vmem:[%s9 + $0x38] sm:$0xf]
  %v3561 = vld [vmem:[%s9 + $0x3c] sm:$0xf]
  %v3562 = vld [vmem:[%s9 + $0x40] sm:$0xf]
  %v3563 = vld [vmem:[%s9 + $0x44] sm:$0xf]
  %v3564 = vld [vmem:[%s9 + $0x48] sm:$0xf]
  %v3565 = vld [vmem:[%s9 + $0x4c] sm:$0xf]
  %v3566 = vld [vmem:[%s9 + $0x50] sm:$0xf]
  %v3567 = vld [vmem:[%s9 + $0x54] sm:$0xf]
  %v3568 = vld [vmem:[%s9 + $0x58] sm:$0xf]
  %v3569 = vld [vmem:[%s9 + $0x5c] sm:$0xf]
  %v3570 = vld [vmem:[%s9 + $0x60] sm:$0xf]
  %v3571 = vld [vmem:[%s9 + $0x64] sm:$0xf]
  %v3572 = vld [vmem:[%s9 + $0x68] sm:$0xf]
  %v3573 = vld [vmem:[%s9 + $0x6c] sm:$0xf]
  %v3574 = vld [vmem:[%s9 + $0x70] sm:$0xf]
  %v3575 = vld [vmem:[%s9 + $0x74] sm:$0xf]
  %v3576 = vld [vmem:[%s9 + $0x78] sm:$0xf]
  %v3577 = vld [vmem:[%s9 + $0x7c] sm:$0xf]
  %v3578 = vld [vmem:[%s9 + $0x80] sm:$0xf]
  %v3579 = vld [vmem:[%s9 + $0x84] sm:$0xf]
  %v3580 = vld [vmem:[%s9 + $0x88] sm:$0xf]
  %v3581 = vld [vmem:[%s9 + $0x8c] sm:$0xf]
  %v3582 = vld [vmem:[%s9 + $0x90] sm:$0xf]
  %v3583 = vld [vmem:[%s9 + $0x94] sm:$0xf]
  %v3584 = vld [vmem:[%s9 + $0x98] sm:$0xf]
  %v3585 = vld [vmem:[%s9 + $0x9c] sm:$0xf]
  %v3586 = vld [vmem:[%s9 + $0xa0] sm:$0xf]
  %v3587 = vld [vmem:[%s9 + $0xa4] sm:$0xf]
  %v3588 = vld [vmem:[%s9 + $0xa8] sm:$0xf]
  %v3589 = vld [vmem:[%s9 + $0xac] sm:$0xf]
  %v3590 = vld [vmem:[%s9 + $0xb0] sm:$0xf]
  %v3591 = vld [vmem:[%s9 + $0xb4] sm:$0xf]
  %v3592 = vld [vmem:[%s9 + $0xb8] sm:$0xf]
  %v3593 = vld [vmem:[%s9 + $0xbc] sm:$0xf]
  %v3594 = vld [vmem:[%s9 + $0xc0] sm:$0xf]
  %v3595 = vld [vmem:[%s9 + $0xc4] sm:$0xf]
  %v3596 = vld [vmem:[%s9 + $0xc8] sm:$0xf]
  %v3597 = vld [vmem:[%s9 + $0xcc] sm:$0xf]
  %v3598 = vld [vmem:[%s9 + $0xd0] sm:$0xf]
  %v3599 = vld [vmem:[%s9 + $0xd4] sm:$0xf]
  %v3600 = vld [vmem:[%s9 + $0xd8] sm:$0xf]
  %v3601 = vld [vmem:[%s9 + $0xdc] sm:$0xf]
  %v3602 = vld [vmem:[%s9 + $0xe0] sm:$0xf]
  %v3603 = vld [vmem:[%s9 + $0xe4] sm:$0xf]
  %v3604 = vld [vmem:[%s9 + $0xe8] sm:$0xf]
  %v3605 = vld [vmem:[%s9 + $0xec] sm:$0xf]
  %v3606 = vld [vmem:[%s9 + $0xf0] sm:$0xf]
  %v3607 = vld [vmem:[%s9 + $0xf4] sm:$0xf]
  %v3608 = vld [vmem:[%s9 + $0xf8] sm:$0xf]
  %v3609 = vld [vmem:[%s9 + $0xfc] sm:$0xf]
  %v3610 = vld [vmem:[%s9 + $0x100] sm:$0xf]
  %v3611 = vld [vmem:[%s9 + $0x104] sm:$0xf]
  %v3612 = vld [vmem:[%s9 + $0x108] sm:$0xf]
  %v3613 = vld [vmem:[%s9 + $0x10c] sm:$0xf]
  %v3614 = vld [vmem:[%s9 + $0x110] sm:$0xf]
  %v3615 = vld [vmem:[%s9 + $0x114] sm:$0xf]
  %v3616 = vld [vmem:[%s9 + $0x118] sm:$0xf]
  %v3617 = vld [vmem:[%s9 + $0x11c] sm:$0xf]
  %v3618 = vld [vmem:[%s9 + $0x120] sm:$0xf]
  %v3619 = vld [vmem:[%s9 + $0x124] sm:$0xf]
  %v3620 = vld [vmem:[%s9 + $0x128] sm:$0xf]
  %v3621 = vld [vmem:[%s9 + $0x12c] sm:$0xf]
  %v3622 = vld [vmem:[%s9 + $0x130] sm:$0xf]
  %v3623 = vld [vmem:[%s9 + $0x134] sm:$0xf]
  %v3624 = vld [vmem:[%s9 + $0x138] sm:$0xf]
  %v3625 = vld [vmem:[%s9 + $0x13c] sm:$0xf]
  %v3626 = vld [vmem:[%s9 + $0x140] sm:$0xf]
  %v3627 = vld [vmem:[%s9 + $0x144] sm:$0xf]
  %v3628 = vld [vmem:[%s9 + $0x148] sm:$0xf]
  %v3629 = vld [vmem:[%s9 + $0x14c] sm:$0xf]
  %v3630 = vld [vmem:[%s9 + $0x150] sm:$0xf]
  %v3631 = vld [vmem:[%s9 + $0x154] sm:$0xf]
  %v3632 = vld [vmem:[%s9 + $0x158] sm:$0xf]
  %v3633 = vld [vmem:[%s9 + $0x15c] sm:$0xf]
  %v3634 = vld [vmem:[%s9 + $0x160] sm:$0xf]
  %v3635 = vld [vmem:[%s9 + $0x164] sm:$0xf]
  %v3636 = vld [vmem:[%s9 + $0x168] sm:$0xf]
  %v3637 = vld [vmem:[%s9 + $0x16c] sm:$0xf]
  %v3638 = vld [vmem:[%s9 + $0x170] sm:$0xf]
  %v3639 = vld [vmem:[%s9 + $0x174] sm:$0xf]
  %v3640 = vld [vmem:[%s9 + $0x178] sm:$0xf]
  %v3641 = vld [vmem:[%s9 + $0x17c] sm:$0xf]
  %v3642 = vld [vmem:[%s9 + $0x180] sm:$0xf]
  %v3643 = vld [vmem:[%s9 + $0x184] sm:$0xf]
  %v3644 = vld [vmem:[%s9 + $0x188] sm:$0xf]
  %v3645 = vld [vmem:[%s9 + $0x18c] sm:$0xf]
  %v3646 = vld [vmem:[%s9 + $0x190] sm:$0xf]
  %v3647 = vld [vmem:[%s9 + $0x194] sm:$0xf]
  %v3648 = vld [vmem:[%s9 + $0x198] sm:$0xf]
  %v3649 = vld [vmem:[%s9 + $0x19c] sm:$0xf]
  %v3650 = vld [vmem:[%s9 + $0x1a0] sm:$0xf]
  %v3651 = vld [vmem:[%s9 + $0x1a4] sm:$0xf]
  %v3652 = vld [vmem:[%s9 + $0x1a8] sm:$0xf]
  %v3653 = vld [vmem:[%s9 + $0x1ac] sm:$0xf]
  %v3654 = vld [vmem:[%s9 + $0x1b0] sm:$0xf]
  %v3655 = vld [vmem:[%s9 + $0x1b4] sm:$0xf]
  %v3656 = vld [vmem:[%s9 + $0x1b8] sm:$0xf]
  %v3657 = vld [vmem:[%s9 + $0x1bc] sm:$0xf]
  %v3658 = vld [vmem:[%s9 + $0x1c0] sm:$0xf]
  %v3659 = vld [vmem:[%s9 + $0x1c4] sm:$0xf]
  %v3660 = vld [vmem:[%s9 + $0x1c8] sm:$0xf]
  %v3661 = vld [vmem:[%s9 + $0x1cc] sm:$0xf]
  %v3662 = vld [vmem:[%s9 + $0x1d0] sm:$0xf]
  %v3663 = vld [vmem:[%s9 + $0x1d4] sm:$0xf]
  %v3664 = vld [vmem:[%s9 + $0x1d8] sm:$0xf]
  %v3665 = vld [vmem:[%s9 + $0x1dc] sm:$0xf]
  %v3666 = vld [vmem:[%s9 + $0x1e0] sm:$0xf]
  %v3667 = vld [vmem:[%s9 + $0x1e4] sm:$0xf]
  %v3668 = vld [vmem:[%s9 + $0x1e8] sm:$0xf]
  %v3669 = vld [vmem:[%s9 + $0x1ec] sm:$0xf]
  %v3670 = vld [vmem:[%s9 + $0x1f0] sm:$0xf]
  %v3671 = vld [vmem:[%s9 + $0x1f4] sm:$0xf]
  %v3672 = vld [vmem:[%s9 + $0x1f8] sm:$0xf]
  %v3673 = vld [vmem:[%s9 + $0x1fc] sm:$0xf]
  %v3682 = vunpack.c.l.b16 %v3538
  %v3683 = vunpack.c.h.b16 %v3538
  %v3684 = vunpack.c.l.b16 %v3539
  %v3685 = vunpack.c.h.b16 %v3539
  %v3686 = vunpack.c.l.b16 %v3540
  %v3687 = vunpack.c.h.b16 %v3540
  %v3688 = vunpack.c.l.b16 %v3541
  %v3689 = vunpack.c.h.b16 %v3541
  %v3690 = vunpack.c.l.b16 %v3542
  %v3691 = vunpack.c.h.b16 %v3542
  %v3692 = vunpack.c.l.b16 %v3543
  %v3693 = vunpack.c.h.b16 %v3543
  %v3694 = vunpack.c.l.b16 %v3544
  %v3695 = vunpack.c.h.b16 %v3544
  %v3696 = vunpack.c.l.b16 %v3545
  %v3697 = vunpack.c.h.b16 %v3545
  %v3698 = vpack.c.b16 %v3684, %v3682
  %v3699 = vpack.c.b16 %v3685, %v3683
  %v3700 = vpack.c.b16 %v3688, %v3686
  %v3701 = vpack.c.b16 %v3689, %v3687
  %v3702 = vpack.c.b16 %v3692, %v3690
  %v3703 = vpack.c.b16 %v3693, %v3691
  %v3704 = vpack.c.b16 %v3696, %v3694
  %v3705 = vpack.c.b16 %v3697, %v3695
  %v3715 = vsel %vm3361, %v3534, 0
  %v3718 = vsel %vm3361, %v3535, 0
  %v3721 = vsel %vm3361, %v3536, 0
  %v3724 = vsel %vm3361, %v3537, 0
  %3726 = vmatprep.subr.bf16.mxu0 0
  %3727 = vmatpush1.bf16.msra.mxu0 0
  %3728 = vmatprep.subr.bf16.mxu0 0
  %3729 = vmatpush1.bf16.msra.mxu0 0
  %3730 = vmatprep.subr.bf16.mxu0 0
  %3731 = vmatpush1.bf16.msra.mxu0 0
  %3732 = vmatprep.subr.bf16.mxu0 0
  %3733 = vmatpush1.bf16.msra.mxu0 0
  %3734 = vmatprep.subr.bf16.mxu0 %v3705
  %3735 = vmatpush1.bf16.msra.mxu0 %v3704
  %3736 = vmatprep.subr.bf16.mxu0 %v3703
  %3737 = vmatpush1.bf16.msra.mxu0 %v3702
  %3738 = vmatprep.subr.bf16.mxu0 %v3701
  %3739 = vmatpush1.bf16.msra.mxu0 %v3700
  %3740 = vmatprep.subr.bf16.mxu0 %v3699
  %3741 = vmatpush1.bf16.msra.mxu0 %v3698
  %3742 = vmatprep.subr.bf16.mxu0 0
  %3743 = vmatpush2.bf16.msra.mxu0 0
  %3744 = vmatprep.subr.bf16.mxu0 0
  %3745 = vmatpush2.bf16.msra.mxu0 0
  %3746 = vmatprep.subr.bf16.mxu0 0
  %3747 = vmatpush2.bf16.msra.mxu0 0
  %3748 = vmatprep.subr.bf16.mxu0 0
  %3749 = vmatpush2.bf16.msra.mxu0 0
  %3750 = vmatprep.subr.bf16.mxu0 0
  %3751 = vmatpush2.bf16.msra.mxu0 0
  %3752 = vmatprep.subr.bf16.mxu0 0
  %3753 = vmatpush2.bf16.msra.mxu0 0
  %3754 = vmatprep.subr.bf16.mxu0 0
  %3755 = vmatpush2.bf16.msra.mxu0 0
  %3756 = vmatprep.subr.bf16.mxu0 0
  %3757 = vmatpush2.bf16.msra.mxu0 0
  %3758 = vmatprep.mubr.bf16.mxu0 0
  %3759 = vmatmul.mubr.bf16.gmra.mxu0 %v3715
  %v3760 = vpop.f32.mrf.mxu0
  %v3761 = vadd.f32 0.0, %v3760
  %v3762 = vpop.f32.mrf.mxu0
  %v3763 = vadd.f32 0.0, %v3762
  %v3764 = vpop.f32.mrf.mxu0
  %v3765 = vadd.f32 0.0, %v3764
  %v3766 = vpop.f32.mrf.mxu0
  %v3767 = vadd.f32 0.0, %v3766
  %3768 = vmatprep.mubr.bf16.mxu0 0
  %3769 = vmatmul.mubr.bf16.gmra.mxu0 %v3718
  %v3770 = vpop.f32.mrf.mxu0
  %v3771 = vadd.f32 0.0, %v3770
  %v3772 = vpop.f32.mrf.mxu0
  %v3773 = vadd.f32 0.0, %v3772
  %v3774 = vpop.f32.mrf.mxu0
  %v3775 = vadd.f32 0.0, %v3774
  %v3776 = vpop.f32.mrf.mxu0
  %v3777 = vadd.f32 0.0, %v3776
  %3778 = vmatprep.mubr.bf16.mxu0 0
  %3779 = vmatmul.mubr.bf16.gmra.mxu0 %v3721
  %v3780 = vpop.f32.mrf.mxu0
  %v3781 = vadd.f32 0.0, %v3780
  %v3782 = vpop.f32.mrf.mxu0
  %v3783 = vadd.f32 0.0, %v3782
  %v3784 = vpop.f32.mrf.mxu0
  %v3785 = vadd.f32 0.0, %v3784
  %v3786 = vpop.f32.mrf.mxu0
  %v3787 = vadd.f32 0.0, %v3786
  %3788 = vmatprep.mubr.bf16.mxu0 0
  %3789 = vmatmul.mubr.bf16.gmra.mxu0 %v3724
  %v3790 = vpop.f32.mrf.mxu0
  %v3791 = vadd.f32 0.0, %v3790
  %v3792 = vpop.f32.mrf.mxu0
  %v3793 = vadd.f32 0.0, %v3792
  %v3794 = vpop.f32.mrf.mxu0
  %v3795 = vadd.f32 0.0, %v3794
  %v3796 = vpop.f32.mrf.mxu0
  %v3797 = vadd.f32 0.0, %v3796
  %3798 = vdwg.mxu0
  %v3799 = vpack.c.bf16 %v3765, %v3761
  %v3800 = vpack.c.bf16 %v3767, %v3763
  %v3801 = vpack.c.bf16 %v3775, %v3771
  %v3802 = vpack.c.bf16 %v3777, %v3773
  %v3803 = vpack.c.bf16 %v3785, %v3781
  %v3804 = vpack.c.bf16 %v3787, %v3783
  %v3805 = vpack.c.bf16 %v3795, %v3791
  %v3806 = vpack.c.bf16 %v3797, %v3793
  %v3815 = vunpack.c.l.b16 %v3554
  %v3816 = vunpack.c.l.b16 %v3555
  %v3817 = vunpack.c.l.b16 %v3556
  %v3818 = vunpack.c.l.b16 %v3557
  %v3819 = vunpack.c.l.b16 %v3558
  %v3820 = vunpack.c.l.b16 %v3559
  %v3821 = vunpack.c.l.b16 %v3560
  %v3822 = vunpack.c.l.b16 %v3561
  %v3823 = vpack.c.b16 %v3816, %v3815
  %v3824 = vpack.c.b16 %v3818, %v3817
  %v3825 = vpack.c.b16 %v3820, %v3819
  %v3826 = vpack.c.b16 %v3822, %v3821
  %3829 = vrot.lane.b32.xlu0 %v3799, 112
  %v3830 = vpop.permute.xlu0 %3829
  %3831 = vrot.lane.b32.xlu0 %v3801, 112
  %v3832 = vpop.permute.xlu0 %3831
  %vm3835 = vcmask 261120
  %v3837 = vsel %vm3835, %v3823, 0
  %v3840 = vsel %vm3835, %v3824, 0
  %v3843 = vsel %vm3835, %v3825, 0
  %v3846 = vsel %vm3835, %v3826, 0
  %3848 = vmatprep.subr.bf16.mxu0 0
  %3849 = vmatpush1.bf16.msra.mxu0 0
  %3850 = vmatprep.subr.bf16.mxu0 0
  %3851 = vmatpush1.bf16.msra.mxu0 0
  %3852 = vmatprep.subr.bf16.mxu0 0
  %3853 = vmatpush1.bf16.msra.mxu0 0
  %3854 = vmatprep.subr.bf16.mxu0 0
  %3855 = vmatpush1.bf16.msra.mxu0 0
  %3856 = vmatprep.subr.bf16.mxu0 0
  %3857 = vmatpush1.bf16.msra.mxu0 0
  %3858 = vmatprep.subr.bf16.mxu0 0
  %3859 = vmatpush1.bf16.msra.mxu0 0
  %3860 = vmatprep.subr.bf16.mxu0 0
  %3861 = vmatpush1.bf16.msra.mxu0 %v3832
  %3862 = vmatprep.subr.bf16.mxu0 0
  %3863 = vmatpush1.bf16.msra.mxu0 %v3830
  %3864 = vmatprep.subr.bf16.mxu0 0
  %3865 = vmatpush2.bf16.msra.mxu0 0
  %3866 = vmatprep.subr.bf16.mxu0 0
  %3867 = vmatpush2.bf16.msra.mxu0 0
  %3868 = vmatprep.subr.bf16.mxu0 0
  %3869 = vmatpush2.bf16.msra.mxu0 0
  %3870 = vmatprep.subr.bf16.mxu0 0
  %3871 = vmatpush2.bf16.msra.mxu0 0
  %3872 = vmatprep.subr.bf16.mxu0 0
  %3873 = vmatpush2.bf16.msra.mxu0 0
  %3874 = vmatprep.subr.bf16.mxu0 0
  %3875 = vmatpush2.bf16.msra.mxu0 0
  %3876 = vmatprep.subr.bf16.mxu0 0
  %3877 = vmatpush2.bf16.msra.mxu0 0
  %3878 = vmatprep.subr.bf16.mxu0 0
  %3879 = vmatpush2.bf16.msra.mxu0 0
  %3880 = vmatprep.mubr.bf16.mxu0 0
  %3881 = vmatmul.mubr.bf16.gmra.mxu0 %v3837
  %v3882 = vpop.f32.mrf.mxu0
  %v3883 = vadd.f32 0.0, %v3882
  %v3884 = vpop.f32.mrf.mxu0
  %v3885 = vpop.f32.mrf.mxu0
  %v3886 = vadd.f32 0.0, %v3885
  %v3887 = vpop.f32.mrf.mxu0
  %3888 = vmatprep.mubr.bf16.mxu0 0
  %3889 = vmatmul.mubr.bf16.gmra.mxu0 %v3840
  %v3890 = vpop.f32.mrf.mxu0
  %v3891 = vadd.f32 0.0, %v3890
  %v3892 = vpop.f32.mrf.mxu0
  %v3893 = vpop.f32.mrf.mxu0
  %v3894 = vadd.f32 0.0, %v3893
  %v3895 = vpop.f32.mrf.mxu0
  %3896 = vmatprep.mubr.bf16.mxu0 0
  %3897 = vmatmul.mubr.bf16.gmra.mxu0 %v3843
  %v3898 = vpop.f32.mrf.mxu0
  %v3899 = vadd.f32 0.0, %v3898
  %v3900 = vpop.f32.mrf.mxu0
  %v3901 = vpop.f32.mrf.mxu0
  %v3902 = vadd.f32 0.0, %v3901
  %v3903 = vpop.f32.mrf.mxu0
  %3904 = vmatprep.mubr.bf16.mxu0 0
  %3905 = vmatmul.mubr.bf16.gmra.mxu0 %v3846
  %v3906 = vpop.f32.mrf.mxu0
  %v3907 = vadd.f32 0.0, %v3906
  %v3908 = vpop.f32.mrf.mxu0
  %v3909 = vpop.f32.mrf.mxu0
  %v3910 = vadd.f32 0.0, %v3909
  %v3911 = vpop.f32.mrf.mxu0
  %3912 = vdwg.mxu0
  %3915 = vrot.lane.b32.xlu0 %v3803, 112
  %v3916 = vpop.permute.xlu0 %3915
  %3917 = vrot.lane.b32.xlu0 %v3805, 112
  %v3918 = vpop.permute.xlu0 %3917
  %3921 = vmatprep.subr.bf16.mxu0 0
  %3922 = vmatpush1.bf16.msra.mxu0 0
  %3923 = vmatprep.subr.bf16.mxu0 0
  %3924 = vmatpush1.bf16.msra.mxu0 0
  %3925 = vmatprep.subr.bf16.mxu0 0
  %3926 = vmatpush1.bf16.msra.mxu0 0
  %3927 = vmatprep.subr.bf16.mxu0 0
  %3928 = vmatpush1.bf16.msra.mxu0 0
  %3929 = vmatprep.subr.bf16.mxu0 0
  %3930 = vmatpush1.bf16.msra.mxu0 0
  %3931 = vmatprep.subr.bf16.mxu0 0
  %3932 = vmatpush1.bf16.msra.mxu0 0
  %3933 = vmatprep.subr.bf16.mxu0 0
  %3934 = vmatpush1.bf16.msra.mxu0 %v3918
  %3935 = vmatprep.subr.bf16.mxu0 0
  %3936 = vmatpush1.bf16.msra.mxu0 %v3916
  %3937 = vmatprep.subr.bf16.mxu0 0
  %3938 = vmatpush2.bf16.msra.mxu0 0
  %3939 = vmatprep.subr.bf16.mxu0 0
  %3940 = vmatpush2.bf16.msra.mxu0 0
  %3941 = vmatprep.subr.bf16.mxu0 0
  %3942 = vmatpush2.bf16.msra.mxu0 0
  %3943 = vmatprep.subr.bf16.mxu0 0
  %3944 = vmatpush2.bf16.msra.mxu0 0
  %3945 = vmatprep.subr.bf16.mxu0 0
  %3946 = vmatpush2.bf16.msra.mxu0 0
  %3947 = vmatprep.subr.bf16.mxu0 0
  %3948 = vmatpush2.bf16.msra.mxu0 0
  %3949 = vmatprep.subr.bf16.mxu0 0
  %3950 = vmatpush2.bf16.msra.mxu0 0
  %3951 = vmatprep.subr.bf16.mxu0 0
  %3952 = vmatpush2.bf16.msra.mxu0 0
  %3953 = vmatprep.mubr.bf16.mxu0 0
  %3954 = vmatmul.mubr.bf16.gmra.mxu0 %v3837
  %v3955 = vpop.f32.mrf.mxu0
  %v3956 = vadd.f32 0.0, %v3955
  %v3957 = vpop.f32.mrf.mxu0
  %v3958 = vpop.f32.mrf.mxu0
  %v3959 = vadd.f32 0.0, %v3958
  %v3960 = vpop.f32.mrf.mxu0
  %3961 = vmatprep.mubr.bf16.mxu0 0
  %3962 = vmatmul.mubr.bf16.gmra.mxu0 %v3840
  %v3963 = vpop.f32.mrf.mxu0
  %v3964 = vadd.f32 0.0, %v3963
  %v3965 = vpop.f32.mrf.mxu0
  %v3966 = vpop.f32.mrf.mxu0
  %v3967 = vadd.f32 0.0, %v3966
  %v3968 = vpop.f32.mrf.mxu0
  %3969 = vmatprep.mubr.bf16.mxu0 0
  %3970 = vmatmul.mubr.bf16.gmra.mxu0 %v3843
  %v3971 = vpop.f32.mrf.mxu0
  %v3972 = vadd.f32 0.0, %v3971
  %v3973 = vpop.f32.mrf.mxu0
  %v3974 = vpop.f32.mrf.mxu0
  %v3975 = vadd.f32 0.0, %v3974
  %v3976 = vpop.f32.mrf.mxu0
  %3977 = vmatprep.mubr.bf16.mxu0 0
  %3978 = vmatmul.mubr.bf16.gmra.mxu0 %v3846
  %v3979 = vpop.f32.mrf.mxu0
  %v3980 = vadd.f32 0.0, %v3979
  %v3981 = vpop.f32.mrf.mxu0
  %v3982 = vpop.f32.mrf.mxu0
  %v3983 = vadd.f32 0.0, %v3982
  %v3984 = vpop.f32.mrf.mxu0
  %3985 = vdwg.mxu0
  %v3994 = vunpack.c.l.b16 %v3546
  %v3995 = vunpack.c.l.b16 %v3547
  %v3996 = vunpack.c.l.b16 %v3548
  %v3997 = vunpack.c.l.b16 %v3549
  %v3998 = vunpack.c.l.b16 %v3550
  %v3999 = vunpack.c.l.b16 %v3551
  %v4000 = vunpack.c.l.b16 %v3552
  %v4001 = vunpack.c.l.b16 %v3553
  %v4002 = vpack.c.b16 %v3995, %v3994
  %v4003 = vpack.c.b16 %v3997, %v3996
  %v4004 = vpack.c.b16 %v3999, %v3998
  %v4005 = vpack.c.b16 %v4001, %v4000
  %v4007 = vsel %vm3835, %v4002, 0
  %v4010 = vsel %vm3835, %v4003, 0
  %v4013 = vsel %vm3835, %v4004, 0
  %v4016 = vsel %vm3835, %v4005, 0
  %4018 = vmatprep.subr.bf16.mxu0 0
  %4019 = vmatpush1.bf16.msra.mxu0 0
  %4020 = vmatprep.subr.bf16.mxu0 0
  %4021 = vmatpush1.bf16.msra.mxu0 0
  %4022 = vmatprep.subr.bf16.mxu0 0
  %4023 = vmatpush1.bf16.msra.mxu0 0
  %4024 = vmatprep.subr.bf16.mxu0 0
  %4025 = vmatpush1.bf16.msra.mxu0 0
  %4026 = vmatprep.subr.bf16.mxu0 0
  %4027 = vmatpush1.bf16.msra.mxu0 0
  %4028 = vmatprep.subr.bf16.mxu0 0
  %4029 = vmatpush1.bf16.msra.mxu0 0
  %4030 = vmatprep.subr.bf16.mxu0 0
  %4031 = vmatpush1.bf16.msra.mxu0 %v3801
  %4032 = vmatprep.subr.bf16.mxu0 0
  %4033 = vmatpush1.bf16.msra.mxu0 %v3799
  %4034 = vmatprep.subr.bf16.mxu0 0
  %4035 = vmatpush2.bf16.msra.mxu0 0
  %4036 = vmatprep.subr.bf16.mxu0 0
  %4037 = vmatpush2.bf16.msra.mxu0 0
  %4038 = vmatprep.subr.bf16.mxu0 0
  %4039 = vmatpush2.bf16.msra.mxu0 0
  %4040 = vmatprep.subr.bf16.mxu0 0
  %4041 = vmatpush2.bf16.msra.mxu0 0
  %4042 = vmatprep.subr.bf16.mxu0 0
  %4043 = vmatpush2.bf16.msra.mxu0 0
  %4044 = vmatprep.subr.bf16.mxu0 0
  %4045 = vmatpush2.bf16.msra.mxu0 0
  %4046 = vmatprep.subr.bf16.mxu0 0
  %4047 = vmatpush2.bf16.msra.mxu0 0
  %4048 = vmatprep.subr.bf16.mxu0 0
  %4049 = vmatpush2.bf16.msra.mxu0 0
  %4050 = vmatprep.mubr.bf16.mxu0 0
  %4051 = vmatmul.mubr.bf16.gmra.mxu0 %v4007
  %v4052 = vpop.f32.mrf.mxu0
  %v4053 = vadd.f32 %v3883, %v4052
  %v4054 = vpop.f32.mrf.mxu0
  %v4055 = vpop.f32.mrf.mxu0
  %v4056 = vadd.f32 %v3886, %v4055
  %v4057 = vpop.f32.mrf.mxu0
  %4058 = vmatprep.mubr.bf16.mxu0 0
  %4059 = vmatmul.mubr.bf16.gmra.mxu0 %v4010
  %v4060 = vpop.f32.mrf.mxu0
  %v4061 = vadd.f32 %v3891, %v4060
  %v4062 = vpop.f32.mrf.mxu0
  %v4063 = vpop.f32.mrf.mxu0
  %v4064 = vadd.f32 %v3894, %v4063
  %v4065 = vpop.f32.mrf.mxu0
  %4066 = vmatprep.mubr.bf16.mxu0 0
  %4067 = vmatmul.mubr.bf16.gmra.mxu0 %v4013
  %v4068 = vpop.f32.mrf.mxu0
  %v4069 = vadd.f32 %v3899, %v4068
  %v4070 = vpop.f32.mrf.mxu0
  %v4071 = vpop.f32.mrf.mxu0
  %v4072 = vadd.f32 %v3902, %v4071
  %v4073 = vpop.f32.mrf.mxu0
  %4074 = vmatprep.mubr.bf16.mxu0 0
  %4075 = vmatmul.mubr.bf16.gmra.mxu0 %v4016
  %v4076 = vpop.f32.mrf.mxu0
  %v4077 = vadd.f32 %v3907, %v4076
  %v4078 = vpop.f32.mrf.mxu0
  %v4079 = vpop.f32.mrf.mxu0
  %v4080 = vadd.f32 %v3910, %v4079
  %v4081 = vpop.f32.mrf.mxu0
  %4082 = vdwg.mxu0
  %4083 = vmatprep.subr.bf16.mxu0 0
  %4084 = vmatpush1.bf16.msra.mxu0 0
  %4085 = vmatprep.subr.bf16.mxu0 0
  %4086 = vmatpush1.bf16.msra.mxu0 0
  %4087 = vmatprep.subr.bf16.mxu0 0
  %4088 = vmatpush1.bf16.msra.mxu0 0
  %4089 = vmatprep.subr.bf16.mxu0 0
  %4090 = vmatpush1.bf16.msra.mxu0 0
  %4091 = vmatprep.subr.bf16.mxu0 0
  %4092 = vmatpush1.bf16.msra.mxu0 0
  %4093 = vmatprep.subr.bf16.mxu0 0
  %4094 = vmatpush1.bf16.msra.mxu0 0
  %4095 = vmatprep.subr.bf16.mxu0 0
  %4096 = vmatpush1.bf16.msra.mxu0 %v3805
  %4097 = vmatprep.subr.bf16.mxu0 0
  %4098 = vmatpush1.bf16.msra.mxu0 %v3803
  %4099 = vmatprep.subr.bf16.mxu0 0
  %4100 = vmatpush2.bf16.msra.mxu0 0
  %4101 = vmatprep.subr.bf16.mxu0 0
  %4102 = vmatpush2.bf16.msra.mxu0 0
  %4103 = vmatprep.subr.bf16.mxu0 0
  %4104 = vmatpush2.bf16.msra.mxu0 0
  %4105 = vmatprep.subr.bf16.mxu0 0
  %4106 = vmatpush2.bf16.msra.mxu0 0
  %4107 = vmatprep.subr.bf16.mxu0 0
  %4108 = vmatpush2.bf16.msra.mxu0 0
  %4109 = vmatprep.subr.bf16.mxu0 0
  %4110 = vmatpush2.bf16.msra.mxu0 0
  %4111 = vmatprep.subr.bf16.mxu0 0
  %4112 = vmatpush2.bf16.msra.mxu0 0
  %4113 = vmatprep.subr.bf16.mxu0 0
  %4114 = vmatpush2.bf16.msra.mxu0 0
  %4115 = vmatprep.mubr.bf16.mxu0 0
  %4116 = vmatmul.mubr.bf16.gmra.mxu0 %v4007
  %v4117 = vpop.f32.mrf.mxu0
  %v4118 = vadd.f32 %v3956, %v4117
  %v4119 = vpop.f32.mrf.mxu0
  %v4120 = vpop.f32.mrf.mxu0
  %v4121 = vadd.f32 %v3959, %v4120
  %v4122 = vpop.f32.mrf.mxu0
  %4123 = vmatprep.mubr.bf16.mxu0 0
  %4124 = vmatmul.mubr.bf16.gmra.mxu0 %v4010
  %v4125 = vpop.f32.mrf.mxu0
  %v4126 = vadd.f32 %v3964, %v4125
  %v4127 = vpop.f32.mrf.mxu0
  %v4128 = vpop.f32.mrf.mxu0
  %v4129 = vadd.f32 %v3967, %v4128
  %v4130 = vpop.f32.mrf.mxu0
  %4131 = vmatprep.mubr.bf16.mxu0 0
  %4132 = vmatmul.mubr.bf16.gmra.mxu0 %v4013
  %v4133 = vpop.f32.mrf.mxu0
  %v4134 = vadd.f32 %v3972, %v4133
  %v4135 = vpop.f32.mrf.mxu0
  %v4136 = vpop.f32.mrf.mxu0
  %v4137 = vadd.f32 %v3975, %v4136
  %v4138 = vpop.f32.mrf.mxu0
  %4139 = vmatprep.mubr.bf16.mxu0 0
  %4140 = vmatmul.mubr.bf16.gmra.mxu0 %v4016
  %v4141 = vpop.f32.mrf.mxu0
  %v4142 = vadd.f32 %v3980, %v4141
  %v4143 = vpop.f32.mrf.mxu0
  %v4144 = vpop.f32.mrf.mxu0
  %v4145 = vadd.f32 %v3983, %v4144
  %v4146 = vpop.f32.mrf.mxu0
  %4147 = vdwg.mxu0
  %v4156 = vunpack.c.l.b16 %v3562
  %v4157 = vunpack.c.l.b16 %v3563
  %v4158 = vunpack.c.l.b16 %v3564
  %v4159 = vunpack.c.l.b16 %v3565
  %v4160 = vunpack.c.l.b16 %v3566
  %v4161 = vunpack.c.l.b16 %v3567
  %v4162 = vunpack.c.l.b16 %v3568
  %v4163 = vunpack.c.l.b16 %v3569
  %v4164 = vpack.c.b16 %v4157, %v4156
  %v4165 = vpack.c.b16 %v4159, %v4158
  %v4166 = vpack.c.b16 %v4161, %v4160
  %v4167 = vpack.c.b16 %v4163, %v4162
  %4168 = vrot.lane.b32.xlu0 %v3799, 96
  %v4169 = vpop.permute.xlu0 %4168
  %4170 = vrot.lane.b32.xlu0 %v3801, 96
  %v4171 = vpop.permute.xlu0 %4170
  %v4175 = vsel %vm3835, %v4164, 0
  %v4178 = vsel %vm3835, %v4165, 0
  %v4181 = vsel %vm3835, %v4166, 0
  %v4184 = vsel %vm3835, %v4167, 0
  %4186 = vmatprep.subr.bf16.mxu0 0
  %4187 = vmatpush1.bf16.msra.mxu0 0
  %4188 = vmatprep.subr.bf16.mxu0 0
  %4189 = vmatpush1.bf16.msra.mxu0 0
  %4190 = vmatprep.subr.bf16.mxu0 0
  %4191 = vmatpush1.bf16.msra.mxu0 0
  %4192 = vmatprep.subr.bf16.mxu0 0
  %4193 = vmatpush1.bf16.msra.mxu0 0
  %4194 = vmatprep.subr.bf16.mxu0 0
  %4195 = vmatpush1.bf16.msra.mxu0 0
  %4196 = vmatprep.subr.bf16.mxu0 0
  %4197 = vmatpush1.bf16.msra.mxu0 0
  %4198 = vmatprep.subr.bf16.mxu0 0
  %4199 = vmatpush1.bf16.msra.mxu0 %v4171
  %4200 = vmatprep.subr.bf16.mxu0 0
  %4201 = vmatpush1.bf16.msra.mxu0 %v4169
  %4202 = vmatprep.subr.bf16.mxu0 0
  %4203 = vmatpush2.bf16.msra.mxu0 0
  %4204 = vmatprep.subr.bf16.mxu0 0
  %4205 = vmatpush2.bf16.msra.mxu0 0
  %4206 = vmatprep.subr.bf16.mxu0 0
  %4207 = vmatpush2.bf16.msra.mxu0 0
  %4208 = vmatprep.subr.bf16.mxu0 0
  %4209 = vmatpush2.bf16.msra.mxu0 0
  %4210 = vmatprep.subr.bf16.mxu0 0
  %4211 = vmatpush2.bf16.msra.mxu0 0
  %4212 = vmatprep.subr.bf16.mxu0 0
  %4213 = vmatpush2.bf16.msra.mxu0 0
  %4214 = vmatprep.subr.bf16.mxu0 0
  %4215 = vmatpush2.bf16.msra.mxu0 0
  %4216 = vmatprep.subr.bf16.mxu0 0
  %4217 = vmatpush2.bf16.msra.mxu0 0
  %4218 = vmatprep.mubr.bf16.mxu0 0
  %4219 = vmatmul.mubr.bf16.gmra.mxu0 %v4175
  %v4220 = vpop.f32.mrf.mxu0
  %v4221 = vadd.f32 0.0, %v4220
  %v4222 = vpop.f32.mrf.mxu0
  %v4223 = vpop.f32.mrf.mxu0
  %v4224 = vadd.f32 0.0, %v4223
  %v4225 = vpop.f32.mrf.mxu0
  %4226 = vmatprep.mubr.bf16.mxu0 0
  %4227 = vmatmul.mubr.bf16.gmra.mxu0 %v4178
  %v4228 = vpop.f32.mrf.mxu0
  %v4229 = vadd.f32 0.0, %v4228
  %v4230 = vpop.f32.mrf.mxu0
  %v4231 = vpop.f32.mrf.mxu0
  %v4232 = vadd.f32 0.0, %v4231
  %v4233 = vpop.f32.mrf.mxu0
  %4234 = vmatprep.mubr.bf16.mxu0 0
  %4235 = vmatmul.mubr.bf16.gmra.mxu0 %v4181
  %v4236 = vpop.f32.mrf.mxu0
  %v4237 = vadd.f32 0.0, %v4236
  %v4238 = vpop.f32.mrf.mxu0
  %v4239 = vpop.f32.mrf.mxu0
  %v4240 = vadd.f32 0.0, %v4239
  %v4241 = vpop.f32.mrf.mxu0
  %4242 = vmatprep.mubr.bf16.mxu0 0
  %4243 = vmatmul.mubr.bf16.gmra.mxu0 %v4184
  %v4244 = vpop.f32.mrf.mxu0
  %v4245 = vadd.f32 0.0, %v4244
  %v4246 = vpop.f32.mrf.mxu0
  %v4247 = vpop.f32.mrf.mxu0
  %v4248 = vadd.f32 0.0, %v4247
  %v4249 = vpop.f32.mrf.mxu0
  %4250 = vdwg.mxu0
  %4251 = vrot.lane.b32.xlu0 %v3803, 96
  %v4252 = vpop.permute.xlu0 %4251
  %4253 = vrot.lane.b32.xlu0 %v3805, 96
  %v4254 = vpop.permute.xlu0 %4253
  %4257 = vmatprep.subr.bf16.mxu0 0
  %4258 = vmatpush1.bf16.msra.mxu0 0
  %4259 = vmatprep.subr.bf16.mxu0 0
  %4260 = vmatpush1.bf16.msra.mxu0 0
  %4261 = vmatprep.subr.bf16.mxu0 0
  %4262 = vmatpush1.bf16.msra.mxu0 0
  %4263 = vmatprep.subr.bf16.mxu0 0
  %4264 = vmatpush1.bf16.msra.mxu0 0
  %4265 = vmatprep.subr.bf16.mxu0 0
  %4266 = vmatpush1.bf16.msra.mxu0 0
  %4267 = vmatprep.subr.bf16.mxu0 0
  %4268 = vmatpush1.bf16.msra.mxu0 0
  %4269 = vmatprep.subr.bf16.mxu0 0
  %4270 = vmatpush1.bf16.msra.mxu0 %v4254
  %4271 = vmatprep.subr.bf16.mxu0 0
  %4272 = vmatpush1.bf16.msra.mxu0 %v4252
  %4273 = vmatprep.subr.bf16.mxu0 0
  %4274 = vmatpush2.bf16.msra.mxu0 0
  %4275 = vmatprep.subr.bf16.mxu0 0
  %4276 = vmatpush2.bf16.msra.mxu0 0
  %4277 = vmatprep.subr.bf16.mxu0 0
  %4278 = vmatpush2.bf16.msra.mxu0 0
  %4279 = vmatprep.subr.bf16.mxu0 0
  %4280 = vmatpush2.bf16.msra.mxu0 0
  %4281 = vmatprep.subr.bf16.mxu0 0
  %4282 = vmatpush2.bf16.msra.mxu0 0
  %4283 = vmatprep.subr.bf16.mxu0 0
  %4284 = vmatpush2.bf16.msra.mxu0 0
  %4285 = vmatprep.subr.bf16.mxu0 0
  %4286 = vmatpush2.bf16.msra.mxu0 0
  %4287 = vmatprep.subr.bf16.mxu0 0
  %4288 = vmatpush2.bf16.msra.mxu0 0
  %4289 = vmatprep.mubr.bf16.mxu0 0
  %4290 = vmatmul.mubr.bf16.gmra.mxu0 %v4175
  %v4291 = vpop.f32.mrf.mxu0
  %v4292 = vadd.f32 0.0, %v4291
  %v4293 = vpop.f32.mrf.mxu0
  %v4294 = vpop.f32.mrf.mxu0
  %v4295 = vadd.f32 0.0, %v4294
  %v4296 = vpop.f32.mrf.mxu0
  %4297 = vmatprep.mubr.bf16.mxu0 0
  %4298 = vmatmul.mubr.bf16.gmra.mxu0 %v4178
  %v4299 = vpop.f32.mrf.mxu0
  %v4300 = vadd.f32 0.0, %v4299
  %v4301 = vpop.f32.mrf.mxu0
  %v4302 = vpop.f32.mrf.mxu0
  %v4303 = vadd.f32 0.0, %v4302
  %v4304 = vpop.f32.mrf.mxu0
  %4305 = vmatprep.mubr.bf16.mxu0 0
  %4306 = vmatmul.mubr.bf16.gmra.mxu0 %v4181
  %v4307 = vpop.f32.mrf.mxu0
  %v4308 = vadd.f32 0.0, %v4307
  %v4309 = vpop.f32.mrf.mxu0
  %v4310 = vpop.f32.mrf.mxu0
  %v4311 = vadd.f32 0.0, %v4310
  %v4312 = vpop.f32.mrf.mxu0
  %4313 = vmatprep.mubr.bf16.mxu0 0
  %4314 = vmatmul.mubr.bf16.gmra.mxu0 %v4184
  %v4315 = vpop.f32.mrf.mxu0
  %v4316 = vadd.f32 0.0, %v4315
  %v4317 = vpop.f32.mrf.mxu0
  %v4318 = vpop.f32.mrf.mxu0
  %v4319 = vadd.f32 0.0, %v4318
  %v4320 = vpop.f32.mrf.mxu0
  %4321 = vdwg.mxu0
  %v4322 = vadd.f32 %v4053, %v4221
  %v4323 = vadd.f32 %v4056, %v4224
  %v4324 = vadd.f32 %v4061, %v4229
  %v4325 = vadd.f32 %v4064, %v4232
  %v4326 = vadd.f32 %v4069, %v4237
  %v4327 = vadd.f32 %v4072, %v4240
  %v4328 = vadd.f32 %v4077, %v4245
  %v4329 = vadd.f32 %v4080, %v4248
  %v4330 = vadd.f32 %v4118, %v4292
  %v4331 = vadd.f32 %v4121, %v4295
  %v4332 = vadd.f32 %v4126, %v4300
  %v4333 = vadd.f32 %v4129, %v4303
  %v4334 = vadd.f32 %v4134, %v4308
  %v4335 = vadd.f32 %v4137, %v4311
  %v4336 = vadd.f32 %v4142, %v4316
  %v4337 = vadd.f32 %v4145, %v4319
  %v4346 = vunpack.c.l.b16 %v3570
  %v4347 = vunpack.c.l.b16 %v3571
  %v4348 = vunpack.c.l.b16 %v3572
  %v4349 = vunpack.c.l.b16 %v3573
  %v4350 = vunpack.c.l.b16 %v3574
  %v4351 = vunpack.c.l.b16 %v3575
  %v4352 = vunpack.c.l.b16 %v3576
  %v4353 = vunpack.c.l.b16 %v3577
  %v4354 = vpack.c.b16 %v4347, %v4346
  %v4355 = vpack.c.b16 %v4349, %v4348
  %v4356 = vpack.c.b16 %v4351, %v4350
  %v4357 = vpack.c.b16 %v4353, %v4352
  %4358 = vrot.lane.b32.xlu0 %v3799, 80
  %v4359 = vpop.permute.xlu0 %4358
  %4360 = vrot.lane.b32.xlu0 %v3801, 80
  %v4361 = vpop.permute.xlu0 %4360
  %v4365 = vsel %vm3835, %v4354, 0
  %v4368 = vsel %vm3835, %v4355, 0
  %v4371 = vsel %vm3835, %v4356, 0
  %v4374 = vsel %vm3835, %v4357, 0
  %4376 = vmatprep.subr.bf16.mxu0 0
  %4377 = vmatpush1.bf16.msra.mxu0 0
  %4378 = vmatprep.subr.bf16.mxu0 0
  %4379 = vmatpush1.bf16.msra.mxu0 0
  %4380 = vmatprep.subr.bf16.mxu0 0
  %4381 = vmatpush1.bf16.msra.mxu0 0
  %4382 = vmatprep.subr.bf16.mxu0 0
  %4383 = vmatpush1.bf16.msra.mxu0 0
  %4384 = vmatprep.subr.bf16.mxu0 0
  %4385 = vmatpush1.bf16.msra.mxu0 0
  %4386 = vmatprep.subr.bf16.mxu0 0
  %4387 = vmatpush1.bf16.msra.mxu0 0
  %4388 = vmatprep.subr.bf16.mxu0 0
  %4389 = vmatpush1.bf16.msra.mxu0 %v4361
  %4390 = vmatprep.subr.bf16.mxu0 0
  %4391 = vmatpush1.bf16.msra.mxu0 %v4359
  %4392 = vmatprep.subr.bf16.mxu0 0
  %4393 = vmatpush2.bf16.msra.mxu0 0
  %4394 = vmatprep.subr.bf16.mxu0 0
  %4395 = vmatpush2.bf16.msra.mxu0 0
  %4396 = vmatprep.subr.bf16.mxu0 0
  %4397 = vmatpush2.bf16.msra.mxu0 0
  %4398 = vmatprep.subr.bf16.mxu0 0
  %4399 = vmatpush2.bf16.msra.mxu0 0
  %4400 = vmatprep.subr.bf16.mxu0 0
  %4401 = vmatpush2.bf16.msra.mxu0 0
  %4402 = vmatprep.subr.bf16.mxu0 0
  %4403 = vmatpush2.bf16.msra.mxu0 0
  %4404 = vmatprep.subr.bf16.mxu0 0
  %4405 = vmatpush2.bf16.msra.mxu0 0
  %4406 = vmatprep.subr.bf16.mxu0 0
  %4407 = vmatpush2.bf16.msra.mxu0 0
  %4408 = vmatprep.mubr.bf16.mxu0 0
  %4409 = vmatmul.mubr.bf16.gmra.mxu0 %v4365
  %v4410 = vpop.f32.mrf.mxu0
  %v4411 = vadd.f32 0.0, %v4410
  %v4412 = vpop.f32.mrf.mxu0
  %v4413 = vpop.f32.mrf.mxu0
  %v4414 = vadd.f32 0.0, %v4413
  %v4415 = vpop.f32.mrf.mxu0
  %4416 = vmatprep.mubr.bf16.mxu0 0
  %4417 = vmatmul.mubr.bf16.gmra.mxu0 %v4368
  %v4418 = vpop.f32.mrf.mxu0
  %v4419 = vadd.f32 0.0, %v4418
  %v4420 = vpop.f32.mrf.mxu0
  %v4421 = vpop.f32.mrf.mxu0
  %v4422 = vadd.f32 0.0, %v4421
  %v4423 = vpop.f32.mrf.mxu0
  %4424 = vmatprep.mubr.bf16.mxu0 0
  %4425 = vmatmul.mubr.bf16.gmra.mxu0 %v4371
  %v4426 = vpop.f32.mrf.mxu0
  %v4427 = vadd.f32 0.0, %v4426
  %v4428 = vpop.f32.mrf.mxu0
  %v4429 = vpop.f32.mrf.mxu0
  %v4430 = vadd.f32 0.0, %v4429
  %v4431 = vpop.f32.mrf.mxu0
  %4432 = vmatprep.mubr.bf16.mxu0 0
  %4433 = vmatmul.mubr.bf16.gmra.mxu0 %v4374
  %v4434 = vpop.f32.mrf.mxu0
  %v4435 = vadd.f32 0.0, %v4434
  %v4436 = vpop.f32.mrf.mxu0
  %v4437 = vpop.f32.mrf.mxu0
  %v4438 = vadd.f32 0.0, %v4437
  %v4439 = vpop.f32.mrf.mxu0
  %4440 = vdwg.mxu0
  %4441 = vrot.lane.b32.xlu0 %v3803, 80
  %v4442 = vpop.permute.xlu0 %4441
  %4443 = vrot.lane.b32.xlu0 %v3805, 80
  %v4444 = vpop.permute.xlu0 %4443
  %4447 = vmatprep.subr.bf16.mxu0 0
  %4448 = vmatpush1.bf16.msra.mxu0 0
  %4449 = vmatprep.subr.bf16.mxu0 0
  %4450 = vmatpush1.bf16.msra.mxu0 0
  %4451 = vmatprep.subr.bf16.mxu0 0
  %4452 = vmatpush1.bf16.msra.mxu0 0
  %4453 = vmatprep.subr.bf16.mxu0 0
  %4454 = vmatpush1.bf16.msra.mxu0 0
  %4455 = vmatprep.subr.bf16.mxu0 0
  %4456 = vmatpush1.bf16.msra.mxu0 0
  %4457 = vmatprep.subr.bf16.mxu0 0
  %4458 = vmatpush1.bf16.msra.mxu0 0
  %4459 = vmatprep.subr.bf16.mxu0 0
  %4460 = vmatpush1.bf16.msra.mxu0 %v4444
  %4461 = vmatprep.subr.bf16.mxu0 0
  %4462 = vmatpush1.bf16.msra.mxu0 %v4442
  %4463 = vmatprep.subr.bf16.mxu0 0
  %4464 = vmatpush2.bf16.msra.mxu0 0
  %4465 = vmatprep.subr.bf16.mxu0 0
  %4466 = vmatpush2.bf16.msra.mxu0 0
  %4467 = vmatprep.subr.bf16.mxu0 0
  %4468 = vmatpush2.bf16.msra.mxu0 0
  %4469 = vmatprep.subr.bf16.mxu0 0
  %4470 = vmatpush2.bf16.msra.mxu0 0
  %4471 = vmatprep.subr.bf16.mxu0 0
  %4472 = vmatpush2.bf16.msra.mxu0 0
  %4473 = vmatprep.subr.bf16.mxu0 0
  %4474 = vmatpush2.bf16.msra.mxu0 0
  %4475 = vmatprep.subr.bf16.mxu0 0
  %4476 = vmatpush2.bf16.msra.mxu0 0
  %4477 = vmatprep.subr.bf16.mxu0 0
  %4478 = vmatpush2.bf16.msra.mxu0 0
  %4479 = vmatprep.mubr.bf16.mxu0 0
  %4480 = vmatmul.mubr.bf16.gmra.mxu0 %v4365
  %v4481 = vpop.f32.mrf.mxu0
  %v4482 = vadd.f32 0.0, %v4481
  %v4483 = vpop.f32.mrf.mxu0
  %v4484 = vpop.f32.mrf.mxu0
  %v4485 = vadd.f32 0.0, %v4484
  %v4486 = vpop.f32.mrf.mxu0
  %4487 = vmatprep.mubr.bf16.mxu0 0
  %4488 = vmatmul.mubr.bf16.gmra.mxu0 %v4368
  %v4489 = vpop.f32.mrf.mxu0
  %v4490 = vadd.f32 0.0, %v4489
  %v4491 = vpop.f32.mrf.mxu0
  %v4492 = vpop.f32.mrf.mxu0
  %v4493 = vadd.f32 0.0, %v4492
  %v4494 = vpop.f32.mrf.mxu0
  %4495 = vmatprep.mubr.bf16.mxu0 0
  %4496 = vmatmul.mubr.bf16.gmra.mxu0 %v4371
  %v4497 = vpop.f32.mrf.mxu0
  %v4498 = vadd.f32 0.0, %v4497
  %v4499 = vpop.f32.mrf.mxu0
  %v4500 = vpop.f32.mrf.mxu0
  %v4501 = vadd.f32 0.0, %v4500
  %v4502 = vpop.f32.mrf.mxu0
  %4503 = vmatprep.mubr.bf16.mxu0 0
  %4504 = vmatmul.mubr.bf16.gmra.mxu0 %v4374
  %v4505 = vpop.f32.mrf.mxu0
  %v4506 = vadd.f32 0.0, %v4505
  %v4507 = vpop.f32.mrf.mxu0
  %v4508 = vpop.f32.mrf.mxu0
  %v4509 = vadd.f32 0.0, %v4508
  %v4510 = vpop.f32.mrf.mxu0
  %4511 = vdwg.mxu0
  %v4512 = vadd.f32 %v4322, %v4411
  %v4513 = vadd.f32 %v4323, %v4414
  %v4514 = vadd.f32 %v4324, %v4419
  %v4515 = vadd.f32 %v4325, %v4422
  %v4516 = vadd.f32 %v4326, %v4427
  %v4517 = vadd.f32 %v4327, %v4430
  %v4518 = vadd.f32 %v4328, %v4435
  %v4519 = vadd.f32 %v4329, %v4438
  %v4520 = vadd.f32 %v4330, %v4482
  %v4521 = vadd.f32 %v4331, %v4485
  %v4522 = vadd.f32 %v4332, %v4490
  %v4523 = vadd.f32 %v4333, %v4493
  %v4524 = vadd.f32 %v4334, %v4498
  %v4525 = vadd.f32 %v4335, %v4501
  %v4526 = vadd.f32 %v4336, %v4506
  %v4527 = vadd.f32 %v4337, %v4509
  %v4536 = vunpack.c.l.b16 %v3578
  %v4537 = vunpack.c.l.b16 %v3579
  %v4538 = vunpack.c.l.b16 %v3580
  %v4539 = vunpack.c.l.b16 %v3581
  %v4540 = vunpack.c.l.b16 %v3582
  %v4541 = vunpack.c.l.b16 %v3583
  %v4542 = vunpack.c.l.b16 %v3584
  %v4543 = vunpack.c.l.b16 %v3585
  %v4544 = vpack.c.b16 %v4537, %v4536
  %v4545 = vpack.c.b16 %v4539, %v4538
  %v4546 = vpack.c.b16 %v4541, %v4540
  %v4547 = vpack.c.b16 %v4543, %v4542
  %4548 = vrot.lane.b32.xlu0 %v3799, 64
  %v4549 = vpop.permute.xlu0 %4548
  %4550 = vrot.lane.b32.xlu0 %v3801, 64
  %v4551 = vpop.permute.xlu0 %4550
  %v4555 = vsel %vm3835, %v4544, 0
  %v4558 = vsel %vm3835, %v4545, 0
  %v4561 = vsel %vm3835, %v4546, 0
  %v4564 = vsel %vm3835, %v4547, 0
  %4566 = vmatprep.subr.bf16.mxu0 0
  %4567 = vmatpush1.bf16.msra.mxu0 0
  %4568 = vmatprep.subr.bf16.mxu0 0
  %4569 = vmatpush1.bf16.msra.mxu0 0
  %4570 = vmatprep.subr.bf16.mxu0 0
  %4571 = vmatpush1.bf16.msra.mxu0 0
  %4572 = vmatprep.subr.bf16.mxu0 0
  %4573 = vmatpush1.bf16.msra.mxu0 0
  %4574 = vmatprep.subr.bf16.mxu0 0
  %4575 = vmatpush1.bf16.msra.mxu0 0
  %4576 = vmatprep.subr.bf16.mxu0 0
  %4577 = vmatpush1.bf16.msra.mxu0 0
  %4578 = vmatprep.subr.bf16.mxu0 0
  %4579 = vmatpush1.bf16.msra.mxu0 %v4551
  %4580 = vmatprep.subr.bf16.mxu0 0
  %4581 = vmatpush1.bf16.msra.mxu0 %v4549
  %4582 = vmatprep.subr.bf16.mxu0 0
  %4583 = vmatpush2.bf16.msra.mxu0 0
  %4584 = vmatprep.subr.bf16.mxu0 0
  %4585 = vmatpush2.bf16.msra.mxu0 0
  %4586 = vmatprep.subr.bf16.mxu0 0
  %4587 = vmatpush2.bf16.msra.mxu0 0
  %4588 = vmatprep.subr.bf16.mxu0 0
  %4589 = vmatpush2.bf16.msra.mxu0 0
  %4590 = vmatprep.subr.bf16.mxu0 0
  %4591 = vmatpush2.bf16.msra.mxu0 0
  %4592 = vmatprep.subr.bf16.mxu0 0
  %4593 = vmatpush2.bf16.msra.mxu0 0
  %4594 = vmatprep.subr.bf16.mxu0 0
  %4595 = vmatpush2.bf16.msra.mxu0 0
  %4596 = vmatprep.subr.bf16.mxu0 0
  %4597 = vmatpush2.bf16.msra.mxu0 0
  %4598 = vmatprep.mubr.bf16.mxu0 0
  %4599 = vmatmul.mubr.bf16.gmra.mxu0 %v4555
  %v4600 = vpop.f32.mrf.mxu0
  %v4601 = vadd.f32 0.0, %v4600
  %v4602 = vpop.f32.mrf.mxu0
  %v4603 = vpop.f32.mrf.mxu0
  %v4604 = vadd.f32 0.0, %v4603
  %v4605 = vpop.f32.mrf.mxu0
  %4606 = vmatprep.mubr.bf16.mxu0 0
  %4607 = vmatmul.mubr.bf16.gmra.mxu0 %v4558
  %v4608 = vpop.f32.mrf.mxu0
  %v4609 = vadd.f32 0.0, %v4608
  %v4610 = vpop.f32.mrf.mxu0
  %v4611 = vpop.f32.mrf.mxu0
  %v4612 = vadd.f32 0.0, %v4611
  %v4613 = vpop.f32.mrf.mxu0
  %4614 = vmatprep.mubr.bf16.mxu0 0
  %4615 = vmatmul.mubr.bf16.gmra.mxu0 %v4561
  %v4616 = vpop.f32.mrf.mxu0
  %v4617 = vadd.f32 0.0, %v4616
  %v4618 = vpop.f32.mrf.mxu0
  %v4619 = vpop.f32.mrf.mxu0
  %v4620 = vadd.f32 0.0, %v4619
  %v4621 = vpop.f32.mrf.mxu0
  %4622 = vmatprep.mubr.bf16.mxu0 0
  %4623 = vmatmul.mubr.bf16.gmra.mxu0 %v4564
  %v4624 = vpop.f32.mrf.mxu0
  %v4625 = vadd.f32 0.0, %v4624
  %v4626 = vpop.f32.mrf.mxu0
  %v4627 = vpop.f32.mrf.mxu0
  %v4628 = vadd.f32 0.0, %v4627
  %v4629 = vpop.f32.mrf.mxu0
  %4630 = vdwg.mxu0
  %4631 = vrot.lane.b32.xlu0 %v3803, 64
  %v4632 = vpop.permute.xlu0 %4631
  %4633 = vrot.lane.b32.xlu0 %v3805, 64
  %v4634 = vpop.permute.xlu0 %4633
  %4637 = vmatprep.subr.bf16.mxu0 0
  %4638 = vmatpush1.bf16.msra.mxu0 0
  %4639 = vmatprep.subr.bf16.mxu0 0
  %4640 = vmatpush1.bf16.msra.mxu0 0
  %4641 = vmatprep.subr.bf16.mxu0 0
  %4642 = vmatpush1.bf16.msra.mxu0 0
  %4643 = vmatprep.subr.bf16.mxu0 0
  %4644 = vmatpush1.bf16.msra.mxu0 0
  %4645 = vmatprep.subr.bf16.mxu0 0
  %4646 = vmatpush1.bf16.msra.mxu0 0
  %4647 = vmatprep.subr.bf16.mxu0 0
  %4648 = vmatpush1.bf16.msra.mxu0 0
  %4649 = vmatprep.subr.bf16.mxu0 0
  %4650 = vmatpush1.bf16.msra.mxu0 %v4634
  %4651 = vmatprep.subr.bf16.mxu0 0
  %4652 = vmatpush1.bf16.msra.mxu0 %v4632
  %4653 = vmatprep.subr.bf16.mxu0 0
  %4654 = vmatpush2.bf16.msra.mxu0 0
  %4655 = vmatprep.subr.bf16.mxu0 0
  %4656 = vmatpush2.bf16.msra.mxu0 0
  %4657 = vmatprep.subr.bf16.mxu0 0
  %4658 = vmatpush2.bf16.msra.mxu0 0
  %4659 = vmatprep.subr.bf16.mxu0 0
  %4660 = vmatpush2.bf16.msra.mxu0 0
  %4661 = vmatprep.subr.bf16.mxu0 0
  %4662 = vmatpush2.bf16.msra.mxu0 0
  %4663 = vmatprep.subr.bf16.mxu0 0
  %4664 = vmatpush2.bf16.msra.mxu0 0
  %4665 = vmatprep.subr.bf16.mxu0 0
  %4666 = vmatpush2.bf16.msra.mxu0 0
  %4667 = vmatprep.subr.bf16.mxu0 0
  %4668 = vmatpush2.bf16.msra.mxu0 0
  %4669 = vmatprep.mubr.bf16.mxu0 0
  %4670 = vmatmul.mubr.bf16.gmra.mxu0 %v4555
  %v4671 = vpop.f32.mrf.mxu0
  %v4672 = vadd.f32 0.0, %v4671
  %v4673 = vpop.f32.mrf.mxu0
  %v4674 = vpop.f32.mrf.mxu0
  %v4675 = vadd.f32 0.0, %v4674
  %v4676 = vpop.f32.mrf.mxu0
  %4677 = vmatprep.mubr.bf16.mxu0 0
  %4678 = vmatmul.mubr.bf16.gmra.mxu0 %v4558
  %v4679 = vpop.f32.mrf.mxu0
  %v4680 = vadd.f32 0.0, %v4679
  %v4681 = vpop.f32.mrf.mxu0
  %v4682 = vpop.f32.mrf.mxu0
  %v4683 = vadd.f32 0.0, %v4682
  %v4684 = vpop.f32.mrf.mxu0
  %4685 = vmatprep.mubr.bf16.mxu0 0
  %4686 = vmatmul.mubr.bf16.gmra.mxu0 %v4561
  %v4687 = vpop.f32.mrf.mxu0
  %v4688 = vadd.f32 0.0, %v4687
  %v4689 = vpop.f32.mrf.mxu0
  %v4690 = vpop.f32.mrf.mxu0
  %v4691 = vadd.f32 0.0, %v4690
  %v4692 = vpop.f32.mrf.mxu0
  %4693 = vmatprep.mubr.bf16.mxu0 0
  %4694 = vmatmul.mubr.bf16.gmra.mxu0 %v4564
  %v4695 = vpop.f32.mrf.mxu0
  %v4696 = vadd.f32 0.0, %v4695
  %v4697 = vpop.f32.mrf.mxu0
  %v4698 = vpop.f32.mrf.mxu0
  %v4699 = vadd.f32 0.0, %v4698
  %v4700 = vpop.f32.mrf.mxu0
  %4701 = vdwg.mxu0
  %v4702 = vadd.f32 %v4512, %v4601
  %v4703 = vadd.f32 %v4513, %v4604
  %v4704 = vadd.f32 %v4514, %v4609
  %v4705 = vadd.f32 %v4515, %v4612
  %v4706 = vadd.f32 %v4516, %v4617
  %v4707 = vadd.f32 %v4517, %v4620
  %v4708 = vadd.f32 %v4518, %v4625
  %v4709 = vadd.f32 %v4519, %v4628
  %v4710 = vadd.f32 %v4520, %v4672
  %v4711 = vadd.f32 %v4521, %v4675
  %v4712 = vadd.f32 %v4522, %v4680
  %v4713 = vadd.f32 %v4523, %v4683
  %v4714 = vadd.f32 %v4524, %v4688
  %v4715 = vadd.f32 %v4525, %v4691
  %v4716 = vadd.f32 %v4526, %v4696
  %v4717 = vadd.f32 %v4527, %v4699
  %v4726 = vunpack.c.l.b16 %v3586
  %v4727 = vunpack.c.l.b16 %v3587
  %v4728 = vunpack.c.l.b16 %v3588
  %v4729 = vunpack.c.l.b16 %v3589
  %v4730 = vunpack.c.l.b16 %v3590
  %v4731 = vunpack.c.l.b16 %v3591
  %v4732 = vunpack.c.l.b16 %v3592
  %v4733 = vunpack.c.l.b16 %v3593
  %v4734 = vpack.c.b16 %v4727, %v4726
  %v4735 = vpack.c.b16 %v4729, %v4728
  %v4736 = vpack.c.b16 %v4731, %v4730
  %v4737 = vpack.c.b16 %v4733, %v4732
  %4738 = vrot.lane.b32.xlu0 %v3799, 48
  %v4739 = vpop.permute.xlu0 %4738
  %4740 = vrot.lane.b32.xlu0 %v3801, 48
  %v4741 = vpop.permute.xlu0 %4740
  %v4745 = vsel %vm3835, %v4734, 0
  %v4748 = vsel %vm3835, %v4735, 0
  %v4751 = vsel %vm3835, %v4736, 0
  %v4754 = vsel %vm3835, %v4737, 0
  %4756 = vmatprep.subr.bf16.mxu0 0
  %4757 = vmatpush1.bf16.msra.mxu0 0
  %4758 = vmatprep.subr.bf16.mxu0 0
  %4759 = vmatpush1.bf16.msra.mxu0 0
  %4760 = vmatprep.subr.bf16.mxu0 0
  %4761 = vmatpush1.bf16.msra.mxu0 0
  %4762 = vmatprep.subr.bf16.mxu0 0
  %4763 = vmatpush1.bf16.msra.mxu0 0
  %4764 = vmatprep.subr.bf16.mxu0 0
  %4765 = vmatpush1.bf16.msra.mxu0 0
  %4766 = vmatprep.subr.bf16.mxu0 0
  %4767 = vmatpush1.bf16.msra.mxu0 0
  %4768 = vmatprep.subr.bf16.mxu0 0
  %4769 = vmatpush1.bf16.msra.mxu0 %v4741
  %4770 = vmatprep.subr.bf16.mxu0 0
  %4771 = vmatpush1.bf16.msra.mxu0 %v4739
  %4772 = vmatprep.subr.bf16.mxu0 0
  %4773 = vmatpush2.bf16.msra.mxu0 0
  %4774 = vmatprep.subr.bf16.mxu0 0
  %4775 = vmatpush2.bf16.msra.mxu0 0
  %4776 = vmatprep.subr.bf16.mxu0 0
  %4777 = vmatpush2.bf16.msra.mxu0 0
  %4778 = vmatprep.subr.bf16.mxu0 0
  %4779 = vmatpush2.bf16.msra.mxu0 0
  %4780 = vmatprep.subr.bf16.mxu0 0
  %4781 = vmatpush2.bf16.msra.mxu0 0
  %4782 = vmatprep.subr.bf16.mxu0 0
  %4783 = vmatpush2.bf16.msra.mxu0 0
  %4784 = vmatprep.subr.bf16.mxu0 0
  %4785 = vmatpush2.bf16.msra.mxu0 0
  %4786 = vmatprep.subr.bf16.mxu0 0
  %4787 = vmatpush2.bf16.msra.mxu0 0
  %4788 = vmatprep.mubr.bf16.mxu0 0
  %4789 = vmatmul.mubr.bf16.gmra.mxu0 %v4745
  %v4790 = vpop.f32.mrf.mxu0
  %v4791 = vadd.f32 0.0, %v4790
  %v4792 = vpop.f32.mrf.mxu0
  %v4793 = vpop.f32.mrf.mxu0
  %v4794 = vadd.f32 0.0, %v4793
  %v4795 = vpop.f32.mrf.mxu0
  %4796 = vmatprep.mubr.bf16.mxu0 0
  %4797 = vmatmul.mubr.bf16.gmra.mxu0 %v4748
  %v4798 = vpop.f32.mrf.mxu0
  %v4799 = vadd.f32 0.0, %v4798
  %v4800 = vpop.f32.mrf.mxu0
  %v4801 = vpop.f32.mrf.mxu0
  %v4802 = vadd.f32 0.0, %v4801
  %v4803 = vpop.f32.mrf.mxu0
  %4804 = vmatprep.mubr.bf16.mxu0 0
  %4805 = vmatmul.mubr.bf16.gmra.mxu0 %v4751
  %v4806 = vpop.f32.mrf.mxu0
  %v4807 = vadd.f32 0.0, %v4806
  %v4808 = vpop.f32.mrf.mxu0
  %v4809 = vpop.f32.mrf.mxu0
  %v4810 = vadd.f32 0.0, %v4809
  %v4811 = vpop.f32.mrf.mxu0
  %4812 = vmatprep.mubr.bf16.mxu0 0
  %4813 = vmatmul.mubr.bf16.gmra.mxu0 %v4754
  %v4814 = vpop.f32.mrf.mxu0
  %v4815 = vadd.f32 0.0, %v4814
  %v4816 = vpop.f32.mrf.mxu0
  %v4817 = vpop.f32.mrf.mxu0
  %v4818 = vadd.f32 0.0, %v4817
  %v4819 = vpop.f32.mrf.mxu0
  %4820 = vdwg.mxu0
  %4821 = vrot.lane.b32.xlu0 %v3803, 48
  %v4822 = vpop.permute.xlu0 %4821
  %4823 = vrot.lane.b32.xlu0 %v3805, 48
  %v4824 = vpop.permute.xlu0 %4823
  %4827 = vmatprep.subr.bf16.mxu0 0
  %4828 = vmatpush1.bf16.msra.mxu0 0
  %4829 = vmatprep.subr.bf16.mxu0 0
  %4830 = vmatpush1.bf16.msra.mxu0 0
  %4831 = vmatprep.subr.bf16.mxu0 0
  %4832 = vmatpush1.bf16.msra.mxu0 0
  %4833 = vmatprep.subr.bf16.mxu0 0
  %4834 = vmatpush1.bf16.msra.mxu0 0
  %4835 = vmatprep.subr.bf16.mxu0 0
  %4836 = vmatpush1.bf16.msra.mxu0 0
  %4837 = vmatprep.subr.bf16.mxu0 0
  %4838 = vmatpush1.bf16.msra.mxu0 0
  %4839 = vmatprep.subr.bf16.mxu0 0
  %4840 = vmatpush1.bf16.msra.mxu0 %v4824
  %4841 = vmatprep.subr.bf16.mxu0 0
  %4842 = vmatpush1.bf16.msra.mxu0 %v4822
  %4843 = vmatprep.subr.bf16.mxu0 0
  %4844 = vmatpush2.bf16.msra.mxu0 0
  %4845 = vmatprep.subr.bf16.mxu0 0
  %4846 = vmatpush2.bf16.msra.mxu0 0
  %4847 = vmatprep.subr.bf16.mxu0 0
  %4848 = vmatpush2.bf16.msra.mxu0 0
  %4849 = vmatprep.subr.bf16.mxu0 0
  %4850 = vmatpush2.bf16.msra.mxu0 0
  %4851 = vmatprep.subr.bf16.mxu0 0
  %4852 = vmatpush2.bf16.msra.mxu0 0
  %4853 = vmatprep.subr.bf16.mxu0 0
  %4854 = vmatpush2.bf16.msra.mxu0 0
  %4855 = vmatprep.subr.bf16.mxu0 0
  %4856 = vmatpush2.bf16.msra.mxu0 0
  %4857 = vmatprep.subr.bf16.mxu0 0
  %4858 = vmatpush2.bf16.msra.mxu0 0
  %4859 = vmatprep.mubr.bf16.mxu0 0
  %4860 = vmatmul.mubr.bf16.gmra.mxu0 %v4745
  %v4861 = vpop.f32.mrf.mxu0
  %v4862 = vadd.f32 0.0, %v4861
  %v4863 = vpop.f32.mrf.mxu0
  %v4864 = vpop.f32.mrf.mxu0
  %v4865 = vadd.f32 0.0, %v4864
  %v4866 = vpop.f32.mrf.mxu0
  %4867 = vmatprep.mubr.bf16.mxu0 0
  %4868 = vmatmul.mubr.bf16.gmra.mxu0 %v4748
  %v4869 = vpop.f32.mrf.mxu0
  %v4870 = vadd.f32 0.0, %v4869
  %v4871 = vpop.f32.mrf.mxu0
  %v4872 = vpop.f32.mrf.mxu0
  %v4873 = vadd.f32 0.0, %v4872
  %v4874 = vpop.f32.mrf.mxu0
  %4875 = vmatprep.mubr.bf16.mxu0 0
  %4876 = vmatmul.mubr.bf16.gmra.mxu0 %v4751
  %v4877 = vpop.f32.mrf.mxu0
  %v4878 = vadd.f32 0.0, %v4877
  %v4879 = vpop.f32.mrf.mxu0
  %v4880 = vpop.f32.mrf.mxu0
  %v4881 = vadd.f32 0.0, %v4880
  %v4882 = vpop.f32.mrf.mxu0
  %4883 = vmatprep.mubr.bf16.mxu0 0
  %4884 = vmatmul.mubr.bf16.gmra.mxu0 %v4754
  %v4885 = vpop.f32.mrf.mxu0
  %v4886 = vadd.f32 0.0, %v4885
  %v4887 = vpop.f32.mrf.mxu0
  %v4888 = vpop.f32.mrf.mxu0
  %v4889 = vadd.f32 0.0, %v4888
  %v4890 = vpop.f32.mrf.mxu0
  %4891 = vdwg.mxu0
  %v4892 = vadd.f32 %v4702, %v4791
  %v4893 = vadd.f32 %v4703, %v4794
  %v4894 = vadd.f32 %v4704, %v4799
  %v4895 = vadd.f32 %v4705, %v4802
  %v4896 = vadd.f32 %v4706, %v4807
  %v4897 = vadd.f32 %v4707, %v4810
  %v4898 = vadd.f32 %v4708, %v4815
  %v4899 = vadd.f32 %v4709, %v4818
  %v4900 = vadd.f32 %v4710, %v4862
  %v4901 = vadd.f32 %v4711, %v4865
  %v4902 = vadd.f32 %v4712, %v4870
  %v4903 = vadd.f32 %v4713, %v4873
  %v4904 = vadd.f32 %v4714, %v4878
  %v4905 = vadd.f32 %v4715, %v4881
  %v4906 = vadd.f32 %v4716, %v4886
  %v4907 = vadd.f32 %v4717, %v4889
  %v4916 = vunpack.c.l.b16 %v3594
  %v4917 = vunpack.c.l.b16 %v3595
  %v4918 = vunpack.c.l.b16 %v3596
  %v4919 = vunpack.c.l.b16 %v3597
  %v4920 = vunpack.c.l.b16 %v3598
  %v4921 = vunpack.c.l.b16 %v3599
  %v4922 = vunpack.c.l.b16 %v3600
  %v4923 = vunpack.c.l.b16 %v3601
  %v4924 = vpack.c.b16 %v4917, %v4916
  %v4925 = vpack.c.b16 %v4919, %v4918
  %v4926 = vpack.c.b16 %v4921, %v4920
  %v4927 = vpack.c.b16 %v4923, %v4922
  %4928 = vrot.lane.b32.xlu0 %v3799, 32
  %v4929 = vpop.permute.xlu0 %4928
  %4930 = vrot.lane.b32.xlu0 %v3801, 32
  %v4931 = vpop.permute.xlu0 %4930
  %v4935 = vsel %vm3835, %v4924, 0
  %v4938 = vsel %vm3835, %v4925, 0
  %v4941 = vsel %vm3835, %v4926, 0
  %v4944 = vsel %vm3835, %v4927, 0
  %4946 = vmatprep.subr.bf16.mxu0 0
  %4947 = vmatpush1.bf16.msra.mxu0 0
  %4948 = vmatprep.subr.bf16.mxu0 0
  %4949 = vmatpush1.bf16.msra.mxu0 0
  %4950 = vmatprep.subr.bf16.mxu0 0
  %4951 = vmatpush1.bf16.msra.mxu0 0
  %4952 = vmatprep.subr.bf16.mxu0 0
  %4953 = vmatpush1.bf16.msra.mxu0 0
  %4954 = vmatprep.subr.bf16.mxu0 0
  %4955 = vmatpush1.bf16.msra.mxu0 0
  %4956 = vmatprep.subr.bf16.mxu0 0
  %4957 = vmatpush1.bf16.msra.mxu0 0
  %4958 = vmatprep.subr.bf16.mxu0 0
  %4959 = vmatpush1.bf16.msra.mxu0 %v4931
  %4960 = vmatprep.subr.bf16.mxu0 0
  %4961 = vmatpush1.bf16.msra.mxu0 %v4929
  %4962 = vmatprep.subr.bf16.mxu0 0
  %4963 = vmatpush2.bf16.msra.mxu0 0
  %4964 = vmatprep.subr.bf16.mxu0 0
  %4965 = vmatpush2.bf16.msra.mxu0 0
  %4966 = vmatprep.subr.bf16.mxu0 0
  %4967 = vmatpush2.bf16.msra.mxu0 0
  %4968 = vmatprep.subr.bf16.mxu0 0
  %4969 = vmatpush2.bf16.msra.mxu0 0
  %4970 = vmatprep.subr.bf16.mxu0 0
  %4971 = vmatpush2.bf16.msra.mxu0 0
  %4972 = vmatprep.subr.bf16.mxu0 0
  %4973 = vmatpush2.bf16.msra.mxu0 0
  %4974 = vmatprep.subr.bf16.mxu0 0
  %4975 = vmatpush2.bf16.msra.mxu0 0
  %4976 = vmatprep.subr.bf16.mxu0 0
  %4977 = vmatpush2.bf16.msra.mxu0 0
  %4978 = vmatprep.mubr.bf16.mxu0 0
  %4979 = vmatmul.mubr.bf16.gmra.mxu0 %v4935
  %v4980 = vpop.f32.mrf.mxu0
  %v4981 = vadd.f32 0.0, %v4980
  %v4982 = vpop.f32.mrf.mxu0
  %v4983 = vpop.f32.mrf.mxu0
  %v4984 = vadd.f32 0.0, %v4983
  %v4985 = vpop.f32.mrf.mxu0
  %4986 = vmatprep.mubr.bf16.mxu0 0
  %4987 = vmatmul.mubr.bf16.gmra.mxu0 %v4938
  %v4988 = vpop.f32.mrf.mxu0
  %v4989 = vadd.f32 0.0, %v4988
  %v4990 = vpop.f32.mrf.mxu0
  %v4991 = vpop.f32.mrf.mxu0
  %v4992 = vadd.f32 0.0, %v4991
  %v4993 = vpop.f32.mrf.mxu0
  %4994 = vmatprep.mubr.bf16.mxu0 0
  %4995 = vmatmul.mubr.bf16.gmra.mxu0 %v4941
  %v4996 = vpop.f32.mrf.mxu0
  %v4997 = vadd.f32 0.0, %v4996
  %v4998 = vpop.f32.mrf.mxu0
  %v4999 = vpop.f32.mrf.mxu0
  %v5000 = vadd.f32 0.0, %v4999
  %v5001 = vpop.f32.mrf.mxu0
  %5002 = vmatprep.mubr.bf16.mxu0 0
  %5003 = vmatmul.mubr.bf16.gmra.mxu0 %v4944
  %v5004 = vpop.f32.mrf.mxu0
  %v5005 = vadd.f32 0.0, %v5004
  %v5006 = vpop.f32.mrf.mxu0
  %v5007 = vpop.f32.mrf.mxu0
  %v5008 = vadd.f32 0.0, %v5007
  %v5009 = vpop.f32.mrf.mxu0
  %5010 = vdwg.mxu0
  %5011 = vrot.lane.b32.xlu0 %v3803, 32
  %v5012 = vpop.permute.xlu0 %5011
  %5013 = vrot.lane.b32.xlu0 %v3805, 32
  %v5014 = vpop.permute.xlu0 %5013
  %5017 = vmatprep.subr.bf16.mxu0 0
  %5018 = vmatpush1.bf16.msra.mxu0 0
  %5019 = vmatprep.subr.bf16.mxu0 0
  %5020 = vmatpush1.bf16.msra.mxu0 0
  %5021 = vmatprep.subr.bf16.mxu0 0
  %5022 = vmatpush1.bf16.msra.mxu0 0
  %5023 = vmatprep.subr.bf16.mxu0 0
  %5024 = vmatpush1.bf16.msra.mxu0 0
  %5025 = vmatprep.subr.bf16.mxu0 0
  %5026 = vmatpush1.bf16.msra.mxu0 0
  %5027 = vmatprep.subr.bf16.mxu0 0
  %5028 = vmatpush1.bf16.msra.mxu0 0
  %5029 = vmatprep.subr.bf16.mxu0 0
  %5030 = vmatpush1.bf16.msra.mxu0 %v5014
  %5031 = vmatprep.subr.bf16.mxu0 0
  %5032 = vmatpush1.bf16.msra.mxu0 %v5012
  %5033 = vmatprep.subr.bf16.mxu0 0
  %5034 = vmatpush2.bf16.msra.mxu0 0
  %5035 = vmatprep.subr.bf16.mxu0 0
  %5036 = vmatpush2.bf16.msra.mxu0 0
  %5037 = vmatprep.subr.bf16.mxu0 0
  %5038 = vmatpush2.bf16.msra.mxu0 0
  %5039 = vmatprep.subr.bf16.mxu0 0
  %5040 = vmatpush2.bf16.msra.mxu0 0
  %5041 = vmatprep.subr.bf16.mxu0 0
  %5042 = vmatpush2.bf16.msra.mxu0 0
  %5043 = vmatprep.subr.bf16.mxu0 0
  %5044 = vmatpush2.bf16.msra.mxu0 0
  %5045 = vmatprep.subr.bf16.mxu0 0
  %5046 = vmatpush2.bf16.msra.mxu0 0
  %5047 = vmatprep.subr.bf16.mxu0 0
  %5048 = vmatpush2.bf16.msra.mxu0 0
  %5049 = vmatprep.mubr.bf16.mxu0 0
  %5050 = vmatmul.mubr.bf16.gmra.mxu0 %v4935
  %v5051 = vpop.f32.mrf.mxu0
  %v5052 = vadd.f32 0.0, %v5051
  %v5053 = vpop.f32.mrf.mxu0
  %v5054 = vpop.f32.mrf.mxu0
  %v5055 = vadd.f32 0.0, %v5054
  %v5056 = vpop.f32.mrf.mxu0
  %5057 = vmatprep.mubr.bf16.mxu0 0
  %5058 = vmatmul.mubr.bf16.gmra.mxu0 %v4938
  %v5059 = vpop.f32.mrf.mxu0
  %v5060 = vadd.f32 0.0, %v5059
  %v5061 = vpop.f32.mrf.mxu0
  %v5062 = vpop.f32.mrf.mxu0
  %v5063 = vadd.f32 0.0, %v5062
  %v5064 = vpop.f32.mrf.mxu0
  %5065 = vmatprep.mubr.bf16.mxu0 0
  %5066 = vmatmul.mubr.bf16.gmra.mxu0 %v4941
  %v5067 = vpop.f32.mrf.mxu0
  %v5068 = vadd.f32 0.0, %v5067
  %v5069 = vpop.f32.mrf.mxu0
  %v5070 = vpop.f32.mrf.mxu0
  %v5071 = vadd.f32 0.0, %v5070
  %v5072 = vpop.f32.mrf.mxu0
  %5073 = vmatprep.mubr.bf16.mxu0 0
  %5074 = vmatmul.mubr.bf16.gmra.mxu0 %v4944
  %v5075 = vpop.f32.mrf.mxu0
  %v5076 = vadd.f32 0.0, %v5075
  %v5077 = vpop.f32.mrf.mxu0
  %v5078 = vpop.f32.mrf.mxu0
  %v5079 = vadd.f32 0.0, %v5078
  %v5080 = vpop.f32.mrf.mxu0
  %5081 = vdwg.mxu0
  %v5082 = vadd.f32 %v4892, %v4981
  %v5083 = vadd.f32 %v4893, %v4984
  %v5084 = vadd.f32 %v4894, %v4989
  %v5085 = vadd.f32 %v4895, %v4992
  %v5086 = vadd.f32 %v4896, %v4997
  %v5087 = vadd.f32 %v4897, %v5000
  %v5088 = vadd.f32 %v4898, %v5005
  %v5089 = vadd.f32 %v4899, %v5008
  %v5090 = vadd.f32 %v4900, %v5052
  %v5091 = vadd.f32 %v4901, %v5055
  %v5092 = vadd.f32 %v4902, %v5060
  %v5093 = vadd.f32 %v4903, %v5063
  %v5094 = vadd.f32 %v4904, %v5068
  %v5095 = vadd.f32 %v4905, %v5071
  %v5096 = vadd.f32 %v4906, %v5076
  %v5097 = vadd.f32 %v4907, %v5079
  %v5106 = vunpack.c.l.b16 %v3602
  %v5107 = vunpack.c.l.b16 %v3603
  %v5108 = vunpack.c.l.b16 %v3604
  %v5109 = vunpack.c.l.b16 %v3605
  %v5110 = vunpack.c.l.b16 %v3606
  %v5111 = vunpack.c.l.b16 %v3607
  %v5112 = vunpack.c.l.b16 %v3608
  %v5113 = vunpack.c.l.b16 %v3609
  %v5114 = vpack.c.b16 %v5107, %v5106
  %v5115 = vpack.c.b16 %v5109, %v5108
  %v5116 = vpack.c.b16 %v5111, %v5110
  %v5117 = vpack.c.b16 %v5113, %v5112
  %5118 = vrot.lane.b32.xlu0 %v3799, 16
  %v5119 = vpop.permute.xlu0 %5118
  %5120 = vrot.lane.b32.xlu0 %v3801, 16
  %v5121 = vpop.permute.xlu0 %5120
  %v5125 = vsel %vm3835, %v5114, 0
  %v5128 = vsel %vm3835, %v5115, 0
  %v5131 = vsel %vm3835, %v5116, 0
  %v5134 = vsel %vm3835, %v5117, 0
  %5136 = vmatprep.subr.bf16.mxu0 0
  %5137 = vmatpush1.bf16.msra.mxu0 0
  %5138 = vmatprep.subr.bf16.mxu0 0
  %5139 = vmatpush1.bf16.msra.mxu0 0
  %5140 = vmatprep.subr.bf16.mxu0 0
  %5141 = vmatpush1.bf16.msra.mxu0 0
  %5142 = vmatprep.subr.bf16.mxu0 0
  %5143 = vmatpush1.bf16.msra.mxu0 0
  %5144 = vmatprep.subr.bf16.mxu0 0
  %5145 = vmatpush1.bf16.msra.mxu0 0
  %5146 = vmatprep.subr.bf16.mxu0 0
  %5147 = vmatpush1.bf16.msra.mxu0 0
  %5148 = vmatprep.subr.bf16.mxu0 0
  %5149 = vmatpush1.bf16.msra.mxu0 %v5121
  %5150 = vmatprep.subr.bf16.mxu0 0
  %5151 = vmatpush1.bf16.msra.mxu0 %v5119
  %5152 = vmatprep.subr.bf16.mxu0 0
  %5153 = vmatpush2.bf16.msra.mxu0 0
  %5154 = vmatprep.subr.bf16.mxu0 0
  %5155 = vmatpush2.bf16.msra.mxu0 0
  %5156 = vmatprep.subr.bf16.mxu0 0
  %5157 = vmatpush2.bf16.msra.mxu0 0
  %5158 = vmatprep.subr.bf16.mxu0 0
  %5159 = vmatpush2.bf16.msra.mxu0 0
  %5160 = vmatprep.subr.bf16.mxu0 0
  %5161 = vmatpush2.bf16.msra.mxu0 0
  %5162 = vmatprep.subr.bf16.mxu0 0
  %5163 = vmatpush2.bf16.msra.mxu0 0
  %5164 = vmatprep.subr.bf16.mxu0 0
  %5165 = vmatpush2.bf16.msra.mxu0 0
  %5166 = vmatprep.subr.bf16.mxu0 0
  %5167 = vmatpush2.bf16.msra.mxu0 0
  %5168 = vmatprep.mubr.bf16.mxu0 0
  %5169 = vmatmul.mubr.bf16.gmra.mxu0 %v5125
  %v5170 = vpop.f32.mrf.mxu0
  %v5171 = vadd.f32 0.0, %v5170
  %v5172 = vpop.f32.mrf.mxu0
  %v5173 = vpop.f32.mrf.mxu0
  %v5174 = vadd.f32 0.0, %v5173
  %v5175 = vpop.f32.mrf.mxu0
  %5176 = vmatprep.mubr.bf16.mxu0 0
  %5177 = vmatmul.mubr.bf16.gmra.mxu0 %v5128
  %v5178 = vpop.f32.mrf.mxu0
  %v5179 = vadd.f32 0.0, %v5178
  %v5180 = vpop.f32.mrf.mxu0
  %v5181 = vpop.f32.mrf.mxu0
  %v5182 = vadd.f32 0.0, %v5181
  %v5183 = vpop.f32.mrf.mxu0
  %5184 = vmatprep.mubr.bf16.mxu0 0
  %5185 = vmatmul.mubr.bf16.gmra.mxu0 %v5131
  %v5186 = vpop.f32.mrf.mxu0
  %v5187 = vadd.f32 0.0, %v5186
  %v5188 = vpop.f32.mrf.mxu0
  %v5189 = vpop.f32.mrf.mxu0
  %v5190 = vadd.f32 0.0, %v5189
  %v5191 = vpop.f32.mrf.mxu0
  %5192 = vmatprep.mubr.bf16.mxu0 0
  %5193 = vmatmul.mubr.bf16.gmra.mxu0 %v5134
  %v5194 = vpop.f32.mrf.mxu0
  %v5195 = vadd.f32 0.0, %v5194
  %v5196 = vpop.f32.mrf.mxu0
  %v5197 = vpop.f32.mrf.mxu0
  %v5198 = vadd.f32 0.0, %v5197
  %v5199 = vpop.f32.mrf.mxu0
  %5200 = vdwg.mxu0
  %5201 = vrot.lane.b32.xlu0 %v3803, 16
  %v5202 = vpop.permute.xlu0 %5201
  %5203 = vrot.lane.b32.xlu0 %v3805, 16
  %v5204 = vpop.permute.xlu0 %5203
  %5207 = vmatprep.subr.bf16.mxu0 0
  %5208 = vmatpush1.bf16.msra.mxu0 0
  %5209 = vmatprep.subr.bf16.mxu0 0
  %5210 = vmatpush1.bf16.msra.mxu0 0
  %5211 = vmatprep.subr.bf16.mxu0 0
  %5212 = vmatpush1.bf16.msra.mxu0 0
  %5213 = vmatprep.subr.bf16.mxu0 0
  %5214 = vmatpush1.bf16.msra.mxu0 0
  %5215 = vmatprep.subr.bf16.mxu0 0
  %5216 = vmatpush1.bf16.msra.mxu0 0
  %5217 = vmatprep.subr.bf16.mxu0 0
  %5218 = vmatpush1.bf16.msra.mxu0 0
  %5219 = vmatprep.subr.bf16.mxu0 0
  %5220 = vmatpush1.bf16.msra.mxu0 %v5204
  %5221 = vmatprep.subr.bf16.mxu0 0
  %5222 = vmatpush1.bf16.msra.mxu0 %v5202
  %5223 = vmatprep.subr.bf16.mxu0 0
  %5224 = vmatpush2.bf16.msra.mxu0 0
  %5225 = vmatprep.subr.bf16.mxu0 0
  %5226 = vmatpush2.bf16.msra.mxu0 0
  %5227 = vmatprep.subr.bf16.mxu0 0
  %5228 = vmatpush2.bf16.msra.mxu0 0
  %5229 = vmatprep.subr.bf16.mxu0 0
  %5230 = vmatpush2.bf16.msra.mxu0 0
  %5231 = vmatprep.subr.bf16.mxu0 0
  %5232 = vmatpush2.bf16.msra.mxu0 0
  %5233 = vmatprep.subr.bf16.mxu0 0
  %5234 = vmatpush2.bf16.msra.mxu0 0
  %5235 = vmatprep.subr.bf16.mxu0 0
  %5236 = vmatpush2.bf16.msra.mxu0 0
  %5237 = vmatprep.subr.bf16.mxu0 0
  %5238 = vmatpush2.bf16.msra.mxu0 0
  %5239 = vmatprep.mubr.bf16.mxu0 0
  %5240 = vmatmul.mubr.bf16.gmra.mxu0 %v5125
  %v5241 = vpop.f32.mrf.mxu0
  %v5242 = vadd.f32 0.0, %v5241
  %v5243 = vpop.f32.mrf.mxu0
  %v5244 = vpop.f32.mrf.mxu0
  %v5245 = vadd.f32 0.0, %v5244
  %v5246 = vpop.f32.mrf.mxu0
  %5247 = vmatprep.mubr.bf16.mxu0 0
  %5248 = vmatmul.mubr.bf16.gmra.mxu0 %v5128
  %v5249 = vpop.f32.mrf.mxu0
  %v5250 = vadd.f32 0.0, %v5249
  %v5251 = vpop.f32.mrf.mxu0
  %v5252 = vpop.f32.mrf.mxu0
  %v5253 = vadd.f32 0.0, %v5252
  %v5254 = vpop.f32.mrf.mxu0
  %5255 = vmatprep.mubr.bf16.mxu0 0
  %5256 = vmatmul.mubr.bf16.gmra.mxu0 %v5131
  %v5257 = vpop.f32.mrf.mxu0
  %v5258 = vadd.f32 0.0, %v5257
  %v5259 = vpop.f32.mrf.mxu0
  %v5260 = vpop.f32.mrf.mxu0
  %v5261 = vadd.f32 0.0, %v5260
  %v5262 = vpop.f32.mrf.mxu0
  %5263 = vmatprep.mubr.bf16.mxu0 0
  %5264 = vmatmul.mubr.bf16.gmra.mxu0 %v5134
  %v5265 = vpop.f32.mrf.mxu0
  %v5266 = vadd.f32 0.0, %v5265
  %v5267 = vpop.f32.mrf.mxu0
  %v5268 = vpop.f32.mrf.mxu0
  %v5269 = vadd.f32 0.0, %v5268
  %v5270 = vpop.f32.mrf.mxu0
  %5271 = vdwg.mxu0
  %v5272 = vadd.f32 %v5082, %v5171
  %v5273 = vadd.f32 %v5083, %v5174
  %v5274 = vadd.f32 %v5084, %v5179
  %v5275 = vadd.f32 %v5085, %v5182
  %v5276 = vadd.f32 %v5086, %v5187
  %v5277 = vadd.f32 %v5087, %v5190
  %v5278 = vadd.f32 %v5088, %v5195
  %v5279 = vadd.f32 %v5089, %v5198
  %v5280 = vadd.f32 %v5090, %v5242
  %v5281 = vadd.f32 %v5091, %v5245
  %v5282 = vadd.f32 %v5092, %v5250
  %v5283 = vadd.f32 %v5093, %v5253
  %v5284 = vadd.f32 %v5094, %v5258
  %v5285 = vadd.f32 %v5095, %v5261
  %v5286 = vadd.f32 %v5096, %v5266
  %v5287 = vadd.f32 %v5097, %v5269
  %v5296 = vunpack.c.l.b16 %v3610
  %v5297 = vunpack.c.l.b16 %v3611
  %v5298 = vunpack.c.l.b16 %v3612
  %v5299 = vunpack.c.l.b16 %v3613
  %v5300 = vunpack.c.l.b16 %v3614
  %v5301 = vunpack.c.l.b16 %v3615
  %v5302 = vunpack.c.l.b16 %v3616
  %v5303 = vunpack.c.l.b16 %v3617
  %v5304 = vpack.c.b16 %v5297, %v5296
  %v5305 = vpack.c.b16 %v5299, %v5298
  %v5306 = vpack.c.b16 %v5301, %v5300
  %v5307 = vpack.c.b16 %v5303, %v5302
  %v5309 = vsel %vm3835, %v5304, 0
  %v5312 = vsel %vm3835, %v5305, 0
  %v5315 = vsel %vm3835, %v5306, 0
  %v5318 = vsel %vm3835, %v5307, 0
  %5320 = vmatprep.subr.bf16.mxu0 0
  %5321 = vmatpush1.bf16.msra.mxu0 0
  %5322 = vmatprep.subr.bf16.mxu0 0
  %5323 = vmatpush1.bf16.msra.mxu0 0
  %5324 = vmatprep.subr.bf16.mxu0 0
  %5325 = vmatpush1.bf16.msra.mxu0 0
  %5326 = vmatprep.subr.bf16.mxu0 0
  %5327 = vmatpush1.bf16.msra.mxu0 0
  %5328 = vmatprep.subr.bf16.mxu0 0
  %5329 = vmatpush1.bf16.msra.mxu0 0
  %5330 = vmatprep.subr.bf16.mxu0 0
  %5331 = vmatpush1.bf16.msra.mxu0 0
  %5332 = vmatprep.subr.bf16.mxu0 0
  %5333 = vmatpush1.bf16.msra.mxu0 %v3802
  %5334 = vmatprep.subr.bf16.mxu0 0
  %5335 = vmatpush1.bf16.msra.mxu0 %v3800
  %5336 = vmatprep.subr.bf16.mxu0 0
  %5337 = vmatpush2.bf16.msra.mxu0 0
  %5338 = vmatprep.subr.bf16.mxu0 0
  %5339 = vmatpush2.bf16.msra.mxu0 0
  %5340 = vmatprep.subr.bf16.mxu0 0
  %5341 = vmatpush2.bf16.msra.mxu0 0
  %5342 = vmatprep.subr.bf16.mxu0 0
  %5343 = vmatpush2.bf16.msra.mxu0 0
  %5344 = vmatprep.subr.bf16.mxu0 0
  %5345 = vmatpush2.bf16.msra.mxu0 0
  %5346 = vmatprep.subr.bf16.mxu0 0
  %5347 = vmatpush2.bf16.msra.mxu0 0
  %5348 = vmatprep.subr.bf16.mxu0 0
  %5349 = vmatpush2.bf16.msra.mxu0 0
  %5350 = vmatprep.subr.bf16.mxu0 0
  %5351 = vmatpush2.bf16.msra.mxu0 0
  %5352 = vmatprep.mubr.bf16.mxu0 0
  %5353 = vmatmul.mubr.bf16.gmra.mxu0 %v5309
  %v5354 = vpop.f32.mrf.mxu0
  %v5355 = vadd.f32 0.0, %v5354
  %v5356 = vpop.f32.mrf.mxu0
  %v5357 = vpop.f32.mrf.mxu0
  %v5358 = vadd.f32 0.0, %v5357
  %v5359 = vpop.f32.mrf.mxu0
  %5360 = vmatprep.mubr.bf16.mxu0 0
  %5361 = vmatmul.mubr.bf16.gmra.mxu0 %v5312
  %v5362 = vpop.f32.mrf.mxu0
  %v5363 = vadd.f32 0.0, %v5362
  %v5364 = vpop.f32.mrf.mxu0
  %v5365 = vpop.f32.mrf.mxu0
  %v5366 = vadd.f32 0.0, %v5365
  %v5367 = vpop.f32.mrf.mxu0
  %5368 = vmatprep.mubr.bf16.mxu0 0
  %5369 = vmatmul.mubr.bf16.gmra.mxu0 %v5315
  %v5370 = vpop.f32.mrf.mxu0
  %v5371 = vadd.f32 0.0, %v5370
  %v5372 = vpop.f32.mrf.mxu0
  %v5373 = vpop.f32.mrf.mxu0
  %v5374 = vadd.f32 0.0, %v5373
  %v5375 = vpop.f32.mrf.mxu0
  %5376 = vmatprep.mubr.bf16.mxu0 0
  %5377 = vmatmul.mubr.bf16.gmra.mxu0 %v5318
  %v5378 = vpop.f32.mrf.mxu0
  %v5379 = vadd.f32 0.0, %v5378
  %v5380 = vpop.f32.mrf.mxu0
  %v5381 = vpop.f32.mrf.mxu0
  %v5382 = vadd.f32 0.0, %v5381
  %v5383 = vpop.f32.mrf.mxu0
  %5384 = vdwg.mxu0
  %5385 = vmatprep.subr.bf16.mxu0 0
  %5386 = vmatpush1.bf16.msra.mxu0 0
  %5387 = vmatprep.subr.bf16.mxu0 0
  %5388 = vmatpush1.bf16.msra.mxu0 0
  %5389 = vmatprep.subr.bf16.mxu0 0
  %5390 = vmatpush1.bf16.msra.mxu0 0
  %5391 = vmatprep.subr.bf16.mxu0 0
  %5392 = vmatpush1.bf16.msra.mxu0 0
  %5393 = vmatprep.subr.bf16.mxu0 0
  %5394 = vmatpush1.bf16.msra.mxu0 0
  %5395 = vmatprep.subr.bf16.mxu0 0
  %5396 = vmatpush1.bf16.msra.mxu0 0
  %5397 = vmatprep.subr.bf16.mxu0 0
  %5398 = vmatpush1.bf16.msra.mxu0 %v3806
  %5399 = vmatprep.subr.bf16.mxu0 0
  %5400 = vmatpush1.bf16.msra.mxu0 %v3804
  %5401 = vmatprep.subr.bf16.mxu0 0
  %5402 = vmatpush2.bf16.msra.mxu0 0
  %5403 = vmatprep.subr.bf16.mxu0 0
  %5404 = vmatpush2.bf16.msra.mxu0 0
  %5405 = vmatprep.subr.bf16.mxu0 0
  %5406 = vmatpush2.bf16.msra.mxu0 0
  %5407 = vmatprep.subr.bf16.mxu0 0
  %5408 = vmatpush2.bf16.msra.mxu0 0
  %5409 = vmatprep.subr.bf16.mxu0 0
  %5410 = vmatpush2.bf16.msra.mxu0 0
  %5411 = vmatprep.subr.bf16.mxu0 0
  %5412 = vmatpush2.bf16.msra.mxu0 0
  %5413 = vmatprep.subr.bf16.mxu0 0
  %5414 = vmatpush2.bf16.msra.mxu0 0
  %5415 = vmatprep.subr.bf16.mxu0 0
  %5416 = vmatpush2.bf16.msra.mxu0 0
  %5417 = vmatprep.mubr.bf16.mxu0 0
  %5418 = vmatmul.mubr.bf16.gmra.mxu0 %v5309
  %v5419 = vpop.f32.mrf.mxu0
  %v5420 = vadd.f32 0.0, %v5419
  %v5421 = vpop.f32.mrf.mxu0
  %v5422 = vpop.f32.mrf.mxu0
  %v5423 = vadd.f32 0.0, %v5422
  %v5424 = vpop.f32.mrf.mxu0
  %5425 = vmatprep.mubr.bf16.mxu0 0
  %5426 = vmatmul.mubr.bf16.gmra.mxu0 %v5312
  %v5427 = vpop.f32.mrf.mxu0
  %v5428 = vadd.f32 0.0, %v5427
  %v5429 = vpop.f32.mrf.mxu0
  %v5430 = vpop.f32.mrf.mxu0
  %v5431 = vadd.f32 0.0, %v5430
  %v5432 = vpop.f32.mrf.mxu0
  %5433 = vmatprep.mubr.bf16.mxu0 0
  %5434 = vmatmul.mubr.bf16.gmra.mxu0 %v5315
  %v5435 = vpop.f32.mrf.mxu0
  %v5436 = vadd.f32 0.0, %v5435
  %v5437 = vpop.f32.mrf.mxu0
  %v5438 = vpop.f32.mrf.mxu0
  %v5439 = vadd.f32 0.0, %v5438
  %v5440 = vpop.f32.mrf.mxu0
  %5441 = vmatprep.mubr.bf16.mxu0 0
  %5442 = vmatmul.mubr.bf16.gmra.mxu0 %v5318
  %v5443 = vpop.f32.mrf.mxu0
  %v5444 = vadd.f32 0.0, %v5443
  %v5445 = vpop.f32.mrf.mxu0
  %v5446 = vpop.f32.mrf.mxu0
  %v5447 = vadd.f32 0.0, %v5446
  %v5448 = vpop.f32.mrf.mxu0
  %5449 = vdwg.mxu0
  %v5450 = vadd.f32 %v5272, %v5355
  %v5451 = vadd.f32 %v5273, %v5358
  %v5452 = vadd.f32 %v5274, %v5363
  %v5453 = vadd.f32 %v5275, %v5366
  %v5454 = vadd.f32 %v5276, %v5371
  %v5455 = vadd.f32 %v5277, %v5374
  %v5456 = vadd.f32 %v5278, %v5379
  %v5457 = vadd.f32 %v5279, %v5382
  %v5458 = vadd.f32 %v5280, %v5420
  %v5459 = vadd.f32 %v5281, %v5423
  %v5460 = vadd.f32 %v5282, %v5428
  %v5461 = vadd.f32 %v5283, %v5431
  %v5462 = vadd.f32 %v5284, %v5436
  %v5463 = vadd.f32 %v5285, %v5439
  %v5464 = vadd.f32 %v5286, %v5444
  %v5465 = vadd.f32 %v5287, %v5447
  %v5474 = vunpack.c.l.b16 %v3618
  %v5475 = vunpack.c.l.b16 %v3619
  %v5476 = vunpack.c.l.b16 %v3620
  %v5477 = vunpack.c.l.b16 %v3621
  %v5478 = vunpack.c.l.b16 %v3622
  %v5479 = vunpack.c.l.b16 %v3623
  %v5480 = vunpack.c.l.b16 %v3624
  %v5481 = vunpack.c.l.b16 %v3625
  %v5482 = vpack.c.b16 %v5475, %v5474
  %v5483 = vpack.c.b16 %v5477, %v5476
  %v5484 = vpack.c.b16 %v5479, %v5478
  %v5485 = vpack.c.b16 %v5481, %v5480
  %5488 = vrot.lane.b32.xlu0 %v3800, 112
  %v5489 = vpop.permute.xlu0 %5488
  %5490 = vrot.lane.b32.xlu0 %v3802, 112
  %v5491 = vpop.permute.xlu0 %5490
  %v5495 = vsel %vm3835, %v5482, 0
  %v5498 = vsel %vm3835, %v5483, 0
  %v5501 = vsel %vm3835, %v5484, 0
  %v5504 = vsel %vm3835, %v5485, 0
  %5506 = vmatprep.subr.bf16.mxu0 0
  %5507 = vmatpush1.bf16.msra.mxu0 0
  %5508 = vmatprep.subr.bf16.mxu0 0
  %5509 = vmatpush1.bf16.msra.mxu0 0
  %5510 = vmatprep.subr.bf16.mxu0 0
  %5511 = vmatpush1.bf16.msra.mxu0 0
  %5512 = vmatprep.subr.bf16.mxu0 0
  %5513 = vmatpush1.bf16.msra.mxu0 0
  %5514 = vmatprep.subr.bf16.mxu0 0
  %5515 = vmatpush1.bf16.msra.mxu0 0
  %5516 = vmatprep.subr.bf16.mxu0 0
  %5517 = vmatpush1.bf16.msra.mxu0 0
  %5518 = vmatprep.subr.bf16.mxu0 0
  %5519 = vmatpush1.bf16.msra.mxu0 %v5491
  %5520 = vmatprep.subr.bf16.mxu0 0
  %5521 = vmatpush1.bf16.msra.mxu0 %v5489
  %5522 = vmatprep.subr.bf16.mxu0 0
  %5523 = vmatpush2.bf16.msra.mxu0 0
  %5524 = vmatprep.subr.bf16.mxu0 0
  %5525 = vmatpush2.bf16.msra.mxu0 0
  %5526 = vmatprep.subr.bf16.mxu0 0
  %5527 = vmatpush2.bf16.msra.mxu0 0
  %5528 = vmatprep.subr.bf16.mxu0 0
  %5529 = vmatpush2.bf16.msra.mxu0 0
  %5530 = vmatprep.subr.bf16.mxu0 0
  %5531 = vmatpush2.bf16.msra.mxu0 0
  %5532 = vmatprep.subr.bf16.mxu0 0
  %5533 = vmatpush2.bf16.msra.mxu0 0
  %5534 = vmatprep.subr.bf16.mxu0 0
  %5535 = vmatpush2.bf16.msra.mxu0 0
  %5536 = vmatprep.subr.bf16.mxu0 0
  %5537 = vmatpush2.bf16.msra.mxu0 0
  %5538 = vmatprep.mubr.bf16.mxu0 0
  %5539 = vmatmul.mubr.bf16.gmra.mxu0 %v5495
  %v5540 = vpop.f32.mrf.mxu0
  %v5541 = vadd.f32 0.0, %v5540
  %v5542 = vpop.f32.mrf.mxu0
  %v5543 = vpop.f32.mrf.mxu0
  %v5544 = vadd.f32 0.0, %v5543
  %v5545 = vpop.f32.mrf.mxu0
  %5546 = vmatprep.mubr.bf16.mxu0 0
  %5547 = vmatmul.mubr.bf16.gmra.mxu0 %v5498
  %v5548 = vpop.f32.mrf.mxu0
  %v5549 = vadd.f32 0.0, %v5548
  %v5550 = vpop.f32.mrf.mxu0
  %v5551 = vpop.f32.mrf.mxu0
  %v5552 = vadd.f32 0.0, %v5551
  %v5553 = vpop.f32.mrf.mxu0
  %5554 = vmatprep.mubr.bf16.mxu0 0
  %5555 = vmatmul.mubr.bf16.gmra.mxu0 %v5501
  %v5556 = vpop.f32.mrf.mxu0
  %v5557 = vadd.f32 0.0, %v5556
  %v5558 = vpop.f32.mrf.mxu0
  %v5559 = vpop.f32.mrf.mxu0
  %v5560 = vadd.f32 0.0, %v5559
  %v5561 = vpop.f32.mrf.mxu0
  %5562 = vmatprep.mubr.bf16.mxu0 0
  %5563 = vmatmul.mubr.bf16.gmra.mxu0 %v5504
  %v5564 = vpop.f32.mrf.mxu0
  %v5565 = vadd.f32 0.0, %v5564
  %v5566 = vpop.f32.mrf.mxu0
  %v5567 = vpop.f32.mrf.mxu0
  %v5568 = vadd.f32 0.0, %v5567
  %v5569 = vpop.f32.mrf.mxu0
  %5570 = vdwg.mxu0
  %5573 = vrot.lane.b32.xlu0 %v3804, 112
  %v5574 = vpop.permute.xlu0 %5573
  %5575 = vrot.lane.b32.xlu0 %v3806, 112
  %v5576 = vpop.permute.xlu0 %5575
  %5579 = vmatprep.subr.bf16.mxu0 0
  %5580 = vmatpush1.bf16.msra.mxu0 0
  %5581 = vmatprep.subr.bf16.mxu0 0
  %5582 = vmatpush1.bf16.msra.mxu0 0
  %5583 = vmatprep.subr.bf16.mxu0 0
  %5584 = vmatpush1.bf16.msra.mxu0 0
  %5585 = vmatprep.subr.bf16.mxu0 0
  %5586 = vmatpush1.bf16.msra.mxu0 0
  %5587 = vmatprep.subr.bf16.mxu0 0
  %5588 = vmatpush1.bf16.msra.mxu0 0
  %5589 = vmatprep.subr.bf16.mxu0 0
  %5590 = vmatpush1.bf16.msra.mxu0 0
  %5591 = vmatprep.subr.bf16.mxu0 0
  %5592 = vmatpush1.bf16.msra.mxu0 %v5576
  %5593 = vmatprep.subr.bf16.mxu0 0
  %5594 = vmatpush1.bf16.msra.mxu0 %v5574
  %5595 = vmatprep.subr.bf16.mxu0 0
  %5596 = vmatpush2.bf16.msra.mxu0 0
  %5597 = vmatprep.subr.bf16.mxu0 0
  %5598 = vmatpush2.bf16.msra.mxu0 0
  %5599 = vmatprep.subr.bf16.mxu0 0
  %5600 = vmatpush2.bf16.msra.mxu0 0
  %5601 = vmatprep.subr.bf16.mxu0 0
  %5602 = vmatpush2.bf16.msra.mxu0 0
  %5603 = vmatprep.subr.bf16.mxu0 0
  %5604 = vmatpush2.bf16.msra.mxu0 0
  %5605 = vmatprep.subr.bf16.mxu0 0
  %5606 = vmatpush2.bf16.msra.mxu0 0
  %5607 = vmatprep.subr.bf16.mxu0 0
  %5608 = vmatpush2.bf16.msra.mxu0 0
  %5609 = vmatprep.subr.bf16.mxu0 0
  %5610 = vmatpush2.bf16.msra.mxu0 0
  %5611 = vmatprep.mubr.bf16.mxu0 0
  %5612 = vmatmul.mubr.bf16.gmra.mxu0 %v5495
  %v5613 = vpop.f32.mrf.mxu0
  %v5614 = vadd.f32 0.0, %v5613
  %v5615 = vpop.f32.mrf.mxu0
  %v5616 = vpop.f32.mrf.mxu0
  %v5617 = vadd.f32 0.0, %v5616
  %v5618 = vpop.f32.mrf.mxu0
  %5619 = vmatprep.mubr.bf16.mxu0 0
  %5620 = vmatmul.mubr.bf16.gmra.mxu0 %v5498
  %v5621 = vpop.f32.mrf.mxu0
  %v5622 = vadd.f32 0.0, %v5621
  %v5623 = vpop.f32.mrf.mxu0
  %v5624 = vpop.f32.mrf.mxu0
  %v5625 = vadd.f32 0.0, %v5624
  %v5626 = vpop.f32.mrf.mxu0
  %5627 = vmatprep.mubr.bf16.mxu0 0
  %5628 = vmatmul.mubr.bf16.gmra.mxu0 %v5501
  %v5629 = vpop.f32.mrf.mxu0
  %v5630 = vadd.f32 0.0, %v5629
  %v5631 = vpop.f32.mrf.mxu0
  %v5632 = vpop.f32.mrf.mxu0
  %v5633 = vadd.f32 0.0, %v5632
  %v5634 = vpop.f32.mrf.mxu0
  %5635 = vmatprep.mubr.bf16.mxu0 0
  %5636 = vmatmul.mubr.bf16.gmra.mxu0 %v5504
  %v5637 = vpop.f32.mrf.mxu0
  %v5638 = vadd.f32 0.0, %v5637
  %v5639 = vpop.f32.mrf.mxu0
  %v5640 = vpop.f32.mrf.mxu0
  %v5641 = vadd.f32 0.0, %v5640
  %v5642 = vpop.f32.mrf.mxu0
  %5643 = vdwg.mxu0
  %v5644 = vadd.f32 %v5450, %v5541
  %v5645 = vadd.f32 %v5451, %v5544
  %v5646 = vadd.f32 %v5452, %v5549
  %v5647 = vadd.f32 %v5453, %v5552
  %v5648 = vadd.f32 %v5454, %v5557
  %v5649 = vadd.f32 %v5455, %v5560
  %v5650 = vadd.f32 %v5456, %v5565
  %v5651 = vadd.f32 %v5457, %v5568
  %v5652 = vadd.f32 %v5458, %v5614
  %v5653 = vadd.f32 %v5459, %v5617
  %v5654 = vadd.f32 %v5460, %v5622
  %v5655 = vadd.f32 %v5461, %v5625
  %v5656 = vadd.f32 %v5462, %v5630
  %v5657 = vadd.f32 %v5463, %v5633
  %v5658 = vadd.f32 %v5464, %v5638
  %v5659 = vadd.f32 %v5465, %v5641
  %v5668 = vunpack.c.l.b16 %v3626
  %v5669 = vunpack.c.l.b16 %v3627
  %v5670 = vunpack.c.l.b16 %v3628
  %v5671 = vunpack.c.l.b16 %v3629
  %v5672 = vunpack.c.l.b16 %v3630
  %v5673 = vunpack.c.l.b16 %v3631
  %v5674 = vunpack.c.l.b16 %v3632
  %v5675 = vunpack.c.l.b16 %v3633
  %v5676 = vpack.c.b16 %v5669, %v5668
  %v5677 = vpack.c.b16 %v5671, %v5670
  %v5678 = vpack.c.b16 %v5673, %v5672
  %v5679 = vpack.c.b16 %v5675, %v5674
  %5680 = vrot.lane.b32.xlu0 %v3800, 96
  %v5681 = vpop.permute.xlu0 %5680
  %5682 = vrot.lane.b32.xlu0 %v3802, 96
  %v5683 = vpop.permute.xlu0 %5682
  %v5687 = vsel %vm3835, %v5676, 0
  %v5690 = vsel %vm3835, %v5677, 0
  %v5693 = vsel %vm3835, %v5678, 0
  %v5696 = vsel %vm3835, %v5679, 0
  %5698 = vmatprep.subr.bf16.mxu0 0
  %5699 = vmatpush1.bf16.msra.mxu0 0
  %5700 = vmatprep.subr.bf16.mxu0 0
  %5701 = vmatpush1.bf16.msra.mxu0 0
  %5702 = vmatprep.subr.bf16.mxu0 0
  %5703 = vmatpush1.bf16.msra.mxu0 0
  %5704 = vmatprep.subr.bf16.mxu0 0
  %5705 = vmatpush1.bf16.msra.mxu0 0
  %5706 = vmatprep.subr.bf16.mxu0 0
  %5707 = vmatpush1.bf16.msra.mxu0 0
  %5708 = vmatprep.subr.bf16.mxu0 0
  %5709 = vmatpush1.bf16.msra.mxu0 0
  %5710 = vmatprep.subr.bf16.mxu0 0
  %5711 = vmatpush1.bf16.msra.mxu0 %v5683
  %5712 = vmatprep.subr.bf16.mxu0 0
  %5713 = vmatpush1.bf16.msra.mxu0 %v5681
  %5714 = vmatprep.subr.bf16.mxu0 0
  %5715 = vmatpush2.bf16.msra.mxu0 0
  %5716 = vmatprep.subr.bf16.mxu0 0
  %5717 = vmatpush2.bf16.msra.mxu0 0
  %5718 = vmatprep.subr.bf16.mxu0 0
  %5719 = vmatpush2.bf16.msra.mxu0 0
  %5720 = vmatprep.subr.bf16.mxu0 0
  %5721 = vmatpush2.bf16.msra.mxu0 0
  %5722 = vmatprep.subr.bf16.mxu0 0
  %5723 = vmatpush2.bf16.msra.mxu0 0
  %5724 = vmatprep.subr.bf16.mxu0 0
  %5725 = vmatpush2.bf16.msra.mxu0 0
  %5726 = vmatprep.subr.bf16.mxu0 0
  %5727 = vmatpush2.bf16.msra.mxu0 0
  %5728 = vmatprep.subr.bf16.mxu0 0
  %5729 = vmatpush2.bf16.msra.mxu0 0
  %5730 = vmatprep.mubr.bf16.mxu0 0
  %5731 = vmatmul.mubr.bf16.gmra.mxu0 %v5687
  %v5732 = vpop.f32.mrf.mxu0
  %v5733 = vadd.f32 0.0, %v5732
  %v5734 = vpop.f32.mrf.mxu0
  %v5735 = vpop.f32.mrf.mxu0
  %v5736 = vadd.f32 0.0, %v5735
  %v5737 = vpop.f32.mrf.mxu0
  %5738 = vmatprep.mubr.bf16.mxu0 0
  %5739 = vmatmul.mubr.bf16.gmra.mxu0 %v5690
  %v5740 = vpop.f32.mrf.mxu0
  %v5741 = vadd.f32 0.0, %v5740
  %v5742 = vpop.f32.mrf.mxu0
  %v5743 = vpop.f32.mrf.mxu0
  %v5744 = vadd.f32 0.0, %v5743
  %v5745 = vpop.f32.mrf.mxu0
  %5746 = vmatprep.mubr.bf16.mxu0 0
  %5747 = vmatmul.mubr.bf16.gmra.mxu0 %v5693
  %v5748 = vpop.f32.mrf.mxu0
  %v5749 = vadd.f32 0.0, %v5748
  %v5750 = vpop.f32.mrf.mxu0
  %v5751 = vpop.f32.mrf.mxu0
  %v5752 = vadd.f32 0.0, %v5751
  %v5753 = vpop.f32.mrf.mxu0
  %5754 = vmatprep.mubr.bf16.mxu0 0
  %5755 = vmatmul.mubr.bf16.gmra.mxu0 %v5696
  %v5756 = vpop.f32.mrf.mxu0
  %v5757 = vadd.f32 0.0, %v5756
  %v5758 = vpop.f32.mrf.mxu0
  %v5759 = vpop.f32.mrf.mxu0
  %v5760 = vadd.f32 0.0, %v5759
  %v5761 = vpop.f32.mrf.mxu0
  %5762 = vdwg.mxu0
  %5763 = vrot.lane.b32.xlu0 %v3804, 96
  %v5764 = vpop.permute.xlu0 %5763
  %5765 = vrot.lane.b32.xlu0 %v3806, 96
  %v5766 = vpop.permute.xlu0 %5765
  %5769 = vmatprep.subr.bf16.mxu0 0
  %5770 = vmatpush1.bf16.msra.mxu0 0
  %5771 = vmatprep.subr.bf16.mxu0 0
  %5772 = vmatpush1.bf16.msra.mxu0 0
  %5773 = vmatprep.subr.bf16.mxu0 0
  %5774 = vmatpush1.bf16.msra.mxu0 0
  %5775 = vmatprep.subr.bf16.mxu0 0
  %5776 = vmatpush1.bf16.msra.mxu0 0
  %5777 = vmatprep.subr.bf16.mxu0 0
  %5778 = vmatpush1.bf16.msra.mxu0 0
  %5779 = vmatprep.subr.bf16.mxu0 0
  %5780 = vmatpush1.bf16.msra.mxu0 0
  %5781 = vmatprep.subr.bf16.mxu0 0
  %5782 = vmatpush1.bf16.msra.mxu0 %v5766
  %5783 = vmatprep.subr.bf16.mxu0 0
  %5784 = vmatpush1.bf16.msra.mxu0 %v5764
  %5785 = vmatprep.subr.bf16.mxu0 0
  %5786 = vmatpush2.bf16.msra.mxu0 0
  %5787 = vmatprep.subr.bf16.mxu0 0
  %5788 = vmatpush2.bf16.msra.mxu0 0
  %5789 = vmatprep.subr.bf16.mxu0 0
  %5790 = vmatpush2.bf16.msra.mxu0 0
  %5791 = vmatprep.subr.bf16.mxu0 0
  %5792 = vmatpush2.bf16.msra.mxu0 0
  %5793 = vmatprep.subr.bf16.mxu0 0
  %5794 = vmatpush2.bf16.msra.mxu0 0
  %5795 = vmatprep.subr.bf16.mxu0 0
  %5796 = vmatpush2.bf16.msra.mxu0 0
  %5797 = vmatprep.subr.bf16.mxu0 0
  %5798 = vmatpush2.bf16.msra.mxu0 0
  %5799 = vmatprep.subr.bf16.mxu0 0
  %5800 = vmatpush2.bf16.msra.mxu0 0
  %5801 = vmatprep.mubr.bf16.mxu0 0
  %5802 = vmatmul.mubr.bf16.gmra.mxu0 %v5687
  %v5803 = vpop.f32.mrf.mxu0
  %v5804 = vadd.f32 0.0, %v5803
  %v5805 = vpop.f32.mrf.mxu0
  %v5806 = vpop.f32.mrf.mxu0
  %v5807 = vadd.f32 0.0, %v5806
  %v5808 = vpop.f32.mrf.mxu0
  %5809 = vmatprep.mubr.bf16.mxu0 0
  %5810 = vmatmul.mubr.bf16.gmra.mxu0 %v5690
  %v5811 = vpop.f32.mrf.mxu0
  %v5812 = vadd.f32 0.0, %v5811
  %v5813 = vpop.f32.mrf.mxu0
  %v5814 = vpop.f32.mrf.mxu0
  %v5815 = vadd.f32 0.0, %v5814
  %v5816 = vpop.f32.mrf.mxu0
  %5817 = vmatprep.mubr.bf16.mxu0 0
  %5818 = vmatmul.mubr.bf16.gmra.mxu0 %v5693
  %v5819 = vpop.f32.mrf.mxu0
  %v5820 = vadd.f32 0.0, %v5819
  %v5821 = vpop.f32.mrf.mxu0
  %v5822 = vpop.f32.mrf.mxu0
  %v5823 = vadd.f32 0.0, %v5822
  %v5824 = vpop.f32.mrf.mxu0
  %5825 = vmatprep.mubr.bf16.mxu0 0
  %5826 = vmatmul.mubr.bf16.gmra.mxu0 %v5696
  %v5827 = vpop.f32.mrf.mxu0
  %v5828 = vadd.f32 0.0, %v5827
  %v5829 = vpop.f32.mrf.mxu0
  %v5830 = vpop.f32.mrf.mxu0
  %v5831 = vadd.f32 0.0, %v5830
  %v5832 = vpop.f32.mrf.mxu0
  %5833 = vdwg.mxu0
  %v5834 = vadd.f32 %v5644, %v5733
  %v5835 = vadd.f32 %v5645, %v5736
  %v5836 = vadd.f32 %v5646, %v5741
  %v5837 = vadd.f32 %v5647, %v5744
  %v5838 = vadd.f32 %v5648, %v5749
  %v5839 = vadd.f32 %v5649, %v5752
  %v5840 = vadd.f32 %v5650, %v5757
  %v5841 = vadd.f32 %v5651, %v5760
  %v5842 = vadd.f32 %v5652, %v5804
  %v5843 = vadd.f32 %v5653, %v5807
  %v5844 = vadd.f32 %v5654, %v5812
  %v5845 = vadd.f32 %v5655, %v5815
  %v5846 = vadd.f32 %v5656, %v5820
  %v5847 = vadd.f32 %v5657, %v5823
  %v5848 = vadd.f32 %v5658, %v5828
  %v5849 = vadd.f32 %v5659, %v5831
  %v5858 = vunpack.c.l.b16 %v3634
  %v5859 = vunpack.c.l.b16 %v3635
  %v5860 = vunpack.c.l.b16 %v3636
  %v5861 = vunpack.c.l.b16 %v3637
  %v5862 = vunpack.c.l.b16 %v3638
  %v5863 = vunpack.c.l.b16 %v3639
  %v5864 = vunpack.c.l.b16 %v3640
  %v5865 = vunpack.c.l.b16 %v3641
  %v5866 = vpack.c.b16 %v5859, %v5858
  %v5867 = vpack.c.b16 %v5861, %v5860
  %v5868 = vpack.c.b16 %v5863, %v5862
  %v5869 = vpack.c.b16 %v5865, %v5864
  %5870 = vrot.lane.b32.xlu0 %v3800, 80
  %v5871 = vpop.permute.xlu0 %5870
  %5872 = vrot.lane.b32.xlu0 %v3802, 80
  %v5873 = vpop.permute.xlu0 %5872
  %v5877 = vsel %vm3835, %v5866, 0
  %v5880 = vsel %vm3835, %v5867, 0
  %v5883 = vsel %vm3835, %v5868, 0
  %v5886 = vsel %vm3835, %v5869, 0
  %5888 = vmatprep.subr.bf16.mxu0 0
  %5889 = vmatpush1.bf16.msra.mxu0 0
  %5890 = vmatprep.subr.bf16.mxu0 0
  %5891 = vmatpush1.bf16.msra.mxu0 0
  %5892 = vmatprep.subr.bf16.mxu0 0
  %5893 = vmatpush1.bf16.msra.mxu0 0
  %5894 = vmatprep.subr.bf16.mxu0 0
  %5895 = vmatpush1.bf16.msra.mxu0 0
  %5896 = vmatprep.subr.bf16.mxu0 0
  %5897 = vmatpush1.bf16.msra.mxu0 0
  %5898 = vmatprep.subr.bf16.mxu0 0
  %5899 = vmatpush1.bf16.msra.mxu0 0
  %5900 = vmatprep.subr.bf16.mxu0 0
  %5901 = vmatpush1.bf16.msra.mxu0 %v5873
  %5902 = vmatprep.subr.bf16.mxu0 0
  %5903 = vmatpush1.bf16.msra.mxu0 %v5871
  %5904 = vmatprep.subr.bf16.mxu0 0
  %5905 = vmatpush2.bf16.msra.mxu0 0
  %5906 = vmatprep.subr.bf16.mxu0 0
  %5907 = vmatpush2.bf16.msra.mxu0 0
  %5908 = vmatprep.subr.bf16.mxu0 0
  %5909 = vmatpush2.bf16.msra.mxu0 0
  %5910 = vmatprep.subr.bf16.mxu0 0
  %5911 = vmatpush2.bf16.msra.mxu0 0
  %5912 = vmatprep.subr.bf16.mxu0 0
  %5913 = vmatpush2.bf16.msra.mxu0 0
  %5914 = vmatprep.subr.bf16.mxu0 0
  %5915 = vmatpush2.bf16.msra.mxu0 0
  %5916 = vmatprep.subr.bf16.mxu0 0
  %5917 = vmatpush2.bf16.msra.mxu0 0
  %5918 = vmatprep.subr.bf16.mxu0 0
  %5919 = vmatpush2.bf16.msra.mxu0 0
  %5920 = vmatprep.mubr.bf16.mxu0 0
  %5921 = vmatmul.mubr.bf16.gmra.mxu0 %v5877
  %v5922 = vpop.f32.mrf.mxu0
  %v5923 = vadd.f32 0.0, %v5922
  %v5924 = vpop.f32.mrf.mxu0
  %v5925 = vpop.f32.mrf.mxu0
  %v5926 = vadd.f32 0.0, %v5925
  %v5927 = vpop.f32.mrf.mxu0
  %5928 = vmatprep.mubr.bf16.mxu0 0
  %5929 = vmatmul.mubr.bf16.gmra.mxu0 %v5880
  %v5930 = vpop.f32.mrf.mxu0
  %v5931 = vadd.f32 0.0, %v5930
  %v5932 = vpop.f32.mrf.mxu0
  %v5933 = vpop.f32.mrf.mxu0
  %v5934 = vadd.f32 0.0, %v5933
  %v5935 = vpop.f32.mrf.mxu0
  %5936 = vmatprep.mubr.bf16.mxu0 0
  %5937 = vmatmul.mubr.bf16.gmra.mxu0 %v5883
  %v5938 = vpop.f32.mrf.mxu0
  %v5939 = vadd.f32 0.0, %v5938
  %v5940 = vpop.f32.mrf.mxu0
  %v5941 = vpop.f32.mrf.mxu0
  %v5942 = vadd.f32 0.0, %v5941
  %v5943 = vpop.f32.mrf.mxu0
  %5944 = vmatprep.mubr.bf16.mxu0 0
  %5945 = vmatmul.mubr.bf16.gmra.mxu0 %v5886
  %v5946 = vpop.f32.mrf.mxu0
  %v5947 = vadd.f32 0.0, %v5946
  %v5948 = vpop.f32.mrf.mxu0
  %v5949 = vpop.f32.mrf.mxu0
  %v5950 = vadd.f32 0.0, %v5949
  %v5951 = vpop.f32.mrf.mxu0
  %5952 = vdwg.mxu0
  %5953 = vrot.lane.b32.xlu0 %v3804, 80
  %v5954 = vpop.permute.xlu0 %5953
  %5955 = vrot.lane.b32.xlu0 %v3806, 80
  %v5956 = vpop.permute.xlu0 %5955
  %5959 = vmatprep.subr.bf16.mxu0 0
  %5960 = vmatpush1.bf16.msra.mxu0 0
  %5961 = vmatprep.subr.bf16.mxu0 0
  %5962 = vmatpush1.bf16.msra.mxu0 0
  %5963 = vmatprep.subr.bf16.mxu0 0
  %5964 = vmatpush1.bf16.msra.mxu0 0
  %5965 = vmatprep.subr.bf16.mxu0 0
  %5966 = vmatpush1.bf16.msra.mxu0 0
  %5967 = vmatprep.subr.bf16.mxu0 0
  %5968 = vmatpush1.bf16.msra.mxu0 0
  %5969 = vmatprep.subr.bf16.mxu0 0
  %5970 = vmatpush1.bf16.msra.mxu0 0
  %5971 = vmatprep.subr.bf16.mxu0 0
  %5972 = vmatpush1.bf16.msra.mxu0 %v5956
  %5973 = vmatprep.subr.bf16.mxu0 0
  %5974 = vmatpush1.bf16.msra.mxu0 %v5954
  %5975 = vmatprep.subr.bf16.mxu0 0
  %5976 = vmatpush2.bf16.msra.mxu0 0
  %5977 = vmatprep.subr.bf16.mxu0 0
  %5978 = vmatpush2.bf16.msra.mxu0 0
  %5979 = vmatprep.subr.bf16.mxu0 0
  %5980 = vmatpush2.bf16.msra.mxu0 0
  %5981 = vmatprep.subr.bf16.mxu0 0
  %5982 = vmatpush2.bf16.msra.mxu0 0
  %5983 = vmatprep.subr.bf16.mxu0 0
  %5984 = vmatpush2.bf16.msra.mxu0 0
  %5985 = vmatprep.subr.bf16.mxu0 0
  %5986 = vmatpush2.bf16.msra.mxu0 0
  %5987 = vmatprep.subr.bf16.mxu0 0
  %5988 = vmatpush2.bf16.msra.mxu0 0
  %5989 = vmatprep.subr.bf16.mxu0 0
  %5990 = vmatpush2.bf16.msra.mxu0 0
  %5991 = vmatprep.mubr.bf16.mxu0 0
  %5992 = vmatmul.mubr.bf16.gmra.mxu0 %v5877
  %v5993 = vpop.f32.mrf.mxu0
  %v5994 = vadd.f32 0.0, %v5993
  %v5995 = vpop.f32.mrf.mxu0
  %v5996 = vpop.f32.mrf.mxu0
  %v5997 = vadd.f32 0.0, %v5996
  %v5998 = vpop.f32.mrf.mxu0
  %5999 = vmatprep.mubr.bf16.mxu0 0
  %6000 = vmatmul.mubr.bf16.gmra.mxu0 %v5880
  %v6001 = vpop.f32.mrf.mxu0
  %v6002 = vadd.f32 0.0, %v6001
  %v6003 = vpop.f32.mrf.mxu0
  %v6004 = vpop.f32.mrf.mxu0
  %v6005 = vadd.f32 0.0, %v6004
  %v6006 = vpop.f32.mrf.mxu0
  %6007 = vmatprep.mubr.bf16.mxu0 0
  %6008 = vmatmul.mubr.bf16.gmra.mxu0 %v5883
  %v6009 = vpop.f32.mrf.mxu0
  %v6010 = vadd.f32 0.0, %v6009
  %v6011 = vpop.f32.mrf.mxu0
  %v6012 = vpop.f32.mrf.mxu0
  %v6013 = vadd.f32 0.0, %v6012
  %v6014 = vpop.f32.mrf.mxu0
  %6015 = vmatprep.mubr.bf16.mxu0 0
  %6016 = vmatmul.mubr.bf16.gmra.mxu0 %v5886
  %v6017 = vpop.f32.mrf.mxu0
  %v6018 = vadd.f32 0.0, %v6017
  %v6019 = vpop.f32.mrf.mxu0
  %v6020 = vpop.f32.mrf.mxu0
  %v6021 = vadd.f32 0.0, %v6020
  %v6022 = vpop.f32.mrf.mxu0
  %6023 = vdwg.mxu0
  %v6024 = vadd.f32 %v5834, %v5923
  %v6025 = vadd.f32 %v5835, %v5926
  %v6026 = vadd.f32 %v5836, %v5931
  %v6027 = vadd.f32 %v5837, %v5934
  %v6028 = vadd.f32 %v5838, %v5939
  %v6029 = vadd.f32 %v5839, %v5942
  %v6030 = vadd.f32 %v5840, %v5947
  %v6031 = vadd.f32 %v5841, %v5950
  %v6032 = vadd.f32 %v5842, %v5994
  %v6033 = vadd.f32 %v5843, %v5997
  %v6034 = vadd.f32 %v5844, %v6002
  %v6035 = vadd.f32 %v5845, %v6005
  %v6036 = vadd.f32 %v5846, %v6010
  %v6037 = vadd.f32 %v5847, %v6013
  %v6038 = vadd.f32 %v5848, %v6018
  %v6039 = vadd.f32 %v5849, %v6021
  %v6048 = vunpack.c.l.b16 %v3642
  %v6049 = vunpack.c.l.b16 %v3643
  %v6050 = vunpack.c.l.b16 %v3644
  %v6051 = vunpack.c.l.b16 %v3645
  %v6052 = vunpack.c.l.b16 %v3646
  %v6053 = vunpack.c.l.b16 %v3647
  %v6054 = vunpack.c.l.b16 %v3648
  %v6055 = vunpack.c.l.b16 %v3649
  %v6056 = vpack.c.b16 %v6049, %v6048
  %v6057 = vpack.c.b16 %v6051, %v6050
  %v6058 = vpack.c.b16 %v6053, %v6052
  %v6059 = vpack.c.b16 %v6055, %v6054
  %6060 = vrot.lane.b32.xlu0 %v3800, 64
  %v6061 = vpop.permute.xlu0 %6060
  %6062 = vrot.lane.b32.xlu0 %v3802, 64
  %v6063 = vpop.permute.xlu0 %6062
  %v6067 = vsel %vm3835, %v6056, 0
  %v6070 = vsel %vm3835, %v6057, 0
  %v6073 = vsel %vm3835, %v6058, 0
  %v6076 = vsel %vm3835, %v6059, 0
  %6078 = vmatprep.subr.bf16.mxu0 0
  %6079 = vmatpush1.bf16.msra.mxu0 0
  %6080 = vmatprep.subr.bf16.mxu0 0
  %6081 = vmatpush1.bf16.msra.mxu0 0
  %6082 = vmatprep.subr.bf16.mxu0 0
  %6083 = vmatpush1.bf16.msra.mxu0 0
  %6084 = vmatprep.subr.bf16.mxu0 0
  %6085 = vmatpush1.bf16.msra.mxu0 0
  %6086 = vmatprep.subr.bf16.mxu0 0
  %6087 = vmatpush1.bf16.msra.mxu0 0
  %6088 = vmatprep.subr.bf16.mxu0 0
  %6089 = vmatpush1.bf16.msra.mxu0 0
  %6090 = vmatprep.subr.bf16.mxu0 0
  %6091 = vmatpush1.bf16.msra.mxu0 %v6063
  %6092 = vmatprep.subr.bf16.mxu0 0
  %6093 = vmatpush1.bf16.msra.mxu0 %v6061
  %6094 = vmatprep.subr.bf16.mxu0 0
  %6095 = vmatpush2.bf16.msra.mxu0 0
  %6096 = vmatprep.subr.bf16.mxu0 0
  %6097 = vmatpush2.bf16.msra.mxu0 0
  %6098 = vmatprep.subr.bf16.mxu0 0
  %6099 = vmatpush2.bf16.msra.mxu0 0
  %6100 = vmatprep.subr.bf16.mxu0 0
  %6101 = vmatpush2.bf16.msra.mxu0 0
  %6102 = vmatprep.subr.bf16.mxu0 0
  %6103 = vmatpush2.bf16.msra.mxu0 0
  %6104 = vmatprep.subr.bf16.mxu0 0
  %6105 = vmatpush2.bf16.msra.mxu0 0
  %6106 = vmatprep.subr.bf16.mxu0 0
  %6107 = vmatpush2.bf16.msra.mxu0 0
  %6108 = vmatprep.subr.bf16.mxu0 0
  %6109 = vmatpush2.bf16.msra.mxu0 0
  %6110 = vmatprep.mubr.bf16.mxu0 0
  %6111 = vmatmul.mubr.bf16.gmra.mxu0 %v6067
  %v6112 = vpop.f32.mrf.mxu0
  %v6113 = vadd.f32 0.0, %v6112
  %v6114 = vpop.f32.mrf.mxu0
  %v6115 = vpop.f32.mrf.mxu0
  %v6116 = vadd.f32 0.0, %v6115
  %v6117 = vpop.f32.mrf.mxu0
  %6118 = vmatprep.mubr.bf16.mxu0 0
  %6119 = vmatmul.mubr.bf16.gmra.mxu0 %v6070
  %v6120 = vpop.f32.mrf.mxu0
  %v6121 = vadd.f32 0.0, %v6120
  %v6122 = vpop.f32.mrf.mxu0
  %v6123 = vpop.f32.mrf.mxu0
  %v6124 = vadd.f32 0.0, %v6123
  %v6125 = vpop.f32.mrf.mxu0
  %6126 = vmatprep.mubr.bf16.mxu0 0
  %6127 = vmatmul.mubr.bf16.gmra.mxu0 %v6073
  %v6128 = vpop.f32.mrf.mxu0
  %v6129 = vadd.f32 0.0, %v6128
  %v6130 = vpop.f32.mrf.mxu0
  %v6131 = vpop.f32.mrf.mxu0
  %v6132 = vadd.f32 0.0, %v6131
  %v6133 = vpop.f32.mrf.mxu0
  %6134 = vmatprep.mubr.bf16.mxu0 0
  %6135 = vmatmul.mubr.bf16.gmra.mxu0 %v6076
  %v6136 = vpop.f32.mrf.mxu0
  %v6137 = vadd.f32 0.0, %v6136
  %v6138 = vpop.f32.mrf.mxu0
  %v6139 = vpop.f32.mrf.mxu0
  %v6140 = vadd.f32 0.0, %v6139
  %v6141 = vpop.f32.mrf.mxu0
  %6142 = vdwg.mxu0
  %6143 = vrot.lane.b32.xlu0 %v3804, 64
  %v6144 = vpop.permute.xlu0 %6143
  %6145 = vrot.lane.b32.xlu0 %v3806, 64
  %v6146 = vpop.permute.xlu0 %6145
  %6149 = vmatprep.subr.bf16.mxu0 0
  %6150 = vmatpush1.bf16.msra.mxu0 0
  %6151 = vmatprep.subr.bf16.mxu0 0
  %6152 = vmatpush1.bf16.msra.mxu0 0
  %6153 = vmatprep.subr.bf16.mxu0 0
  %6154 = vmatpush1.bf16.msra.mxu0 0
  %6155 = vmatprep.subr.bf16.mxu0 0
  %6156 = vmatpush1.bf16.msra.mxu0 0
  %6157 = vmatprep.subr.bf16.mxu0 0
  %6158 = vmatpush1.bf16.msra.mxu0 0
  %6159 = vmatprep.subr.bf16.mxu0 0
  %6160 = vmatpush1.bf16.msra.mxu0 0
  %6161 = vmatprep.subr.bf16.mxu0 0
  %6162 = vmatpush1.bf16.msra.mxu0 %v6146
  %6163 = vmatprep.subr.bf16.mxu0 0
  %6164 = vmatpush1.bf16.msra.mxu0 %v6144
  %6165 = vmatprep.subr.bf16.mxu0 0
  %6166 = vmatpush2.bf16.msra.mxu0 0
  %6167 = vmatprep.subr.bf16.mxu0 0
  %6168 = vmatpush2.bf16.msra.mxu0 0
  %6169 = vmatprep.subr.bf16.mxu0 0
  %6170 = vmatpush2.bf16.msra.mxu0 0
  %6171 = vmatprep.subr.bf16.mxu0 0
  %6172 = vmatpush2.bf16.msra.mxu0 0
  %6173 = vmatprep.subr.bf16.mxu0 0
  %6174 = vmatpush2.bf16.msra.mxu0 0
  %6175 = vmatprep.subr.bf16.mxu0 0
  %6176 = vmatpush2.bf16.msra.mxu0 0
  %6177 = vmatprep.subr.bf16.mxu0 0
  %6178 = vmatpush2.bf16.msra.mxu0 0
  %6179 = vmatprep.subr.bf16.mxu0 0
  %6180 = vmatpush2.bf16.msra.mxu0 0
  %6181 = vmatprep.mubr.bf16.mxu0 0
  %6182 = vmatmul.mubr.bf16.gmra.mxu0 %v6067
  %v6183 = vpop.f32.mrf.mxu0
  %v6184 = vadd.f32 0.0, %v6183
  %v6185 = vpop.f32.mrf.mxu0
  %v6186 = vpop.f32.mrf.mxu0
  %v6187 = vadd.f32 0.0, %v6186
  %v6188 = vpop.f32.mrf.mxu0
  %6189 = vmatprep.mubr.bf16.mxu0 0
  %6190 = vmatmul.mubr.bf16.gmra.mxu0 %v6070
  %v6191 = vpop.f32.mrf.mxu0
  %v6192 = vadd.f32 0.0, %v6191
  %v6193 = vpop.f32.mrf.mxu0
  %v6194 = vpop.f32.mrf.mxu0
  %v6195 = vadd.f32 0.0, %v6194
  %v6196 = vpop.f32.mrf.mxu0
  %6197 = vmatprep.mubr.bf16.mxu0 0
  %6198 = vmatmul.mubr.bf16.gmra.mxu0 %v6073
  %v6199 = vpop.f32.mrf.mxu0
  %v6200 = vadd.f32 0.0, %v6199
  %v6201 = vpop.f32.mrf.mxu0
  %v6202 = vpop.f32.mrf.mxu0
  %v6203 = vadd.f32 0.0, %v6202
  %v6204 = vpop.f32.mrf.mxu0
  %6205 = vmatprep.mubr.bf16.mxu0 0
  %6206 = vmatmul.mubr.bf16.gmra.mxu0 %v6076
  %v6207 = vpop.f32.mrf.mxu0
  %v6208 = vadd.f32 0.0, %v6207
  %v6209 = vpop.f32.mrf.mxu0
  %v6210 = vpop.f32.mrf.mxu0
  %v6211 = vadd.f32 0.0, %v6210
  %v6212 = vpop.f32.mrf.mxu0
  %6213 = vdwg.mxu0
  %v6214 = vadd.f32 %v6024, %v6113
  %v6215 = vadd.f32 %v6025, %v6116
  %v6216 = vadd.f32 %v6026, %v6121
  %v6217 = vadd.f32 %v6027, %v6124
  %v6218 = vadd.f32 %v6028, %v6129
  %v6219 = vadd.f32 %v6029, %v6132
  %v6220 = vadd.f32 %v6030, %v6137
  %v6221 = vadd.f32 %v6031, %v6140
  %v6222 = vadd.f32 %v6032, %v6184
  %v6223 = vadd.f32 %v6033, %v6187
  %v6224 = vadd.f32 %v6034, %v6192
  %v6225 = vadd.f32 %v6035, %v6195
  %v6226 = vadd.f32 %v6036, %v6200
  %v6227 = vadd.f32 %v6037, %v6203
  %v6228 = vadd.f32 %v6038, %v6208
  %v6229 = vadd.f32 %v6039, %v6211
  %v6238 = vunpack.c.l.b16 %v3650
  %v6239 = vunpack.c.l.b16 %v3651
  %v6240 = vunpack.c.l.b16 %v3652
  %v6241 = vunpack.c.l.b16 %v3653
  %v6242 = vunpack.c.l.b16 %v3654
  %v6243 = vunpack.c.l.b16 %v3655
  %v6244 = vunpack.c.l.b16 %v3656
  %v6245 = vunpack.c.l.b16 %v3657
  %v6246 = vpack.c.b16 %v6239, %v6238
  %v6247 = vpack.c.b16 %v6241, %v6240
  %v6248 = vpack.c.b16 %v6243, %v6242
  %v6249 = vpack.c.b16 %v6245, %v6244
  %6250 = vrot.lane.b32.xlu0 %v3800, 48
  %v6251 = vpop.permute.xlu0 %6250
  %6252 = vrot.lane.b32.xlu0 %v3802, 48
  %v6253 = vpop.permute.xlu0 %6252
  %v6257 = vsel %vm3835, %v6246, 0
  %v6260 = vsel %vm3835, %v6247, 0
  %v6263 = vsel %vm3835, %v6248, 0
  %v6266 = vsel %vm3835, %v6249, 0
  %6268 = vmatprep.subr.bf16.mxu0 0
  %6269 = vmatpush1.bf16.msra.mxu0 0
  %6270 = vmatprep.subr.bf16.mxu0 0
  %6271 = vmatpush1.bf16.msra.mxu0 0
  %6272 = vmatprep.subr.bf16.mxu0 0
  %6273 = vmatpush1.bf16.msra.mxu0 0
  %6274 = vmatprep.subr.bf16.mxu0 0
  %6275 = vmatpush1.bf16.msra.mxu0 0
  %6276 = vmatprep.subr.bf16.mxu0 0
  %6277 = vmatpush1.bf16.msra.mxu0 0
  %6278 = vmatprep.subr.bf16.mxu0 0
  %6279 = vmatpush1.bf16.msra.mxu0 0
  %6280 = vmatprep.subr.bf16.mxu0 0
  %6281 = vmatpush1.bf16.msra.mxu0 %v6253
  %6282 = vmatprep.subr.bf16.mxu0 0
  %6283 = vmatpush1.bf16.msra.mxu0 %v6251
  %6284 = vmatprep.subr.bf16.mxu0 0
  %6285 = vmatpush2.bf16.msra.mxu0 0
  %6286 = vmatprep.subr.bf16.mxu0 0
  %6287 = vmatpush2.bf16.msra.mxu0 0
  %6288 = vmatprep.subr.bf16.mxu0 0
  %6289 = vmatpush2.bf16.msra.mxu0 0
  %6290 = vmatprep.subr.bf16.mxu0 0
  %6291 = vmatpush2.bf16.msra.mxu0 0
  %6292 = vmatprep.subr.bf16.mxu0 0
  %6293 = vmatpush2.bf16.msra.mxu0 0
  %6294 = vmatprep.subr.bf16.mxu0 0
  %6295 = vmatpush2.bf16.msra.mxu0 0
  %6296 = vmatprep.subr.bf16.mxu0 0
  %6297 = vmatpush2.bf16.msra.mxu0 0
  %6298 = vmatprep.subr.bf16.mxu0 0
  %6299 = vmatpush2.bf16.msra.mxu0 0
  %6300 = vmatprep.mubr.bf16.mxu0 0
  %6301 = vmatmul.mubr.bf16.gmra.mxu0 %v6257
  %v6302 = vpop.f32.mrf.mxu0
  %v6303 = vadd.f32 0.0, %v6302
  %v6304 = vpop.f32.mrf.mxu0
  %v6305 = vpop.f32.mrf.mxu0
  %v6306 = vadd.f32 0.0, %v6305
  %v6307 = vpop.f32.mrf.mxu0
  %6308 = vmatprep.mubr.bf16.mxu0 0
  %6309 = vmatmul.mubr.bf16.gmra.mxu0 %v6260
  %v6310 = vpop.f32.mrf.mxu0
  %v6311 = vadd.f32 0.0, %v6310
  %v6312 = vpop.f32.mrf.mxu0
  %v6313 = vpop.f32.mrf.mxu0
  %v6314 = vadd.f32 0.0, %v6313
  %v6315 = vpop.f32.mrf.mxu0
  %6316 = vmatprep.mubr.bf16.mxu0 0
  %6317 = vmatmul.mubr.bf16.gmra.mxu0 %v6263
  %v6318 = vpop.f32.mrf.mxu0
  %v6319 = vadd.f32 0.0, %v6318
  %v6320 = vpop.f32.mrf.mxu0
  %v6321 = vpop.f32.mrf.mxu0
  %v6322 = vadd.f32 0.0, %v6321
  %v6323 = vpop.f32.mrf.mxu0
  %6324 = vmatprep.mubr.bf16.mxu0 0
  %6325 = vmatmul.mubr.bf16.gmra.mxu0 %v6266
  %v6326 = vpop.f32.mrf.mxu0
  %v6327 = vadd.f32 0.0, %v6326
  %v6328 = vpop.f32.mrf.mxu0
  %v6329 = vpop.f32.mrf.mxu0
  %v6330 = vadd.f32 0.0, %v6329
  %v6331 = vpop.f32.mrf.mxu0
  %6332 = vdwg.mxu0
  %6333 = vrot.lane.b32.xlu0 %v3804, 48
  %v6334 = vpop.permute.xlu0 %6333
  %6335 = vrot.lane.b32.xlu0 %v3806, 48
  %v6336 = vpop.permute.xlu0 %6335
  %6339 = vmatprep.subr.bf16.mxu0 0
  %6340 = vmatpush1.bf16.msra.mxu0 0
  %6341 = vmatprep.subr.bf16.mxu0 0
  %6342 = vmatpush1.bf16.msra.mxu0 0
  %6343 = vmatprep.subr.bf16.mxu0 0
  %6344 = vmatpush1.bf16.msra.mxu0 0
  %6345 = vmatprep.subr.bf16.mxu0 0
  %6346 = vmatpush1.bf16.msra.mxu0 0
  %6347 = vmatprep.subr.bf16.mxu0 0
  %6348 = vmatpush1.bf16.msra.mxu0 0
  %6349 = vmatprep.subr.bf16.mxu0 0
  %6350 = vmatpush1.bf16.msra.mxu0 0
  %6351 = vmatprep.subr.bf16.mxu0 0
  %6352 = vmatpush1.bf16.msra.mxu0 %v6336
  %6353 = vmatprep.subr.bf16.mxu0 0
  %6354 = vmatpush1.bf16.msra.mxu0 %v6334
  %6355 = vmatprep.subr.bf16.mxu0 0
  %6356 = vmatpush2.bf16.msra.mxu0 0
  %6357 = vmatprep.subr.bf16.mxu0 0
  %6358 = vmatpush2.bf16.msra.mxu0 0
  %6359 = vmatprep.subr.bf16.mxu0 0
  %6360 = vmatpush2.bf16.msra.mxu0 0
  %6361 = vmatprep.subr.bf16.mxu0 0
  %6362 = vmatpush2.bf16.msra.mxu0 0
  %6363 = vmatprep.subr.bf16.mxu0 0
  %6364 = vmatpush2.bf16.msra.mxu0 0
  %6365 = vmatprep.subr.bf16.mxu0 0
  %6366 = vmatpush2.bf16.msra.mxu0 0
  %6367 = vmatprep.subr.bf16.mxu0 0
  %6368 = vmatpush2.bf16.msra.mxu0 0
  %6369 = vmatprep.subr.bf16.mxu0 0
  %6370 = vmatpush2.bf16.msra.mxu0 0
  %6371 = vmatprep.mubr.bf16.mxu0 0
  %6372 = vmatmul.mubr.bf16.gmra.mxu0 %v6257
  %v6373 = vpop.f32.mrf.mxu0
  %v6374 = vadd.f32 0.0, %v6373
  %v6375 = vpop.f32.mrf.mxu0
  %v6376 = vpop.f32.mrf.mxu0
  %v6377 = vadd.f32 0.0, %v6376
  %v6378 = vpop.f32.mrf.mxu0
  %6379 = vmatprep.mubr.bf16.mxu0 0
  %6380 = vmatmul.mubr.bf16.gmra.mxu0 %v6260
  %v6381 = vpop.f32.mrf.mxu0
  %v6382 = vadd.f32 0.0, %v6381
  %v6383 = vpop.f32.mrf.mxu0
  %v6384 = vpop.f32.mrf.mxu0
  %v6385 = vadd.f32 0.0, %v6384
  %v6386 = vpop.f32.mrf.mxu0
  %6387 = vmatprep.mubr.bf16.mxu0 0
  %6388 = vmatmul.mubr.bf16.gmra.mxu0 %v6263
  %v6389 = vpop.f32.mrf.mxu0
  %v6390 = vadd.f32 0.0, %v6389
  %v6391 = vpop.f32.mrf.mxu0
  %v6392 = vpop.f32.mrf.mxu0
  %v6393 = vadd.f32 0.0, %v6392
  %v6394 = vpop.f32.mrf.mxu0
  %6395 = vmatprep.mubr.bf16.mxu0 0
  %6396 = vmatmul.mubr.bf16.gmra.mxu0 %v6266
  %v6397 = vpop.f32.mrf.mxu0
  %v6398 = vadd.f32 0.0, %v6397
  %v6399 = vpop.f32.mrf.mxu0
  %v6400 = vpop.f32.mrf.mxu0
  %v6401 = vadd.f32 0.0, %v6400
  %v6402 = vpop.f32.mrf.mxu0
  %6403 = vdwg.mxu0
  %v6404 = vadd.f32 %v6214, %v6303
  %v6405 = vadd.f32 %v6215, %v6306
  %v6406 = vadd.f32 %v6216, %v6311
  %v6407 = vadd.f32 %v6217, %v6314
  %v6408 = vadd.f32 %v6218, %v6319
  %v6409 = vadd.f32 %v6219, %v6322
  %v6410 = vadd.f32 %v6220, %v6327
  %v6411 = vadd.f32 %v6221, %v6330
  %v6412 = vadd.f32 %v6222, %v6374
  %v6413 = vadd.f32 %v6223, %v6377
  %v6414 = vadd.f32 %v6224, %v6382
  %v6415 = vadd.f32 %v6225, %v6385
  %v6416 = vadd.f32 %v6226, %v6390
  %v6417 = vadd.f32 %v6227, %v6393
  %v6418 = vadd.f32 %v6228, %v6398
  %v6419 = vadd.f32 %v6229, %v6401
  %v6428 = vunpack.c.l.b16 %v3658
  %v6429 = vunpack.c.l.b16 %v3659
  %v6430 = vunpack.c.l.b16 %v3660
  %v6431 = vunpack.c.l.b16 %v3661
  %v6432 = vunpack.c.l.b16 %v3662
  %v6433 = vunpack.c.l.b16 %v3663
  %v6434 = vunpack.c.l.b16 %v3664
  %v6435 = vunpack.c.l.b16 %v3665
  %v6436 = vpack.c.b16 %v6429, %v6428
  %v6437 = vpack.c.b16 %v6431, %v6430
  %v6438 = vpack.c.b16 %v6433, %v6432
  %v6439 = vpack.c.b16 %v6435, %v6434
  %6440 = vrot.lane.b32.xlu0 %v3800, 32
  %v6441 = vpop.permute.xlu0 %6440
  %6442 = vrot.lane.b32.xlu0 %v3802, 32
  %v6443 = vpop.permute.xlu0 %6442
  %v6447 = vsel %vm3835, %v6436, 0
  %v6450 = vsel %vm3835, %v6437, 0
  %v6453 = vsel %vm3835, %v6438, 0
  %v6456 = vsel %vm3835, %v6439, 0
  %6458 = vmatprep.subr.bf16.mxu0 0
  %6459 = vmatpush1.bf16.msra.mxu0 0
  %6460 = vmatprep.subr.bf16.mxu0 0
  %6461 = vmatpush1.bf16.msra.mxu0 0
  %6462 = vmatprep.subr.bf16.mxu0 0
  %6463 = vmatpush1.bf16.msra.mxu0 0
  %6464 = vmatprep.subr.bf16.mxu0 0
  %6465 = vmatpush1.bf16.msra.mxu0 0
  %6466 = vmatprep.subr.bf16.mxu0 0
  %6467 = vmatpush1.bf16.msra.mxu0 0
  %6468 = vmatprep.subr.bf16.mxu0 0
  %6469 = vmatpush1.bf16.msra.mxu0 0
  %6470 = vmatprep.subr.bf16.mxu0 0
  %6471 = vmatpush1.bf16.msra.mxu0 %v6443
  %6472 = vmatprep.subr.bf16.mxu0 0
  %6473 = vmatpush1.bf16.msra.mxu0 %v6441
  %6474 = vmatprep.subr.bf16.mxu0 0
  %6475 = vmatpush2.bf16.msra.mxu0 0
  %6476 = vmatprep.subr.bf16.mxu0 0
  %6477 = vmatpush2.bf16.msra.mxu0 0
  %6478 = vmatprep.subr.bf16.mxu0 0
  %6479 = vmatpush2.bf16.msra.mxu0 0
  %6480 = vmatprep.subr.bf16.mxu0 0
  %6481 = vmatpush2.bf16.msra.mxu0 0
  %6482 = vmatprep.subr.bf16.mxu0 0
  %6483 = vmatpush2.bf16.msra.mxu0 0
  %6484 = vmatprep.subr.bf16.mxu0 0
  %6485 = vmatpush2.bf16.msra.mxu0 0
  %6486 = vmatprep.subr.bf16.mxu0 0
  %6487 = vmatpush2.bf16.msra.mxu0 0
  %6488 = vmatprep.subr.bf16.mxu0 0
  %6489 = vmatpush2.bf16.msra.mxu0 0
  %6490 = vmatprep.mubr.bf16.mxu0 0
  %6491 = vmatmul.mubr.bf16.gmra.mxu0 %v6447
  %v6492 = vpop.f32.mrf.mxu0
  %v6493 = vadd.f32 0.0, %v6492
  %v6494 = vpop.f32.mrf.mxu0
  %v6495 = vpop.f32.mrf.mxu0
  %v6496 = vadd.f32 0.0, %v6495
  %v6497 = vpop.f32.mrf.mxu0
  %6498 = vmatprep.mubr.bf16.mxu0 0
  %6499 = vmatmul.mubr.bf16.gmra.mxu0 %v6450
  %v6500 = vpop.f32.mrf.mxu0
  %v6501 = vadd.f32 0.0, %v6500
  %v6502 = vpop.f32.mrf.mxu0
  %v6503 = vpop.f32.mrf.mxu0
  %v6504 = vadd.f32 0.0, %v6503
  %v6505 = vpop.f32.mrf.mxu0
  %6506 = vmatprep.mubr.bf16.mxu0 0
  %6507 = vmatmul.mubr.bf16.gmra.mxu0 %v6453
  %v6508 = vpop.f32.mrf.mxu0
  %v6509 = vadd.f32 0.0, %v6508
  %v6510 = vpop.f32.mrf.mxu0
  %v6511 = vpop.f32.mrf.mxu0
  %v6512 = vadd.f32 0.0, %v6511
  %v6513 = vpop.f32.mrf.mxu0
  %6514 = vmatprep.mubr.bf16.mxu0 0
  %6515 = vmatmul.mubr.bf16.gmra.mxu0 %v6456
  %v6516 = vpop.f32.mrf.mxu0
  %v6517 = vadd.f32 0.0, %v6516
  %v6518 = vpop.f32.mrf.mxu0
  %v6519 = vpop.f32.mrf.mxu0
  %v6520 = vadd.f32 0.0, %v6519
  %v6521 = vpop.f32.mrf.mxu0
  %6522 = vdwg.mxu0
  %6523 = vrot.lane.b32.xlu0 %v3804, 32
  %v6524 = vpop.permute.xlu0 %6523
  %6525 = vrot.lane.b32.xlu0 %v3806, 32
  %v6526 = vpop.permute.xlu0 %6525
  %6529 = vmatprep.subr.bf16.mxu0 0
  %6530 = vmatpush1.bf16.msra.mxu0 0
  %6531 = vmatprep.subr.bf16.mxu0 0
  %6532 = vmatpush1.bf16.msra.mxu0 0
  %6533 = vmatprep.subr.bf16.mxu0 0
  %6534 = vmatpush1.bf16.msra.mxu0 0
  %6535 = vmatprep.subr.bf16.mxu0 0
  %6536 = vmatpush1.bf16.msra.mxu0 0
  %6537 = vmatprep.subr.bf16.mxu0 0
  %6538 = vmatpush1.bf16.msra.mxu0 0
  %6539 = vmatprep.subr.bf16.mxu0 0
  %6540 = vmatpush1.bf16.msra.mxu0 0
  %6541 = vmatprep.subr.bf16.mxu0 0
  %6542 = vmatpush1.bf16.msra.mxu0 %v6526
  %6543 = vmatprep.subr.bf16.mxu0 0
  %6544 = vmatpush1.bf16.msra.mxu0 %v6524
  %6545 = vmatprep.subr.bf16.mxu0 0
  %6546 = vmatpush2.bf16.msra.mxu0 0
  %6547 = vmatprep.subr.bf16.mxu0 0
  %6548 = vmatpush2.bf16.msra.mxu0 0
  %6549 = vmatprep.subr.bf16.mxu0 0
  %6550 = vmatpush2.bf16.msra.mxu0 0
  %6551 = vmatprep.subr.bf16.mxu0 0
  %6552 = vmatpush2.bf16.msra.mxu0 0
  %6553 = vmatprep.subr.bf16.mxu0 0
  %6554 = vmatpush2.bf16.msra.mxu0 0
  %6555 = vmatprep.subr.bf16.mxu0 0
  %6556 = vmatpush2.bf16.msra.mxu0 0
  %6557 = vmatprep.subr.bf16.mxu0 0
  %6558 = vmatpush2.bf16.msra.mxu0 0
  %6559 = vmatprep.subr.bf16.mxu0 0
  %6560 = vmatpush2.bf16.msra.mxu0 0
  %6561 = vmatprep.mubr.bf16.mxu0 0
  %6562 = vmatmul.mubr.bf16.gmra.mxu0 %v6447
  %v6563 = vpop.f32.mrf.mxu0
  %v6564 = vadd.f32 0.0, %v6563
  %v6565 = vpop.f32.mrf.mxu0
  %v6566 = vpop.f32.mrf.mxu0
  %v6567 = vadd.f32 0.0, %v6566
  %v6568 = vpop.f32.mrf.mxu0
  %6569 = vmatprep.mubr.bf16.mxu0 0
  %6570 = vmatmul.mubr.bf16.gmra.mxu0 %v6450
  %v6571 = vpop.f32.mrf.mxu0
  %v6572 = vadd.f32 0.0, %v6571
  %v6573 = vpop.f32.mrf.mxu0
  %v6574 = vpop.f32.mrf.mxu0
  %v6575 = vadd.f32 0.0, %v6574
  %v6576 = vpop.f32.mrf.mxu0
  %6577 = vmatprep.mubr.bf16.mxu0 0
  %6578 = vmatmul.mubr.bf16.gmra.mxu0 %v6453
  %v6579 = vpop.f32.mrf.mxu0
  %v6580 = vadd.f32 0.0, %v6579
  %v6581 = vpop.f32.mrf.mxu0
  %v6582 = vpop.f32.mrf.mxu0
  %v6583 = vadd.f32 0.0, %v6582
  %v6584 = vpop.f32.mrf.mxu0
  %6585 = vmatprep.mubr.bf16.mxu0 0
  %6586 = vmatmul.mubr.bf16.gmra.mxu0 %v6456
  %v6587 = vpop.f32.mrf.mxu0
  %v6588 = vadd.f32 0.0, %v6587
  %v6589 = vpop.f32.mrf.mxu0
  %v6590 = vpop.f32.mrf.mxu0
  %v6591 = vadd.f32 0.0, %v6590
  %v6592 = vpop.f32.mrf.mxu0
  %6593 = vdwg.mxu0
  %v6594 = vadd.f32 %v6404, %v6493
  %v6595 = vadd.f32 %v6405, %v6496
  %v6596 = vadd.f32 %v6406, %v6501
  %v6597 = vadd.f32 %v6407, %v6504
  %v6598 = vadd.f32 %v6408, %v6509
  %v6599 = vadd.f32 %v6409, %v6512
  %v6600 = vadd.f32 %v6410, %v6517
  %v6601 = vadd.f32 %v6411, %v6520
  %v6602 = vadd.f32 %v6412, %v6564
  %v6603 = vadd.f32 %v6413, %v6567
  %v6604 = vadd.f32 %v6414, %v6572
  %v6605 = vadd.f32 %v6415, %v6575
  %v6606 = vadd.f32 %v6416, %v6580
  %v6607 = vadd.f32 %v6417, %v6583
  %v6608 = vadd.f32 %v6418, %v6588
  %v6609 = vadd.f32 %v6419, %v6591
  %v6618 = vunpack.c.l.b16 %v3666
  %v6619 = vunpack.c.l.b16 %v3667
  %v6620 = vunpack.c.l.b16 %v3668
  %v6621 = vunpack.c.l.b16 %v3669
  %v6622 = vunpack.c.l.b16 %v3670
  %v6623 = vunpack.c.l.b16 %v3671
  %v6624 = vunpack.c.l.b16 %v3672
  %v6625 = vunpack.c.l.b16 %v3673
  %v6626 = vpack.c.b16 %v6619, %v6618
  %v6627 = vpack.c.b16 %v6621, %v6620
  %v6628 = vpack.c.b16 %v6623, %v6622
  %v6629 = vpack.c.b16 %v6625, %v6624
  %6630 = vrot.lane.b32.xlu0 %v3800, 16
  %v6631 = vpop.permute.xlu0 %6630
  %6632 = vrot.lane.b32.xlu0 %v3802, 16
  %v6633 = vpop.permute.xlu0 %6632
  %v6637 = vsel %vm3835, %v6626, 0
  %v6640 = vsel %vm3835, %v6627, 0
  %v6643 = vsel %vm3835, %v6628, 0
  %v6646 = vsel %vm3835, %v6629, 0
  %6648 = vmatprep.subr.bf16.mxu0 0
  %6649 = vmatpush1.bf16.msra.mxu0 0
  %6650 = vmatprep.subr.bf16.mxu0 0
  %6651 = vmatpush1.bf16.msra.mxu0 0
  %6652 = vmatprep.subr.bf16.mxu0 0
  %6653 = vmatpush1.bf16.msra.mxu0 0
  %6654 = vmatprep.subr.bf16.mxu0 0
  %6655 = vmatpush1.bf16.msra.mxu0 0
  %6656 = vmatprep.subr.bf16.mxu0 0
  %6657 = vmatpush1.bf16.msra.mxu0 0
  %6658 = vmatprep.subr.bf16.mxu0 0
  %6659 = vmatpush1.bf16.msra.mxu0 0
  %6660 = vmatprep.subr.bf16.mxu0 0
  %6661 = vmatpush1.bf16.msra.mxu0 %v6633
  %6662 = vmatprep.subr.bf16.mxu0 0
  %6663 = vmatpush1.bf16.msra.mxu0 %v6631
  %6664 = vmatprep.subr.bf16.mxu0 0
  %6665 = vmatpush2.bf16.msra.mxu0 0
  %6666 = vmatprep.subr.bf16.mxu0 0
  %6667 = vmatpush2.bf16.msra.mxu0 0
  %6668 = vmatprep.subr.bf16.mxu0 0
  %6669 = vmatpush2.bf16.msra.mxu0 0
  %6670 = vmatprep.subr.bf16.mxu0 0
  %6671 = vmatpush2.bf16.msra.mxu0 0
  %6672 = vmatprep.subr.bf16.mxu0 0
  %6673 = vmatpush2.bf16.msra.mxu0 0
  %6674 = vmatprep.subr.bf16.mxu0 0
  %6675 = vmatpush2.bf16.msra.mxu0 0
  %6676 = vmatprep.subr.bf16.mxu0 0
  %6677 = vmatpush2.bf16.msra.mxu0 0
  %6678 = vmatprep.subr.bf16.mxu0 0
  %6679 = vmatpush2.bf16.msra.mxu0 0
  %6680 = vmatprep.mubr.bf16.mxu0 0
  %6681 = vmatmul.mubr.bf16.gmra.mxu0 %v6637
  %v6682 = vpop.f32.mrf.mxu0
  %v6683 = vadd.f32 0.0, %v6682
  %v6684 = vpop.f32.mrf.mxu0
  %v6685 = vpop.f32.mrf.mxu0
  %v6686 = vadd.f32 0.0, %v6685
  %v6687 = vpop.f32.mrf.mxu0
  %6688 = vmatprep.mubr.bf16.mxu0 0
  %6689 = vmatmul.mubr.bf16.gmra.mxu0 %v6640
  %v6690 = vpop.f32.mrf.mxu0
  %v6691 = vadd.f32 0.0, %v6690
  %v6692 = vpop.f32.mrf.mxu0
  %v6693 = vpop.f32.mrf.mxu0
  %v6694 = vadd.f32 0.0, %v6693
  %v6695 = vpop.f32.mrf.mxu0
  %6696 = vmatprep.mubr.bf16.mxu0 0
  %6697 = vmatmul.mubr.bf16.gmra.mxu0 %v6643
  %v6698 = vpop.f32.mrf.mxu0
  %v6699 = vadd.f32 0.0, %v6698
  %v6700 = vpop.f32.mrf.mxu0
  %v6701 = vpop.f32.mrf.mxu0
  %v6702 = vadd.f32 0.0, %v6701
  %v6703 = vpop.f32.mrf.mxu0
  %6704 = vmatprep.mubr.bf16.mxu0 0
  %6705 = vmatmul.mubr.bf16.gmra.mxu0 %v6646
  %v6706 = vpop.f32.mrf.mxu0
  %v6707 = vadd.f32 0.0, %v6706
  %v6708 = vpop.f32.mrf.mxu0
  %v6709 = vpop.f32.mrf.mxu0
  %v6710 = vadd.f32 0.0, %v6709
  %v6711 = vpop.f32.mrf.mxu0
  %6712 = vdwg.mxu0
  %6713 = vrot.lane.b32.xlu0 %v3804, 16
  %v6714 = vpop.permute.xlu0 %6713
  %6715 = vrot.lane.b32.xlu0 %v3806, 16
  %v6716 = vpop.permute.xlu0 %6715
  %6719 = vmatprep.subr.bf16.mxu0 0
  %6720 = vmatpush1.bf16.msra.mxu0 0
  %6721 = vmatprep.subr.bf16.mxu0 0
  %6722 = vmatpush1.bf16.msra.mxu0 0
  %6723 = vmatprep.subr.bf16.mxu0 0
  %6724 = vmatpush1.bf16.msra.mxu0 0
  %6725 = vmatprep.subr.bf16.mxu0 0
  %6726 = vmatpush1.bf16.msra.mxu0 0
  %6727 = vmatprep.subr.bf16.mxu0 0
  %6728 = vmatpush1.bf16.msra.mxu0 0
  %6729 = vmatprep.subr.bf16.mxu0 0
  %6730 = vmatpush1.bf16.msra.mxu0 0
  %6731 = vmatprep.subr.bf16.mxu0 0
  %6732 = vmatpush1.bf16.msra.mxu0 %v6716
  %6733 = vmatprep.subr.bf16.mxu0 0
  %6734 = vmatpush1.bf16.msra.mxu0 %v6714
  %6735 = vmatprep.subr.bf16.mxu0 0
  %6736 = vmatpush2.bf16.msra.mxu0 0
  %6737 = vmatprep.subr.bf16.mxu0 0
  %6738 = vmatpush2.bf16.msra.mxu0 0
  %6739 = vmatprep.subr.bf16.mxu0 0
  %6740 = vmatpush2.bf16.msra.mxu0 0
  %6741 = vmatprep.subr.bf16.mxu0 0
  %6742 = vmatpush2.bf16.msra.mxu0 0
  %6743 = vmatprep.subr.bf16.mxu0 0
  %6744 = vmatpush2.bf16.msra.mxu0 0
  %6745 = vmatprep.subr.bf16.mxu0 0
  %6746 = vmatpush2.bf16.msra.mxu0 0
  %6747 = vmatprep.subr.bf16.mxu0 0
  %6748 = vmatpush2.bf16.msra.mxu0 0
  %6749 = vmatprep.subr.bf16.mxu0 0
  %6750 = vmatpush2.bf16.msra.mxu0 0
  %6751 = vmatprep.mubr.bf16.mxu0 0
  %6752 = vmatmul.mubr.bf16.gmra.mxu0 %v6637
  %v6753 = vpop.f32.mrf.mxu0
  %v6754 = vadd.f32 0.0, %v6753
  %v6755 = vpop.f32.mrf.mxu0
  %v6756 = vpop.f32.mrf.mxu0
  %v6757 = vadd.f32 0.0, %v6756
  %v6758 = vpop.f32.mrf.mxu0
  %6759 = vmatprep.mubr.bf16.mxu0 0
  %6760 = vmatmul.mubr.bf16.gmra.mxu0 %v6640
  %v6761 = vpop.f32.mrf.mxu0
  %v6762 = vadd.f32 0.0, %v6761
  %v6763 = vpop.f32.mrf.mxu0
  %v6764 = vpop.f32.mrf.mxu0
  %v6765 = vadd.f32 0.0, %v6764
  %v6766 = vpop.f32.mrf.mxu0
  %6767 = vmatprep.mubr.bf16.mxu0 0
  %6768 = vmatmul.mubr.bf16.gmra.mxu0 %v6643
  %v6769 = vpop.f32.mrf.mxu0
  %v6770 = vadd.f32 0.0, %v6769
  %v6771 = vpop.f32.mrf.mxu0
  %v6772 = vpop.f32.mrf.mxu0
  %v6773 = vadd.f32 0.0, %v6772
  %v6774 = vpop.f32.mrf.mxu0
  %6775 = vmatprep.mubr.bf16.mxu0 0
  %6776 = vmatmul.mubr.bf16.gmra.mxu0 %v6646
  %v6777 = vpop.f32.mrf.mxu0
  %v6778 = vadd.f32 0.0, %v6777
  %v6779 = vpop.f32.mrf.mxu0
  %v6780 = vpop.f32.mrf.mxu0
  %v6781 = vadd.f32 0.0, %v6780
  %v6782 = vpop.f32.mrf.mxu0
  %6783 = vdwg.mxu0
  %v6784 = vadd.f32 %v6594, %v6683
  %v6785 = vadd.f32 %v6595, %v6686
  %v6786 = vadd.f32 %v6596, %v6691
  %v6787 = vadd.f32 %v6597, %v6694
  %v6788 = vadd.f32 %v6598, %v6699
  %v6789 = vadd.f32 %v6599, %v6702
  %v6790 = vadd.f32 %v6600, %v6707
  %v6791 = vadd.f32 %v6601, %v6710
  %v6792 = vadd.f32 %v6602, %v6754
  %v6793 = vadd.f32 %v6603, %v6757
  %v6794 = vadd.f32 %v6604, %v6762
  %v6795 = vadd.f32 %v6605, %v6765
  %v6796 = vadd.f32 %v6606, %v6770
  %v6797 = vadd.f32 %v6607, %v6773
  %v6798 = vadd.f32 %v6608, %v6778
  %v6799 = vadd.f32 %v6609, %v6781
  %v6800 = vld [vmem:[%s10] sm:$0xff]
  %v6801 = vld [vmem:[%s10 + $0x8] sm:$0xff]
  %v6802 = vld [vmem:[%s10 + $0x10] sm:$0xff]
  %v6803 = vld [vmem:[%s10 + $0x18] sm:$0xff]
  %v6804 = vld [vmem:[%s10 + $0x20] sm:$0xff]
  %v6805 = vld [vmem:[%s10 + $0x28] sm:$0xff]
  %v6806 = vld [vmem:[%s10 + $0x30] sm:$0xff]
  %v6807 = vld [vmem:[%s10 + $0x38] sm:$0xff]
  %v6808 = vld [vmem:[%s11] sm:$0xff]
  %v6809 = vld [vmem:[%s11 + $0x8] sm:$0xff]
  %v6810 = vld [vmem:[%s11 + $0x10] sm:$0xff]
  %v6811 = vld [vmem:[%s11 + $0x18] sm:$0xff]
  %v6812 = vld [vmem:[%s11 + $0x20] sm:$0xff]
  %v6813 = vld [vmem:[%s11 + $0x28] sm:$0xff]
  %v6814 = vld [vmem:[%s11 + $0x30] sm:$0xff]
  %v6815 = vld [vmem:[%s11 + $0x38] sm:$0xff]
  %v6816 = vsel %vm71, %v6784, 0.0
  %6817 = vadd.xlane.f32.xlu0 %v6816
  %v6818 = vpop.xlane.xlu0 %6817
  %v6819 = vsel %vm71, %v6785, 0.0
  %6820 = vadd.xlane.f32.xlu0 %v6819
  %v6821 = vpop.xlane.xlu0 %6820
  %v6822 = vsel %vm71, %v6786, 0.0
  %6823 = vadd.xlane.f32.xlu0 %v6822
  %v6824 = vpop.xlane.xlu0 %6823
  %v6825 = vsel %vm71, %v6787, 0.0
  %6826 = vadd.xlane.f32.xlu0 %v6825
  %v6827 = vpop.xlane.xlu0 %6826
  %v6828 = vsel %vm71, %v6788, 0.0
  %6829 = vadd.xlane.f32.xlu0 %v6828
  %v6830 = vpop.xlane.xlu0 %6829
  %v6831 = vsel %vm71, %v6789, 0.0
  %6832 = vadd.xlane.f32.xlu0 %v6831
  %v6833 = vpop.xlane.xlu0 %6832
  %v6834 = vsel %vm71, %v6790, 0.0
  %6835 = vadd.xlane.f32.xlu0 %v6834
  %v6836 = vpop.xlane.xlu0 %6835
  %v6837 = vsel %vm71, %v6791, 0.0
  %6838 = vadd.xlane.f32.xlu0 %v6837
  %v6839 = vpop.xlane.xlu0 %6838
  %v6840 = vsel %vm71, %v6792, 0.0
  %6841 = vadd.xlane.f32.xlu0 %v6840
  %v6842 = vpop.xlane.xlu0 %6841
  %v6843 = vsel %vm71, %v6793, 0.0
  %6844 = vadd.xlane.f32.xlu0 %v6843
  %v6845 = vpop.xlane.xlu0 %6844
  %v6846 = vsel %vm71, %v6794, 0.0
  %6847 = vadd.xlane.f32.xlu0 %v6846
  %v6848 = vpop.xlane.xlu0 %6847
  %v6849 = vsel %vm71, %v6795, 0.0
  %6850 = vadd.xlane.f32.xlu0 %v6849
  %v6851 = vpop.xlane.xlu0 %6850
  %v6852 = vsel %vm71, %v6796, 0.0
  %6853 = vadd.xlane.f32.xlu0 %v6852
  %v6854 = vpop.xlane.xlu0 %6853
  %v6855 = vsel %vm71, %v6797, 0.0
  %6856 = vadd.xlane.f32.xlu0 %v6855
  %v6857 = vpop.xlane.xlu0 %6856
  %v6858 = vsel %vm71, %v6798, 0.0
  %6859 = vadd.xlane.f32.xlu0 %v6858
  %v6860 = vpop.xlane.xlu0 %6859
  %v6861 = vsel %vm71, %v6799, 0.0
  %6862 = vadd.xlane.f32.xlu0 %v6861
  %v6863 = vpop.xlane.xlu0 %6862
  %v6864 = vadd.f32 %v6818, %v6842
  %v6865 = vadd.f32 %v6821, %v6845
  %v6866 = vadd.f32 %v6824, %v6848
  %v6867 = vadd.f32 %v6827, %v6851
  %v6868 = vadd.f32 %v6830, %v6854
  %v6869 = vadd.f32 %v6833, %v6857
  %v6870 = vadd.f32 %v6836, %v6860
  %v6871 = vadd.f32 %v6839, %v6863
  %v6872 = vmul.f32 %v6864, 0.03125
  %v6873 = vmul.f32 %v6865, 0.03125
  %v6874 = vmul.f32 %v6866, 0.03125
  %v6875 = vmul.f32 %v6867, 0.03125
  %v6876 = vmul.f32 %v6868, 0.03125
  %v6877 = vmul.f32 %v6869, 0.03125
  %v6878 = vmul.f32 %v6870, 0.03125
  %v6879 = vmul.f32 %v6871, 0.03125
  %v6880 = vsub.f32 %v6784, %v6872
  %v6881 = vsub.f32 %v6785, %v6873
  %v6882 = vsub.f32 %v6786, %v6874
  %v6883 = vsub.f32 %v6787, %v6875
  %v6884 = vsub.f32 %v6788, %v6876
  %v6885 = vsub.f32 %v6789, %v6877
  %v6886 = vsub.f32 %v6790, %v6878
  %v6887 = vsub.f32 %v6791, %v6879
  %v6888 = vsub.f32 %v6792, %v6872
  %v6889 = vsub.f32 %v6793, %v6873
  %v6890 = vsub.f32 %v6794, %v6874
  %v6891 = vsub.f32 %v6795, %v6875
  %v6892 = vsub.f32 %v6796, %v6876
  %v6893 = vsub.f32 %v6797, %v6877
  %v6894 = vsub.f32 %v6798, %v6878
  %v6895 = vsub.f32 %v6799, %v6879
  %v6896 = vmul.f32 %v6880, %v6880
  %v6897 = vmul.f32 %v6881, %v6881
  %v6898 = vmul.f32 %v6882, %v6882
  %v6899 = vmul.f32 %v6883, %v6883
  %v6900 = vmul.f32 %v6884, %v6884
  %v6901 = vmul.f32 %v6885, %v6885
  %v6902 = vmul.f32 %v6886, %v6886
  %v6903 = vmul.f32 %v6887, %v6887
  %v6904 = vmul.f32 %v6888, %v6888
  %v6905 = vmul.f32 %v6889, %v6889
  %v6906 = vmul.f32 %v6890, %v6890
  %v6907 = vmul.f32 %v6891, %v6891
  %v6908 = vmul.f32 %v6892, %v6892
  %v6909 = vmul.f32 %v6893, %v6893
  %v6910 = vmul.f32 %v6894, %v6894
  %v6911 = vmul.f32 %v6895, %v6895
  %v6912 = vsel %vm71, %v6896, 0.0
  %6913 = vadd.xlane.f32.xlu0 %v6912
  %v6914 = vpop.xlane.xlu0 %6913
  %v6915 = vsel %vm71, %v6897, 0.0
  %6916 = vadd.xlane.f32.xlu0 %v6915
  %v6917 = vpop.xlane.xlu0 %6916
  %v6918 = vsel %vm71, %v6898, 0.0
  %6919 = vadd.xlane.f32.xlu0 %v6918
  %v6920 = vpop.xlane.xlu0 %6919
  %v6921 = vsel %vm71, %v6899, 0.0
  %6922 = vadd.xlane.f32.xlu0 %v6921
  %v6923 = vpop.xlane.xlu0 %6922
  %v6924 = vsel %vm71, %v6900, 0.0
  %6925 = vadd.xlane.f32.xlu0 %v6924
  %v6926 = vpop.xlane.xlu0 %6925
  %v6927 = vsel %vm71, %v6901, 0.0
  %6928 = vadd.xlane.f32.xlu0 %v6927
  %v6929 = vpop.xlane.xlu0 %6928
  %v6930 = vsel %vm71, %v6902, 0.0
  %6931 = vadd.xlane.f32.xlu0 %v6930
  %v6932 = vpop.xlane.xlu0 %6931
  %v6933 = vsel %vm71, %v6903, 0.0
  %6934 = vadd.xlane.f32.xlu0 %v6933
  %v6935 = vpop.xlane.xlu0 %6934
  %v6936 = vsel %vm71, %v6904, 0.0
  %6937 = vadd.xlane.f32.xlu0 %v6936
  %v6938 = vpop.xlane.xlu0 %6937
  %v6939 = vsel %vm71, %v6905, 0.0
  %6940 = vadd.xlane.f32.xlu0 %v6939
  %v6941 = vpop.xlane.xlu0 %6940
  %v6942 = vsel %vm71, %v6906, 0.0
  %6943 = vadd.xlane.f32.xlu0 %v6942
  %v6944 = vpop.xlane.xlu0 %6943
  %v6945 = vsel %vm71, %v6907, 0.0
  %6946 = vadd.xlane.f32.xlu0 %v6945
  %v6947 = vpop.xlane.xlu0 %6946
  %v6948 = vsel %vm71, %v6908, 0.0
  %6949 = vadd.xlane.f32.xlu0 %v6948
  %v6950 = vpop.xlane.xlu0 %6949
  %v6951 = vsel %vm71, %v6909, 0.0
  %6952 = vadd.xlane.f32.xlu0 %v6951
  %v6953 = vpop.xlane.xlu0 %6952
  %v6954 = vsel %vm71, %v6910, 0.0
  %6955 = vadd.xlane.f32.xlu0 %v6954
  %v6956 = vpop.xlane.xlu0 %6955
  %v6957 = vsel %vm71, %v6911, 0.0
  %6958 = vadd.xlane.f32.xlu0 %v6957
  %v6959 = vpop.xlane.xlu0 %6958
  %v6960 = vadd.f32 %v6914, %v6938
  %v6961 = vadd.f32 %v6917, %v6941
  %v6962 = vadd.f32 %v6920, %v6944
  %v6963 = vadd.f32 %v6923, %v6947
  %v6964 = vadd.f32 %v6926, %v6950
  %v6965 = vadd.f32 %v6929, %v6953
  %v6966 = vadd.f32 %v6932, %v6956
  %v6967 = vadd.f32 %v6935, %v6959
  %v6968 = vmul.f32 %v6960, 0.03125
  %v6969 = vmul.f32 %v6961, 0.03125
  %v6970 = vmul.f32 %v6962, 0.03125
  %v6971 = vmul.f32 %v6963, 0.03125
  %v6972 = vmul.f32 %v6964, 0.03125
  %v6973 = vmul.f32 %v6965, 0.03125
  %v6974 = vmul.f32 %v6966, 0.03125
  %v6975 = vmul.f32 %v6967, 0.03125
  %v6976 = vadd.f32 %v6968, 1e-05
  %v6977 = vadd.f32 %v6969, 1e-05
  %v6978 = vadd.f32 %v6970, 1e-05
  %v6979 = vadd.f32 %v6971, 1e-05
  %v6980 = vadd.f32 %v6972, 1e-05
  %v6981 = vadd.f32 %v6973, 1e-05
  %v6982 = vadd.f32 %v6974, 1e-05
  %v6983 = vadd.f32 %v6975, 1e-05
  %v6984 = vrsqrt.pop %v6976
  %v6985 = vrsqrt.pop %v6977
  %v6986 = vrsqrt.pop %v6978
  %v6987 = vrsqrt.pop %v6979
  %v6988 = vrsqrt.pop %v6980
  %v6989 = vrsqrt.pop %v6981
  %v6990 = vrsqrt.pop %v6982
  %v6991 = vrsqrt.pop %v6983
  %v6992 = vmul.f32 %v6800, %v6984
  %v6993 = vmul.f32 %v6801, %v6985
  %v6994 = vmul.f32 %v6802, %v6986
  %v6995 = vmul.f32 %v6803, %v6987
  %v6996 = vmul.f32 %v6804, %v6988
  %v6997 = vmul.f32 %v6805, %v6989
  %v6998 = vmul.f32 %v6806, %v6990
  %v6999 = vmul.f32 %v6807, %v6991
  %7001 = vset.pattern.permute.xlu0 0
  %7002 = vperm.xlu0 %7001, %v6992
  %v7003 = vpop.permute.xlu0 %7002
  %7006 = vset.pattern.permute.xlu0 0
  %7007 = vperm.xlu0 %7006, %v6993
  %v7008 = vpop.permute.xlu0 %7007
  %7011 = vset.pattern.permute.xlu0 0
  %7012 = vperm.xlu0 %7011, %v6994
  %v7013 = vpop.permute.xlu0 %7012
  %7016 = vset.pattern.permute.xlu0 0
  %7017 = vperm.xlu0 %7016, %v6995
  %v7018 = vpop.permute.xlu0 %7017
  %7021 = vset.pattern.permute.xlu0 0
  %7022 = vperm.xlu0 %7021, %v6996
  %v7023 = vpop.permute.xlu0 %7022
  %7026 = vset.pattern.permute.xlu0 0
  %7027 = vperm.xlu0 %7026, %v6997
  %v7028 = vpop.permute.xlu0 %7027
  %7031 = vset.pattern.permute.xlu0 0
  %7032 = vperm.xlu0 %7031, %v6998
  %v7033 = vpop.permute.xlu0 %7032
  %7036 = vset.pattern.permute.xlu0 0
  %7037 = vperm.xlu0 %7036, %v6999
  %v7038 = vpop.permute.xlu0 %7037
  %v7040 = vmul.f32 %v6880, %v7003
  %v7041 = vmul.f32 %v6881, %v7008
  %v7042 = vmul.f32 %v6882, %v7013
  %v7043 = vmul.f32 %v6883, %v7018
  %v7044 = vmul.f32 %v6884, %v7023
  %v7045 = vmul.f32 %v6885, %v7028
  %v7046 = vmul.f32 %v6886, %v7033
  %v7047 = vmul.f32 %v6887, %v7038
  %v7048 = vmul.f32 %v6888, %v7003
  %v7049 = vmul.f32 %v6889, %v7008
  %v7050 = vmul.f32 %v6890, %v7013
  %v7051 = vmul.f32 %v6891, %v7018
  %v7052 = vmul.f32 %v6892, %v7023
  %v7053 = vmul.f32 %v6893, %v7028
  %v7054 = vmul.f32 %v6894, %v7033
  %v7055 = vmul.f32 %v6895, %v7038
  %7057 = vset.pattern.permute.xlu0 0
  %7058 = vperm.xlu0 %7057, %v6808
  %v7059 = vpop.permute.xlu0 %7058
  %7062 = vset.pattern.permute.xlu0 0
  %7063 = vperm.xlu0 %7062, %v6809
  %v7064 = vpop.permute.xlu0 %7063
  %7067 = vset.pattern.permute.xlu0 0
  %7068 = vperm.xlu0 %7067, %v6810
  %v7069 = vpop.permute.xlu0 %7068
  %7072 = vset.pattern.permute.xlu0 0
  %7073 = vperm.xlu0 %7072, %v6811
  %v7074 = vpop.permute.xlu0 %7073
  %7077 = vset.pattern.permute.xlu0 0
  %7078 = vperm.xlu0 %7077, %v6812
  %v7079 = vpop.permute.xlu0 %7078
  %7082 = vset.pattern.permute.xlu0 0
  %7083 = vperm.xlu0 %7082, %v6813
  %v7084 = vpop.permute.xlu0 %7083
  %7087 = vset.pattern.permute.xlu0 0
  %7088 = vperm.xlu0 %7087, %v6814
  %v7089 = vpop.permute.xlu0 %7088
  %7092 = vset.pattern.permute.xlu0 0
  %7093 = vperm.xlu0 %7092, %v6815
  %v7094 = vpop.permute.xlu0 %7093
  %v7096 = vadd.f32 %v7040, %v7059
  %v7097 = vadd.f32 %v7041, %v7064
  %v7098 = vadd.f32 %v7042, %v7069
  %v7099 = vadd.f32 %v7043, %v7074
  %v7100 = vadd.f32 %v7044, %v7079
  %v7101 = vadd.f32 %v7045, %v7084
  %v7102 = vadd.f32 %v7046, %v7089
  %v7103 = vadd.f32 %v7047, %v7094
  %v7104 = vadd.f32 %v7048, %v7059
  %v7105 = vadd.f32 %v7049, %v7064
  %v7106 = vadd.f32 %v7050, %v7069
  %v7107 = vadd.f32 %v7051, %v7074
  %v7108 = vadd.f32 %v7052, %v7079
  %v7109 = vadd.f32 %v7053, %v7084
  %v7110 = vadd.f32 %v7054, %v7089
  %v7111 = vadd.f32 %v7055, %v7094
  %vm7112 = vcmp.ge.f32.partialorder %v7096, 0.0
  %vm7113 = vcmp.ge.f32.partialorder %v7097, 0.0
  %vm7114 = vcmp.ge.f32.partialorder %v7098, 0.0
  %vm7115 = vcmp.ge.f32.partialorder %v7099, 0.0
  %vm7116 = vcmp.ge.f32.partialorder %v7100, 0.0
  %vm7117 = vcmp.ge.f32.partialorder %v7101, 0.0
  %vm7118 = vcmp.ge.f32.partialorder %v7102, 0.0
  %vm7119 = vcmp.ge.f32.partialorder %v7103, 0.0
  %vm7120 = vcmp.ge.f32.partialorder %v7104, 0.0
  %vm7121 = vcmp.ge.f32.partialorder %v7105, 0.0
  %vm7122 = vcmp.ge.f32.partialorder %v7106, 0.0
  %vm7123 = vcmp.ge.f32.partialorder %v7107, 0.0
  %vm7124 = vcmp.ge.f32.partialorder %v7108, 0.0
  %vm7125 = vcmp.ge.f32.partialorder %v7109, 0.0
  %vm7126 = vcmp.ge.f32.partialorder %v7110, 0.0
  %vm7127 = vcmp.ge.f32.partialorder %v7111, 0.0
  %v7128 = vmul.f32 %v7096, 0.003
  %v7129 = vmul.f32 %v7097, 0.003
  %v7130 = vmul.f32 %v7098, 0.003
  %v7131 = vmul.f32 %v7099, 0.003
  %v7132 = vmul.f32 %v7100, 0.003
  %v7133 = vmul.f32 %v7101, 0.003
  %v7134 = vmul.f32 %v7102, 0.003
  %v7135 = vmul.f32 %v7103, 0.003
  %v7136 = vmul.f32 %v7104, 0.003
  %v7137 = vmul.f32 %v7105, 0.003
  %v7138 = vmul.f32 %v7106, 0.003
  %v7139 = vmul.f32 %v7107, 0.003
  %v7140 = vmul.f32 %v7108, 0.003
  %v7141 = vmul.f32 %v7109, 0.003
  %v7142 = vmul.f32 %v7110, 0.003
  %v7143 = vmul.f32 %v7111, 0.003
  %v7144 = vsel %vm7112, %v7096, %v7128
  %v7145 = vsel %vm7113, %v7097, %v7129
  %v7146 = vsel %vm7114, %v7098, %v7130
  %v7147 = vsel %vm7115, %v7099, %v7131
  %v7148 = vsel %vm7116, %v7100, %v7132
  %v7149 = vsel %vm7117, %v7101, %v7133
  %v7150 = vsel %vm7118, %v7102, %v7134
  %v7151 = vsel %vm7119, %v7103, %v7135
  %v7152 = vsel %vm7120, %v7104, %v7136
  %v7153 = vsel %vm7121, %v7105, %v7137
  %v7154 = vsel %vm7122, %v7106, %v7138
  %v7155 = vsel %vm7123, %v7107, %v7139
  %v7156 = vsel %vm7124, %v7108, %v7140
  %v7157 = vsel %vm7125, %v7109, %v7141
  %v7158 = vsel %vm7126, %v7110, %v7142
  %v7159 = vsel %vm7127, %v7111, %v7143
  %v7160 = vld [vmem:[%s12] sm:$0xff]
  %v7161 = vld [vmem:[%s12 + $0x8] sm:$0xff]
  %v7162 = vld [vmem:[%s12 + $0x10] sm:$0xff]
  %v7163 = vld [vmem:[%s12 + $0x18] sm:$0xff]
  %v7164 = vld [vmem:[%s12 + $0x20] sm:$0xff]
  %v7165 = vld [vmem:[%s12 + $0x28] sm:$0xff]
  %v7166 = vld [vmem:[%s12 + $0x30] sm:$0xff]
  %v7167 = vld [vmem:[%s12 + $0x38] sm:$0xff]
  %v7168 = vmul.f32 %v7144, %v7160
  %v7169 = vmul.f32 %v7145, %v7161
  %v7170 = vmul.f32 %v7146, %v7162
  %v7171 = vmul.f32 %v7147, %v7163
  %v7172 = vmul.f32 %v7148, %v7164
  %v7173 = vmul.f32 %v7149, %v7165
  %v7174 = vmul.f32 %v7150, %v7166
  %v7175 = vmul.f32 %v7151, %v7167
  %v7176 = vmul.f32 %v7152, %v7160
  %v7177 = vmul.f32 %v7153, %v7161
  %v7178 = vmul.f32 %v7154, %v7162
  %v7179 = vmul.f32 %v7155, %v7163
  %v7180 = vmul.f32 %v7156, %v7164
  %v7181 = vmul.f32 %v7157, %v7165
  %v7182 = vmul.f32 %v7158, %v7166
  %v7183 = vmul.f32 %v7159, %v7167
  %v7184 = vsel %vm71, %v7168, 0.0
  %v7185 = vsel %vm71, %v7169, 0.0
  %v7186 = vadd.f32 %v7184, %v7185
  %v7187 = vsel %vm71, %v7170, 0.0
  %v7188 = vadd.f32 %v7186, %v7187
  %v7189 = vsel %vm71, %v7171, 0.0
  %v7190 = vadd.f32 %v7188, %v7189
  %v7191 = vsel %vm71, %v7172, 0.0
  %v7192 = vadd.f32 %v7190, %v7191
  %v7193 = vsel %vm71, %v7173, 0.0
  %v7194 = vadd.f32 %v7192, %v7193
  %v7195 = vsel %vm71, %v7174, 0.0
  %v7196 = vadd.f32 %v7194, %v7195
  %v7197 = vsel %vm71, %v7175, 0.0
  %v7198 = vadd.f32 %v7196, %v7197
  %v7199 = vrot.slane %v7198, 4
  %v7200 = vadd.f32 %v7198, %v7199
  %v7201 = vrot.slane %v7200, 2
  %v7202 = vadd.f32 %v7200, %v7201
  %v7203 = vrot.slane %v7202, 1
  %v7204 = vadd.f32 %v7202, %v7203
  %v7205 = vsel %vm71, %v7176, 0.0
  %v7206 = vsel %vm71, %v7177, 0.0
  %v7207 = vadd.f32 %v7205, %v7206
  %v7208 = vsel %vm71, %v7178, 0.0
  %v7209 = vadd.f32 %v7207, %v7208
  %v7210 = vsel %vm71, %v7179, 0.0
  %v7211 = vadd.f32 %v7209, %v7210
  %v7212 = vsel %vm71, %v7180, 0.0
  %v7213 = vadd.f32 %v7211, %v7212
  %v7214 = vsel %vm71, %v7181, 0.0
  %v7215 = vadd.f32 %v7213, %v7214
  %v7216 = vsel %vm71, %v7182, 0.0
  %v7217 = vadd.f32 %v7215, %v7216
  %v7218 = vsel %vm71, %v7183, 0.0
  %v7219 = vadd.f32 %v7217, %v7218
  %v7220 = vrot.slane %v7219, 4
  %v7221 = vadd.f32 %v7219, %v7220
  %v7222 = vrot.slane %v7221, 2
  %v7223 = vadd.f32 %v7221, %v7222
  %v7224 = vrot.slane %v7223, 1
  %v7225 = vadd.f32 %v7223, %v7224
  %v7226 = vsel %vm71, %v7204, 0.0
  %7227 = vadd.xlane.f32.xlu0 %v7226
  %v7228 = vpop.xlane.xlu0 %7227
  %v7229 = vsel %vm71, %v7225, 0.0
  %7230 = vadd.xlane.f32.xlu0 %v7229
  %v7231 = vpop.xlane.xlu0 %7230
  %v7232 = vld [vmem:[#allocation2] sm:$0x1]
  %v7233 = vadd.f32 %v7228, %v7232
  %v7234 = vadd.f32 %v7231, %v7232
  %v7235 = vxor.u32 %v7233, 2147483648
  %v7236 = vxor.u32 %v7234, 2147483648
  %v7237 = vmul.f32 %v7235, 1.442695
  %v7238 = vpow.pop %v7237
  %v7239 = vmul.f32 %v7236, 1.442695
  %v7240 = vpow.pop %v7239
  %v7241 = vadd.f32 %v7238, 1.0
  %v7242 = vadd.f32 %v7240, 1.0
  %v7243 = vrcp.pop %v7241
  %v7244 = vmul.f32 1.0, %v7243
  %v7245 = vrcp.pop %v7242
  %v7246 = vmul.f32 1.0, %v7245
  %vm7247 = vcmask 0
  %7248 = vst.msk [vmem:[%s14] sm:$0x1] %vm7247, %v7244
  %7249 = vst.msk [vmem:[%s14 + $0x1] sm:$0x1] %vm7247, %v7246
  // Predicated region
  $region58: #{discriminator_forward.1} parent=0 // pred_check
    _
  $region59: #{discriminator_forward.1} parent=0 // pred_check_branch
    %7251 = sbr.rel (0) target = $region61
  $region60: #{discriminator_forward.1} parent=0 // pred_region
    _
  $region61: #{discriminator_forward.1} parent=0 // pred_fallthru
    _
  // Predicated region
  $region62: #{discriminator_forward.1} parent=0 // pred_check
    _
  $region63: #{discriminator_forward.1} parent=0 // pred_check_branch
    %7253 = sbr.rel (0) target = $region65
  $region64: #{discriminator_forward.1} parent=0 // pred_region
    _
  $region65: #{discriminator_forward.1} parent=0 // pred_fallthru
    _

</llo_original>
